<compile_context>
chip_gen: v7x
topology: tpu7x:2x2x1
jax: 0.10.0
libtpu: 0.0.40
codegen_flags: <defaults>
</compile_context>

<pallas_src>
import jax
import jax.numpy as jnp
import numpy as np
from jax.experimental import pallas as pl
from jax.experimental.pallas import tpu as pltpu


# ----------------------------- Pallas kernels ------------------------------ #
def _conv_mm_kernel(x_ref, w_ref, b_ref, o_ref):
    # x_ref: (OH*OW, K) bf16 patches of one image (batch dim squeezed by BlockSpec)
    # w_ref: (K, Cout) bf16   b_ref: (1, Cout) f32   o_ref: (OH*OW, Cout) bf16
    y = jnp.dot(x_ref[...], w_ref[...], preferred_element_type=jnp.float32)
    y = jnp.maximum(y + b_ref[...], 0.0)        # bias + ReLU epilogue in f32
    o_ref[...] = y.astype(o_ref.dtype)


def _fc_tail_kernel(x_ref, w1_ref, b1_ref, w2_ref, b2_ref, o_ref):
    # Fused fc1 -> ReLU -> fc2 -> L2 row-normalize; all operands VMEM resident.
    h = jnp.dot(x_ref[...], w1_ref[...], preferred_element_type=jnp.float32)
    h = jnp.maximum(h + b1_ref[...], 0.0)       # (M, 128); cols 124..127 are exactly 0
    y = jnp.dot(h.astype(jnp.bfloat16), w2_ref[...],
                preferred_element_type=jnp.float32)
    y = y + b2_ref[...]                         # (M, 64): only real output columns
    k = jnp.sum(y * y, axis=1, keepdims=True)   # norm over the 64 real columns only
    o_ref[...] = y * jax.lax.rsqrt(k + 1e-12)   # eps avoids NaN/Inf on zero rows


# ------------------------------ JAX wrappers -------------------------------- #
def conv2d_nhwc(x, wmat, b, ksize, stride):
    """x: (N,H,W,Cin) bf16; wmat: (Cin*K*K, Cout) bf16; b: (1,Cout) f32 -> (N,OH,OW,Cout) bf16."""
    n = x.shape[0]
    cout = wmat.shape[1]
    # One fused patch-extraction op; output features are channel-major (Cin,KH,KW),
    # identical to PyTorch weight.view(Cout, -1) ordering.
    p = jax.lax.conv_general_dilated_patches(
        x, filter_shape=(ksize, ksize), window_strides=(stride, stride),
        padding="VALID", dimension_numbers=("NHWC", "HWIO", "NHWC"))
    _, oh, ow, k = p.shape
    p = p.reshape(n, oh * ow, k)                 # contiguous merge, free

    y = pl.pallas_call(
        _conv_mm_kernel,
        out_shape=jax.ShapeDtypeStruct((n, oh * ow, cout), jnp.bfloat16),
        grid=(n,),                               # one image per step: >= 2 steps (v7x megacore)
        in_specs=[
            pl.BlockSpec((None, oh * ow, k), lambda i: (i, 0, 0)),  # full-K block, no host pad
            pl.BlockSpec((k, cout), lambda i: (0, 0)),              # grid-invariant weights
            pl.BlockSpec((1, cout), lambda i: (0, 0)),
        ],
        # Deliberate: Cout < 128 output blocks take masked stores, but that avoids
        # 2-8x extra HBM writeback + a re-slice on these small activations.
        out_specs=pl.BlockSpec((None, oh * ow, cout), lambda i: (i, 0, 0)),
        compiler_params=pltpu.CompilerParams(dimension_semantics=("parallel",)),
    )(p, wmat, b)
    return y.reshape(n, oh, ow, cout)


def fc_tail(x, w1, b1, w2, b2):
    """Fused fc1(+ReLU) -> fc2 -> L2-normalize. x: (M, 1024) bf16 -> (M, 64) f32."""
    m, kin = x.shape
    h = w1.shape[1]
    nout = w2.shape[1]
    return pl.pallas_call(
        _fc_tail_kernel,
        out_shape=jax.ShapeDtypeStruct((m, nout), jnp.float32),
        grid=(1,),   # M=2: nothing useful to split across cores for the tail
        in_specs=[
            pl.BlockSpec((m, kin), lambda i: (0, 0)),
            pl.BlockSpec((kin, h), lambda i: (0, 0)),
            pl.BlockSpec((1, h), lambda i: (0, 0)),
            pl.BlockSpec((h, nout), lambda i: (0, 0)),
            pl.BlockSpec((1, nout), lambda i: (0, 0)),
        ],
        out_specs=pl.BlockSpec((m, nout), lambda i: (0, 0)),
    )(x, w1, b1, w2, b2)


def maxpool2(x):
    # 2x2 max pool, stride 2, floor mode (matches F.max_pool2d default), NHWC.
    # TODO(synk): kept as plain JAX glue (cheap reshuffle on small tensors).
    n, hh, ww, c = x.shape
    h2, w2 = hh // 2, ww // 2
    x = x[:, :h2 * 2, :w2 * 2, :].reshape(n, h2, 2, w2, 2, c)
    return jnp.max(x, axis=(2, 4))


# --------------------------- Parameter init / prep -------------------------- #
def _xavier_uniform(key, shape, gain):
    if len(shape) == 4:
        fan_in = shape[1] * shape[2] * shape[3]
        fan_out = shape[0] * shape[2] * shape[3]
    else:
        fan_out, fan_in = shape
    bound = gain * np.sqrt(6.0 / (fan_in + fan_out))
    return jax.random.uniform(key, shape, jnp.float32, -bound, bound)


def init_params(seed=42):
    keys = jax.random.split(jax.random.PRNGKey(seed), 7)
    g = np.sqrt(2.0)
    return {
        "w1": _xavier_uniform(keys[0], (16, 3, 7, 7), g),   "b1": jnp.full((16,), 0.1, jnp.float32),
        "w2": _xavier_uniform(keys[1], (32, 16, 5, 5), g),  "b2": jnp.full((32,), 0.1, jnp.float32),
        "w3": _xavier_uniform(keys[2], (32, 32, 5, 5), g),  "b3": jnp.full((32,), 0.1, jnp.float32),
        "w4": _xavier_uniform(keys[3], (64, 32, 3, 3), g),  "b4": jnp.full((64,), 0.1, jnp.float32),
        "w5": _xavier_uniform(keys[4], (64, 64, 2, 2), g),  "b5": jnp.full((64,), 0.1, jnp.float32),
        "wfc1": _xavier_uniform(keys[5], (124, 1024), g),   "bfc1": jnp.full((124,), 0.1, jnp.float32),
        "wfc2": _xavier_uniform(keys[6], (64, 124), g),     "bfc2": jnp.full((64,), 0.1, jnp.float32),
    }


def prepare_params(p):
    """One-time conversion of PyTorch-layout params into kernel-ready matrices."""
    def conv_w(w):      # (Cout, Cin, KH, KW) -> (Cin*KH*KW, Cout), bf16 operands
        return w.reshape(w.shape[0], -1).T.astype(jnp.bfloat16)

    def row(b):         # (C,) -> (1, C), f32 (epilogue stays f32 on all chips)
        return b.reshape(1, -1).astype(jnp.float32)

    # fc1 columns are in NCHW (C=64,H=4,W=4) flatten order; permute them once to
    # the NHWC flatten order used here so the math matches PyTorch exactly.
    wfc1 = p["wfc1"].reshape(124, 64, 4, 4).transpose(0, 2, 3, 1).reshape(124, 1024)
    w1m = jnp.pad(wfc1.T.astype(jnp.bfloat16), ((0, 0), (0, 4)))      # (1024, 128), lane-dense hidden
    b1m = jnp.pad(row(p["bfc1"]), ((0, 0), (0, 4)))                    # (1, 128), pads are exact zeros
    w2m = jnp.pad(p["wfc2"].T.astype(jnp.bfloat16), ((0, 4), (0, 0)))  # (128, 64), zero rows for pads
    b2m = row(p["bfc2"])
    return {
        "w1": conv_w(p["w1"]), "b1": row(p["b1"]),
        "w2": conv_w(p["w2"]), "b2": row(p["b2"]),
        "w3": conv_w(p["w3"]), "b3": row(p["b3"]),
        "w4": conv_w(p["w4"]), "b4": row(p["b4"]),
        "w5": conv_w(p["w5"]), "b5": row(p["b5"]),
        "wfc1": w1m, "bfc1": b1m, "wfc2": w2m, "bfc2": b2m,
    }


# --------------------------------- Forward ---------------------------------- #
def encoder_s_forward(x, pp):
    x = x.reshape(-1, 3, 112, 112)
    x = jnp.transpose(x, (0, 2, 3, 1)).astype(jnp.bfloat16)          # NCHW -> NHWC once, bf16 acts
    x = maxpool2(conv2d_nhwc(x, pp["w1"], pp["b1"], 7, 2))           # (N,26,26,16)
    x = maxpool2(conv2d_nhwc(x, pp["w2"], pp["b2"], 5, 1))           # (N,11,11,32)
    x = conv2d_nhwc(x, pp["w3"], pp["b3"], 5, 1)                     # (N,7,7,32)
    x = conv2d_nhwc(x, pp["w4"], pp["b4"], 3, 1)                     # (N,5,5,64)
    x = conv2d_nhwc(x, pp["w5"], pp["b5"], 2, 1)                     # (N,4,4,64)
    x = x.reshape(x.shape[0], -1)                                    # (N,1024) NHWC flatten (fc1 permuted to match)
    return fc_tail(x, pp["wfc1"], pp["bfc1"], pp["wfc2"], pp["bfc2"])  # (N,64), unit L2 rows


if __name__ == "__main__":
    params = init_params(seed=42)
    pp = prepare_params(params)
    x = jax.random.normal(jax.random.PRNGKey(0), (2, 3, 112, 112), jnp.float32)

    fwd = jax.jit(encoder_s_forward)
    out = jax.block_until_ready(fwd(x, pp))

    assert out.shape == (2, 64), out.shape
    norms = np.asarray(jnp.sum(out * out, axis=1))
    assert np.allclose(norms, 1.0, atol=1e-3), norms
    assert np.all(np.isfinite(np.asarray(out)))
    print("KERNEL_OK")
</pallas_src>

<mosaic_0001>
module attributes {stable_mosaic.version = 11 : i64} {
  func.func @_conv_mm_kernel(%arg0: i32, %arg1: memref<1x2809x147xbf16, #tpu.memory_space<vmem>>, %arg2: memref<147x16xbf16, #tpu.memory_space<vmem>>, %arg3: memref<1x16xf32, #tpu.memory_space<vmem>>, %arg4: memref<1x2809x16xbf16, #tpu.memory_space<vmem>>) attributes {dimension_semantics = [#tpu.dimension_semantics<parallel>], iteration_bounds = array<i64: 2>, scalar_prefetch = 0 : i64, scratch_operands = 0 : i64, tpu.core_type = #tpu.core_type<tc>, window_params = [{transform_indices = @transform_0, window_bounds = array<i64: 1, 2809, 147>}, {pipeline_mode = #tpu.pipeline_mode<synchronous>, transform_indices = @transform_1, window_bounds = array<i64: 147, 16>}, {pipeline_mode = #tpu.pipeline_mode<synchronous>, transform_indices = @transform_2, window_bounds = array<i64: 1, 16>}, {transform_indices = @transform_3, window_bounds = array<i64: 1, 2809, 16>}]} {
    %c0 = arith.constant 0 : index
    %c0_0 = arith.constant 0 : index
    %c0_1 = arith.constant 0 : index
    %0 = vector.load %arg1[%c0, %c0_0, %c0_1] : memref<1x2809x147xbf16, #tpu.memory_space<vmem>>, vector<1x2809x147xbf16>
    %1 = vector.shape_cast %0 : vector<1x2809x147xbf16> to vector<2809x147xbf16>
    %c0_2 = arith.constant 0 : index
    %c0_3 = arith.constant 0 : index
    %2 = vector.load %arg2[%c0_2, %c0_3] : memref<147x16xbf16, #tpu.memory_space<vmem>>, vector<147x16xbf16>
    %cst = arith.constant dense<0.000000e+00> : vector<2809x16xf32>
    %3 = tpu.matmul %1, %2, %cst {dimension_numbers = #tpu.dot_dimension_numbers<[1], [0], [0], [1], [0, 0, 1, 1], [], []>} : vector<2809x147xbf16>, vector<147x16xbf16>, vector<2809x16xf32> -> vector<2809x16xf32>
    %c0_4 = arith.constant 0 : index
    %c0_5 = arith.constant 0 : index
    %4 = vector.load %arg3[%c0_4, %c0_5] : memref<1x16xf32, #tpu.memory_space<vmem>>, vector<1x16xf32>
    %5 = vector.broadcast %4 : vector<1x16xf32> to vector<2809x16xf32>
    %6 = arith.addf %3, %5 : vector<2809x16xf32>
    %cst_6 = arith.constant 0.000000e+00 : f32
    %7 = vector.broadcast %cst_6 : f32 to vector<2809x16xf32>
    %8 = arith.maximumf %6, %7 : vector<2809x16xf32>
    %9 = arith.truncf %8 : vector<2809x16xf32> to vector<2809x16xbf16>
    %c0_7 = arith.constant 0 : index
    %c0_8 = arith.constant 0 : index
    %c0_9 = arith.constant 0 : index
    %10 = vector.load %arg4[%c0_7, %c0_8, %c0_9] : memref<1x2809x16xbf16, #tpu.memory_space<vmem>>, vector<1x2809x16xbf16>
    %11 = vector.shape_cast %10 : vector<1x2809x16xbf16> to vector<2809x16xbf16>
    %12 = vector.shape_cast %9 : vector<2809x16xbf16> to vector<1x2809x16xbf16>
    tpu.vector_store %arg4[%c0_7, %c0_8, %c0_9], %12 {strides = array<i32>} : memref<1x2809x16xbf16, #tpu.memory_space<vmem>>, vector<1x2809x16xbf16>,
    return
  }
  func.func @transform_0(%arg0: i32) -> (i32, i32, i32) {
    %c0_i32 = arith.constant 0 : i32
    %c0_i32_0 = arith.constant 0 : i32
    %c0_i32_1 = arith.constant 0 : i32
    return %arg0, %c0_i32, %c0_i32_0 : i32, i32, i32
  }
  func.func @transform_1(%arg0: i32) -> (i32, i32) {
    %c0_i32 = arith.constant 0 : i32
    %c0_i32_0 = arith.constant 0 : i32
    %c0_i32_1 = arith.constant 0 : i32
    return %c0_i32, %c0_i32_0 : i32, i32
  }
  func.func @transform_2(%arg0: i32) -> (i32, i32) {
    %c0_i32 = arith.constant 0 : i32
    %c0_i32_0 = arith.constant 0 : i32
    %c0_i32_1 = arith.constant 0 : i32
    return %c0_i32, %c0_i32_0 : i32, i32
  }
  func.func @transform_3(%arg0: i32) -> (i32, i32, i32) {
    %c0_i32 = arith.constant 0 : i32
    %c0_i32_0 = arith.constant 0 : i32
    %c0_i32_1 = arith.constant 0 : i32
    return %arg0, %c0_i32, %c0_i32_0 : i32, i32, i32
  }
}

module attributes {stable_mosaic.version = 11 : i64} {
  func.func @_conv_mm_kernel(%arg0: i32, %arg1: memref<1x484x400xbf16, #tpu.memory_space<vmem>>, %arg2: memref<400x32xbf16, #tpu.memory_space<vmem>>, %arg3: memref<1x32xf32, #tpu.memory_space<vmem>>, %arg4: memref<1x484x32xbf16, #tpu.memory_space<vmem>>) attributes {dimension_semantics = [#tpu.dimension_semantics<parallel>], iteration_bounds = array<i64: 2>, scalar_prefetch = 0 : i64, scratch_operands = 0 : i64, tpu.core_type = #tpu.core_type<tc>, window_params = [{transform_indices = @transform_0, window_bounds = array<i64: 1, 484, 400>}, {pipeline_mode = #tpu.pipeline_mode<synchronous>, transform_indices = @transform_1, window_bounds = array<i64: 400, 32>}, {pipeline_mode = #tpu.pipeline_mode<synchronous>, transform_indices = @transform_2, window_bounds = array<i64: 1, 32>}, {transform_indices = @transform_3, window_bounds = array<i64: 1, 484, 32>}]} {
    %c0 = arith.constant 0 : index
    %c0_0 = arith.constant 0 : index
    %c0_1 = arith.constant 0 : index
    %0 = vector.load %arg1[%c0, %c0_0, %c0_1] : memref<1x484x400xbf16, #tpu.memory_space<vmem>>, vector<1x484x400xbf16>
    %1 = vector.shape_cast %0 : vector<1x484x400xbf16> to vector<484x400xbf16>
    %c0_2 = arith.constant 0 : index
    %c0_3 = arith.constant 0 : index
    %2 = vector.load %arg2[%c0_2, %c0_3] : memref<400x32xbf16, #tpu.memory_space<vmem>>, vector<400x32xbf16>
    %cst = arith.constant dense<0.000000e+00> : vector<484x32xf32>
    %3 = tpu.matmul %1, %2, %cst {dimension_numbers = #tpu.dot_dimension_numbers<[1], [0], [0], [1], [0, 0, 1, 1], [], []>} : vector<484x400xbf16>, vector<400x32xbf16>, vector<484x32xf32> -> vector<484x32xf32>
    %c0_4 = arith.constant 0 : index
    %c0_5 = arith.constant 0 : index
    %4 = vector.load %arg3[%c0_4, %c0_5] : memref<1x32xf32, #tpu.memory_space<vmem>>, vector<1x32xf32>
    %5 = vector.broadcast %4 : vector<1x32xf32> to vector<484x32xf32>
    %6 = arith.addf %3, %5 : vector<484x32xf32>
    %cst_6 = arith.constant 0.000000e+00 : f32
    %7 = vector.broadcast %cst_6 : f32 to vector<484x32xf32>
    %8 = arith.maximumf %6, %7 : vector<484x32xf32>
    %9 = arith.truncf %8 : vector<484x32xf32> to vector<484x32xbf16>
    %c0_7 = arith.constant 0 : index
    %c0_8 = arith.constant 0 : index
    %c0_9 = arith.constant 0 : index
    %10 = vector.load %arg4[%c0_7, %c0_8, %c0_9] : memref<1x484x32xbf16, #tpu.memory_space<vmem>>, vector<1x484x32xbf16>
    %11 = vector.shape_cast %10 : vector<1x484x32xbf16> to vector<484x32xbf16>
    %12 = vector.shape_cast %9 : vector<484x32xbf16> to vector<1x484x32xbf16>
    tpu.vector_store %arg4[%c0_7, %c0_8, %c0_9], %12 {strides = array<i32>} : memref<1x484x32xbf16, #tpu.memory_space<vmem>>, vector<1x484x32xbf16>,
    return
  }
  func.func @transform_0(%arg0: i32) -> (i32, i32, i32) {
    %c0_i32 = arith.constant 0 : i32
    %c0_i32_0 = arith.constant 0 : i32
    %c0_i32_1 = arith.constant 0 : i32
    return %arg0, %c0_i32, %c0_i32_0 : i32, i32, i32
  }
  func.func @transform_1(%arg0: i32) -> (i32, i32) {
    %c0_i32 = arith.constant 0 : i32
    %c0_i32_0 = arith.constant 0 : i32
    %c0_i32_1 = arith.constant 0 : i32
    return %c0_i32, %c0_i32_0 : i32, i32
  }
  func.func @transform_2(%arg0: i32) -> (i32, i32) {
    %c0_i32 = arith.constant 0 : i32
    %c0_i32_0 = arith.constant 0 : i32
    %c0_i32_1 = arith.constant 0 : i32
    return %c0_i32, %c0_i32_0 : i32, i32
  }
  func.func @transform_3(%arg0: i32) -> (i32, i32, i32) {
    %c0_i32 = arith.constant 0 : i32
    %c0_i32_0 = arith.constant 0 : i32
    %c0_i32_1 = arith.constant 0 : i32
    return %arg0, %c0_i32, %c0_i32_0 : i32, i32, i32
  }
}

module attributes {stable_mosaic.version = 11 : i64} {
  func.func @_conv_mm_kernel(%arg0: i32, %arg1: memref<1x49x800xbf16, #tpu.memory_space<vmem>>, %arg2: memref<800x32xbf16, #tpu.memory_space<vmem>>, %arg3: memref<1x32xf32, #tpu.memory_space<vmem>>, %arg4: memref<1x49x32xbf16, #tpu.memory_space<vmem>>) attributes {dimension_semantics = [#tpu.dimension_semantics<parallel>], iteration_bounds = array<i64: 2>, scalar_prefetch = 0 : i64, scratch_operands = 0 : i64, tpu.core_type = #tpu.core_type<tc>, window_params = [{transform_indices = @transform_0, window_bounds = array<i64: 1, 49, 800>}, {pipeline_mode = #tpu.pipeline_mode<synchronous>, transform_indices = @transform_1, window_bounds = array<i64: 800, 32>}, {pipeline_mode = #tpu.pipeline_mode<synchronous>, transform_indices = @transform_2, window_bounds = array<i64: 1, 32>}, {transform_indices = @transform_3, window_bounds = array<i64: 1, 49, 32>}]} {
    %c0 = arith.constant 0 : index
    %c0_0 = arith.constant 0 : index
    %c0_1 = arith.constant 0 : index
    %0 = vector.load %arg1[%c0, %c0_0, %c0_1] : memref<1x49x800xbf16, #tpu.memory_space<vmem>>, vector<1x49x800xbf16>
    %1 = vector.shape_cast %0 : vector<1x49x800xbf16> to vector<49x800xbf16>
    %c0_2 = arith.constant 0 : index
    %c0_3 = arith.constant 0 : index
    %2 = vector.load %arg2[%c0_2, %c0_3] : memref<800x32xbf16, #tpu.memory_space<vmem>>, vector<800x32xbf16>
    %cst = arith.constant dense<0.000000e+00> : vector<49x32xf32>
    %3 = tpu.matmul %1, %2, %cst {dimension_numbers = #tpu.dot_dimension_numbers<[1], [0], [0], [1], [0, 0, 1, 1], [], []>} : vector<49x800xbf16>, vector<800x32xbf16>, vector<49x32xf32> -> vector<49x32xf32>
    %c0_4 = arith.constant 0 : index
    %c0_5 = arith.constant 0 : index
    %4 = vector.load %arg3[%c0_4, %c0_5] : memref<1x32xf32, #tpu.memory_space<vmem>>, vector<1x32xf32>
    %5 = vector.broadcast %4 : vector<1x32xf32> to vector<49x32xf32>
    %6 = arith.addf %3, %5 : vector<49x32xf32>
    %cst_6 = arith.constant 0.000000e+00 : f32
    %7 = vector.broadcast %cst_6 : f32 to vector<49x32xf32>
    %8 = arith.maximumf %6, %7 : vector<49x32xf32>
    %9 = arith.truncf %8 : vector<49x32xf32> to vector<49x32xbf16>
    %c0_7 = arith.constant 0 : index
    %c0_8 = arith.constant 0 : index
    %c0_9 = arith.constant 0 : index
    %10 = vector.load %arg4[%c0_7, %c0_8, %c0_9] : memref<1x49x32xbf16, #tpu.memory_space<vmem>>, vector<1x49x32xbf16>
    %11 = vector.shape_cast %10 : vector<1x49x32xbf16> to vector<49x32xbf16>
    %12 = vector.shape_cast %9 : vector<49x32xbf16> to vector<1x49x32xbf16>
    tpu.vector_store %arg4[%c0_7, %c0_8, %c0_9], %12 {strides = array<i32>} : memref<1x49x32xbf16, #tpu.memory_space<vmem>>, vector<1x49x32xbf16>,
    return
  }
  func.func @transform_0(%arg0: i32) -> (i32, i32, i32) {
    %c0_i32 = arith.constant 0 : i32
    %c0_i32_0 = arith.constant 0 : i32
    %c0_i32_1 = arith.constant 0 : i32
    return %arg0, %c0_i32, %c0_i32_0 : i32, i32, i32
  }
  func.func @transform_1(%arg0: i32) -> (i32, i32) {
    %c0_i32 = arith.constant 0 : i32
    %c0_i32_0 = arith.constant 0 : i32
    %c0_i32_1 = arith.constant 0 : i32
    return %c0_i32, %c0_i32_0 : i32, i32
  }
  func.func @transform_2(%arg0: i32) -> (i32, i32) {
    %c0_i32 = arith.constant 0 : i32
    %c0_i32_0 = arith.constant 0 : i32
    %c0_i32_1 = arith.constant 0 : i32
    return %c0_i32, %c0_i32_0 : i32, i32
  }
  func.func @transform_3(%arg0: i32) -> (i32, i32, i32) {
    %c0_i32 = arith.constant 0 : i32
    %c0_i32_0 = arith.constant 0 : i32
    %c0_i32_1 = arith.constant 0 : i32
    return %arg0, %c0_i32, %c0_i32_0 : i32, i32, i32
  }
}

module attributes {stable_mosaic.version = 11 : i64} {
  func.func @_conv_mm_kernel(%arg0: i32, %arg1: memref<1x25x288xbf16, #tpu.memory_space<vmem>>, %arg2: memref<288x64xbf16, #tpu.memory_space<vmem>>, %arg3: memref<1x64xf32, #tpu.memory_space<vmem>>, %arg4: memref<1x25x64xbf16, #tpu.memory_space<vmem>>) attributes {dimension_semantics = [#tpu.dimension_semantics<parallel>], iteration_bounds = array<i64: 2>, scalar_prefetch = 0 : i64, scratch_operands = 0 : i64, tpu.core_type = #tpu.core_type<tc>, window_params = [{transform_indices = @transform_0, window_bounds = array<i64: 1, 25, 288>}, {pipeline_mode = #tpu.pipeline_mode<synchronous>, transform_indices = @transform_1, window_bounds = array<i64: 288, 64>}, {pipeline_mode = #tpu.pipeline_mode<synchronous>, transform_indices = @transform_2, window_bounds = array<i64: 1, 64>}, {transform_indices = @transform_3, window_bounds = array<i64: 1, 25, 64>}]} {
    %c0 = arith.constant 0 : index
    %c0_0 = arith.constant 0 : index
    %c0_1 = arith.constant 0 : index
    %0 = vector.load %arg1[%c0, %c0_0, %c0_1] : memref<1x25x288xbf16, #tpu.memory_space<vmem>>, vector<1x25x288xbf16>
    %1 = vector.shape_cast %0 : vector<1x25x288xbf16> to vector<25x288xbf16>
    %c0_2 = arith.constant 0 : index
    %c0_3 = arith.constant 0 : index
    %2 = vector.load %arg2[%c0_2, %c0_3] : memref<288x64xbf16, #tpu.memory_space<vmem>>, vector<288x64xbf16>
    %cst = arith.constant dense<0.000000e+00> : vector<25x64xf32>
    %3 = tpu.matmul %1, %2, %cst {dimension_numbers = #tpu.dot_dimension_numbers<[1], [0], [0], [1], [0, 0, 1, 1], [], []>} : vector<25x288xbf16>, vector<288x64xbf16>, vector<25x64xf32> -> vector<25x64xf32>
    %c0_4 = arith.constant 0 : index
    %c0_5 = arith.constant 0 : index
    %4 = vector.load %arg3[%c0_4, %c0_5] : memref<1x64xf32, #tpu.memory_space<vmem>>, vector<1x64xf32>
    %5 = vector.broadcast %4 : vector<1x64xf32> to vector<25x64xf32>
    %6 = arith.addf %3, %5 : vector<25x64xf32>
    %cst_6 = arith.constant 0.000000e+00 : f32
    %7 = vector.broadcast %cst_6 : f32 to vector<25x64xf32>
    %8 = arith.maximumf %6, %7 : vector<25x64xf32>
    %9 = arith.truncf %8 : vector<25x64xf32> to vector<25x64xbf16>
    %c0_7 = arith.constant 0 : index
    %c0_8 = arith.constant 0 : index
    %c0_9 = arith.constant 0 : index
    %10 = vector.load %arg4[%c0_7, %c0_8, %c0_9] : memref<1x25x64xbf16, #tpu.memory_space<vmem>>, vector<1x25x64xbf16>
    %11 = vector.shape_cast %10 : vector<1x25x64xbf16> to vector<25x64xbf16>
    %12 = vector.shape_cast %9 : vector<25x64xbf16> to vector<1x25x64xbf16>
    tpu.vector_store %arg4[%c0_7, %c0_8, %c0_9], %12 {strides = array<i32>} : memref<1x25x64xbf16, #tpu.memory_space<vmem>>, vector<1x25x64xbf16>,
    return
  }
  func.func @transform_0(%arg0: i32) -> (i32, i32, i32) {
    %c0_i32 = arith.constant 0 : i32
    %c0_i32_0 = arith.constant 0 : i32
    %c0_i32_1 = arith.constant 0 : i32
    return %arg0, %c0_i32, %c0_i32_0 : i32, i32, i32
  }
  func.func @transform_1(%arg0: i32) -> (i32, i32) {
    %c0_i32 = arith.constant 0 : i32
    %c0_i32_0 = arith.constant 0 : i32
    %c0_i32_1 = arith.constant 0 : i32
    return %c0_i32, %c0_i32_0 : i32, i32
  }
  func.func @transform_2(%arg0: i32) -> (i32, i32) {
    %c0_i32 = arith.constant 0 : i32
    %c0_i32_0 = arith.constant 0 : i32
    %c0_i32_1 = arith.constant 0 : i32
    return %c0_i32, %c0_i32_0 : i32, i32
  }
  func.func @transform_3(%arg0: i32) -> (i32, i32, i32) {
    %c0_i32 = arith.constant 0 : i32
    %c0_i32_0 = arith.constant 0 : i32
    %c0_i32_1 = arith.constant 0 : i32
    return %arg0, %c0_i32, %c0_i32_0 : i32, i32, i32
  }
}

module attributes {stable_mosaic.version = 11 : i64} {
  func.func @_conv_mm_kernel(%arg0: i32, %arg1: memref<1x16x256xbf16, #tpu.memory_space<vmem>>, %arg2: memref<256x64xbf16, #tpu.memory_space<vmem>>, %arg3: memref<1x64xf32, #tpu.memory_space<vmem>>, %arg4: memref<1x16x64xbf16, #tpu.memory_space<vmem>>) attributes {dimension_semantics = [#tpu.dimension_semantics<parallel>], iteration_bounds = array<i64: 2>, scalar_prefetch = 0 : i64, scratch_operands = 0 : i64, tpu.core_type = #tpu.core_type<tc>, window_params = [{transform_indices = @transform_0, window_bounds = array<i64: 1, 16, 256>}, {pipeline_mode = #tpu.pipeline_mode<synchronous>, transform_indices = @transform_1, window_bounds = array<i64: 256, 64>}, {pipeline_mode = #tpu.pipeline_mode<synchronous>, transform_indices = @transform_2, window_bounds = array<i64: 1, 64>}, {transform_indices = @transform_3, window_bounds = array<i64: 1, 16, 64>}]} {
    %c0 = arith.constant 0 : index
    %c0_0 = arith.constant 0 : index
    %c0_1 = arith.constant 0 : index
    %0 = vector.load %arg1[%c0, %c0_0, %c0_1] : memref<1x16x256xbf16, #tpu.memory_space<vmem>>, vector<1x16x256xbf16>
    %1 = vector.shape_cast %0 : vector<1x16x256xbf16> to vector<16x256xbf16>
    %c0_2 = arith.constant 0 : index
    %c0_3 = arith.constant 0 : index
    %2 = vector.load %arg2[%c0_2, %c0_3] : memref<256x64xbf16, #tpu.memory_space<vmem>>, vector<256x64xbf16>
    %cst = arith.constant dense<0.000000e+00> : vector<16x64xf32>
    %3 = tpu.matmul %1, %2, %cst {dimension_numbers = #tpu.dot_dimension_numbers<[1], [0], [0], [1], [0, 0, 1, 1], [], []>} : vector<16x256xbf16>, vector<256x64xbf16>, vector<16x64xf32> -> vector<16x64xf32>
    %c0_4 = arith.constant 0 : index
    %c0_5 = arith.constant 0 : index
    %4 = vector.load %arg3[%c0_4, %c0_5] : memref<1x64xf32, #tpu.memory_space<vmem>>, vector<1x64xf32>
    %5 = vector.broadcast %4 : vector<1x64xf32> to vector<16x64xf32>
    %6 = arith.addf %3, %5 : vector<16x64xf32>
    %cst_6 = arith.constant 0.000000e+00 : f32
    %7 = vector.broadcast %cst_6 : f32 to vector<16x64xf32>
    %8 = arith.maximumf %6, %7 : vector<16x64xf32>
    %9 = arith.truncf %8 : vector<16x64xf32> to vector<16x64xbf16>
    %c0_7 = arith.constant 0 : index
    %c0_8 = arith.constant 0 : index
    %c0_9 = arith.constant 0 : index
    %10 = vector.load %arg4[%c0_7, %c0_8, %c0_9] : memref<1x16x64xbf16, #tpu.memory_space<vmem>>, vector<1x16x64xbf16>
    %11 = vector.shape_cast %10 : vector<1x16x64xbf16> to vector<16x64xbf16>
    %12 = vector.shape_cast %9 : vector<16x64xbf16> to vector<1x16x64xbf16>
    tpu.vector_store %arg4[%c0_7, %c0_8, %c0_9], %12 {strides = array<i32>} : memref<1x16x64xbf16, #tpu.memory_space<vmem>>, vector<1x16x64xbf16>,
    return
  }
  func.func @transform_0(%arg0: i32) -> (i32, i32, i32) {
    %c0_i32 = arith.constant 0 : i32
    %c0_i32_0 = arith.constant 0 : i32
    %c0_i32_1 = arith.constant 0 : i32
    return %arg0, %c0_i32, %c0_i32_0 : i32, i32, i32
  }
  func.func @transform_1(%arg0: i32) -> (i32, i32) {
    %c0_i32 = arith.constant 0 : i32
    %c0_i32_0 = arith.constant 0 : i32
    %c0_i32_1 = arith.constant 0 : i32
    return %c0_i32, %c0_i32_0 : i32, i32
  }
  func.func @transform_2(%arg0: i32) -> (i32, i32) {
    %c0_i32 = arith.constant 0 : i32
    %c0_i32_0 = arith.constant 0 : i32
    %c0_i32_1 = arith.constant 0 : i32
    return %c0_i32, %c0_i32_0 : i32, i32
  }
  func.func @transform_3(%arg0: i32) -> (i32, i32, i32) {
    %c0_i32 = arith.constant 0 : i32
    %c0_i32_0 = arith.constant 0 : i32
    %c0_i32_1 = arith.constant 0 : i32
    return %arg0, %c0_i32, %c0_i32_0 : i32, i32, i32
  }
}

module attributes {stable_mosaic.version = 11 : i64} {
  func.func @_fc_tail_kernel(%arg0: i32, %arg1: memref<2x1024xbf16, #tpu.memory_space<vmem>>, %arg2: memref<1024x128xbf16, #tpu.memory_space<vmem>>, %arg3: memref<1x128xf32, #tpu.memory_space<vmem>>, %arg4: memref<128x64xbf16, #tpu.memory_space<vmem>>, %arg5: memref<1x64xf32, #tpu.memory_space<vmem>>, %arg6: memref<2x64xf32, #tpu.memory_space<vmem>>) attributes {dimension_semantics = [#tpu.dimension_semantics<arbitrary>], iteration_bounds = array<i64: 1>, scalar_prefetch = 0 : i64, scratch_operands = 0 : i64, tpu.core_type = #tpu.core_type<tc>, window_params = [{pipeline_mode = #tpu.pipeline_mode<synchronous>, transform_indices = @transform_0, window_bounds = array<i64: 2, 1024>}, {pipeline_mode = #tpu.pipeline_mode<synchronous>, transform_indices = @transform_1, window_bounds = array<i64: 1024, 128>}, {pipeline_mode = #tpu.pipeline_mode<synchronous>, transform_indices = @transform_2, window_bounds = array<i64: 1, 128>}, {pipeline_mode = #tpu.pipeline_mode<synchronous>, transform_indices = @transform_3, window_bounds = array<i64: 128, 64>}, {pipeline_mode = #tpu.pipeline_mode<synchronous>, transform_indices = @transform_4, window_bounds = array<i64: 1, 64>}, {pipeline_mode = #tpu.pipeline_mode<synchronous>, transform_indices = @transform_5, window_bounds = array<i64: 2, 64>}]} {
    %c0 = arith.constant 0 : index
    %c0_0 = arith.constant 0 : index
    %0 = vector.load %arg1[%c0, %c0_0] : memref<2x1024xbf16, #tpu.memory_space<vmem>>, vector<2x1024xbf16>
    %c0_1 = arith.constant 0 : index
    %c0_2 = arith.constant 0 : index
    %1 = vector.load %arg2[%c0_1, %c0_2] : memref<1024x128xbf16, #tpu.memory_space<vmem>>, vector<1024x128xbf16>
    %cst = arith.constant dense<0.000000e+00> : vector<2x128xf32>
    %2 = tpu.matmul %0, %1, %cst {dimension_numbers = #tpu.dot_dimension_numbers<[1], [0], [0], [1], [0, 0, 1, 1], [], []>} : vector<2x1024xbf16>, vector<1024x128xbf16>, vector<2x128xf32> -> vector<2x128xf32>
    %c0_3 = arith.constant 0 : index
    %c0_4 = arith.constant 0 : index
    %3 = vector.load %arg3[%c0_3, %c0_4] : memref<1x128xf32, #tpu.memory_space<vmem>>, vector<1x128xf32>
    %4 = vector.broadcast %3 : vector<1x128xf32> to vector<2x128xf32>
    %5 = arith.addf %2, %4 : vector<2x128xf32>
    %cst_5 = arith.constant 0.000000e+00 : f32
    %6 = vector.broadcast %cst_5 : f32 to vector<2x128xf32>
    %7 = arith.maximumf %5, %6 : vector<2x128xf32>
    %8 = arith.truncf %7 : vector<2x128xf32> to vector<2x128xbf16>
    %c0_6 = arith.constant 0 : index
    %c0_7 = arith.constant 0 : index
    %9 = vector.load %arg4[%c0_6, %c0_7] : memref<128x64xbf16, #tpu.memory_space<vmem>>, vector<128x64xbf16>
    %cst_8 = arith.constant dense<0.000000e+00> : vector<2x64xf32>
    %10 = tpu.matmul %8, %9, %cst_8 {dimension_numbers = #tpu.dot_dimension_numbers<[1], [0], [0], [1], [0, 0, 1, 1], [], []>} : vector<2x128xbf16>, vector<128x64xbf16>, vector<2x64xf32> -> vector<2x64xf32>
    %c0_9 = arith.constant 0 : index
    %c0_10 = arith.constant 0 : index
    %11 = vector.load %arg5[%c0_9, %c0_10] : memref<1x64xf32, #tpu.memory_space<vmem>>, vector<1x64xf32>
    %12 = vector.broadcast %11 : vector<1x64xf32> to vector<2x64xf32>
    %13 = arith.addf %10, %12 : vector<2x64xf32>
    %14 = arith.mulf %13, %13 : vector<2x64xf32>
    %cst_11 = arith.constant dense<0.000000e+00> : vector<2xf32>
    %15 = vector.multi_reduction <add>, %14, %cst_11 [1] : vector<2x64xf32> to vector<2xf32>
    %16 = vector.shape_cast %15 : vector<2xf32> to vector<2x1xf32>
    %cst_12 = arith.constant 9.99999996E-13 : f32
    %17 = vector.broadcast %cst_12 : f32 to vector<2x1xf32>
    %18 = arith.addf %16, %17 : vector<2x1xf32>
    %19 = math.rsqrt %18 : vector<2x1xf32>
    %20 = vector.broadcast %19 : vector<2x1xf32> to vector<2x64xf32>
    %21 = arith.mulf %13, %20 : vector<2x64xf32>
    %c0_13 = arith.constant 0 : index
    %c0_14 = arith.constant 0 : index
    %22 = vector.load %arg6[%c0_13, %c0_14] : memref<2x64xf32, #tpu.memory_space<vmem>>, vector<2x64xf32>
    tpu.vector_store %arg6[%c0_13, %c0_14], %21 {strides = array<i32>} : memref<2x64xf32, #tpu.memory_space<vmem>>, vector<2x64xf32>,
    return
  }
  func.func @transform_0(%arg0: i32) -> (i32, i32) {
    %c0_i32 = arith.constant 0 : i32
    %c0_i32_0 = arith.constant 0 : i32
    %c0_i32_1 = arith.constant 0 : i32
    return %c0_i32, %c0_i32_0 : i32, i32
  }
  func.func @transform_1(%arg0: i32) -> (i32, i32) {
    %c0_i32 = arith.constant 0 : i32
    %c0_i32_0 = arith.constant 0 : i32
    %c0_i32_1 = arith.constant 0 : i32
    return %c0_i32, %c0_i32_0 : i32, i32
  }
  func.func @transform_2(%arg0: i32) -> (i32, i32) {
    %c0_i32 = arith.constant 0 : i32
    %c0_i32_0 = arith.constant 0 : i32
    %c0_i32_1 = arith.constant 0 : i32
    return %c0_i32, %c0_i32_0 : i32, i32
  }
  func.func @transform_3(%arg0: i32) -> (i32, i32) {
    %c0_i32 = arith.constant 0 : i32
    %c0_i32_0 = arith.constant 0 : i32
    %c0_i32_1 = arith.constant 0 : i32
    return %c0_i32, %c0_i32_0 : i32, i32
  }
  func.func @transform_4(%arg0: i32) -> (i32, i32) {
    %c0_i32 = arith.constant 0 : i32
    %c0_i32_0 = arith.constant 0 : i32
    %c0_i32_1 = arith.constant 0 : i32
    return %c0_i32, %c0_i32_0 : i32, i32
  }
  func.func @transform_5(%arg0: i32) -> (i32, i32) {
    %c0_i32 = arith.constant 0 : i32
    %c0_i32_0 = arith.constant 0 : i32
    %c0_i32_1 = arith.constant 0 : i32
    return %c0_i32, %c0_i32_0 : i32, i32
  }
}

</mosaic_0001>

<llo_original>
// kernel: encoder_s_forward.6
$region0: #{encoder_s_forward.6}
  #allocation0 [shape = 'u32[]', space=smem, size = 0x4, offset = 0x4, fixed_abs, tag = 'smem constant byte address 0x4 - core index']
  #allocation1 [shape = 'u32[144,128]{1,0:T(1,128)}', space=vmem, size = 0x12000, scoped, tag = 'internal scratch']
  %s0 = inlined_call_operand.vmem [shape: bf16[2,2809,147], index: 0, kind: input, shape index: {}]
  %s1 = inlined_call_operand.vmem [shape: bf16[147,16], index: 1, kind: input, shape index: {}]
  %s2 = inlined_call_operand.vmem [shape: f32[1,16], index: 2, kind: input, shape index: {}]
  %s3 = inlined_call_operand.vmem [shape: bf16[2,2809,16], index: 3, kind: output, shape index: {}]
  %s4 = sld [smem:[#allocation0]]
  $region45: #{encoder_s_forward.6} parent=0
    _
  %s6 = ssub.s32 1, %s4
  %s7 = scalar_select 0, %s6, %s4
  loop: start=0, step=1, limit=4
  $region2: #{encoder_s_forward.6} parent=0 // loop_pre_header
    _
  $region3: #{encoder_s_forward.6} parent=0 // loop_header
    %s9 = sphi 0, %s13
    %p10 = scmp.ge.s32.totalorder %s9, 4
    %s19 = sphi 0, %s21
    %s22 = sphi 0, %s19
    %s23 = sphi 0, %s22
    %s39 = sphi 0, %s23
    %s43 = sphi 0, %s43
    %s45 = sphi 0, %s43
    %s46 = sphi 0, %s45
    %s60 = sphi 0, %s46
    %s64 = sphi 0, %s64
    %s66 = sphi 0, %s64
    %s67 = sphi 0, %s66
    %s81 = sphi 0, %s67
    %s87 = sphi 0, %s89
    %s90 = sphi 0, %s87
    %s91 = sphi 0, %s90
    %s107 = sphi 0, %s91
  $region4: #{encoder_s_forward.6} parent=0 // loop_header_branch
    %12 = sbr.rel (%p10) target = $region8
  $region5: #{encoder_s_forward.6} parent=0 // loop_body
    %s14 = ssub.s32 %s9, 1
    %s15 = ssub.s32 %s9, 2
    %s16 = sadd.s32 %s9, 1
    %s17 = ssub.s32 %s9, %s16
    %p18 = scmp.eq.s32.totalorder %s17, 0
    %s20 = sadd.s32 %s19, 1
    %s21 = scalar_select %p18, %s19, %s20
    %p24 = pneg %p18
    %p25 = scmp.eq.s32.totalorder %s9, 1
    %p26 = por %p24, %p25
    %p27 = scmp.ne.s32.totalorder %s19, %s22
    %p28 = scmp.eq.s32.totalorder %s9, 0
    %p29 = por %p27, %p28
    %p30 = scmp.ne.s32.totalorder %s19, %s22
    %p31 = scmp.eq.s32.totalorder %s14, 1
    %p32 = por %p30, %p31
    %p33 = scmp.ne.s32.totalorder %s22, %s23
    %p34 = scmp.eq.s32.totalorder %s14, 0
    %p35 = por %p33, %p34
    %p36 = scmp.ne.s32.totalorder %s22, %s23
    %p37 = scmp.eq.s32.totalorder %s15, 1
    %p38 = por %p36, %p37
    %p40 = scmp.ne.s32.totalorder %s23, %s39
    %p41 = scmp.eq.s32.totalorder %s15, 0
    %p42 = por %p40, %p41
    %s44 = sadd.s32 %s43, 1
    %p47 = scmp.eq.s32.totalorder %s9, 1
    %p48 = scmp.ne.s32.totalorder %s43, %s45
    %p49 = scmp.eq.s32.totalorder %s9, 0
    %p50 = por %p48, %p49
    %p51 = scmp.ne.s32.totalorder %s43, %s45
    %p52 = scmp.eq.s32.totalorder %s14, 1
    %p53 = por %p51, %p52
    %p54 = scmp.ne.s32.totalorder %s45, %s46
    %p55 = scmp.eq.s32.totalorder %s14, 0
    %p56 = por %p54, %p55
    %p57 = scmp.ne.s32.totalorder %s45, %s46
    %p58 = scmp.eq.s32.totalorder %s15, 1
    %p59 = por %p57, %p58
    %p61 = scmp.ne.s32.totalorder %s46, %s60
    %p62 = scmp.eq.s32.totalorder %s15, 0
    %p63 = por %p61, %p62
    %s65 = sadd.s32 %s64, 1
    %p68 = scmp.eq.s32.totalorder %s9, 1
    %p69 = scmp.ne.s32.totalorder %s64, %s66
    %p70 = scmp.eq.s32.totalorder %s9, 0
    %p71 = por %p69, %p70
    %p72 = scmp.ne.s32.totalorder %s64, %s66
    %p73 = scmp.eq.s32.totalorder %s14, 1
    %p74 = por %p72, %p73
    %p75 = scmp.ne.s32.totalorder %s66, %s67
    %p76 = scmp.eq.s32.totalorder %s14, 0
    %p77 = por %p75, %p76
    %p78 = scmp.ne.s32.totalorder %s66, %s67
    %p79 = scmp.eq.s32.totalorder %s15, 1
    %p80 = por %p78, %p79
    %p82 = scmp.ne.s32.totalorder %s67, %s81
    %p83 = scmp.eq.s32.totalorder %s15, 0
    %p84 = por %p82, %p83
    %s85 = ssub.s32 %s9, %s16
    %p86 = scmp.eq.s32.totalorder %s85, 0
    %s88 = sadd.s32 %s87, 1
    %s89 = scalar_select %p86, %s87, %s88
    %p92 = pneg %p86
    %p93 = scmp.eq.s32.totalorder %s9, 1
    %p94 = por %p92, %p93
    %p95 = scmp.ne.s32.totalorder %s87, %s90
    %p96 = scmp.eq.s32.totalorder %s9, 0
    %p97 = por %p95, %p96
    %p98 = scmp.ne.s32.totalorder %s87, %s90
    %p99 = scmp.eq.s32.totalorder %s14, 1
    %p100 = por %p98, %p99
    %p101 = scmp.ne.s32.totalorder %s90, %s91
    %p102 = scmp.eq.s32.totalorder %s14, 0
    %p103 = por %p101, %p102
    %p104 = scmp.ne.s32.totalorder %s90, %s91
    %p105 = scmp.eq.s32.totalorder %s15, 1
    %p106 = por %p104, %p105
    %p108 = scmp.ne.s32.totalorder %s91, %s107
    %p109 = scmp.eq.s32.totalorder %s15, 0
    %p110 = por %p108, %p109
    %p111 = scmp.le.s32.totalorder 1, %s9
    %p112 = scmp.lt.s32.totalorder %s9, 3
    %p113 = pnand %p111, %p112
    %p114 = pneg %p113
    // Predicated region
    $region9: #{encoder_s_forward.6} parent=5 // pred_check
      _
    $region10: #{encoder_s_forward.6} parent=5 // pred_check_branch
      %116 = sbr.rel (%p113) target = $region12
    $region11: #{encoder_s_forward.6} parent=5 // pred_region
      %s117 = ssub.s32 %s9, 1
      // Predicated region
      $region13: #{encoder_s_forward.6} parent=11 // pred_check
        %p118 = pneg %p56
      $region14: #{encoder_s_forward.6} parent=11 // pred_check_branch
        %120 = sbr.rel (%p118) target = $region16
      $region15: #{encoder_s_forward.6} parent=11 // pred_region
        _
      $region16: #{encoder_s_forward.6} parent=11 // pred_fallthru
        _
      // Predicated region
      $region17: #{encoder_s_forward.6} parent=11 // pred_check
        %p121 = pneg %p77
      $region18: #{encoder_s_forward.6} parent=11 // pred_check_branch
        %123 = sbr.rel (%p121) target = $region20
      $region19: #{encoder_s_forward.6} parent=11 // pred_region
        _
      $region20: #{encoder_s_forward.6} parent=11 // pred_fallthru
        _
    $region12: #{encoder_s_forward.6} parent=5 // pred_fallthru
      _
    %p124 = scmp.lt.s32.totalorder %s9, 2
    // Predicated region
    $region21: #{encoder_s_forward.6} parent=5 // pred_check
      %p125 = pneg %p124
    $region22: #{encoder_s_forward.6} parent=5 // pred_check_branch
      %127 = sbr.rel (%p125) target = $region24
    $region23: #{encoder_s_forward.6} parent=5 // pred_region
      // Predicated region
      $region25: #{encoder_s_forward.6} parent=23 // pred_check
        %p128 = pneg %p29
      $region26: #{encoder_s_forward.6} parent=23 // pred_check_branch
        %130 = sbr.rel (%p128) target = $region28
      $region27: #{encoder_s_forward.6} parent=23 // pred_region
        %p131 = scmp.lt.s32.totalorder %s9, 1
        %s132 = scalar_select %p131, %s9, 1
        %s133 = smul.addr %s132, 704
        %s134 = smul.addr %s133, 4
        %s135 = scalar_lea.vmem %s0, %s134
      $region28: #{encoder_s_forward.6} parent=23 // pred_fallthru
        _
    $region24: #{encoder_s_forward.6} parent=5 // pred_fallthru
      _
    %p136 = scmp.le.s32.totalorder 1, %s9
    %p137 = scmp.lt.s32.totalorder %s9, 3
    %p138 = pnand %p136, %p137
    %p139 = pneg %p138
    // Predicated region
    $region29: #{encoder_s_forward.6} parent=5 // pred_check
      _
    $region30: #{encoder_s_forward.6} parent=5 // pred_check_branch
      %141 = sbr.rel (%p138) target = $region32
    $region31: #{encoder_s_forward.6} parent=5 // pred_region
      %s142 = ssub.s32 %s9, 1
      %p143 = scmp.lt.s32.totalorder %s14, 1
      %s144 = scalar_select %p143, %s14, 1
      %s145 = smul.addr %s144, 704
      %s146 = smul.addr %s145, 4
      %s147 = scalar_lea.vmem %s0, %s146
      %p148 = pneg %p35
      %p149 = pneg %p32
      %p150 = pneg %p56
      %p151 = pneg %p53
      %p152 = pneg %p77
      %p153 = pneg %p74
      %p154 = pneg %p103
      %p155 = pneg %p100
      %p156 = scmp.lt.s32.totalorder %s14, 1
      %s157 = scalar_select %p156, %s14, 1
      %s158 = smul.addr %s157, 352
      %s159 = smul.addr %s158, 4
      %s160 = scalar_lea.vmem %s3, %s159
      %p161 = scmp.lt.s32.totalorder %s14, 1
      %s162 = scalar_select %p161, %s14, 1
      %s163 = smul.addr %s162, 704
      %s164 = smul.addr %s163, 4
      %s165 = scalar_lea.vmem %s0, %s164
      %p166 = scmp.lt.s32.totalorder %s14, 1
      %s167 = scalar_select %p166, %s14, 1
      %s168 = smul.addr %s167, 352
      %s169 = smul.addr %s168, 4
      %s170 = scalar_lea.vmem %s3, %s169
      %v172 = vld [vmem:[%s165] sm:$0xff]
      %v173 = vld [vmem:[%s165 + $0x8] sm:$0xff]
      %v174 = vld [vmem:[%s165 + $0x10] sm:$0xff]
      %v175 = vld [vmem:[%s165 + $0x18] sm:$0xff]
      %v176 = vld [vmem:[%s165 + $0x20] sm:$0xff]
      %v177 = vld [vmem:[%s165 + $0x28] sm:$0xff]
      %v178 = vld [vmem:[%s165 + $0x30] sm:$0xff]
      %v179 = vld [vmem:[%s165 + $0x38] sm:$0xff]
      %v180 = vld [vmem:[%s165 + $0x40] sm:$0xff]
      %v181 = vld [vmem:[%s165 + $0x48] sm:$0xff]
      %v182 = vld [vmem:[%s165 + $0x50] sm:$0xff]
      %v183 = vld [vmem:[%s165 + $0x58] sm:$0xff]
      %v184 = vld [vmem:[%s165 + $0x60] sm:$0xff]
      %v185 = vld [vmem:[%s165 + $0x68] sm:$0xff]
      %v186 = vld [vmem:[%s165 + $0x70] sm:$0xff]
      %v187 = vld [vmem:[%s165 + $0x78] sm:$0xff]
      %v188 = vld [vmem:[%s165 + $0x80] sm:$0xff]
      %v189 = vld [vmem:[%s165 + $0x88] sm:$0xff]
      %v190 = vld [vmem:[%s165 + $0x90] sm:$0xff]
      %v191 = vld [vmem:[%s165 + $0x98] sm:$0xff]
      %v192 = vld [vmem:[%s165 + $0xa0] sm:$0xff]
      %v193 = vld [vmem:[%s165 + $0xa8] sm:$0xff]
      %v194 = vld [vmem:[%s165 + $0xb0] sm:$0xff]
      %v195 = vld [vmem:[%s165 + $0xb8] sm:$0xff]
      %v196 = vld [vmem:[%s165 + $0xc0] sm:$0xff]
      %v197 = vld [vmem:[%s165 + $0xc8] sm:$0xff]
      %v198 = vld [vmem:[%s165 + $0xd0] sm:$0xff]
      %v199 = vld [vmem:[%s165 + $0xd8] sm:$0xff]
      %v200 = vld [vmem:[%s165 + $0xe0] sm:$0xff]
      %v201 = vld [vmem:[%s165 + $0xe8] sm:$0xff]
      %v202 = vld [vmem:[%s165 + $0xf0] sm:$0xff]
      %v203 = vld [vmem:[%s165 + $0xf8] sm:$0xff]
      %v204 = vld [vmem:[%s165 + $0x100] sm:$0xff]
      %v205 = vld [vmem:[%s165 + $0x108] sm:$0xff]
      %v206 = vld [vmem:[%s165 + $0x110] sm:$0xff]
      %v207 = vld [vmem:[%s165 + $0x118] sm:$0xff]
      %v208 = vld [vmem:[%s165 + $0x120] sm:$0xff]
      %v209 = vld [vmem:[%s165 + $0x128] sm:$0xff]
      %v210 = vld [vmem:[%s165 + $0x130] sm:$0xff]
      %v211 = vld [vmem:[%s165 + $0x138] sm:$0xff]
      %v212 = vld [vmem:[%s165 + $0x140] sm:$0xff]
      %v213 = vld [vmem:[%s165 + $0x148] sm:$0xff]
      %v214 = vld [vmem:[%s165 + $0x150] sm:$0xff]
      %v215 = vld [vmem:[%s165 + $0x158] sm:$0xff]
      %v216 = vld [vmem:[%s165 + $0x160] sm:$0xff]
      %v217 = vld [vmem:[%s165 + $0x168] sm:$0xff]
      %v218 = vld [vmem:[%s165 + $0x170] sm:$0xff]
      %v219 = vld [vmem:[%s165 + $0x178] sm:$0xff]
      %v220 = vld [vmem:[%s165 + $0x180] sm:$0xff]
      %v221 = vld [vmem:[%s165 + $0x188] sm:$0xff]
      %v222 = vld [vmem:[%s165 + $0x190] sm:$0xff]
      %v223 = vld [vmem:[%s165 + $0x198] sm:$0xff]
      %v224 = vld [vmem:[%s165 + $0x1a0] sm:$0xff]
      %v225 = vld [vmem:[%s165 + $0x1a8] sm:$0xff]
      %v226 = vld [vmem:[%s165 + $0x1b0] sm:$0xff]
      %v227 = vld [vmem:[%s165 + $0x1b8] sm:$0xff]
      %v228 = vld [vmem:[%s165 + $0x1c0] sm:$0xff]
      %v229 = vld [vmem:[%s165 + $0x1c8] sm:$0xff]
      %v230 = vld [vmem:[%s165 + $0x1d0] sm:$0xff]
      %v231 = vld [vmem:[%s165 + $0x1d8] sm:$0xff]
      %v232 = vld [vmem:[%s165 + $0x1e0] sm:$0xff]
      %v233 = vld [vmem:[%s165 + $0x1e8] sm:$0xff]
      %v234 = vld [vmem:[%s165 + $0x1f0] sm:$0xff]
      %v235 = vld [vmem:[%s165 + $0x1f8] sm:$0xff]
      %v236 = vld [vmem:[%s165 + $0x200] sm:$0xff]
      %v237 = vld [vmem:[%s165 + $0x208] sm:$0xff]
      %v238 = vld [vmem:[%s165 + $0x210] sm:$0xff]
      %v239 = vld [vmem:[%s165 + $0x218] sm:$0xff]
      %v240 = vld [vmem:[%s165 + $0x220] sm:$0xff]
      %v241 = vld [vmem:[%s165 + $0x228] sm:$0xff]
      %v242 = vld [vmem:[%s165 + $0x230] sm:$0xff]
      %v243 = vld [vmem:[%s165 + $0x238] sm:$0xff]
      %v244 = vld [vmem:[%s165 + $0x240] sm:$0xff]
      %v245 = vld [vmem:[%s165 + $0x248] sm:$0xff]
      %v246 = vld [vmem:[%s165 + $0x250] sm:$0xff]
      %v247 = vld [vmem:[%s165 + $0x258] sm:$0xff]
      %v248 = vld [vmem:[%s165 + $0x260] sm:$0xff]
      %v249 = vld [vmem:[%s165 + $0x268] sm:$0xff]
      %v250 = vld [vmem:[%s165 + $0x270] sm:$0xff]
      %v251 = vld [vmem:[%s165 + $0x278] sm:$0xff]
      %v252 = vld [vmem:[%s165 + $0x280] sm:$0xff]
      %v253 = vld [vmem:[%s165 + $0x288] sm:$0xff]
      %v254 = vld [vmem:[%s165 + $0x290] sm:$0xff]
      %v255 = vld [vmem:[%s165 + $0x298] sm:$0xff]
      %v256 = vld [vmem:[%s165 + $0x2a0] sm:$0xff]
      %v257 = vld [vmem:[%s165 + $0x2a8] sm:$0xff]
      %v258 = vld [vmem:[%s165 + $0x2b0] sm:$0xff]
      %v259 = vld [vmem:[%s165 + $0x2b8] sm:$0xff]
      %v260 = vld [vmem:[%s165 + $0x2c0] sm:$0xff]
      %v261 = vld [vmem:[%s165 + $0x2c8] sm:$0xff]
      %v262 = vld [vmem:[%s165 + $0x2d0] sm:$0xff]
      %v263 = vld [vmem:[%s165 + $0x2d8] sm:$0xff]
      %v264 = vld [vmem:[%s165 + $0x2e0] sm:$0xff]
      %v265 = vld [vmem:[%s165 + $0x2e8] sm:$0xff]
      %v266 = vld [vmem:[%s165 + $0x2f0] sm:$0xff]
      %v267 = vld [vmem:[%s165 + $0x2f8] sm:$0xff]
      %v268 = vld [vmem:[%s165 + $0x300] sm:$0xff]
      %v269 = vld [vmem:[%s165 + $0x308] sm:$0xff]
      %v270 = vld [vmem:[%s165 + $0x310] sm:$0xff]
      %v271 = vld [vmem:[%s165 + $0x318] sm:$0xff]
      %v272 = vld [vmem:[%s165 + $0x320] sm:$0xff]
      %v273 = vld [vmem:[%s165 + $0x328] sm:$0xff]
      %v274 = vld [vmem:[%s165 + $0x330] sm:$0xff]
      %v275 = vld [vmem:[%s165 + $0x338] sm:$0xff]
      %v276 = vld [vmem:[%s165 + $0x340] sm:$0xff]
      %v277 = vld [vmem:[%s165 + $0x348] sm:$0xff]
      %v278 = vld [vmem:[%s165 + $0x350] sm:$0xff]
      %v279 = vld [vmem:[%s165 + $0x358] sm:$0xff]
      %v280 = vld [vmem:[%s165 + $0x360] sm:$0xff]
      %v281 = vld [vmem:[%s165 + $0x368] sm:$0xff]
      %v282 = vld [vmem:[%s165 + $0x370] sm:$0xff]
      %v283 = vld [vmem:[%s165 + $0x378] sm:$0xff]
      %v284 = vld [vmem:[%s165 + $0x380] sm:$0xff]
      %v285 = vld [vmem:[%s165 + $0x388] sm:$0xff]
      %v286 = vld [vmem:[%s165 + $0x390] sm:$0xff]
      %v287 = vld [vmem:[%s165 + $0x398] sm:$0xff]
      %v288 = vld [vmem:[%s165 + $0x3a0] sm:$0xff]
      %v289 = vld [vmem:[%s165 + $0x3a8] sm:$0xff]
      %v290 = vld [vmem:[%s165 + $0x3b0] sm:$0xff]
      %v291 = vld [vmem:[%s165 + $0x3b8] sm:$0xff]
      %v292 = vld [vmem:[%s165 + $0x3c0] sm:$0xff]
      %v293 = vld [vmem:[%s165 + $0x3c8] sm:$0xff]
      %v294 = vld [vmem:[%s165 + $0x3d0] sm:$0xff]
      %v295 = vld [vmem:[%s165 + $0x3d8] sm:$0xff]
      %v296 = vld [vmem:[%s165 + $0x3e0] sm:$0xff]
      %v297 = vld [vmem:[%s165 + $0x3e8] sm:$0xff]
      %v298 = vld [vmem:[%s165 + $0x3f0] sm:$0xff]
      %v299 = vld [vmem:[%s165 + $0x3f8] sm:$0xff]
      %v300 = vld [vmem:[%s165 + $0x400] sm:$0xff]
      %v301 = vld [vmem:[%s165 + $0x408] sm:$0xff]
      %v302 = vld [vmem:[%s165 + $0x410] sm:$0xff]
      %v303 = vld [vmem:[%s165 + $0x418] sm:$0xff]
      %v304 = vld [vmem:[%s165 + $0x420] sm:$0xff]
      %v305 = vld [vmem:[%s165 + $0x428] sm:$0xff]
      %v306 = vld [vmem:[%s165 + $0x430] sm:$0xff]
      %v307 = vld [vmem:[%s165 + $0x438] sm:$0xff]
      %v308 = vld [vmem:[%s165 + $0x440] sm:$0xff]
      %v309 = vld [vmem:[%s165 + $0x448] sm:$0xff]
      %v310 = vld [vmem:[%s165 + $0x450] sm:$0xff]
      %v311 = vld [vmem:[%s165 + $0x458] sm:$0xff]
      %v312 = vld [vmem:[%s165 + $0x460] sm:$0xff]
      %v313 = vld [vmem:[%s165 + $0x468] sm:$0xff]
      %v314 = vld [vmem:[%s165 + $0x470] sm:$0xff]
      %v315 = vld [vmem:[%s165 + $0x478] sm:$0xff]
      %v316 = vld [vmem:[%s165 + $0x480] sm:$0xff]
      %v317 = vld [vmem:[%s165 + $0x488] sm:$0xff]
      %v318 = vld [vmem:[%s165 + $0x490] sm:$0xff]
      %v319 = vld [vmem:[%s165 + $0x498] sm:$0xff]
      %v320 = vld [vmem:[%s165 + $0x4a0] sm:$0xff]
      %v321 = vld [vmem:[%s165 + $0x4a8] sm:$0xff]
      %v322 = vld [vmem:[%s165 + $0x4b0] sm:$0xff]
      %v323 = vld [vmem:[%s165 + $0x4b8] sm:$0xff]
      %v324 = vld [vmem:[%s165 + $0x4c0] sm:$0xff]
      %v325 = vld [vmem:[%s165 + $0x4c8] sm:$0xff]
      %v326 = vld [vmem:[%s165 + $0x4d0] sm:$0xff]
      %v327 = vld [vmem:[%s165 + $0x4d8] sm:$0xff]
      %v328 = vld [vmem:[%s165 + $0x4e0] sm:$0xff]
      %v329 = vld [vmem:[%s165 + $0x4e8] sm:$0xff]
      %v330 = vld [vmem:[%s165 + $0x4f0] sm:$0xff]
      %v331 = vld [vmem:[%s165 + $0x4f8] sm:$0xff]
      %v332 = vld [vmem:[%s165 + $0x500] sm:$0xff]
      %v333 = vld [vmem:[%s165 + $0x508] sm:$0xff]
      %v334 = vld [vmem:[%s165 + $0x510] sm:$0xff]
      %v335 = vld [vmem:[%s165 + $0x518] sm:$0xff]
      %v336 = vld [vmem:[%s165 + $0x520] sm:$0xff]
      %v337 = vld [vmem:[%s165 + $0x528] sm:$0xff]
      %v338 = vld [vmem:[%s165 + $0x530] sm:$0xff]
      %v339 = vld [vmem:[%s165 + $0x538] sm:$0xff]
      %v340 = vld [vmem:[%s165 + $0x540] sm:$0xff]
      %v341 = vld [vmem:[%s165 + $0x548] sm:$0xff]
      %v342 = vld [vmem:[%s165 + $0x550] sm:$0xff]
      %v343 = vld [vmem:[%s165 + $0x558] sm:$0xff]
      %v344 = vld [vmem:[%s165 + $0x560] sm:$0xff]
      %v345 = vld [vmem:[%s165 + $0x568] sm:$0xff]
      %v346 = vld [vmem:[%s165 + $0x570] sm:$0xff]
      %v347 = vld [vmem:[%s165 + $0x578] sm:$0xff]
      %v348 = vld [vmem:[%s165 + $0x580] sm:$0xff]
      %v349 = vld [vmem:[%s165 + $0x588] sm:$0xff]
      %v350 = vld [vmem:[%s165 + $0x590] sm:$0xff]
      %v351 = vld [vmem:[%s165 + $0x598] sm:$0xff]
      %v352 = vld [vmem:[%s165 + $0x5a0] sm:$0xff]
      %v353 = vld [vmem:[%s165 + $0x5a8] sm:$0xff]
      %v354 = vld [vmem:[%s165 + $0x5b0] sm:$0xff]
      %v355 = vld [vmem:[%s165 + $0x5b8] sm:$0xff]
      %v356 = vld [vmem:[%s165 + $0x5c0] sm:$0xff]
      %v357 = vld [vmem:[%s165 + $0x5c8] sm:$0xff]
      %v358 = vld [vmem:[%s165 + $0x5d0] sm:$0xff]
      %v359 = vld [vmem:[%s165 + $0x5d8] sm:$0xff]
      %v360 = vld [vmem:[%s165 + $0x5e0] sm:$0xff]
      %v361 = vld [vmem:[%s165 + $0x5e8] sm:$0xff]
      %v362 = vld [vmem:[%s165 + $0x5f0] sm:$0xff]
      %v363 = vld [vmem:[%s165 + $0x5f8] sm:$0xff]
      %v364 = vld [vmem:[%s165 + $0x600] sm:$0xff]
      %v365 = vld [vmem:[%s165 + $0x608] sm:$0xff]
      %v366 = vld [vmem:[%s165 + $0x610] sm:$0xff]
      %v367 = vld [vmem:[%s165 + $0x618] sm:$0xff]
      %v368 = vld [vmem:[%s165 + $0x620] sm:$0xff]
      %v369 = vld [vmem:[%s165 + $0x628] sm:$0xff]
      %v370 = vld [vmem:[%s165 + $0x630] sm:$0xff]
      %v371 = vld [vmem:[%s165 + $0x638] sm:$0xff]
      %v372 = vld [vmem:[%s165 + $0x640] sm:$0xff]
      %v373 = vld [vmem:[%s165 + $0x648] sm:$0xff]
      %v374 = vld [vmem:[%s165 + $0x650] sm:$0xff]
      %v375 = vld [vmem:[%s165 + $0x658] sm:$0xff]
      %v376 = vld [vmem:[%s165 + $0x660] sm:$0xff]
      %v377 = vld [vmem:[%s165 + $0x668] sm:$0xff]
      %v378 = vld [vmem:[%s165 + $0x670] sm:$0xff]
      %v379 = vld [vmem:[%s165 + $0x678] sm:$0xff]
      %v380 = vld [vmem:[%s165 + $0x680] sm:$0xff]
      %v381 = vld [vmem:[%s165 + $0x688] sm:$0xff]
      %v382 = vld [vmem:[%s165 + $0x690] sm:$0xff]
      %v383 = vld [vmem:[%s165 + $0x698] sm:$0xff]
      %v384 = vld [vmem:[%s165 + $0x6a0] sm:$0xff]
      %v385 = vld [vmem:[%s165 + $0x6a8] sm:$0xff]
      %v386 = vld [vmem:[%s165 + $0x6b0] sm:$0xff]
      %v387 = vld [vmem:[%s165 + $0x6b8] sm:$0xff]
      %v388 = vld [vmem:[%s165 + $0x6c0] sm:$0xff]
      %v389 = vld [vmem:[%s165 + $0x6c8] sm:$0xff]
      %v390 = vld [vmem:[%s165 + $0x6d0] sm:$0xff]
      %v391 = vld [vmem:[%s165 + $0x6d8] sm:$0xff]
      %v392 = vld [vmem:[%s165 + $0x6e0] sm:$0xff]
      %v393 = vld [vmem:[%s165 + $0x6e8] sm:$0xff]
      %v394 = vld [vmem:[%s165 + $0x6f0] sm:$0xff]
      %v395 = vld [vmem:[%s165 + $0x6f8] sm:$0xff]
      %v396 = vld [vmem:[%s165 + $0x700] sm:$0xff]
      %v397 = vld [vmem:[%s165 + $0x708] sm:$0xff]
      %v398 = vld [vmem:[%s165 + $0x710] sm:$0xff]
      %v399 = vld [vmem:[%s165 + $0x718] sm:$0xff]
      %v400 = vld [vmem:[%s165 + $0x720] sm:$0xff]
      %v401 = vld [vmem:[%s165 + $0x728] sm:$0xff]
      %v402 = vld [vmem:[%s165 + $0x730] sm:$0xff]
      %v403 = vld [vmem:[%s165 + $0x738] sm:$0xff]
      %v404 = vld [vmem:[%s165 + $0x740] sm:$0xff]
      %v405 = vld [vmem:[%s165 + $0x748] sm:$0xff]
      %v406 = vld [vmem:[%s165 + $0x750] sm:$0xff]
      %v407 = vld [vmem:[%s165 + $0x758] sm:$0xff]
      %v408 = vld [vmem:[%s165 + $0x760] sm:$0xff]
      %v409 = vld [vmem:[%s165 + $0x768] sm:$0xff]
      %v410 = vld [vmem:[%s165 + $0x770] sm:$0xff]
      %v411 = vld [vmem:[%s165 + $0x778] sm:$0xff]
      %v412 = vld [vmem:[%s165 + $0x780] sm:$0xff]
      %v413 = vld [vmem:[%s165 + $0x788] sm:$0xff]
      %v414 = vld [vmem:[%s165 + $0x790] sm:$0xff]
      %v415 = vld [vmem:[%s165 + $0x798] sm:$0xff]
      %v416 = vld [vmem:[%s165 + $0x7a0] sm:$0xff]
      %v417 = vld [vmem:[%s165 + $0x7a8] sm:$0xff]
      %v418 = vld [vmem:[%s165 + $0x7b0] sm:$0xff]
      %v419 = vld [vmem:[%s165 + $0x7b8] sm:$0xff]
      %v420 = vld [vmem:[%s165 + $0x7c0] sm:$0xff]
      %v421 = vld [vmem:[%s165 + $0x7c8] sm:$0xff]
      %v422 = vld [vmem:[%s165 + $0x7d0] sm:$0xff]
      %v423 = vld [vmem:[%s165 + $0x7d8] sm:$0xff]
      %v424 = vld [vmem:[%s165 + $0x7e0] sm:$0xff]
      %v425 = vld [vmem:[%s165 + $0x7e8] sm:$0xff]
      %v426 = vld [vmem:[%s165 + $0x7f0] sm:$0xff]
      %v427 = vld [vmem:[%s165 + $0x7f8] sm:$0xff]
      %v428 = vld [vmem:[%s165 + $0x800] sm:$0xff]
      %v429 = vld [vmem:[%s165 + $0x808] sm:$0xff]
      %v430 = vld [vmem:[%s165 + $0x810] sm:$0xff]
      %v431 = vld [vmem:[%s165 + $0x818] sm:$0xff]
      %v432 = vld [vmem:[%s165 + $0x820] sm:$0xff]
      %v433 = vld [vmem:[%s165 + $0x828] sm:$0xff]
      %v434 = vld [vmem:[%s165 + $0x830] sm:$0xff]
      %v435 = vld [vmem:[%s165 + $0x838] sm:$0xff]
      %v436 = vld [vmem:[%s165 + $0x840] sm:$0xff]
      %v437 = vld [vmem:[%s165 + $0x848] sm:$0xff]
      %v438 = vld [vmem:[%s165 + $0x850] sm:$0xff]
      %v439 = vld [vmem:[%s165 + $0x858] sm:$0xff]
      %v440 = vld [vmem:[%s165 + $0x860] sm:$0xff]
      %v441 = vld [vmem:[%s165 + $0x868] sm:$0xff]
      %v442 = vld [vmem:[%s165 + $0x870] sm:$0xff]
      %v443 = vld [vmem:[%s165 + $0x878] sm:$0xff]
      %v444 = vld [vmem:[%s165 + $0x880] sm:$0xff]
      %v445 = vld [vmem:[%s165 + $0x888] sm:$0xff]
      %v446 = vld [vmem:[%s165 + $0x890] sm:$0xff]
      %v447 = vld [vmem:[%s165 + $0x898] sm:$0xff]
      %v448 = vld [vmem:[%s165 + $0x8a0] sm:$0xff]
      %v449 = vld [vmem:[%s165 + $0x8a8] sm:$0xff]
      %v450 = vld [vmem:[%s165 + $0x8b0] sm:$0xff]
      %v451 = vld [vmem:[%s165 + $0x8b8] sm:$0xff]
      %v452 = vld [vmem:[%s165 + $0x8c0] sm:$0xff]
      %v453 = vld [vmem:[%s165 + $0x8c8] sm:$0xff]
      %v454 = vld [vmem:[%s165 + $0x8d0] sm:$0xff]
      %v455 = vld [vmem:[%s165 + $0x8d8] sm:$0xff]
      %v456 = vld [vmem:[%s165 + $0x8e0] sm:$0xff]
      %v457 = vld [vmem:[%s165 + $0x8e8] sm:$0xff]
      %v458 = vld [vmem:[%s165 + $0x8f0] sm:$0xff]
      %v459 = vld [vmem:[%s165 + $0x8f8] sm:$0xff]
      %v460 = vld [vmem:[%s165 + $0x900] sm:$0xff]
      %v461 = vld [vmem:[%s165 + $0x908] sm:$0xff]
      %v462 = vld [vmem:[%s165 + $0x910] sm:$0xff]
      %v463 = vld [vmem:[%s165 + $0x918] sm:$0xff]
      %v464 = vld [vmem:[%s165 + $0x920] sm:$0xff]
      %v465 = vld [vmem:[%s165 + $0x928] sm:$0xff]
      %v466 = vld [vmem:[%s165 + $0x930] sm:$0xff]
      %v467 = vld [vmem:[%s165 + $0x938] sm:$0xff]
      %v468 = vld [vmem:[%s165 + $0x940] sm:$0xff]
      %v469 = vld [vmem:[%s165 + $0x948] sm:$0xff]
      %v470 = vld [vmem:[%s165 + $0x950] sm:$0xff]
      %v471 = vld [vmem:[%s165 + $0x958] sm:$0xff]
      %v472 = vld [vmem:[%s165 + $0x960] sm:$0xff]
      %v473 = vld [vmem:[%s165 + $0x968] sm:$0xff]
      %v474 = vld [vmem:[%s165 + $0x970] sm:$0xff]
      %v475 = vld [vmem:[%s165 + $0x978] sm:$0xff]
      %v476 = vld [vmem:[%s165 + $0x980] sm:$0xff]
      %v477 = vld [vmem:[%s165 + $0x988] sm:$0xff]
      %v478 = vld [vmem:[%s165 + $0x990] sm:$0xff]
      %v479 = vld [vmem:[%s165 + $0x998] sm:$0xff]
      %v480 = vld [vmem:[%s165 + $0x9a0] sm:$0xff]
      %v481 = vld [vmem:[%s165 + $0x9a8] sm:$0xff]
      %v482 = vld [vmem:[%s165 + $0x9b0] sm:$0xff]
      %v483 = vld [vmem:[%s165 + $0x9b8] sm:$0xff]
      %v484 = vld [vmem:[%s165 + $0x9c0] sm:$0xff]
      %v485 = vld [vmem:[%s165 + $0x9c8] sm:$0xff]
      %v486 = vld [vmem:[%s165 + $0x9d0] sm:$0xff]
      %v487 = vld [vmem:[%s165 + $0x9d8] sm:$0xff]
      %v488 = vld [vmem:[%s165 + $0x9e0] sm:$0xff]
      %v489 = vld [vmem:[%s165 + $0x9e8] sm:$0xff]
      %v490 = vld [vmem:[%s165 + $0x9f0] sm:$0xff]
      %v491 = vld [vmem:[%s165 + $0x9f8] sm:$0xff]
      %v492 = vld [vmem:[%s165 + $0xa00] sm:$0xff]
      %v493 = vld [vmem:[%s165 + $0xa08] sm:$0xff]
      %v494 = vld [vmem:[%s165 + $0xa10] sm:$0xff]
      %v495 = vld [vmem:[%s165 + $0xa18] sm:$0xff]
      %v496 = vld [vmem:[%s165 + $0xa20] sm:$0xff]
      %v497 = vld [vmem:[%s165 + $0xa28] sm:$0xff]
      %v498 = vld [vmem:[%s165 + $0xa30] sm:$0xff]
      %v499 = vld [vmem:[%s165 + $0xa38] sm:$0xff]
      %v500 = vld [vmem:[%s165 + $0xa40] sm:$0xff]
      %v501 = vld [vmem:[%s165 + $0xa48] sm:$0xff]
      %v502 = vld [vmem:[%s165 + $0xa50] sm:$0xff]
      %v503 = vld [vmem:[%s165 + $0xa58] sm:$0xff]
      %v504 = vld [vmem:[%s165 + $0xa60] sm:$0xff]
      %v505 = vld [vmem:[%s165 + $0xa68] sm:$0xff]
      %v506 = vld [vmem:[%s165 + $0xa70] sm:$0xff]
      %v507 = vld [vmem:[%s165 + $0xa78] sm:$0xff]
      %v508 = vld [vmem:[%s165 + $0xa80] sm:$0xff]
      %v509 = vld [vmem:[%s165 + $0xa88] sm:$0xff]
      %v510 = vld [vmem:[%s165 + $0xa90] sm:$0xff]
      %v511 = vld [vmem:[%s165 + $0xa98] sm:$0xff]
      %v512 = vld [vmem:[%s165 + $0xaa0] sm:$0xff]
      %v513 = vld [vmem:[%s165 + $0xaa8] sm:$0xff]
      %v514 = vld [vmem:[%s165 + $0xab0] sm:$0xff]
      %v515 = vld [vmem:[%s165 + $0xab8] sm:$0xff]
      %v516 = vld [vmem:[%s165 + $0xac0] sm:$0xff]
      %v517 = vld [vmem:[%s165 + $0xac8] sm:$0xff]
      %v518 = vld [vmem:[%s165 + $0xad0] sm:$0xff]
      %v519 = vld [vmem:[%s165 + $0xad8] sm:$0xff]
      %v520 = vld [vmem:[%s165 + $0xae0] sm:$0xff]
      %v521 = vld [vmem:[%s165 + $0xae8] sm:$0xff]
      %v522 = vld [vmem:[%s165 + $0xaf0] sm:$0xff]
      %v523 = vld [vmem:[%s165 + $0xaf8] sm:$0x11]
      %v524 = vld [vmem:[%s1] sm:$0xf]
      %v525 = vld [vmem:[%s1 + $0x4] sm:$0xf]
      %v526 = vld [vmem:[%s1 + $0x8] sm:$0xf]
      %v527 = vld [vmem:[%s1 + $0xc] sm:$0xf]
      %v528 = vld [vmem:[%s1 + $0x10] sm:$0xf]
      %v529 = vld [vmem:[%s1 + $0x14] sm:$0xf]
      %v530 = vld [vmem:[%s1 + $0x18] sm:$0xf]
      %v531 = vld [vmem:[%s1 + $0x1c] sm:$0xf]
      %v532 = vld [vmem:[%s1 + $0x20] sm:$0xf]
      %v533 = vld [vmem:[%s1 + $0x24] sm:$0xf]
      %v534 = vld [vmem:[%s1 + $0x28] sm:$0xf]
      %v535 = vld [vmem:[%s1 + $0x2c] sm:$0xf]
      %v536 = vld [vmem:[%s1 + $0x30] sm:$0xf]
      %v537 = vld [vmem:[%s1 + $0x34] sm:$0xf]
      %v538 = vld [vmem:[%s1 + $0x38] sm:$0xf]
      %v539 = vld [vmem:[%s1 + $0x3c] sm:$0xf]
      %v540 = vld [vmem:[%s1 + $0x40] sm:$0xf]
      %v541 = vld [vmem:[%s1 + $0x44] sm:$0xf]
      %v542 = vld [vmem:[%s1 + $0x48] sm:$0x3]
      %v543 = vld [vmem:[%s2] sm:$0x1]
      %v545 = vlaneseq
      %v546 = vshrl.u32 %v545, 7
      %v547 = vsub.s32 0, %v546
      %v548 = vrot.slane %v543, %v547
      %v902 = vunpack.c.l.b16 %v172
      %v903 = vunpack.c.h.b16 %v172
      %v904 = vunpack.c.l.b16 %v173
      %v905 = vunpack.c.h.b16 %v173
      %v906 = vunpack.c.l.b16 %v174
      %v907 = vunpack.c.h.b16 %v174
      %v908 = vunpack.c.l.b16 %v175
      %v909 = vunpack.c.h.b16 %v175
      %v910 = vunpack.c.l.b16 %v176
      %v911 = vunpack.c.h.b16 %v176
      %v912 = vunpack.c.l.b16 %v177
      %v913 = vunpack.c.h.b16 %v177
      %v914 = vunpack.c.l.b16 %v178
      %v915 = vunpack.c.h.b16 %v178
      %v916 = vunpack.c.l.b16 %v179
      %v917 = vunpack.c.h.b16 %v179
      %v918 = vunpack.c.l.b16 %v180
      %v919 = vunpack.c.h.b16 %v180
      %v920 = vunpack.c.l.b16 %v181
      %v921 = vunpack.c.h.b16 %v181
      %v922 = vunpack.c.l.b16 %v182
      %v923 = vunpack.c.h.b16 %v182
      %v924 = vunpack.c.l.b16 %v183
      %v925 = vunpack.c.h.b16 %v183
      %v926 = vunpack.c.l.b16 %v184
      %v927 = vunpack.c.h.b16 %v184
      %v928 = vunpack.c.l.b16 %v185
      %v929 = vunpack.c.h.b16 %v185
      %v930 = vunpack.c.l.b16 %v186
      %v931 = vunpack.c.h.b16 %v186
      %v932 = vunpack.c.l.b16 %v187
      %v933 = vunpack.c.h.b16 %v187
      %v934 = vunpack.c.l.b16 %v188
      %v935 = vunpack.c.h.b16 %v188
      %v936 = vunpack.c.l.b16 %v189
      %v937 = vunpack.c.h.b16 %v189
      %v938 = vunpack.c.l.b16 %v190
      %v939 = vunpack.c.h.b16 %v190
      %v940 = vunpack.c.l.b16 %v191
      %v941 = vunpack.c.h.b16 %v191
      %v942 = vunpack.c.l.b16 %v192
      %v943 = vunpack.c.h.b16 %v192
      %v944 = vunpack.c.l.b16 %v193
      %v945 = vunpack.c.h.b16 %v193
      %v946 = vunpack.c.l.b16 %v194
      %v947 = vunpack.c.h.b16 %v194
      %v948 = vunpack.c.l.b16 %v195
      %v949 = vunpack.c.h.b16 %v195
      %v950 = vunpack.c.l.b16 %v196
      %v951 = vunpack.c.h.b16 %v196
      %v952 = vunpack.c.l.b16 %v197
      %v953 = vunpack.c.h.b16 %v197
      %v954 = vunpack.c.l.b16 %v198
      %v955 = vunpack.c.h.b16 %v198
      %v956 = vunpack.c.l.b16 %v199
      %v957 = vunpack.c.h.b16 %v199
      %v958 = vunpack.c.l.b16 %v200
      %v959 = vunpack.c.h.b16 %v200
      %v960 = vunpack.c.l.b16 %v201
      %v961 = vunpack.c.h.b16 %v201
      %v962 = vunpack.c.l.b16 %v202
      %v963 = vunpack.c.h.b16 %v202
      %v964 = vunpack.c.l.b16 %v203
      %v965 = vunpack.c.h.b16 %v203
      %v966 = vunpack.c.l.b16 %v204
      %v967 = vunpack.c.h.b16 %v204
      %v968 = vunpack.c.l.b16 %v205
      %v969 = vunpack.c.h.b16 %v205
      %v970 = vunpack.c.l.b16 %v206
      %v971 = vunpack.c.h.b16 %v206
      %v972 = vunpack.c.l.b16 %v207
      %v973 = vunpack.c.h.b16 %v207
      %v974 = vunpack.c.l.b16 %v208
      %v975 = vunpack.c.h.b16 %v208
      %v976 = vunpack.c.l.b16 %v209
      %v977 = vunpack.c.h.b16 %v209
      %v978 = vunpack.c.l.b16 %v210
      %v979 = vunpack.c.h.b16 %v210
      %v980 = vunpack.c.l.b16 %v211
      %v981 = vunpack.c.h.b16 %v211
      %v982 = vunpack.c.l.b16 %v212
      %v983 = vunpack.c.h.b16 %v212
      %v984 = vunpack.c.l.b16 %v213
      %v985 = vunpack.c.h.b16 %v213
      %v986 = vunpack.c.l.b16 %v214
      %v987 = vunpack.c.h.b16 %v214
      %v988 = vunpack.c.l.b16 %v215
      %v989 = vunpack.c.h.b16 %v215
      %v990 = vunpack.c.l.b16 %v216
      %v991 = vunpack.c.h.b16 %v216
      %v992 = vunpack.c.l.b16 %v217
      %v993 = vunpack.c.h.b16 %v217
      %v994 = vunpack.c.l.b16 %v218
      %v995 = vunpack.c.h.b16 %v218
      %v996 = vunpack.c.l.b16 %v219
      %v997 = vunpack.c.h.b16 %v219
      %v998 = vunpack.c.l.b16 %v220
      %v999 = vunpack.c.h.b16 %v220
      %v1000 = vunpack.c.l.b16 %v221
      %v1001 = vunpack.c.h.b16 %v221
      %v1002 = vunpack.c.l.b16 %v222
      %v1003 = vunpack.c.h.b16 %v222
      %v1004 = vunpack.c.l.b16 %v223
      %v1005 = vunpack.c.h.b16 %v223
      %v1006 = vunpack.c.l.b16 %v224
      %v1007 = vunpack.c.h.b16 %v224
      %v1008 = vunpack.c.l.b16 %v225
      %v1009 = vunpack.c.h.b16 %v225
      %v1010 = vunpack.c.l.b16 %v226
      %v1011 = vunpack.c.h.b16 %v226
      %v1012 = vunpack.c.l.b16 %v227
      %v1013 = vunpack.c.h.b16 %v227
      %v1014 = vunpack.c.l.b16 %v228
      %v1015 = vunpack.c.h.b16 %v228
      %v1016 = vunpack.c.l.b16 %v229
      %v1017 = vunpack.c.h.b16 %v229
      %v1018 = vunpack.c.l.b16 %v230
      %v1019 = vunpack.c.h.b16 %v230
      %v1020 = vunpack.c.l.b16 %v231
      %v1021 = vunpack.c.h.b16 %v231
      %v1022 = vunpack.c.l.b16 %v232
      %v1023 = vunpack.c.h.b16 %v232
      %v1024 = vunpack.c.l.b16 %v233
      %v1025 = vunpack.c.h.b16 %v233
      %v1026 = vunpack.c.l.b16 %v234
      %v1027 = vunpack.c.h.b16 %v234
      %v1028 = vunpack.c.l.b16 %v235
      %v1029 = vunpack.c.h.b16 %v235
      %v1030 = vunpack.c.l.b16 %v236
      %v1031 = vunpack.c.h.b16 %v236
      %v1032 = vunpack.c.l.b16 %v237
      %v1033 = vunpack.c.h.b16 %v237
      %v1034 = vunpack.c.l.b16 %v238
      %v1035 = vunpack.c.h.b16 %v238
      %v1036 = vunpack.c.l.b16 %v239
      %v1037 = vunpack.c.h.b16 %v239
      %v1038 = vunpack.c.l.b16 %v240
      %v1039 = vunpack.c.h.b16 %v240
      %v1040 = vunpack.c.l.b16 %v241
      %v1041 = vunpack.c.h.b16 %v241
      %v1042 = vunpack.c.l.b16 %v242
      %v1043 = vunpack.c.h.b16 %v242
      %v1044 = vunpack.c.l.b16 %v243
      %v1045 = vunpack.c.h.b16 %v243
      %v1046 = vunpack.c.l.b16 %v244
      %v1047 = vunpack.c.h.b16 %v244
      %v1048 = vunpack.c.l.b16 %v245
      %v1049 = vunpack.c.h.b16 %v245
      %v1050 = vunpack.c.l.b16 %v246
      %v1051 = vunpack.c.h.b16 %v246
      %v1052 = vunpack.c.l.b16 %v247
      %v1053 = vunpack.c.h.b16 %v247
      %v1054 = vunpack.c.l.b16 %v248
      %v1055 = vunpack.c.h.b16 %v248
      %v1056 = vunpack.c.l.b16 %v249
      %v1057 = vunpack.c.h.b16 %v249
      %v1058 = vunpack.c.l.b16 %v250
      %v1059 = vunpack.c.h.b16 %v250
      %v1060 = vunpack.c.l.b16 %v251
      %v1061 = vunpack.c.h.b16 %v251
      %v1062 = vunpack.c.l.b16 %v252
      %v1063 = vunpack.c.h.b16 %v252
      %v1064 = vunpack.c.l.b16 %v253
      %v1065 = vunpack.c.h.b16 %v253
      %v1066 = vunpack.c.l.b16 %v254
      %v1067 = vunpack.c.h.b16 %v254
      %v1068 = vunpack.c.l.b16 %v255
      %v1069 = vunpack.c.h.b16 %v255
      %v1070 = vunpack.c.l.b16 %v256
      %v1071 = vunpack.c.h.b16 %v256
      %v1072 = vunpack.c.l.b16 %v257
      %v1073 = vunpack.c.h.b16 %v257
      %v1074 = vunpack.c.l.b16 %v258
      %v1075 = vunpack.c.h.b16 %v258
      %v1076 = vunpack.c.l.b16 %v259
      %v1077 = vunpack.c.h.b16 %v259
      %v1078 = vunpack.c.l.b16 %v260
      %v1079 = vunpack.c.h.b16 %v260
      %v1080 = vunpack.c.l.b16 %v261
      %v1081 = vunpack.c.h.b16 %v261
      %v1082 = vunpack.c.l.b16 %v262
      %v1083 = vunpack.c.h.b16 %v262
      %v1084 = vunpack.c.l.b16 %v263
      %v1085 = vunpack.c.h.b16 %v263
      %v1086 = vunpack.c.l.b16 %v264
      %v1087 = vunpack.c.h.b16 %v264
      %v1088 = vunpack.c.l.b16 %v265
      %v1089 = vunpack.c.h.b16 %v265
      %v1090 = vunpack.c.l.b16 %v266
      %v1091 = vunpack.c.h.b16 %v266
      %v1092 = vunpack.c.l.b16 %v267
      %v1093 = vunpack.c.h.b16 %v267
      %v1094 = vunpack.c.l.b16 %v268
      %v1095 = vunpack.c.h.b16 %v268
      %v1096 = vunpack.c.l.b16 %v269
      %v1097 = vunpack.c.h.b16 %v269
      %v1098 = vunpack.c.l.b16 %v270
      %v1099 = vunpack.c.h.b16 %v270
      %v1100 = vunpack.c.l.b16 %v271
      %v1101 = vunpack.c.h.b16 %v271
      %v1102 = vunpack.c.l.b16 %v272
      %v1103 = vunpack.c.h.b16 %v272
      %v1104 = vunpack.c.l.b16 %v273
      %v1105 = vunpack.c.h.b16 %v273
      %v1106 = vunpack.c.l.b16 %v274
      %v1107 = vunpack.c.h.b16 %v274
      %v1108 = vunpack.c.l.b16 %v275
      %v1109 = vunpack.c.h.b16 %v275
      %v1110 = vunpack.c.l.b16 %v276
      %v1111 = vunpack.c.h.b16 %v276
      %v1112 = vunpack.c.l.b16 %v277
      %v1113 = vunpack.c.h.b16 %v277
      %v1114 = vunpack.c.l.b16 %v278
      %v1115 = vunpack.c.h.b16 %v278
      %v1116 = vunpack.c.l.b16 %v279
      %v1117 = vunpack.c.h.b16 %v279
      %v1118 = vunpack.c.l.b16 %v280
      %v1119 = vunpack.c.h.b16 %v280
      %v1120 = vunpack.c.l.b16 %v281
      %v1121 = vunpack.c.h.b16 %v281
      %v1122 = vunpack.c.l.b16 %v282
      %v1123 = vunpack.c.h.b16 %v282
      %v1124 = vunpack.c.l.b16 %v283
      %v1125 = vunpack.c.h.b16 %v283
      %v1126 = vunpack.c.l.b16 %v284
      %v1127 = vunpack.c.h.b16 %v284
      %v1128 = vunpack.c.l.b16 %v285
      %v1129 = vunpack.c.h.b16 %v285
      %v1130 = vunpack.c.l.b16 %v286
      %v1131 = vunpack.c.h.b16 %v286
      %v1132 = vunpack.c.l.b16 %v287
      %v1133 = vunpack.c.h.b16 %v287
      %v1134 = vunpack.c.l.b16 %v288
      %v1135 = vunpack.c.h.b16 %v288
      %v1136 = vunpack.c.l.b16 %v289
      %v1137 = vunpack.c.h.b16 %v289
      %v1138 = vunpack.c.l.b16 %v290
      %v1139 = vunpack.c.h.b16 %v290
      %v1140 = vunpack.c.l.b16 %v291
      %v1141 = vunpack.c.h.b16 %v291
      %v1142 = vunpack.c.l.b16 %v292
      %v1143 = vunpack.c.h.b16 %v292
      %v1144 = vunpack.c.l.b16 %v293
      %v1145 = vunpack.c.h.b16 %v293
      %v1146 = vunpack.c.l.b16 %v294
      %v1147 = vunpack.c.h.b16 %v294
      %v1148 = vunpack.c.l.b16 %v295
      %v1149 = vunpack.c.h.b16 %v295
      %v1150 = vunpack.c.l.b16 %v296
      %v1151 = vunpack.c.h.b16 %v296
      %v1152 = vunpack.c.l.b16 %v297
      %v1153 = vunpack.c.h.b16 %v297
      %v1154 = vunpack.c.l.b16 %v298
      %v1155 = vunpack.c.h.b16 %v298
      %v1156 = vunpack.c.l.b16 %v299
      %v1157 = vunpack.c.h.b16 %v299
      %v1158 = vunpack.c.l.b16 %v300
      %v1159 = vunpack.c.h.b16 %v300
      %v1160 = vunpack.c.l.b16 %v301
      %v1161 = vunpack.c.h.b16 %v301
      %v1162 = vunpack.c.l.b16 %v302
      %v1163 = vunpack.c.h.b16 %v302
      %v1164 = vunpack.c.l.b16 %v303
      %v1165 = vunpack.c.h.b16 %v303
      %v1166 = vunpack.c.l.b16 %v304
      %v1167 = vunpack.c.h.b16 %v304
      %v1168 = vunpack.c.l.b16 %v305
      %v1169 = vunpack.c.h.b16 %v305
      %v1170 = vunpack.c.l.b16 %v306
      %v1171 = vunpack.c.h.b16 %v306
      %v1172 = vunpack.c.l.b16 %v307
      %v1173 = vunpack.c.h.b16 %v307
      %v1174 = vunpack.c.l.b16 %v308
      %v1175 = vunpack.c.h.b16 %v308
      %v1176 = vunpack.c.l.b16 %v309
      %v1177 = vunpack.c.h.b16 %v309
      %v1178 = vunpack.c.l.b16 %v310
      %v1179 = vunpack.c.h.b16 %v310
      %v1180 = vunpack.c.l.b16 %v311
      %v1181 = vunpack.c.h.b16 %v311
      %v1182 = vunpack.c.l.b16 %v312
      %v1183 = vunpack.c.h.b16 %v312
      %v1184 = vunpack.c.l.b16 %v313
      %v1185 = vunpack.c.h.b16 %v313
      %v1186 = vunpack.c.l.b16 %v314
      %v1187 = vunpack.c.h.b16 %v314
      %v1188 = vunpack.c.l.b16 %v315
      %v1189 = vunpack.c.h.b16 %v315
      %v1190 = vunpack.c.l.b16 %v316
      %v1191 = vunpack.c.h.b16 %v316
      %v1192 = vunpack.c.l.b16 %v317
      %v1193 = vunpack.c.h.b16 %v317
      %v1194 = vunpack.c.l.b16 %v318
      %v1195 = vunpack.c.h.b16 %v318
      %v1196 = vunpack.c.l.b16 %v319
      %v1197 = vunpack.c.h.b16 %v319
      %v1198 = vunpack.c.l.b16 %v320
      %v1199 = vunpack.c.h.b16 %v320
      %v1200 = vunpack.c.l.b16 %v321
      %v1201 = vunpack.c.h.b16 %v321
      %v1202 = vunpack.c.l.b16 %v322
      %v1203 = vunpack.c.h.b16 %v322
      %v1204 = vunpack.c.l.b16 %v323
      %v1205 = vunpack.c.h.b16 %v323
      %v1206 = vunpack.c.l.b16 %v324
      %v1207 = vunpack.c.h.b16 %v324
      %v1208 = vunpack.c.l.b16 %v325
      %v1209 = vunpack.c.h.b16 %v325
      %v1210 = vunpack.c.l.b16 %v326
      %v1211 = vunpack.c.h.b16 %v326
      %v1212 = vunpack.c.l.b16 %v327
      %v1213 = vunpack.c.h.b16 %v327
      %v1214 = vunpack.c.l.b16 %v328
      %v1215 = vunpack.c.h.b16 %v328
      %v1216 = vunpack.c.l.b16 %v329
      %v1217 = vunpack.c.h.b16 %v329
      %v1218 = vunpack.c.l.b16 %v330
      %v1219 = vunpack.c.h.b16 %v330
      %v1220 = vunpack.c.l.b16 %v331
      %v1221 = vunpack.c.h.b16 %v331
      %v1222 = vunpack.c.l.b16 %v332
      %v1223 = vunpack.c.h.b16 %v332
      %v1224 = vunpack.c.l.b16 %v333
      %v1225 = vunpack.c.h.b16 %v333
      %v1226 = vunpack.c.l.b16 %v334
      %v1227 = vunpack.c.h.b16 %v334
      %v1228 = vunpack.c.l.b16 %v335
      %v1229 = vunpack.c.h.b16 %v335
      %v1230 = vunpack.c.l.b16 %v336
      %v1231 = vunpack.c.h.b16 %v336
      %v1232 = vunpack.c.l.b16 %v337
      %v1233 = vunpack.c.h.b16 %v337
      %v1234 = vunpack.c.l.b16 %v338
      %v1235 = vunpack.c.h.b16 %v338
      %v1236 = vunpack.c.l.b16 %v339
      %v1237 = vunpack.c.h.b16 %v339
      %v1238 = vunpack.c.l.b16 %v340
      %v1239 = vunpack.c.h.b16 %v340
      %v1240 = vunpack.c.l.b16 %v341
      %v1241 = vunpack.c.h.b16 %v341
      %v1242 = vunpack.c.l.b16 %v342
      %v1243 = vunpack.c.h.b16 %v342
      %v1244 = vunpack.c.l.b16 %v343
      %v1245 = vunpack.c.h.b16 %v343
      %v1246 = vunpack.c.l.b16 %v344
      %v1247 = vunpack.c.h.b16 %v344
      %v1248 = vunpack.c.l.b16 %v345
      %v1249 = vunpack.c.h.b16 %v345
      %v1250 = vunpack.c.l.b16 %v346
      %v1251 = vunpack.c.h.b16 %v346
      %v1252 = vunpack.c.l.b16 %v347
      %v1253 = vunpack.c.h.b16 %v347
      %v1254 = vunpack.c.l.b16 %v348
      %v1255 = vunpack.c.h.b16 %v348
      %v1256 = vunpack.c.l.b16 %v349
      %v1257 = vunpack.c.h.b16 %v349
      %v1258 = vunpack.c.l.b16 %v350
      %v1259 = vunpack.c.h.b16 %v350
      %v1260 = vunpack.c.l.b16 %v351
      %v1261 = vunpack.c.h.b16 %v351
      %v1262 = vunpack.c.l.b16 %v352
      %v1263 = vunpack.c.h.b16 %v352
      %v1264 = vunpack.c.l.b16 %v353
      %v1265 = vunpack.c.h.b16 %v353
      %v1266 = vunpack.c.l.b16 %v354
      %v1267 = vunpack.c.h.b16 %v354
      %v1268 = vunpack.c.l.b16 %v355
      %v1269 = vunpack.c.h.b16 %v355
      %v1270 = vunpack.c.l.b16 %v356
      %v1271 = vunpack.c.h.b16 %v356
      %v1272 = vunpack.c.l.b16 %v357
      %v1273 = vunpack.c.h.b16 %v357
      %v1274 = vunpack.c.l.b16 %v358
      %v1275 = vunpack.c.h.b16 %v358
      %v1276 = vunpack.c.l.b16 %v359
      %v1277 = vunpack.c.h.b16 %v359
      %v1278 = vunpack.c.l.b16 %v360
      %v1279 = vunpack.c.h.b16 %v360
      %v1280 = vunpack.c.l.b16 %v361
      %v1281 = vunpack.c.h.b16 %v361
      %v1282 = vunpack.c.l.b16 %v362
      %v1283 = vunpack.c.h.b16 %v362
      %v1284 = vunpack.c.l.b16 %v363
      %v1285 = vunpack.c.h.b16 %v363
      %v1286 = vunpack.c.l.b16 %v364
      %v1287 = vunpack.c.h.b16 %v364
      %v1288 = vunpack.c.l.b16 %v365
      %v1289 = vunpack.c.h.b16 %v365
      %v1290 = vunpack.c.l.b16 %v366
      %v1291 = vunpack.c.h.b16 %v366
      %v1292 = vunpack.c.l.b16 %v367
      %v1293 = vunpack.c.h.b16 %v367
      %v1294 = vunpack.c.l.b16 %v368
      %v1295 = vunpack.c.h.b16 %v368
      %v1296 = vunpack.c.l.b16 %v369
      %v1297 = vunpack.c.h.b16 %v369
      %v1298 = vunpack.c.l.b16 %v370
      %v1299 = vunpack.c.h.b16 %v370
      %v1300 = vunpack.c.l.b16 %v371
      %v1301 = vunpack.c.h.b16 %v371
      %v1302 = vunpack.c.l.b16 %v372
      %v1303 = vunpack.c.h.b16 %v372
      %v1304 = vunpack.c.l.b16 %v373
      %v1305 = vunpack.c.h.b16 %v373
      %v1306 = vunpack.c.l.b16 %v374
      %v1307 = vunpack.c.h.b16 %v374
      %v1308 = vunpack.c.l.b16 %v375
      %v1309 = vunpack.c.h.b16 %v375
      %v1310 = vunpack.c.l.b16 %v376
      %v1311 = vunpack.c.h.b16 %v376
      %v1312 = vunpack.c.l.b16 %v377
      %v1313 = vunpack.c.h.b16 %v377
      %v1314 = vunpack.c.l.b16 %v378
      %v1315 = vunpack.c.h.b16 %v378
      %v1316 = vunpack.c.l.b16 %v379
      %v1317 = vunpack.c.h.b16 %v379
      %v1318 = vunpack.c.l.b16 %v380
      %v1319 = vunpack.c.h.b16 %v380
      %v1320 = vunpack.c.l.b16 %v381
      %v1321 = vunpack.c.h.b16 %v381
      %v1322 = vunpack.c.l.b16 %v382
      %v1323 = vunpack.c.h.b16 %v382
      %v1324 = vunpack.c.l.b16 %v383
      %v1325 = vunpack.c.h.b16 %v383
      %v1326 = vunpack.c.l.b16 %v384
      %v1327 = vunpack.c.h.b16 %v384
      %v1328 = vunpack.c.l.b16 %v385
      %v1329 = vunpack.c.h.b16 %v385
      %v1330 = vunpack.c.l.b16 %v386
      %v1331 = vunpack.c.h.b16 %v386
      %v1332 = vunpack.c.l.b16 %v387
      %v1333 = vunpack.c.h.b16 %v387
      %v1334 = vunpack.c.l.b16 %v388
      %v1335 = vunpack.c.h.b16 %v388
      %v1336 = vunpack.c.l.b16 %v389
      %v1337 = vunpack.c.h.b16 %v389
      %v1338 = vunpack.c.l.b16 %v390
      %v1339 = vunpack.c.h.b16 %v390
      %v1340 = vunpack.c.l.b16 %v391
      %v1341 = vunpack.c.h.b16 %v391
      %v1342 = vunpack.c.l.b16 %v392
      %v1343 = vunpack.c.h.b16 %v392
      %v1344 = vunpack.c.l.b16 %v393
      %v1345 = vunpack.c.h.b16 %v393
      %v1346 = vunpack.c.l.b16 %v394
      %v1347 = vunpack.c.h.b16 %v394
      %v1348 = vunpack.c.l.b16 %v395
      %v1349 = vunpack.c.h.b16 %v395
      %v1350 = vunpack.c.l.b16 %v396
      %v1351 = vunpack.c.h.b16 %v396
      %v1352 = vunpack.c.l.b16 %v397
      %v1353 = vunpack.c.h.b16 %v397
      %v1354 = vunpack.c.l.b16 %v398
      %v1355 = vunpack.c.h.b16 %v398
      %v1356 = vunpack.c.l.b16 %v399
      %v1357 = vunpack.c.h.b16 %v399
      %v1358 = vunpack.c.l.b16 %v400
      %v1359 = vunpack.c.h.b16 %v400
      %v1360 = vunpack.c.l.b16 %v401
      %v1361 = vunpack.c.h.b16 %v401
      %v1362 = vunpack.c.l.b16 %v402
      %v1363 = vunpack.c.h.b16 %v402
      %v1364 = vunpack.c.l.b16 %v403
      %v1365 = vunpack.c.h.b16 %v403
      %v1366 = vunpack.c.l.b16 %v404
      %v1367 = vunpack.c.h.b16 %v404
      %v1368 = vunpack.c.l.b16 %v405
      %v1369 = vunpack.c.h.b16 %v405
      %v1370 = vunpack.c.l.b16 %v406
      %v1371 = vunpack.c.h.b16 %v406
      %v1372 = vunpack.c.l.b16 %v407
      %v1373 = vunpack.c.h.b16 %v407
      %v1374 = vunpack.c.l.b16 %v408
      %v1375 = vunpack.c.h.b16 %v408
      %v1376 = vunpack.c.l.b16 %v409
      %v1377 = vunpack.c.h.b16 %v409
      %v1378 = vunpack.c.l.b16 %v410
      %v1379 = vunpack.c.h.b16 %v410
      %v1380 = vunpack.c.l.b16 %v411
      %v1381 = vunpack.c.h.b16 %v411
      %v1382 = vunpack.c.l.b16 %v412
      %v1383 = vunpack.c.h.b16 %v412
      %v1384 = vunpack.c.l.b16 %v413
      %v1385 = vunpack.c.h.b16 %v413
      %v1386 = vunpack.c.l.b16 %v414
      %v1387 = vunpack.c.h.b16 %v414
      %v1388 = vunpack.c.l.b16 %v415
      %v1389 = vunpack.c.h.b16 %v415
      %v1390 = vunpack.c.l.b16 %v416
      %v1391 = vunpack.c.h.b16 %v416
      %v1392 = vunpack.c.l.b16 %v417
      %v1393 = vunpack.c.h.b16 %v417
      %v1394 = vunpack.c.l.b16 %v418
      %v1395 = vunpack.c.h.b16 %v418
      %v1396 = vunpack.c.l.b16 %v419
      %v1397 = vunpack.c.h.b16 %v419
      %v1398 = vunpack.c.l.b16 %v420
      %v1399 = vunpack.c.h.b16 %v420
      %v1400 = vunpack.c.l.b16 %v421
      %v1401 = vunpack.c.h.b16 %v421
      %v1402 = vunpack.c.l.b16 %v422
      %v1403 = vunpack.c.h.b16 %v422
      %v1404 = vunpack.c.l.b16 %v423
      %v1405 = vunpack.c.h.b16 %v423
      %v1406 = vunpack.c.l.b16 %v424
      %v1407 = vunpack.c.h.b16 %v424
      %v1408 = vunpack.c.l.b16 %v425
      %v1409 = vunpack.c.h.b16 %v425
      %v1410 = vunpack.c.l.b16 %v426
      %v1411 = vunpack.c.h.b16 %v426
      %v1412 = vunpack.c.l.b16 %v427
      %v1413 = vunpack.c.h.b16 %v427
      %v1414 = vunpack.c.l.b16 %v428
      %v1415 = vunpack.c.h.b16 %v428
      %v1416 = vunpack.c.l.b16 %v429
      %v1417 = vunpack.c.h.b16 %v429
      %v1418 = vunpack.c.l.b16 %v430
      %v1419 = vunpack.c.h.b16 %v430
      %v1420 = vunpack.c.l.b16 %v431
      %v1421 = vunpack.c.h.b16 %v431
      %v1422 = vunpack.c.l.b16 %v432
      %v1423 = vunpack.c.h.b16 %v432
      %v1424 = vunpack.c.l.b16 %v433
      %v1425 = vunpack.c.h.b16 %v433
      %v1426 = vunpack.c.l.b16 %v434
      %v1427 = vunpack.c.h.b16 %v434
      %v1428 = vunpack.c.l.b16 %v435
      %v1429 = vunpack.c.h.b16 %v435
      %v1430 = vunpack.c.l.b16 %v436
      %v1431 = vunpack.c.h.b16 %v436
      %v1432 = vunpack.c.l.b16 %v437
      %v1433 = vunpack.c.h.b16 %v437
      %v1434 = vunpack.c.l.b16 %v438
      %v1435 = vunpack.c.h.b16 %v438
      %v1436 = vunpack.c.l.b16 %v439
      %v1437 = vunpack.c.h.b16 %v439
      %v1438 = vunpack.c.l.b16 %v440
      %v1439 = vunpack.c.h.b16 %v440
      %v1440 = vunpack.c.l.b16 %v441
      %v1441 = vunpack.c.h.b16 %v441
      %v1442 = vunpack.c.l.b16 %v442
      %v1443 = vunpack.c.h.b16 %v442
      %v1444 = vunpack.c.l.b16 %v443
      %v1445 = vunpack.c.h.b16 %v443
      %v1446 = vunpack.c.l.b16 %v444
      %v1447 = vunpack.c.h.b16 %v444
      %v1448 = vunpack.c.l.b16 %v445
      %v1449 = vunpack.c.h.b16 %v445
      %v1450 = vunpack.c.l.b16 %v446
      %v1451 = vunpack.c.h.b16 %v446
      %v1452 = vunpack.c.l.b16 %v447
      %v1453 = vunpack.c.h.b16 %v447
      %v1454 = vunpack.c.l.b16 %v448
      %v1455 = vunpack.c.h.b16 %v448
      %v1456 = vunpack.c.l.b16 %v449
      %v1457 = vunpack.c.h.b16 %v449
      %v1458 = vunpack.c.l.b16 %v450
      %v1459 = vunpack.c.h.b16 %v450
      %v1460 = vunpack.c.l.b16 %v451
      %v1461 = vunpack.c.h.b16 %v451
      %v1462 = vunpack.c.l.b16 %v452
      %v1463 = vunpack.c.h.b16 %v452
      %v1464 = vunpack.c.l.b16 %v453
      %v1465 = vunpack.c.h.b16 %v453
      %v1466 = vunpack.c.l.b16 %v454
      %v1467 = vunpack.c.h.b16 %v454
      %v1468 = vunpack.c.l.b16 %v455
      %v1469 = vunpack.c.h.b16 %v455
      %v1470 = vunpack.c.l.b16 %v456
      %v1471 = vunpack.c.h.b16 %v456
      %v1472 = vunpack.c.l.b16 %v457
      %v1473 = vunpack.c.h.b16 %v457
      %v1474 = vunpack.c.l.b16 %v458
      %v1475 = vunpack.c.h.b16 %v458
      %v1476 = vunpack.c.l.b16 %v459
      %v1477 = vunpack.c.h.b16 %v459
      %v1478 = vunpack.c.l.b16 %v460
      %v1479 = vunpack.c.h.b16 %v460
      %v1480 = vunpack.c.l.b16 %v461
      %v1481 = vunpack.c.h.b16 %v461
      %v1482 = vunpack.c.l.b16 %v462
      %v1483 = vunpack.c.h.b16 %v462
      %v1484 = vunpack.c.l.b16 %v463
      %v1485 = vunpack.c.h.b16 %v463
      %v1486 = vunpack.c.l.b16 %v464
      %v1487 = vunpack.c.h.b16 %v464
      %v1488 = vunpack.c.l.b16 %v465
      %v1489 = vunpack.c.h.b16 %v465
      %v1490 = vunpack.c.l.b16 %v466
      %v1491 = vunpack.c.h.b16 %v466
      %v1492 = vunpack.c.l.b16 %v467
      %v1493 = vunpack.c.h.b16 %v467
      %v1494 = vunpack.c.l.b16 %v468
      %v1495 = vunpack.c.h.b16 %v468
      %v1496 = vunpack.c.l.b16 %v469
      %v1497 = vunpack.c.h.b16 %v469
      %v1498 = vunpack.c.l.b16 %v470
      %v1499 = vunpack.c.h.b16 %v470
      %v1500 = vunpack.c.l.b16 %v471
      %v1501 = vunpack.c.h.b16 %v471
      %v1502 = vunpack.c.l.b16 %v472
      %v1503 = vunpack.c.h.b16 %v472
      %v1504 = vunpack.c.l.b16 %v473
      %v1505 = vunpack.c.h.b16 %v473
      %v1506 = vunpack.c.l.b16 %v474
      %v1507 = vunpack.c.h.b16 %v474
      %v1508 = vunpack.c.l.b16 %v475
      %v1509 = vunpack.c.h.b16 %v475
      %v1510 = vunpack.c.l.b16 %v476
      %v1511 = vunpack.c.h.b16 %v476
      %v1512 = vunpack.c.l.b16 %v477
      %v1513 = vunpack.c.h.b16 %v477
      %v1514 = vunpack.c.l.b16 %v478
      %v1515 = vunpack.c.h.b16 %v478
      %v1516 = vunpack.c.l.b16 %v479
      %v1517 = vunpack.c.h.b16 %v479
      %v1518 = vunpack.c.l.b16 %v480
      %v1519 = vunpack.c.h.b16 %v480
      %v1520 = vunpack.c.l.b16 %v481
      %v1521 = vunpack.c.h.b16 %v481
      %v1522 = vunpack.c.l.b16 %v482
      %v1523 = vunpack.c.h.b16 %v482
      %v1524 = vunpack.c.l.b16 %v483
      %v1525 = vunpack.c.h.b16 %v483
      %v1526 = vunpack.c.l.b16 %v484
      %v1527 = vunpack.c.h.b16 %v484
      %v1528 = vunpack.c.l.b16 %v485
      %v1529 = vunpack.c.h.b16 %v485
      %v1530 = vunpack.c.l.b16 %v486
      %v1531 = vunpack.c.h.b16 %v486
      %v1532 = vunpack.c.l.b16 %v487
      %v1533 = vunpack.c.h.b16 %v487
      %v1534 = vunpack.c.l.b16 %v488
      %v1535 = vunpack.c.h.b16 %v488
      %v1536 = vunpack.c.l.b16 %v489
      %v1537 = vunpack.c.h.b16 %v489
      %v1538 = vunpack.c.l.b16 %v490
      %v1539 = vunpack.c.h.b16 %v490
      %v1540 = vunpack.c.l.b16 %v491
      %v1541 = vunpack.c.h.b16 %v491
      %v1542 = vunpack.c.l.b16 %v492
      %v1543 = vunpack.c.h.b16 %v492
      %v1544 = vunpack.c.l.b16 %v493
      %v1545 = vunpack.c.h.b16 %v493
      %v1546 = vunpack.c.l.b16 %v494
      %v1547 = vunpack.c.h.b16 %v494
      %v1548 = vunpack.c.l.b16 %v495
      %v1549 = vunpack.c.h.b16 %v495
      %v1550 = vunpack.c.l.b16 %v496
      %v1551 = vunpack.c.h.b16 %v496
      %v1552 = vunpack.c.l.b16 %v497
      %v1553 = vunpack.c.h.b16 %v497
      %v1554 = vunpack.c.l.b16 %v498
      %v1555 = vunpack.c.h.b16 %v498
      %v1556 = vunpack.c.l.b16 %v499
      %v1557 = vunpack.c.h.b16 %v499
      %v1558 = vunpack.c.l.b16 %v500
      %v1559 = vunpack.c.h.b16 %v500
      %v1560 = vunpack.c.l.b16 %v501
      %v1561 = vunpack.c.h.b16 %v501
      %v1562 = vunpack.c.l.b16 %v502
      %v1563 = vunpack.c.h.b16 %v502
      %v1564 = vunpack.c.l.b16 %v503
      %v1565 = vunpack.c.h.b16 %v503
      %v1566 = vunpack.c.l.b16 %v504
      %v1567 = vunpack.c.h.b16 %v504
      %v1568 = vunpack.c.l.b16 %v505
      %v1569 = vunpack.c.h.b16 %v505
      %v1570 = vunpack.c.l.b16 %v506
      %v1571 = vunpack.c.h.b16 %v506
      %v1572 = vunpack.c.l.b16 %v507
      %v1573 = vunpack.c.h.b16 %v507
      %v1574 = vunpack.c.l.b16 %v508
      %v1575 = vunpack.c.h.b16 %v508
      %v1576 = vunpack.c.l.b16 %v509
      %v1577 = vunpack.c.h.b16 %v509
      %v1578 = vunpack.c.l.b16 %v510
      %v1579 = vunpack.c.h.b16 %v510
      %v1580 = vunpack.c.l.b16 %v511
      %v1581 = vunpack.c.h.b16 %v511
      %v1582 = vunpack.c.l.b16 %v512
      %v1583 = vunpack.c.h.b16 %v512
      %v1584 = vunpack.c.l.b16 %v513
      %v1585 = vunpack.c.h.b16 %v513
      %v1586 = vunpack.c.l.b16 %v514
      %v1587 = vunpack.c.h.b16 %v514
      %v1588 = vunpack.c.l.b16 %v515
      %v1589 = vunpack.c.h.b16 %v515
      %v1590 = vunpack.c.l.b16 %v516
      %v1591 = vunpack.c.h.b16 %v516
      %v1592 = vunpack.c.l.b16 %v517
      %v1593 = vunpack.c.h.b16 %v517
      %v1594 = vunpack.c.l.b16 %v518
      %v1595 = vunpack.c.h.b16 %v518
      %v1596 = vunpack.c.l.b16 %v519
      %v1597 = vunpack.c.h.b16 %v519
      %v1598 = vunpack.c.l.b16 %v520
      %v1599 = vunpack.c.h.b16 %v520
      %v1600 = vunpack.c.l.b16 %v521
      %v1601 = vunpack.c.h.b16 %v521
      %v1602 = vunpack.c.l.b16 %v522
      %v1603 = vunpack.c.h.b16 %v522
      %v1604 = vunpack.c.l.b16 %v523
      %v1605 = vunpack.c.h.b16 %v523
      %v1606 = vpack.c.b16 %v904, %v902
      %v1607 = vpack.c.b16 %v905, %v903
      %v1608 = vpack.c.b16 %v908, %v906
      %v1609 = vpack.c.b16 %v909, %v907
      %v1610 = vpack.c.b16 %v912, %v910
      %v1611 = vpack.c.b16 %v913, %v911
      %v1612 = vpack.c.b16 %v916, %v914
      %v1613 = vpack.c.b16 %v917, %v915
      %v1614 = vpack.c.b16 %v920, %v918
      %v1615 = vpack.c.b16 %v921, %v919
      %v1616 = vpack.c.b16 %v924, %v922
      %v1617 = vpack.c.b16 %v925, %v923
      %v1618 = vpack.c.b16 %v928, %v926
      %v1619 = vpack.c.b16 %v929, %v927
      %v1620 = vpack.c.b16 %v932, %v930
      %v1621 = vpack.c.b16 %v933, %v931
      %v1622 = vpack.c.b16 %v936, %v934
      %v1623 = vpack.c.b16 %v937, %v935
      %v1624 = vpack.c.b16 %v940, %v938
      %v1625 = vpack.c.b16 %v941, %v939
      %v1626 = vpack.c.b16 %v944, %v942
      %v1627 = vpack.c.b16 %v945, %v943
      %v1628 = vpack.c.b16 %v948, %v946
      %v1629 = vpack.c.b16 %v949, %v947
      %v1630 = vpack.c.b16 %v952, %v950
      %v1631 = vpack.c.b16 %v953, %v951
      %v1632 = vpack.c.b16 %v956, %v954
      %v1633 = vpack.c.b16 %v957, %v955
      %v1634 = vpack.c.b16 %v960, %v958
      %v1635 = vpack.c.b16 %v961, %v959
      %v1636 = vpack.c.b16 %v964, %v962
      %v1637 = vpack.c.b16 %v965, %v963
      %v1638 = vpack.c.b16 %v968, %v966
      %v1639 = vpack.c.b16 %v969, %v967
      %v1640 = vpack.c.b16 %v972, %v970
      %v1641 = vpack.c.b16 %v973, %v971
      %v1642 = vpack.c.b16 %v976, %v974
      %v1643 = vpack.c.b16 %v977, %v975
      %v1644 = vpack.c.b16 %v980, %v978
      %v1645 = vpack.c.b16 %v981, %v979
      %v1646 = vpack.c.b16 %v984, %v982
      %v1647 = vpack.c.b16 %v985, %v983
      %v1648 = vpack.c.b16 %v988, %v986
      %v1649 = vpack.c.b16 %v989, %v987
      %v1650 = vpack.c.b16 %v992, %v990
      %v1651 = vpack.c.b16 %v993, %v991
      %v1652 = vpack.c.b16 %v996, %v994
      %v1653 = vpack.c.b16 %v997, %v995
      %v1654 = vpack.c.b16 %v1000, %v998
      %v1655 = vpack.c.b16 %v1001, %v999
      %v1656 = vpack.c.b16 %v1004, %v1002
      %v1657 = vpack.c.b16 %v1005, %v1003
      %v1658 = vpack.c.b16 %v1008, %v1006
      %v1659 = vpack.c.b16 %v1009, %v1007
      %v1660 = vpack.c.b16 %v1012, %v1010
      %v1661 = vpack.c.b16 %v1013, %v1011
      %v1662 = vpack.c.b16 %v1016, %v1014
      %v1663 = vpack.c.b16 %v1017, %v1015
      %v1664 = vpack.c.b16 %v1020, %v1018
      %v1665 = vpack.c.b16 %v1021, %v1019
      %v1666 = vpack.c.b16 %v1024, %v1022
      %v1667 = vpack.c.b16 %v1025, %v1023
      %v1668 = vpack.c.b16 %v1028, %v1026
      %v1669 = vpack.c.b16 %v1029, %v1027
      %v1670 = vpack.c.b16 %v1032, %v1030
      %v1671 = vpack.c.b16 %v1033, %v1031
      %v1672 = vpack.c.b16 %v1036, %v1034
      %v1673 = vpack.c.b16 %v1037, %v1035
      %v1674 = vpack.c.b16 %v1040, %v1038
      %v1675 = vpack.c.b16 %v1041, %v1039
      %v1676 = vpack.c.b16 %v1044, %v1042
      %v1677 = vpack.c.b16 %v1045, %v1043
      %v1678 = vpack.c.b16 %v1048, %v1046
      %v1679 = vpack.c.b16 %v1049, %v1047
      %v1680 = vpack.c.b16 %v1052, %v1050
      %v1681 = vpack.c.b16 %v1053, %v1051
      %v1682 = vpack.c.b16 %v1056, %v1054
      %v1683 = vpack.c.b16 %v1057, %v1055
      %v1684 = vpack.c.b16 %v1060, %v1058
      %v1685 = vpack.c.b16 %v1061, %v1059
      %v1686 = vpack.c.b16 %v1064, %v1062
      %v1687 = vpack.c.b16 %v1065, %v1063
      %v1688 = vpack.c.b16 %v1068, %v1066
      %v1689 = vpack.c.b16 %v1069, %v1067
      %v1690 = vpack.c.b16 %v1072, %v1070
      %v1691 = vpack.c.b16 %v1073, %v1071
      %v1692 = vpack.c.b16 %v1076, %v1074
      %v1693 = vpack.c.b16 %v1077, %v1075
      %v1694 = vpack.c.b16 %v1080, %v1078
      %v1695 = vpack.c.b16 %v1081, %v1079
      %v1696 = vpack.c.b16 %v1084, %v1082
      %v1697 = vpack.c.b16 %v1085, %v1083
      %v1698 = vpack.c.b16 %v1088, %v1086
      %v1699 = vpack.c.b16 %v1089, %v1087
      %v1700 = vpack.c.b16 %v1092, %v1090
      %v1701 = vpack.c.b16 %v1093, %v1091
      %v1702 = vpack.c.b16 %v1096, %v1094
      %v1703 = vpack.c.b16 %v1097, %v1095
      %v1704 = vpack.c.b16 %v1100, %v1098
      %v1705 = vpack.c.b16 %v1101, %v1099
      %v1706 = vpack.c.b16 %v1104, %v1102
      %v1707 = vpack.c.b16 %v1105, %v1103
      %v1708 = vpack.c.b16 %v1108, %v1106
      %v1709 = vpack.c.b16 %v1109, %v1107
      %v1710 = vpack.c.b16 %v1112, %v1110
      %v1711 = vpack.c.b16 %v1113, %v1111
      %v1712 = vpack.c.b16 %v1116, %v1114
      %v1713 = vpack.c.b16 %v1117, %v1115
      %v1714 = vpack.c.b16 %v1120, %v1118
      %v1715 = vpack.c.b16 %v1121, %v1119
      %v1716 = vpack.c.b16 %v1124, %v1122
      %v1717 = vpack.c.b16 %v1125, %v1123
      %v1718 = vpack.c.b16 %v1128, %v1126
      %v1719 = vpack.c.b16 %v1129, %v1127
      %v1720 = vpack.c.b16 %v1132, %v1130
      %v1721 = vpack.c.b16 %v1133, %v1131
      %v1722 = vpack.c.b16 %v1136, %v1134
      %v1723 = vpack.c.b16 %v1137, %v1135
      %v1724 = vpack.c.b16 %v1140, %v1138
      %v1725 = vpack.c.b16 %v1141, %v1139
      %v1726 = vpack.c.b16 %v1144, %v1142
      %v1727 = vpack.c.b16 %v1145, %v1143
      %v1728 = vpack.c.b16 %v1148, %v1146
      %v1729 = vpack.c.b16 %v1149, %v1147
      %v1730 = vpack.c.b16 %v1152, %v1150
      %v1731 = vpack.c.b16 %v1153, %v1151
      %v1732 = vpack.c.b16 %v1156, %v1154
      %v1733 = vpack.c.b16 %v1157, %v1155
      %v1734 = vpack.c.b16 %v1160, %v1158
      %v1735 = vpack.c.b16 %v1161, %v1159
      %v1736 = vpack.c.b16 %v1164, %v1162
      %v1737 = vpack.c.b16 %v1165, %v1163
      %v1738 = vpack.c.b16 %v1168, %v1166
      %v1739 = vpack.c.b16 %v1169, %v1167
      %v1740 = vpack.c.b16 %v1172, %v1170
      %v1741 = vpack.c.b16 %v1173, %v1171
      %v1742 = vpack.c.b16 %v1176, %v1174
      %v1743 = vpack.c.b16 %v1177, %v1175
      %v1744 = vpack.c.b16 %v1180, %v1178
      %v1745 = vpack.c.b16 %v1181, %v1179
      %v1746 = vpack.c.b16 %v1184, %v1182
      %v1747 = vpack.c.b16 %v1185, %v1183
      %v1748 = vpack.c.b16 %v1188, %v1186
      %v1749 = vpack.c.b16 %v1189, %v1187
      %v1750 = vpack.c.b16 %v1192, %v1190
      %v1751 = vpack.c.b16 %v1193, %v1191
      %v1752 = vpack.c.b16 %v1196, %v1194
      %v1753 = vpack.c.b16 %v1197, %v1195
      %v1754 = vpack.c.b16 %v1200, %v1198
      %v1755 = vpack.c.b16 %v1201, %v1199
      %v1756 = vpack.c.b16 %v1204, %v1202
      %v1757 = vpack.c.b16 %v1205, %v1203
      %v1758 = vpack.c.b16 %v1208, %v1206
      %v1759 = vpack.c.b16 %v1209, %v1207
      %v1760 = vpack.c.b16 %v1212, %v1210
      %v1761 = vpack.c.b16 %v1213, %v1211
      %v1762 = vpack.c.b16 %v1216, %v1214
      %v1763 = vpack.c.b16 %v1217, %v1215
      %v1764 = vpack.c.b16 %v1220, %v1218
      %v1765 = vpack.c.b16 %v1221, %v1219
      %v1766 = vpack.c.b16 %v1224, %v1222
      %v1767 = vpack.c.b16 %v1225, %v1223
      %v1768 = vpack.c.b16 %v1228, %v1226
      %v1769 = vpack.c.b16 %v1229, %v1227
      %v1770 = vpack.c.b16 %v1232, %v1230
      %v1771 = vpack.c.b16 %v1233, %v1231
      %v1772 = vpack.c.b16 %v1236, %v1234
      %v1773 = vpack.c.b16 %v1237, %v1235
      %v1774 = vpack.c.b16 %v1240, %v1238
      %v1775 = vpack.c.b16 %v1241, %v1239
      %v1776 = vpack.c.b16 %v1244, %v1242
      %v1777 = vpack.c.b16 %v1245, %v1243
      %v1778 = vpack.c.b16 %v1248, %v1246
      %v1779 = vpack.c.b16 %v1249, %v1247
      %v1780 = vpack.c.b16 %v1252, %v1250
      %v1781 = vpack.c.b16 %v1253, %v1251
      %v1782 = vpack.c.b16 %v1256, %v1254
      %v1783 = vpack.c.b16 %v1257, %v1255
      %v1784 = vpack.c.b16 %v1260, %v1258
      %v1785 = vpack.c.b16 %v1261, %v1259
      %v1786 = vpack.c.b16 %v1264, %v1262
      %v1787 = vpack.c.b16 %v1265, %v1263
      %v1788 = vpack.c.b16 %v1268, %v1266
      %v1789 = vpack.c.b16 %v1269, %v1267
      %v1790 = vpack.c.b16 %v1272, %v1270
      %v1791 = vpack.c.b16 %v1273, %v1271
      %v1792 = vpack.c.b16 %v1276, %v1274
      %v1793 = vpack.c.b16 %v1277, %v1275
      %v1794 = vpack.c.b16 %v1280, %v1278
      %v1795 = vpack.c.b16 %v1281, %v1279
      %v1796 = vpack.c.b16 %v1284, %v1282
      %v1797 = vpack.c.b16 %v1285, %v1283
      %v1798 = vpack.c.b16 %v1288, %v1286
      %v1799 = vpack.c.b16 %v1289, %v1287
      %v1800 = vpack.c.b16 %v1292, %v1290
      %v1801 = vpack.c.b16 %v1293, %v1291
      %v1802 = vpack.c.b16 %v1296, %v1294
      %v1803 = vpack.c.b16 %v1297, %v1295
      %v1804 = vpack.c.b16 %v1300, %v1298
      %v1805 = vpack.c.b16 %v1301, %v1299
      %v1806 = vpack.c.b16 %v1304, %v1302
      %v1807 = vpack.c.b16 %v1305, %v1303
      %v1808 = vpack.c.b16 %v1308, %v1306
      %v1809 = vpack.c.b16 %v1309, %v1307
      %v1810 = vpack.c.b16 %v1312, %v1310
      %v1811 = vpack.c.b16 %v1313, %v1311
      %v1812 = vpack.c.b16 %v1316, %v1314
      %v1813 = vpack.c.b16 %v1317, %v1315
      %v1814 = vpack.c.b16 %v1320, %v1318
      %v1815 = vpack.c.b16 %v1321, %v1319
      %v1816 = vpack.c.b16 %v1324, %v1322
      %v1817 = vpack.c.b16 %v1325, %v1323
      %v1818 = vpack.c.b16 %v1328, %v1326
      %v1819 = vpack.c.b16 %v1329, %v1327
      %v1820 = vpack.c.b16 %v1332, %v1330
      %v1821 = vpack.c.b16 %v1333, %v1331
      %v1822 = vpack.c.b16 %v1336, %v1334
      %v1823 = vpack.c.b16 %v1337, %v1335
      %v1824 = vpack.c.b16 %v1340, %v1338
      %v1825 = vpack.c.b16 %v1341, %v1339
      %v1826 = vpack.c.b16 %v1344, %v1342
      %v1827 = vpack.c.b16 %v1345, %v1343
      %v1828 = vpack.c.b16 %v1348, %v1346
      %v1829 = vpack.c.b16 %v1349, %v1347
      %v1830 = vpack.c.b16 %v1352, %v1350
      %v1831 = vpack.c.b16 %v1353, %v1351
      %v1832 = vpack.c.b16 %v1356, %v1354
      %v1833 = vpack.c.b16 %v1357, %v1355
      %v1834 = vpack.c.b16 %v1360, %v1358
      %v1835 = vpack.c.b16 %v1361, %v1359
      %v1836 = vpack.c.b16 %v1364, %v1362
      %v1837 = vpack.c.b16 %v1365, %v1363
      %v1838 = vpack.c.b16 %v1368, %v1366
      %v1839 = vpack.c.b16 %v1369, %v1367
      %v1840 = vpack.c.b16 %v1372, %v1370
      %v1841 = vpack.c.b16 %v1373, %v1371
      %v1842 = vpack.c.b16 %v1376, %v1374
      %v1843 = vpack.c.b16 %v1377, %v1375
      %v1844 = vpack.c.b16 %v1380, %v1378
      %v1845 = vpack.c.b16 %v1381, %v1379
      %v1846 = vpack.c.b16 %v1384, %v1382
      %v1847 = vpack.c.b16 %v1385, %v1383
      %v1848 = vpack.c.b16 %v1388, %v1386
      %v1849 = vpack.c.b16 %v1389, %v1387
      %v1850 = vpack.c.b16 %v1392, %v1390
      %v1851 = vpack.c.b16 %v1393, %v1391
      %v1852 = vpack.c.b16 %v1396, %v1394
      %v1853 = vpack.c.b16 %v1397, %v1395
      %v1854 = vpack.c.b16 %v1400, %v1398
      %v1855 = vpack.c.b16 %v1401, %v1399
      %v1856 = vpack.c.b16 %v1404, %v1402
      %v1857 = vpack.c.b16 %v1405, %v1403
      %v1858 = vpack.c.b16 %v1408, %v1406
      %v1859 = vpack.c.b16 %v1409, %v1407
      %v1860 = vpack.c.b16 %v1412, %v1410
      %v1861 = vpack.c.b16 %v1413, %v1411
      %v1862 = vpack.c.b16 %v1416, %v1414
      %v1863 = vpack.c.b16 %v1417, %v1415
      %v1864 = vpack.c.b16 %v1420, %v1418
      %v1865 = vpack.c.b16 %v1421, %v1419
      %v1866 = vpack.c.b16 %v1424, %v1422
      %v1867 = vpack.c.b16 %v1425, %v1423
      %v1868 = vpack.c.b16 %v1428, %v1426
      %v1869 = vpack.c.b16 %v1429, %v1427
      %v1870 = vpack.c.b16 %v1432, %v1430
      %v1871 = vpack.c.b16 %v1433, %v1431
      %v1872 = vpack.c.b16 %v1436, %v1434
      %v1873 = vpack.c.b16 %v1437, %v1435
      %v1874 = vpack.c.b16 %v1440, %v1438
      %v1875 = vpack.c.b16 %v1441, %v1439
      %v1876 = vpack.c.b16 %v1444, %v1442
      %v1877 = vpack.c.b16 %v1445, %v1443
      %v1878 = vpack.c.b16 %v1448, %v1446
      %v1879 = vpack.c.b16 %v1449, %v1447
      %v1880 = vpack.c.b16 %v1452, %v1450
      %v1881 = vpack.c.b16 %v1453, %v1451
      %v1882 = vpack.c.b16 %v1456, %v1454
      %v1883 = vpack.c.b16 %v1457, %v1455
      %v1884 = vpack.c.b16 %v1460, %v1458
      %v1885 = vpack.c.b16 %v1461, %v1459
      %v1886 = vpack.c.b16 %v1464, %v1462
      %v1887 = vpack.c.b16 %v1465, %v1463
      %v1888 = vpack.c.b16 %v1468, %v1466
      %v1889 = vpack.c.b16 %v1469, %v1467
      %v1890 = vpack.c.b16 %v1472, %v1470
      %v1891 = vpack.c.b16 %v1473, %v1471
      %v1892 = vpack.c.b16 %v1476, %v1474
      %v1893 = vpack.c.b16 %v1477, %v1475
      %v1894 = vpack.c.b16 %v1480, %v1478
      %v1895 = vpack.c.b16 %v1481, %v1479
      %v1896 = vpack.c.b16 %v1484, %v1482
      %v1897 = vpack.c.b16 %v1485, %v1483
      %v1898 = vpack.c.b16 %v1488, %v1486
      %v1899 = vpack.c.b16 %v1489, %v1487
      %v1900 = vpack.c.b16 %v1492, %v1490
      %v1901 = vpack.c.b16 %v1493, %v1491
      %v1902 = vpack.c.b16 %v1496, %v1494
      %v1903 = vpack.c.b16 %v1497, %v1495
      %v1904 = vpack.c.b16 %v1500, %v1498
      %v1905 = vpack.c.b16 %v1501, %v1499
      %v1906 = vpack.c.b16 %v1504, %v1502
      %v1907 = vpack.c.b16 %v1505, %v1503
      %v1908 = vpack.c.b16 %v1508, %v1506
      %v1909 = vpack.c.b16 %v1509, %v1507
      %v1910 = vpack.c.b16 %v1512, %v1510
      %v1911 = vpack.c.b16 %v1513, %v1511
      %v1912 = vpack.c.b16 %v1516, %v1514
      %v1913 = vpack.c.b16 %v1517, %v1515
      %v1914 = vpack.c.b16 %v1520, %v1518
      %v1915 = vpack.c.b16 %v1521, %v1519
      %v1916 = vpack.c.b16 %v1524, %v1522
      %v1917 = vpack.c.b16 %v1525, %v1523
      %v1918 = vpack.c.b16 %v1528, %v1526
      %v1919 = vpack.c.b16 %v1529, %v1527
      %v1920 = vpack.c.b16 %v1532, %v1530
      %v1921 = vpack.c.b16 %v1533, %v1531
      %v1922 = vpack.c.b16 %v1536, %v1534
      %v1923 = vpack.c.b16 %v1537, %v1535
      %v1924 = vpack.c.b16 %v1540, %v1538
      %v1925 = vpack.c.b16 %v1541, %v1539
      %v1926 = vpack.c.b16 %v1544, %v1542
      %v1927 = vpack.c.b16 %v1545, %v1543
      %v1928 = vpack.c.b16 %v1548, %v1546
      %v1929 = vpack.c.b16 %v1549, %v1547
      %v1930 = vpack.c.b16 %v1552, %v1550
      %v1931 = vpack.c.b16 %v1553, %v1551
      %v1932 = vpack.c.b16 %v1556, %v1554
      %v1933 = vpack.c.b16 %v1557, %v1555
      %v1934 = vpack.c.b16 %v1560, %v1558
      %v1935 = vpack.c.b16 %v1561, %v1559
      %v1936 = vpack.c.b16 %v1564, %v1562
      %v1937 = vpack.c.b16 %v1565, %v1563
      %v1938 = vpack.c.b16 %v1568, %v1566
      %v1939 = vpack.c.b16 %v1569, %v1567
      %v1940 = vpack.c.b16 %v1572, %v1570
      %v1941 = vpack.c.b16 %v1573, %v1571
      %v1942 = vpack.c.b16 %v1576, %v1574
      %v1943 = vpack.c.b16 %v1577, %v1575
      %v1944 = vpack.c.b16 %v1580, %v1578
      %v1945 = vpack.c.b16 %v1581, %v1579
      %v1946 = vpack.c.b16 %v1584, %v1582
      %v1947 = vpack.c.b16 %v1585, %v1583
      %v1948 = vpack.c.b16 %v1588, %v1586
      %v1949 = vpack.c.b16 %v1589, %v1587
      %v1950 = vpack.c.b16 %v1592, %v1590
      %v1951 = vpack.c.b16 %v1593, %v1591
      %v1952 = vpack.c.b16 %v1596, %v1594
      %v1953 = vpack.c.b16 %v1597, %v1595
      %v1954 = vpack.c.b16 %v1600, %v1598
      %v1955 = vpack.c.b16 %v1601, %v1599
      %v1956 = vpack.c.b16 %v1604, %v1602
      %v1957 = vpack.c.b16 %v1605, %v1603
      %v2153 = vunpack.c.l.b16 %v524
      %v2154 = vunpack.c.l.b16 %v525
      %v2155 = vunpack.c.l.b16 %v526
      %v2156 = vunpack.c.l.b16 %v527
      %v2157 = vunpack.c.l.b16 %v528
      %v2158 = vunpack.c.l.b16 %v529
      %v2159 = vunpack.c.l.b16 %v530
      %v2160 = vunpack.c.l.b16 %v531
      %v2161 = vunpack.c.l.b16 %v532
      %v2162 = vunpack.c.l.b16 %v533
      %v2163 = vunpack.c.l.b16 %v534
      %v2164 = vunpack.c.l.b16 %v535
      %v2165 = vunpack.c.l.b16 %v536
      %v2166 = vunpack.c.l.b16 %v537
      %v2167 = vunpack.c.l.b16 %v538
      %v2168 = vunpack.c.l.b16 %v539
      %v2169 = vunpack.c.l.b16 %v540
      %v2170 = vunpack.c.l.b16 %v541
      %v2171 = vunpack.c.l.b16 %v542
      %v2172 = vpack.c.b16 %v2154, %v2153
      %v2173 = vpack.c.b16 %v2156, %v2155
      %v2174 = vpack.c.b16 %v2158, %v2157
      %v2175 = vpack.c.b16 %v2160, %v2159
      %v2176 = vpack.c.b16 %v2162, %v2161
      %v2177 = vpack.c.b16 %v2164, %v2163
      %v2178 = vpack.c.b16 %v2166, %v2165
      %v2179 = vpack.c.b16 %v2168, %v2167
      %v2180 = vpack.c.b16 %v2170, %v2169
      %v2181 = vpack.c.b16 %v2171, %v2171
      %vm2191 = vcmask 154624
      %v2193 = vsel %vm2191, %v1607, 0
      %v2196 = vsel %vm2191, %v1609, 0
      %v2199 = vsel %vm2191, %v1611, 0
      %v2202 = vsel %vm2191, %v1613, 0
      %v2205 = vsel %vm2191, %v1615, 0
      %v2208 = vsel %vm2191, %v1617, 0
      %v2211 = vsel %vm2191, %v1619, 0
      %v2214 = vsel %vm2191, %v1621, 0
      %v2217 = vsel %vm2191, %v1623, 0
      %v2220 = vsel %vm2191, %v1625, 0
      %v2223 = vsel %vm2191, %v1627, 0
      %v2226 = vsel %vm2191, %v1629, 0
      %v2229 = vsel %vm2191, %v1631, 0
      %v2232 = vsel %vm2191, %v1633, 0
      %v2235 = vsel %vm2191, %v1635, 0
      %v2238 = vsel %vm2191, %v1637, 0
      %v2241 = vsel %vm2191, %v1639, 0
      %v2244 = vsel %vm2191, %v1641, 0
      %v2247 = vsel %vm2191, %v1643, 0
      %v2250 = vsel %vm2191, %v1645, 0
      %v2253 = vsel %vm2191, %v1647, 0
      %v2256 = vsel %vm2191, %v1649, 0
      %v2259 = vsel %vm2191, %v1651, 0
      %v2262 = vsel %vm2191, %v1653, 0
      %v2265 = vsel %vm2191, %v1655, 0
      %v2268 = vsel %vm2191, %v1657, 0
      %v2271 = vsel %vm2191, %v1659, 0
      %v2274 = vsel %vm2191, %v1661, 0
      %v2277 = vsel %vm2191, %v1663, 0
      %v2280 = vsel %vm2191, %v1665, 0
      %v2283 = vsel %vm2191, %v1667, 0
      %v2286 = vsel %vm2191, %v1669, 0
      %v2289 = vsel %vm2191, %v1671, 0
      %v2292 = vsel %vm2191, %v1673, 0
      %v2295 = vsel %vm2191, %v1675, 0
      %v2298 = vsel %vm2191, %v1677, 0
      %v2301 = vsel %vm2191, %v1679, 0
      %v2304 = vsel %vm2191, %v1681, 0
      %v2307 = vsel %vm2191, %v1683, 0
      %v2310 = vsel %vm2191, %v1685, 0
      %v2313 = vsel %vm2191, %v1687, 0
      %v2316 = vsel %vm2191, %v1689, 0
      %v2319 = vsel %vm2191, %v1691, 0
      %v2322 = vsel %vm2191, %v1693, 0
      %v2325 = vsel %vm2191, %v1695, 0
      %v2328 = vsel %vm2191, %v1697, 0
      %v2331 = vsel %vm2191, %v1699, 0
      %v2334 = vsel %vm2191, %v1701, 0
      %v2337 = vsel %vm2191, %v1703, 0
      %v2340 = vsel %vm2191, %v1705, 0
      %v2343 = vsel %vm2191, %v1707, 0
      %v2346 = vsel %vm2191, %v1709, 0
      %v2349 = vsel %vm2191, %v1711, 0
      %v2352 = vsel %vm2191, %v1713, 0
      %v2355 = vsel %vm2191, %v1715, 0
      %v2358 = vsel %vm2191, %v1717, 0
      %v2361 = vsel %vm2191, %v1719, 0
      %v2364 = vsel %vm2191, %v1721, 0
      %v2367 = vsel %vm2191, %v1723, 0
      %v2370 = vsel %vm2191, %v1725, 0
      %v2373 = vsel %vm2191, %v1727, 0
      %v2376 = vsel %vm2191, %v1729, 0
      %v2379 = vsel %vm2191, %v1731, 0
      %v2382 = vsel %vm2191, %v1733, 0
      %v2385 = vsel %vm2191, %v1735, 0
      %v2388 = vsel %vm2191, %v1737, 0
      %v2391 = vsel %vm2191, %v1739, 0
      %v2394 = vsel %vm2191, %v1741, 0
      %v2397 = vsel %vm2191, %v1743, 0
      %v2400 = vsel %vm2191, %v1745, 0
      %v2403 = vsel %vm2191, %v1747, 0
      %v2406 = vsel %vm2191, %v1749, 0
      %v2409 = vsel %vm2191, %v1751, 0
      %v2412 = vsel %vm2191, %v1753, 0
      %v2415 = vsel %vm2191, %v1755, 0
      %v2418 = vsel %vm2191, %v1757, 0
      %v2421 = vsel %vm2191, %v1759, 0
      %v2424 = vsel %vm2191, %v1761, 0
      %v2427 = vsel %vm2191, %v1763, 0
      %v2430 = vsel %vm2191, %v1765, 0
      %v2433 = vsel %vm2191, %v1767, 0
      %v2436 = vsel %vm2191, %v1769, 0
      %v2439 = vsel %vm2191, %v1771, 0
      %v2442 = vsel %vm2191, %v1773, 0
      %v2445 = vsel %vm2191, %v1775, 0
      %v2448 = vsel %vm2191, %v1777, 0
      %v2451 = vsel %vm2191, %v1779, 0
      %v2454 = vsel %vm2191, %v1781, 0
      %v2457 = vsel %vm2191, %v1783, 0
      %v2460 = vsel %vm2191, %v1785, 0
      %v2463 = vsel %vm2191, %v1787, 0
      %v2466 = vsel %vm2191, %v1789, 0
      %v2469 = vsel %vm2191, %v1791, 0
      %v2472 = vsel %vm2191, %v1793, 0
      %v2475 = vsel %vm2191, %v1795, 0
      %v2478 = vsel %vm2191, %v1797, 0
      %v2481 = vsel %vm2191, %v1799, 0
      %v2484 = vsel %vm2191, %v1801, 0
      %v2487 = vsel %vm2191, %v1803, 0
      %v2490 = vsel %vm2191, %v1805, 0
      %v2493 = vsel %vm2191, %v1807, 0
      %v2496 = vsel %vm2191, %v1809, 0
      %v2499 = vsel %vm2191, %v1811, 0
      %v2502 = vsel %vm2191, %v1813, 0
      %v2505 = vsel %vm2191, %v1815, 0
      %v2508 = vsel %vm2191, %v1817, 0
      %v2511 = vsel %vm2191, %v1819, 0
      %v2514 = vsel %vm2191, %v1821, 0
      %v2517 = vsel %vm2191, %v1823, 0
      %v2520 = vsel %vm2191, %v1825, 0
      %v2523 = vsel %vm2191, %v1827, 0
      %v2526 = vsel %vm2191, %v1829, 0
      %v2529 = vsel %vm2191, %v1831, 0
      %v2532 = vsel %vm2191, %v1833, 0
      %v2535 = vsel %vm2191, %v1835, 0
      %v2538 = vsel %vm2191, %v1837, 0
      %v2541 = vsel %vm2191, %v1839, 0
      %v2544 = vsel %vm2191, %v1841, 0
      %v2547 = vsel %vm2191, %v1843, 0
      %v2550 = vsel %vm2191, %v1845, 0
      %v2553 = vsel %vm2191, %v1847, 0
      %v2556 = vsel %vm2191, %v1849, 0
      %v2559 = vsel %vm2191, %v1851, 0
      %v2562 = vsel %vm2191, %v1853, 0
      %v2565 = vsel %vm2191, %v1855, 0
      %v2568 = vsel %vm2191, %v1857, 0
      %v2571 = vsel %vm2191, %v1859, 0
      %v2574 = vsel %vm2191, %v1861, 0
      %v2577 = vsel %vm2191, %v1863, 0
      %v2580 = vsel %vm2191, %v1865, 0
      %v2583 = vsel %vm2191, %v1867, 0
      %v2586 = vsel %vm2191, %v1869, 0
      %v2589 = vsel %vm2191, %v1871, 0
      %v2592 = vsel %vm2191, %v1873, 0
      %v2595 = vsel %vm2191, %v1875, 0
      %v2598 = vsel %vm2191, %v1877, 0
      %v2601 = vsel %vm2191, %v1879, 0
      %v2604 = vsel %vm2191, %v1881, 0
      %v2607 = vsel %vm2191, %v1883, 0
      %v2610 = vsel %vm2191, %v1885, 0
      %v2613 = vsel %vm2191, %v1887, 0
      %v2616 = vsel %vm2191, %v1889, 0
      %v2619 = vsel %vm2191, %v1891, 0
      %v2622 = vsel %vm2191, %v1893, 0
      %v2625 = vsel %vm2191, %v1895, 0
      %v2628 = vsel %vm2191, %v1897, 0
      %v2631 = vsel %vm2191, %v1899, 0
      %v2634 = vsel %vm2191, %v1901, 0
      %v2637 = vsel %vm2191, %v1903, 0
      %v2640 = vsel %vm2191, %v1905, 0
      %v2643 = vsel %vm2191, %v1907, 0
      %v2646 = vsel %vm2191, %v1909, 0
      %v2649 = vsel %vm2191, %v1911, 0
      %v2652 = vsel %vm2191, %v1913, 0
      %v2655 = vsel %vm2191, %v1915, 0
      %v2658 = vsel %vm2191, %v1917, 0
      %v2661 = vsel %vm2191, %v1919, 0
      %v2664 = vsel %vm2191, %v1921, 0
      %v2667 = vsel %vm2191, %v1923, 0
      %v2670 = vsel %vm2191, %v1925, 0
      %v2673 = vsel %vm2191, %v1927, 0
      %v2676 = vsel %vm2191, %v1929, 0
      %v2679 = vsel %vm2191, %v1931, 0
      %v2682 = vsel %vm2191, %v1933, 0
      %v2685 = vsel %vm2191, %v1935, 0
      %v2688 = vsel %vm2191, %v1937, 0
      %v2691 = vsel %vm2191, %v1939, 0
      %v2694 = vsel %vm2191, %v1941, 0
      %v2697 = vsel %vm2191, %v1943, 0
      %v2700 = vsel %vm2191, %v1945, 0
      %v2703 = vsel %vm2191, %v1947, 0
      %v2706 = vsel %vm2191, %v1949, 0
      %v2709 = vsel %vm2191, %v1951, 0
      %v2712 = vsel %vm2191, %v1953, 0
      %v2715 = vsel %vm2191, %v1955, 0
      %v2718 = vsel %vm2191, %v1957, 0
      %vm2720 = vcmask 1040384
      %vm2721 = vcmask 1041408
      %v2722 = vsel %vm2720, 4294967295, 65535
      %v2723 = vsel %vm2721, %v2722, 0
      %v2725 = vand.u32 %v2181, %v2723
      %2727 = vmatprep.subr.bf16.mxu0 0
      %2728 = vmatpush1.bf16.msra.mxu0 %v2172
      %2729 = vmatprep.subr.bf16.mxu0 0
      %2730 = vmatpush1.bf16.msra.mxu0 %v2173
      %2731 = vmatprep.subr.bf16.mxu0 0
      %2732 = vmatpush1.bf16.msra.mxu0 %v2174
      %2733 = vmatprep.subr.bf16.mxu0 0
      %2734 = vmatpush1.bf16.msra.mxu0 %v2175
      %2735 = vmatprep.subr.bf16.mxu0 0
      %2736 = vmatpush1.bf16.msra.mxu0 %v2176
      %2737 = vmatprep.subr.bf16.mxu0 0
      %2738 = vmatpush1.bf16.msra.mxu0 %v2177
      %2739 = vmatprep.subr.bf16.mxu0 0
      %2740 = vmatpush1.bf16.msra.mxu0 %v2178
      %2741 = vmatprep.subr.bf16.mxu0 0
      %2742 = vmatpush1.bf16.msra.mxu0 %v2179
      %2743 = vmatprep.subr.bf16.mxu0 0
      %2744 = vmatpush1.bf16.msra.mxu0 %v2180
      %2745 = vmatprep.subr.bf16.mxu0 0
      %2746 = vmatpush1.bf16.msra.mxu0 %v2725
      %2747 = vmatprep.subr.bf16.mxu0 0
      %2748 = vmatpush1.bf16.msra.mxu0 0
      %2749 = vmatprep.subr.bf16.mxu0 0
      %2750 = vmatpush1.bf16.msra.mxu0 0
      %2751 = vmatprep.subr.bf16.mxu0 0
      %2752 = vmatpush1.bf16.msra.mxu0 0
      %2753 = vmatprep.subr.bf16.mxu0 0
      %2754 = vmatpush1.bf16.msra.mxu0 0
      %2755 = vmatprep.subr.bf16.mxu0 0
      %2756 = vmatpush1.bf16.msra.mxu0 0
      %2757 = vmatprep.subr.bf16.mxu0 0
      %2758 = vmatpush1.bf16.msra.mxu0 0
      %2759 = vmatprep.mubr.bf16.mxu0 %v2193
      %2760 = vmatmul.mubr.bf16.gmra.mrb[0].mxu0 %v1606
      %v2761 = vpop.f32.mrb[0].mxu0
      %v2762 = vadd.f32 %v548, %v2761
      %v2763 = vpop.f32.mrb[0].mxu0
      %v2764 = vpop.f32.mrb[0].mxu0
      %v2765 = vadd.f32 %v548, %v2764
      %v2766 = vpop.f32.mrb[0].mxu0
      %2767 = vmatprep.mubr.bf16.mxu0 %v2196
      %2768 = vmatmul.mubr.bf16.gmra.mrb[0].mxu0 %v1608
      %v2769 = vpop.f32.mrb[0].mxu0
      %v2770 = vadd.f32 %v548, %v2769
      %v2771 = vpop.f32.mrb[0].mxu0
      %v2772 = vpop.f32.mrb[0].mxu0
      %v2773 = vadd.f32 %v548, %v2772
      %v2774 = vpop.f32.mrb[0].mxu0
      %2775 = vmatprep.mubr.bf16.mxu0 %v2199
      %2776 = vmatmul.mubr.bf16.gmra.mrb[0].mxu0 %v1610
      %v2777 = vpop.f32.mrb[0].mxu0
      %v2778 = vadd.f32 %v548, %v2777
      %v2779 = vpop.f32.mrb[0].mxu0
      %v2780 = vpop.f32.mrb[0].mxu0
      %v2781 = vadd.f32 %v548, %v2780
      %v2782 = vpop.f32.mrb[0].mxu0
      %2783 = vmatprep.mubr.bf16.mxu0 %v2202
      %2784 = vmatmul.mubr.bf16.gmra.mrb[0].mxu0 %v1612
      %v2785 = vpop.f32.mrb[0].mxu0
      %v2786 = vadd.f32 %v548, %v2785
      %v2787 = vpop.f32.mrb[0].mxu0
      %v2788 = vpop.f32.mrb[0].mxu0
      %v2789 = vadd.f32 %v548, %v2788
      %v2790 = vpop.f32.mrb[0].mxu0
      %2791 = vmatprep.mubr.bf16.mxu0 %v2205
      %2792 = vmatmul.mubr.bf16.gmra.mrb[0].mxu0 %v1614
      %v2793 = vpop.f32.mrb[0].mxu0
      %v2794 = vadd.f32 %v548, %v2793
      %v2795 = vpop.f32.mrb[0].mxu0
      %v2796 = vpop.f32.mrb[0].mxu0
      %v2797 = vadd.f32 %v548, %v2796
      %v2798 = vpop.f32.mrb[0].mxu0
      %2799 = vmatprep.mubr.bf16.mxu0 %v2208
      %2800 = vmatmul.mubr.bf16.gmra.mrb[0].mxu0 %v1616
      %v2801 = vpop.f32.mrb[0].mxu0
      %v2802 = vadd.f32 %v548, %v2801
      %v2803 = vpop.f32.mrb[0].mxu0
      %v2804 = vpop.f32.mrb[0].mxu0
      %v2805 = vadd.f32 %v548, %v2804
      %v2806 = vpop.f32.mrb[0].mxu0
      %2807 = vmatprep.mubr.bf16.mxu0 %v2211
      %2808 = vmatmul.mubr.bf16.gmra.mrb[0].mxu0 %v1618
      %v2809 = vpop.f32.mrb[0].mxu0
      %v2810 = vadd.f32 %v548, %v2809
      %v2811 = vpop.f32.mrb[0].mxu0
      %v2812 = vpop.f32.mrb[0].mxu0
      %v2813 = vadd.f32 %v548, %v2812
      %v2814 = vpop.f32.mrb[0].mxu0
      %2815 = vmatprep.mubr.bf16.mxu0 %v2214
      %2816 = vmatmul.mubr.bf16.gmra.mrb[0].mxu0 %v1620
      %v2817 = vpop.f32.mrb[0].mxu0
      %v2818 = vadd.f32 %v548, %v2817
      %v2819 = vpop.f32.mrb[0].mxu0
      %v2820 = vpop.f32.mrb[0].mxu0
      %v2821 = vadd.f32 %v548, %v2820
      %v2822 = vpop.f32.mrb[0].mxu0
      %2823 = vmatprep.mubr.bf16.mxu0 %v2217
      %2824 = vmatmul.mubr.bf16.gmra.mrb[0].mxu0 %v1622
      %v2825 = vpop.f32.mrb[0].mxu0
      %v2826 = vadd.f32 %v548, %v2825
      %v2827 = vpop.f32.mrb[0].mxu0
      %v2828 = vpop.f32.mrb[0].mxu0
      %v2829 = vadd.f32 %v548, %v2828
      %v2830 = vpop.f32.mrb[0].mxu0
      %2831 = vmatprep.mubr.bf16.mxu0 %v2220
      %2832 = vmatmul.mubr.bf16.gmra.mrb[0].mxu0 %v1624
      %v2833 = vpop.f32.mrb[0].mxu0
      %v2834 = vadd.f32 %v548, %v2833
      %v2835 = vpop.f32.mrb[0].mxu0
      %v2836 = vpop.f32.mrb[0].mxu0
      %v2837 = vadd.f32 %v548, %v2836
      %v2838 = vpop.f32.mrb[0].mxu0
      %2839 = vmatprep.mubr.bf16.mxu0 %v2223
      %2840 = vmatmul.mubr.bf16.gmra.mrb[0].mxu0 %v1626
      %v2841 = vpop.f32.mrb[0].mxu0
      %v2842 = vadd.f32 %v548, %v2841
      %v2843 = vpop.f32.mrb[0].mxu0
      %v2844 = vpop.f32.mrb[0].mxu0
      %v2845 = vadd.f32 %v548, %v2844
      %v2846 = vpop.f32.mrb[0].mxu0
      %2847 = vmatprep.mubr.bf16.mxu0 %v2226
      %2848 = vmatmul.mubr.bf16.gmra.mrb[0].mxu0 %v1628
      %v2849 = vpop.f32.mrb[0].mxu0
      %v2850 = vadd.f32 %v548, %v2849
      %v2851 = vpop.f32.mrb[0].mxu0
      %v2852 = vpop.f32.mrb[0].mxu0
      %v2853 = vadd.f32 %v548, %v2852
      %v2854 = vpop.f32.mrb[0].mxu0
      %2855 = vmatprep.mubr.bf16.mxu0 %v2229
      %2856 = vmatmul.mubr.bf16.gmra.mrb[0].mxu0 %v1630
      %v2857 = vpop.f32.mrb[0].mxu0
      %v2858 = vadd.f32 %v548, %v2857
      %v2859 = vpop.f32.mrb[0].mxu0
      %v2860 = vpop.f32.mrb[0].mxu0
      %v2861 = vadd.f32 %v548, %v2860
      %v2862 = vpop.f32.mrb[0].mxu0
      %2863 = vmatprep.mubr.bf16.mxu0 %v2232
      %2864 = vmatmul.mubr.bf16.gmra.mrb[0].mxu0 %v1632
      %v2865 = vpop.f32.mrb[0].mxu0
      %v2866 = vadd.f32 %v548, %v2865
      %v2867 = vpop.f32.mrb[0].mxu0
      %v2868 = vpop.f32.mrb[0].mxu0
      %v2869 = vadd.f32 %v548, %v2868
      %v2870 = vpop.f32.mrb[0].mxu0
      %2871 = vmatprep.mubr.bf16.mxu0 %v2235
      %2872 = vmatmul.mubr.bf16.gmra.mrb[0].mxu0 %v1634
      %v2873 = vpop.f32.mrb[0].mxu0
      %v2874 = vadd.f32 %v548, %v2873
      %v2875 = vpop.f32.mrb[0].mxu0
      %v2876 = vpop.f32.mrb[0].mxu0
      %v2877 = vadd.f32 %v548, %v2876
      %v2878 = vpop.f32.mrb[0].mxu0
      %2879 = vmatprep.mubr.bf16.mxu0 %v2238
      %2880 = vmatmul.mubr.bf16.gmra.mrb[0].mxu0 %v1636
      %v2881 = vpop.f32.mrb[0].mxu0
      %v2882 = vadd.f32 %v548, %v2881
      %v2883 = vpop.f32.mrb[0].mxu0
      %v2884 = vpop.f32.mrb[0].mxu0
      %v2885 = vadd.f32 %v548, %v2884
      %v2886 = vpop.f32.mrb[0].mxu0
      %2887 = vmatprep.mubr.bf16.mxu0 %v2241
      %2888 = vmatmul.mubr.bf16.gmra.mrb[0].mxu0 %v1638
      %v2889 = vpop.f32.mrb[0].mxu0
      %v2890 = vadd.f32 %v548, %v2889
      %v2891 = vpop.f32.mrb[0].mxu0
      %v2892 = vpop.f32.mrb[0].mxu0
      %v2893 = vadd.f32 %v548, %v2892
      %v2894 = vpop.f32.mrb[0].mxu0
      %2895 = vmatprep.mubr.bf16.mxu0 %v2244
      %2896 = vmatmul.mubr.bf16.gmra.mrb[0].mxu0 %v1640
      %v2897 = vpop.f32.mrb[0].mxu0
      %v2898 = vadd.f32 %v548, %v2897
      %v2899 = vpop.f32.mrb[0].mxu0
      %v2900 = vpop.f32.mrb[0].mxu0
      %v2901 = vadd.f32 %v548, %v2900
      %v2902 = vpop.f32.mrb[0].mxu0
      %2903 = vmatprep.mubr.bf16.mxu0 %v2247
      %2904 = vmatmul.mubr.bf16.gmra.mrb[0].mxu0 %v1642
      %v2905 = vpop.f32.mrb[0].mxu0
      %v2906 = vadd.f32 %v548, %v2905
      %v2907 = vpop.f32.mrb[0].mxu0
      %v2908 = vpop.f32.mrb[0].mxu0
      %v2909 = vadd.f32 %v548, %v2908
      %v2910 = vpop.f32.mrb[0].mxu0
      %2911 = vmatprep.mubr.bf16.mxu0 %v2250
      %2912 = vmatmul.mubr.bf16.gmra.mrb[0].mxu0 %v1644
      %v2913 = vpop.f32.mrb[0].mxu0
      %v2914 = vadd.f32 %v548, %v2913
      %v2915 = vpop.f32.mrb[0].mxu0
      %v2916 = vpop.f32.mrb[0].mxu0
      %v2917 = vadd.f32 %v548, %v2916
      %v2918 = vpop.f32.mrb[0].mxu0
      %2919 = vmatprep.mubr.bf16.mxu0 %v2253
      %2920 = vmatmul.mubr.bf16.gmra.mrb[0].mxu0 %v1646
      %v2921 = vpop.f32.mrb[0].mxu0
      %v2922 = vadd.f32 %v548, %v2921
      %v2923 = vpop.f32.mrb[0].mxu0
      %v2924 = vpop.f32.mrb[0].mxu0
      %v2925 = vadd.f32 %v548, %v2924
      %v2926 = vpop.f32.mrb[0].mxu0
      %2927 = vmatprep.mubr.bf16.mxu0 %v2256
      %2928 = vmatmul.mubr.bf16.gmra.mrb[0].mxu0 %v1648
      %v2929 = vpop.f32.mrb[0].mxu0
      %v2930 = vadd.f32 %v548, %v2929
      %v2931 = vpop.f32.mrb[0].mxu0
      %v2932 = vpop.f32.mrb[0].mxu0
      %v2933 = vadd.f32 %v548, %v2932
      %v2934 = vpop.f32.mrb[0].mxu0
      %2935 = vmatprep.mubr.bf16.mxu0 %v2259
      %2936 = vmatmul.mubr.bf16.gmra.mrb[0].mxu0 %v1650
      %v2937 = vpop.f32.mrb[0].mxu0
      %v2938 = vadd.f32 %v548, %v2937
      %v2939 = vpop.f32.mrb[0].mxu0
      %v2940 = vpop.f32.mrb[0].mxu0
      %v2941 = vadd.f32 %v548, %v2940
      %v2942 = vpop.f32.mrb[0].mxu0
      %2943 = vmatprep.mubr.bf16.mxu0 %v2262
      %2944 = vmatmul.mubr.bf16.gmra.mrb[0].mxu0 %v1652
      %v2945 = vpop.f32.mrb[0].mxu0
      %v2946 = vadd.f32 %v548, %v2945
      %v2947 = vpop.f32.mrb[0].mxu0
      %v2948 = vpop.f32.mrb[0].mxu0
      %v2949 = vadd.f32 %v548, %v2948
      %v2950 = vpop.f32.mrb[0].mxu0
      %2951 = vmatprep.mubr.bf16.mxu0 %v2265
      %2952 = vmatmul.mubr.bf16.gmra.mrb[0].mxu0 %v1654
      %v2953 = vpop.f32.mrb[0].mxu0
      %v2954 = vadd.f32 %v548, %v2953
      %v2955 = vpop.f32.mrb[0].mxu0
      %v2956 = vpop.f32.mrb[0].mxu0
      %v2957 = vadd.f32 %v548, %v2956
      %v2958 = vpop.f32.mrb[0].mxu0
      %2959 = vmatprep.mubr.bf16.mxu0 %v2268
      %2960 = vmatmul.mubr.bf16.gmra.mrb[0].mxu0 %v1656
      %v2961 = vpop.f32.mrb[0].mxu0
      %v2962 = vadd.f32 %v548, %v2961
      %v2963 = vpop.f32.mrb[0].mxu0
      %v2964 = vpop.f32.mrb[0].mxu0
      %v2965 = vadd.f32 %v548, %v2964
      %v2966 = vpop.f32.mrb[0].mxu0
      %2967 = vmatprep.mubr.bf16.mxu0 %v2271
      %2968 = vmatmul.mubr.bf16.gmra.mrb[0].mxu0 %v1658
      %v2969 = vpop.f32.mrb[0].mxu0
      %v2970 = vadd.f32 %v548, %v2969
      %v2971 = vpop.f32.mrb[0].mxu0
      %v2972 = vpop.f32.mrb[0].mxu0
      %v2973 = vadd.f32 %v548, %v2972
      %v2974 = vpop.f32.mrb[0].mxu0
      %2975 = vmatprep.mubr.bf16.mxu0 %v2274
      %2976 = vmatmul.mubr.bf16.gmra.mrb[0].mxu0 %v1660
      %v2977 = vpop.f32.mrb[0].mxu0
      %v2978 = vadd.f32 %v548, %v2977
      %v2979 = vpop.f32.mrb[0].mxu0
      %v2980 = vpop.f32.mrb[0].mxu0
      %v2981 = vadd.f32 %v548, %v2980
      %v2982 = vpop.f32.mrb[0].mxu0
      %2983 = vmatprep.mubr.bf16.mxu0 %v2277
      %2984 = vmatmul.mubr.bf16.gmra.mrb[0].mxu0 %v1662
      %v2985 = vpop.f32.mrb[0].mxu0
      %v2986 = vadd.f32 %v548, %v2985
      %v2987 = vpop.f32.mrb[0].mxu0
      %v2988 = vpop.f32.mrb[0].mxu0
      %v2989 = vadd.f32 %v548, %v2988
      %v2990 = vpop.f32.mrb[0].mxu0
      %2991 = vmatprep.mubr.bf16.mxu0 %v2280
      %2992 = vmatmul.mubr.bf16.gmra.mrb[0].mxu0 %v1664
      %v2993 = vpop.f32.mrb[0].mxu0
      %v2994 = vadd.f32 %v548, %v2993
      %v2995 = vpop.f32.mrb[0].mxu0
      %v2996 = vpop.f32.mrb[0].mxu0
      %v2997 = vadd.f32 %v548, %v2996
      %v2998 = vpop.f32.mrb[0].mxu0
      %2999 = vmatprep.mubr.bf16.mxu0 %v2283
      %3000 = vmatmul.mubr.bf16.gmra.mrb[0].mxu0 %v1666
      %v3001 = vpop.f32.mrb[0].mxu0
      %v3002 = vadd.f32 %v548, %v3001
      %v3003 = vpop.f32.mrb[0].mxu0
      %v3004 = vpop.f32.mrb[0].mxu0
      %v3005 = vadd.f32 %v548, %v3004
      %v3006 = vpop.f32.mrb[0].mxu0
      %3007 = vmatprep.mubr.bf16.mxu0 %v2286
      %3008 = vmatmul.mubr.bf16.gmra.mrb[0].mxu0 %v1668
      %v3009 = vpop.f32.mrb[0].mxu0
      %v3010 = vadd.f32 %v548, %v3009
      %v3011 = vpop.f32.mrb[0].mxu0
      %v3012 = vpop.f32.mrb[0].mxu0
      %v3013 = vadd.f32 %v548, %v3012
      %v3014 = vpop.f32.mrb[0].mxu0
      %3015 = vmatprep.mubr.bf16.mxu0 %v2289
      %3016 = vmatmul.mubr.bf16.gmra.mrb[0].mxu0 %v1670
      %v3017 = vpop.f32.mrb[0].mxu0
      %v3018 = vadd.f32 %v548, %v3017
      %v3019 = vpop.f32.mrb[0].mxu0
      %v3020 = vpop.f32.mrb[0].mxu0
      %v3021 = vadd.f32 %v548, %v3020
      %v3022 = vpop.f32.mrb[0].mxu0
      %3023 = vmatprep.mubr.bf16.mxu0 %v2292
      %3024 = vmatmul.mubr.bf16.gmra.mrb[0].mxu0 %v1672
      %v3025 = vpop.f32.mrb[0].mxu0
      %v3026 = vadd.f32 %v548, %v3025
      %v3027 = vpop.f32.mrb[0].mxu0
      %v3028 = vpop.f32.mrb[0].mxu0
      %v3029 = vadd.f32 %v548, %v3028
      %v3030 = vpop.f32.mrb[0].mxu0
      %3031 = vmatprep.mubr.bf16.mxu0 %v2295
      %3032 = vmatmul.mubr.bf16.gmra.mrb[0].mxu0 %v1674
      %v3033 = vpop.f32.mrb[0].mxu0
      %v3034 = vadd.f32 %v548, %v3033
      %v3035 = vpop.f32.mrb[0].mxu0
      %v3036 = vpop.f32.mrb[0].mxu0
      %v3037 = vadd.f32 %v548, %v3036
      %v3038 = vpop.f32.mrb[0].mxu0
      %3039 = vmatprep.mubr.bf16.mxu0 %v2298
      %3040 = vmatmul.mubr.bf16.gmra.mrb[0].mxu0 %v1676
      %v3041 = vpop.f32.mrb[0].mxu0
      %v3042 = vadd.f32 %v548, %v3041
      %v3043 = vpop.f32.mrb[0].mxu0
      %v3044 = vpop.f32.mrb[0].mxu0
      %v3045 = vadd.f32 %v548, %v3044
      %v3046 = vpop.f32.mrb[0].mxu0
      %3047 = vmatprep.mubr.bf16.mxu0 %v2301
      %3048 = vmatmul.mubr.bf16.gmra.mrb[0].mxu0 %v1678
      %v3049 = vpop.f32.mrb[0].mxu0
      %v3050 = vadd.f32 %v548, %v3049
      %v3051 = vpop.f32.mrb[0].mxu0
      %v3052 = vpop.f32.mrb[0].mxu0
      %v3053 = vadd.f32 %v548, %v3052
      %v3054 = vpop.f32.mrb[0].mxu0
      %3055 = vmatprep.mubr.bf16.mxu0 %v2304
      %3056 = vmatmul.mubr.bf16.gmra.mrb[0].mxu0 %v1680
      %v3057 = vpop.f32.mrb[0].mxu0
      %v3058 = vadd.f32 %v548, %v3057
      %v3059 = vpop.f32.mrb[0].mxu0
      %v3060 = vpop.f32.mrb[0].mxu0
      %v3061 = vadd.f32 %v548, %v3060
      %v3062 = vpop.f32.mrb[0].mxu0
      %3063 = vmatprep.mubr.bf16.mxu0 %v2307
      %3064 = vmatmul.mubr.bf16.gmra.mrb[0].mxu0 %v1682
      %v3065 = vpop.f32.mrb[0].mxu0
      %v3066 = vadd.f32 %v548, %v3065
      %v3067 = vpop.f32.mrb[0].mxu0
      %v3068 = vpop.f32.mrb[0].mxu0
      %v3069 = vadd.f32 %v548, %v3068
      %v3070 = vpop.f32.mrb[0].mxu0
      %3071 = vmatprep.mubr.bf16.mxu0 %v2310
      %3072 = vmatmul.mubr.bf16.gmra.mrb[0].mxu0 %v1684
      %v3073 = vpop.f32.mrb[0].mxu0
      %v3074 = vadd.f32 %v548, %v3073
      %v3075 = vpop.f32.mrb[0].mxu0
      %v3076 = vpop.f32.mrb[0].mxu0
      %v3077 = vadd.f32 %v548, %v3076
      %v3078 = vpop.f32.mrb[0].mxu0
      %3079 = vmatprep.mubr.bf16.mxu0 %v2313
      %3080 = vmatmul.mubr.bf16.gmra.mrb[0].mxu0 %v1686
      %v3081 = vpop.f32.mrb[0].mxu0
      %v3082 = vadd.f32 %v548, %v3081
      %v3083 = vpop.f32.mrb[0].mxu0
      %v3084 = vpop.f32.mrb[0].mxu0
      %v3085 = vadd.f32 %v548, %v3084
      %v3086 = vpop.f32.mrb[0].mxu0
      %3087 = vmatprep.mubr.bf16.mxu0 %v2316
      %3088 = vmatmul.mubr.bf16.gmra.mrb[0].mxu0 %v1688
      %v3089 = vpop.f32.mrb[0].mxu0
      %v3090 = vadd.f32 %v548, %v3089
      %v3091 = vpop.f32.mrb[0].mxu0
      %v3092 = vpop.f32.mrb[0].mxu0
      %v3093 = vadd.f32 %v548, %v3092
      %v3094 = vpop.f32.mrb[0].mxu0
      %3095 = vmatprep.mubr.bf16.mxu0 %v2319
      %3096 = vmatmul.mubr.bf16.gmra.mrb[0].mxu0 %v1690
      %v3097 = vpop.f32.mrb[0].mxu0
      %v3098 = vadd.f32 %v548, %v3097
      %v3099 = vpop.f32.mrb[0].mxu0
      %v3100 = vpop.f32.mrb[0].mxu0
      %v3101 = vadd.f32 %v548, %v3100
      %v3102 = vpop.f32.mrb[0].mxu0
      %3103 = vmatprep.mubr.bf16.mxu0 %v2322
      %3104 = vmatmul.mubr.bf16.gmra.mrb[0].mxu0 %v1692
      %v3105 = vpop.f32.mrb[0].mxu0
      %v3106 = vadd.f32 %v548, %v3105
      %v3107 = vpop.f32.mrb[0].mxu0
      %v3108 = vpop.f32.mrb[0].mxu0
      %v3109 = vadd.f32 %v548, %v3108
      %v3110 = vpop.f32.mrb[0].mxu0
      %3111 = vmatprep.mubr.bf16.mxu0 %v2325
      %3112 = vmatmul.mubr.bf16.gmra.mrb[0].mxu0 %v1694
      %v3113 = vpop.f32.mrb[0].mxu0
      %v3114 = vadd.f32 %v548, %v3113
      %v3115 = vpop.f32.mrb[0].mxu0
      %v3116 = vpop.f32.mrb[0].mxu0
      %v3117 = vadd.f32 %v548, %v3116
      %v3118 = vpop.f32.mrb[0].mxu0
      %3119 = vmatprep.mubr.bf16.mxu0 %v2328
      %3120 = vmatmul.mubr.bf16.gmra.mrb[0].mxu0 %v1696
      %v3121 = vpop.f32.mrb[0].mxu0
      %v3122 = vadd.f32 %v548, %v3121
      %v3123 = vpop.f32.mrb[0].mxu0
      %v3124 = vpop.f32.mrb[0].mxu0
      %v3125 = vadd.f32 %v548, %v3124
      %v3126 = vpop.f32.mrb[0].mxu0
      %3127 = vmatprep.mubr.bf16.mxu0 %v2331
      %3128 = vmatmul.mubr.bf16.gmra.mrb[0].mxu0 %v1698
      %v3129 = vpop.f32.mrb[0].mxu0
      %v3130 = vadd.f32 %v548, %v3129
      %v3131 = vpop.f32.mrb[0].mxu0
      %v3132 = vpop.f32.mrb[0].mxu0
      %v3133 = vadd.f32 %v548, %v3132
      %v3134 = vpop.f32.mrb[0].mxu0
      %3135 = vmatprep.mubr.bf16.mxu0 %v2334
      %3136 = vmatmul.mubr.bf16.gmra.mrb[0].mxu0 %v1700
      %v3137 = vpop.f32.mrb[0].mxu0
      %v3138 = vadd.f32 %v548, %v3137
      %v3139 = vpop.f32.mrb[0].mxu0
      %v3140 = vpop.f32.mrb[0].mxu0
      %v3141 = vadd.f32 %v548, %v3140
      %v3142 = vpop.f32.mrb[0].mxu0
      %3143 = vmatprep.mubr.bf16.mxu0 %v2337
      %3144 = vmatmul.mubr.bf16.gmra.mrb[0].mxu0 %v1702
      %v3145 = vpop.f32.mrb[0].mxu0
      %v3146 = vadd.f32 %v548, %v3145
      %v3147 = vpop.f32.mrb[0].mxu0
      %v3148 = vpop.f32.mrb[0].mxu0
      %v3149 = vadd.f32 %v548, %v3148
      %v3150 = vpop.f32.mrb[0].mxu0
      %3151 = vmatprep.mubr.bf16.mxu0 %v2340
      %3152 = vmatmul.mubr.bf16.gmra.mrb[0].mxu0 %v1704
      %v3153 = vpop.f32.mrb[0].mxu0
      %v3154 = vadd.f32 %v548, %v3153
      %v3155 = vpop.f32.mrb[0].mxu0
      %v3156 = vpop.f32.mrb[0].mxu0
      %v3157 = vadd.f32 %v548, %v3156
      %v3158 = vpop.f32.mrb[0].mxu0
      %3159 = vmatprep.mubr.bf16.mxu0 %v2343
      %3160 = vmatmul.mubr.bf16.gmra.mrb[0].mxu0 %v1706
      %v3161 = vpop.f32.mrb[0].mxu0
      %v3162 = vadd.f32 %v548, %v3161
      %v3163 = vpop.f32.mrb[0].mxu0
      %v3164 = vpop.f32.mrb[0].mxu0
      %v3165 = vadd.f32 %v548, %v3164
      %v3166 = vpop.f32.mrb[0].mxu0
      %3167 = vmatprep.mubr.bf16.mxu0 %v2346
      %3168 = vmatmul.mubr.bf16.gmra.mrb[0].mxu0 %v1708
      %v3169 = vpop.f32.mrb[0].mxu0
      %v3170 = vadd.f32 %v548, %v3169
      %v3171 = vpop.f32.mrb[0].mxu0
      %v3172 = vpop.f32.mrb[0].mxu0
      %v3173 = vadd.f32 %v548, %v3172
      %v3174 = vpop.f32.mrb[0].mxu0
      %3175 = vmatprep.mubr.bf16.mxu0 %v2349
      %3176 = vmatmul.mubr.bf16.gmra.mrb[0].mxu0 %v1710
      %v3177 = vpop.f32.mrb[0].mxu0
      %v3178 = vadd.f32 %v548, %v3177
      %v3179 = vpop.f32.mrb[0].mxu0
      %v3180 = vpop.f32.mrb[0].mxu0
      %v3181 = vadd.f32 %v548, %v3180
      %v3182 = vpop.f32.mrb[0].mxu0
      %3183 = vmatprep.mubr.bf16.mxu0 %v2352
      %3184 = vmatmul.mubr.bf16.gmra.mrb[0].mxu0 %v1712
      %v3185 = vpop.f32.mrb[0].mxu0
      %v3186 = vadd.f32 %v548, %v3185
      %v3187 = vpop.f32.mrb[0].mxu0
      %v3188 = vpop.f32.mrb[0].mxu0
      %v3189 = vadd.f32 %v548, %v3188
      %v3190 = vpop.f32.mrb[0].mxu0
      %3191 = vmatprep.mubr.bf16.mxu0 %v2355
      %3192 = vmatmul.mubr.bf16.gmra.mrb[0].mxu0 %v1714
      %v3193 = vpop.f32.mrb[0].mxu0
      %v3194 = vadd.f32 %v548, %v3193
      %v3195 = vpop.f32.mrb[0].mxu0
      %v3196 = vpop.f32.mrb[0].mxu0
      %v3197 = vadd.f32 %v548, %v3196
      %v3198 = vpop.f32.mrb[0].mxu0
      %3199 = vmatprep.mubr.bf16.mxu0 %v2358
      %3200 = vmatmul.mubr.bf16.gmra.mrb[0].mxu0 %v1716
      %v3201 = vpop.f32.mrb[0].mxu0
      %v3202 = vadd.f32 %v548, %v3201
      %v3203 = vpop.f32.mrb[0].mxu0
      %v3204 = vpop.f32.mrb[0].mxu0
      %v3205 = vadd.f32 %v548, %v3204
      %v3206 = vpop.f32.mrb[0].mxu0
      %3207 = vmatprep.mubr.bf16.mxu0 %v2361
      %3208 = vmatmul.mubr.bf16.gmra.mrb[0].mxu0 %v1718
      %v3209 = vpop.f32.mrb[0].mxu0
      %v3210 = vadd.f32 %v548, %v3209
      %v3211 = vpop.f32.mrb[0].mxu0
      %v3212 = vpop.f32.mrb[0].mxu0
      %v3213 = vadd.f32 %v548, %v3212
      %v3214 = vpop.f32.mrb[0].mxu0
      %3215 = vmatprep.mubr.bf16.mxu0 %v2364
      %3216 = vmatmul.mubr.bf16.gmra.mrb[0].mxu0 %v1720
      %v3217 = vpop.f32.mrb[0].mxu0
      %v3218 = vadd.f32 %v548, %v3217
      %v3219 = vpop.f32.mrb[0].mxu0
      %v3220 = vpop.f32.mrb[0].mxu0
      %v3221 = vadd.f32 %v548, %v3220
      %v3222 = vpop.f32.mrb[0].mxu0
      %3223 = vmatprep.mubr.bf16.mxu0 %v2367
      %3224 = vmatmul.mubr.bf16.gmra.mrb[0].mxu0 %v1722
      %v3225 = vpop.f32.mrb[0].mxu0
      %v3226 = vadd.f32 %v548, %v3225
      %v3227 = vpop.f32.mrb[0].mxu0
      %v3228 = vpop.f32.mrb[0].mxu0
      %v3229 = vadd.f32 %v548, %v3228
      %v3230 = vpop.f32.mrb[0].mxu0
      %3231 = vmatprep.mubr.bf16.mxu0 %v2370
      %3232 = vmatmul.mubr.bf16.gmra.mrb[0].mxu0 %v1724
      %v3233 = vpop.f32.mrb[0].mxu0
      %v3234 = vadd.f32 %v548, %v3233
      %v3235 = vpop.f32.mrb[0].mxu0
      %v3236 = vpop.f32.mrb[0].mxu0
      %v3237 = vadd.f32 %v548, %v3236
      %v3238 = vpop.f32.mrb[0].mxu0
      %3239 = vmatprep.mubr.bf16.mxu0 %v2373
      %3240 = vmatmul.mubr.bf16.gmra.mrb[0].mxu0 %v1726
      %v3241 = vpop.f32.mrb[0].mxu0
      %v3242 = vadd.f32 %v548, %v3241
      %v3243 = vpop.f32.mrb[0].mxu0
      %v3244 = vpop.f32.mrb[0].mxu0
      %v3245 = vadd.f32 %v548, %v3244
      %v3246 = vpop.f32.mrb[0].mxu0
      %3247 = vmatprep.mubr.bf16.mxu0 %v2376
      %3248 = vmatmul.mubr.bf16.gmra.mrb[0].mxu0 %v1728
      %v3249 = vpop.f32.mrb[0].mxu0
      %v3250 = vadd.f32 %v548, %v3249
      %v3251 = vpop.f32.mrb[0].mxu0
      %v3252 = vpop.f32.mrb[0].mxu0
      %v3253 = vadd.f32 %v548, %v3252
      %v3254 = vpop.f32.mrb[0].mxu0
      %3255 = vmatprep.mubr.bf16.mxu0 %v2379
      %3256 = vmatmul.mubr.bf16.gmra.mrb[0].mxu0 %v1730
      %v3257 = vpop.f32.mrb[0].mxu0
      %v3258 = vadd.f32 %v548, %v3257
      %v3259 = vpop.f32.mrb[0].mxu0
      %v3260 = vpop.f32.mrb[0].mxu0
      %v3261 = vadd.f32 %v548, %v3260
      %v3262 = vpop.f32.mrb[0].mxu0
      %3263 = vmatprep.mubr.bf16.mxu0 %v2382
      %3264 = vmatmul.mubr.bf16.gmra.mrb[0].mxu0 %v1732
      %v3265 = vpop.f32.mrb[0].mxu0
      %v3266 = vadd.f32 %v548, %v3265
      %v3267 = vpop.f32.mrb[0].mxu0
      %v3268 = vpop.f32.mrb[0].mxu0
      %v3269 = vadd.f32 %v548, %v3268
      %v3270 = vpop.f32.mrb[0].mxu0
      %3271 = vmatprep.mubr.bf16.mxu0 %v2385
      %3272 = vmatmul.mubr.bf16.gmra.mrb[0].mxu0 %v1734
      %v3273 = vpop.f32.mrb[0].mxu0
      %v3274 = vadd.f32 %v548, %v3273
      %v3275 = vpop.f32.mrb[0].mxu0
      %v3276 = vpop.f32.mrb[0].mxu0
      %v3277 = vadd.f32 %v548, %v3276
      %v3278 = vpop.f32.mrb[0].mxu0
      %3279 = vmatprep.mubr.bf16.mxu0 %v2388
      %3280 = vmatmul.mubr.bf16.gmra.mrb[0].mxu0 %v1736
      %v3281 = vpop.f32.mrb[0].mxu0
      %v3282 = vadd.f32 %v548, %v3281
      %v3283 = vpop.f32.mrb[0].mxu0
      %v3284 = vpop.f32.mrb[0].mxu0
      %v3285 = vadd.f32 %v548, %v3284
      %v3286 = vpop.f32.mrb[0].mxu0
      %3287 = vmatprep.mubr.bf16.mxu0 %v2391
      %3288 = vmatmul.mubr.bf16.gmra.mrb[0].mxu0 %v1738
      %v3289 = vpop.f32.mrb[0].mxu0
      %v3290 = vadd.f32 %v548, %v3289
      %v3291 = vpop.f32.mrb[0].mxu0
      %v3292 = vpop.f32.mrb[0].mxu0
      %v3293 = vadd.f32 %v548, %v3292
      %v3294 = vpop.f32.mrb[0].mxu0
      %3295 = vmatprep.mubr.bf16.mxu0 %v2394
      %3296 = vmatmul.mubr.bf16.gmra.mrb[0].mxu0 %v1740
      %v3297 = vpop.f32.mrb[0].mxu0
      %v3298 = vadd.f32 %v548, %v3297
      %v3299 = vpop.f32.mrb[0].mxu0
      %v3300 = vpop.f32.mrb[0].mxu0
      %v3301 = vadd.f32 %v548, %v3300
      %v3302 = vpop.f32.mrb[0].mxu0
      %3303 = vmatprep.mubr.bf16.mxu0 %v2397
      %3304 = vmatmul.mubr.bf16.gmra.mrb[0].mxu0 %v1742
      %v3305 = vpop.f32.mrb[0].mxu0
      %v3306 = vadd.f32 %v548, %v3305
      %v3307 = vpop.f32.mrb[0].mxu0
      %v3308 = vpop.f32.mrb[0].mxu0
      %v3309 = vadd.f32 %v548, %v3308
      %v3310 = vpop.f32.mrb[0].mxu0
      %3311 = vmatprep.mubr.bf16.mxu0 %v2400
      %3312 = vmatmul.mubr.bf16.gmra.mrb[0].mxu0 %v1744
      %v3313 = vpop.f32.mrb[0].mxu0
      %v3314 = vadd.f32 %v548, %v3313
      %v3315 = vpop.f32.mrb[0].mxu0
      %v3316 = vpop.f32.mrb[0].mxu0
      %v3317 = vadd.f32 %v548, %v3316
      %v3318 = vpop.f32.mrb[0].mxu0
      %3319 = vmatprep.mubr.bf16.mxu0 %v2403
      %3320 = vmatmul.mubr.bf16.gmra.mrb[0].mxu0 %v1746
      %v3321 = vpop.f32.mrb[0].mxu0
      %v3322 = vadd.f32 %v548, %v3321
      %v3323 = vpop.f32.mrb[0].mxu0
      %v3324 = vpop.f32.mrb[0].mxu0
      %v3325 = vadd.f32 %v548, %v3324
      %v3326 = vpop.f32.mrb[0].mxu0
      %3327 = vmatprep.mubr.bf16.mxu0 %v2406
      %3328 = vmatmul.mubr.bf16.gmra.mrb[0].mxu0 %v1748
      %v3329 = vpop.f32.mrb[0].mxu0
      %v3330 = vadd.f32 %v548, %v3329
      %v3331 = vpop.f32.mrb[0].mxu0
      %v3332 = vpop.f32.mrb[0].mxu0
      %v3333 = vadd.f32 %v548, %v3332
      %v3334 = vpop.f32.mrb[0].mxu0
      %3335 = vmatprep.mubr.bf16.mxu0 %v2409
      %3336 = vmatmul.mubr.bf16.gmra.mrb[0].mxu0 %v1750
      %v3337 = vpop.f32.mrb[0].mxu0
      %v3338 = vadd.f32 %v548, %v3337
      %v3339 = vpop.f32.mrb[0].mxu0
      %v3340 = vpop.f32.mrb[0].mxu0
      %v3341 = vadd.f32 %v548, %v3340
      %v3342 = vpop.f32.mrb[0].mxu0
      %3343 = vmatprep.mubr.bf16.mxu0 %v2412
      %3344 = vmatmul.mubr.bf16.gmra.mrb[0].mxu0 %v1752
      %v3345 = vpop.f32.mrb[0].mxu0
      %v3346 = vadd.f32 %v548, %v3345
      %v3347 = vpop.f32.mrb[0].mxu0
      %v3348 = vpop.f32.mrb[0].mxu0
      %v3349 = vadd.f32 %v548, %v3348
      %v3350 = vpop.f32.mrb[0].mxu0
      %3351 = vmatprep.mubr.bf16.mxu0 %v2415
      %3352 = vmatmul.mubr.bf16.gmra.mrb[0].mxu0 %v1754
      %v3353 = vpop.f32.mrb[0].mxu0
      %v3354 = vadd.f32 %v548, %v3353
      %v3355 = vpop.f32.mrb[0].mxu0
      %v3356 = vpop.f32.mrb[0].mxu0
      %v3357 = vadd.f32 %v548, %v3356
      %v3358 = vpop.f32.mrb[0].mxu0
      %3359 = vmatprep.mubr.bf16.mxu0 %v2418
      %3360 = vmatmul.mubr.bf16.gmra.mrb[0].mxu0 %v1756
      %v3361 = vpop.f32.mrb[0].mxu0
      %v3362 = vadd.f32 %v548, %v3361
      %v3363 = vpop.f32.mrb[0].mxu0
      %v3364 = vpop.f32.mrb[0].mxu0
      %v3365 = vadd.f32 %v548, %v3364
      %v3366 = vpop.f32.mrb[0].mxu0
      %3367 = vmatprep.mubr.bf16.mxu0 %v2421
      %3368 = vmatmul.mubr.bf16.gmra.mrb[0].mxu0 %v1758
      %v3369 = vpop.f32.mrb[0].mxu0
      %v3370 = vadd.f32 %v548, %v3369
      %v3371 = vpop.f32.mrb[0].mxu0
      %v3372 = vpop.f32.mrb[0].mxu0
      %v3373 = vadd.f32 %v548, %v3372
      %v3374 = vpop.f32.mrb[0].mxu0
      %3375 = vmatprep.mubr.bf16.mxu0 %v2424
      %3376 = vmatmul.mubr.bf16.gmra.mrb[0].mxu0 %v1760
      %v3377 = vpop.f32.mrb[0].mxu0
      %v3378 = vadd.f32 %v548, %v3377
      %v3379 = vpop.f32.mrb[0].mxu0
      %v3380 = vpop.f32.mrb[0].mxu0
      %v3381 = vadd.f32 %v548, %v3380
      %v3382 = vpop.f32.mrb[0].mxu0
      %3383 = vmatprep.mubr.bf16.mxu0 %v2427
      %3384 = vmatmul.mubr.bf16.gmra.mrb[0].mxu0 %v1762
      %v3385 = vpop.f32.mrb[0].mxu0
      %v3386 = vadd.f32 %v548, %v3385
      %v3387 = vpop.f32.mrb[0].mxu0
      %v3388 = vpop.f32.mrb[0].mxu0
      %v3389 = vadd.f32 %v548, %v3388
      %v3390 = vpop.f32.mrb[0].mxu0
      %3391 = vmatprep.mubr.bf16.mxu0 %v2430
      %3392 = vmatmul.mubr.bf16.gmra.mrb[0].mxu0 %v1764
      %v3393 = vpop.f32.mrb[0].mxu0
      %v3394 = vadd.f32 %v548, %v3393
      %v3395 = vpop.f32.mrb[0].mxu0
      %v3396 = vpop.f32.mrb[0].mxu0
      %v3397 = vadd.f32 %v548, %v3396
      %v3398 = vpop.f32.mrb[0].mxu0
      %3399 = vmatprep.mubr.bf16.mxu0 %v2433
      %3400 = vmatmul.mubr.bf16.gmra.mrb[0].mxu0 %v1766
      %v3401 = vpop.f32.mrb[0].mxu0
      %v3402 = vadd.f32 %v548, %v3401
      %v3403 = vpop.f32.mrb[0].mxu0
      %v3404 = vpop.f32.mrb[0].mxu0
      %v3405 = vadd.f32 %v548, %v3404
      %v3406 = vpop.f32.mrb[0].mxu0
      %3407 = vmatprep.mubr.bf16.mxu0 %v2436
      %3408 = vmatmul.mubr.bf16.gmra.mrb[0].mxu0 %v1768
      %v3409 = vpop.f32.mrb[0].mxu0
      %v3410 = vadd.f32 %v548, %v3409
      %v3411 = vpop.f32.mrb[0].mxu0
      %v3412 = vpop.f32.mrb[0].mxu0
      %v3413 = vadd.f32 %v548, %v3412
      %v3414 = vpop.f32.mrb[0].mxu0
      %3415 = vmatprep.mubr.bf16.mxu0 %v2439
      %3416 = vmatmul.mubr.bf16.gmra.mrb[0].mxu0 %v1770
      %v3417 = vpop.f32.mrb[0].mxu0
      %v3418 = vadd.f32 %v548, %v3417
      %v3419 = vpop.f32.mrb[0].mxu0
      %v3420 = vpop.f32.mrb[0].mxu0
      %v3421 = vadd.f32 %v548, %v3420
      %v3422 = vpop.f32.mrb[0].mxu0
      %3423 = vmatprep.mubr.bf16.mxu0 %v2442
      %3424 = vmatmul.mubr.bf16.gmra.mrb[0].mxu0 %v1772
      %v3425 = vpop.f32.mrb[0].mxu0
      %v3426 = vadd.f32 %v548, %v3425
      %v3427 = vpop.f32.mrb[0].mxu0
      %v3428 = vpop.f32.mrb[0].mxu0
      %v3429 = vadd.f32 %v548, %v3428
      %v3430 = vpop.f32.mrb[0].mxu0
      %3431 = vmatprep.mubr.bf16.mxu0 %v2445
      %3432 = vmatmul.mubr.bf16.gmra.mrb[0].mxu0 %v1774
      %v3433 = vpop.f32.mrb[0].mxu0
      %v3434 = vadd.f32 %v548, %v3433
      %v3435 = vpop.f32.mrb[0].mxu0
      %v3436 = vpop.f32.mrb[0].mxu0
      %v3437 = vadd.f32 %v548, %v3436
      %v3438 = vpop.f32.mrb[0].mxu0
      %3439 = vmatprep.mubr.bf16.mxu0 %v2448
      %3440 = vmatmul.mubr.bf16.gmra.mrb[0].mxu0 %v1776
      %v3441 = vpop.f32.mrb[0].mxu0
      %v3442 = vadd.f32 %v548, %v3441
      %v3443 = vpop.f32.mrb[0].mxu0
      %v3444 = vpop.f32.mrb[0].mxu0
      %v3445 = vadd.f32 %v548, %v3444
      %v3446 = vpop.f32.mrb[0].mxu0
      %3447 = vmatprep.mubr.bf16.mxu0 %v2451
      %3448 = vmatmul.mubr.bf16.gmra.mrb[0].mxu0 %v1778
      %v3449 = vpop.f32.mrb[0].mxu0
      %v3450 = vadd.f32 %v548, %v3449
      %v3451 = vpop.f32.mrb[0].mxu0
      %v3452 = vpop.f32.mrb[0].mxu0
      %v3453 = vadd.f32 %v548, %v3452
      %v3454 = vpop.f32.mrb[0].mxu0
      %3455 = vmatprep.mubr.bf16.mxu0 %v2454
      %3456 = vmatmul.mubr.bf16.gmra.mrb[0].mxu0 %v1780
      %v3457 = vpop.f32.mrb[0].mxu0
      %v3458 = vadd.f32 %v548, %v3457
      %v3459 = vpop.f32.mrb[0].mxu0
      %v3460 = vpop.f32.mrb[0].mxu0
      %v3461 = vadd.f32 %v548, %v3460
      %v3462 = vpop.f32.mrb[0].mxu0
      %3463 = vmatprep.mubr.bf16.mxu0 %v2457
      %3464 = vmatmul.mubr.bf16.gmra.mrb[0].mxu0 %v1782
      %v3465 = vpop.f32.mrb[0].mxu0
      %v3466 = vadd.f32 %v548, %v3465
      %v3467 = vpop.f32.mrb[0].mxu0
      %v3468 = vpop.f32.mrb[0].mxu0
      %v3469 = vadd.f32 %v548, %v3468
      %v3470 = vpop.f32.mrb[0].mxu0
      %3471 = vmatprep.mubr.bf16.mxu0 %v2460
      %3472 = vmatmul.mubr.bf16.gmra.mrb[0].mxu0 %v1784
      %v3473 = vpop.f32.mrb[0].mxu0
      %v3474 = vadd.f32 %v548, %v3473
      %v3475 = vpop.f32.mrb[0].mxu0
      %v3476 = vpop.f32.mrb[0].mxu0
      %v3477 = vadd.f32 %v548, %v3476
      %v3478 = vpop.f32.mrb[0].mxu0
      %3479 = vmatprep.mubr.bf16.mxu0 %v2463
      %3480 = vmatmul.mubr.bf16.gmra.mrb[0].mxu0 %v1786
      %v3481 = vpop.f32.mrb[0].mxu0
      %v3482 = vadd.f32 %v548, %v3481
      %v3483 = vpop.f32.mrb[0].mxu0
      %v3484 = vpop.f32.mrb[0].mxu0
      %v3485 = vadd.f32 %v548, %v3484
      %v3486 = vpop.f32.mrb[0].mxu0
      %3487 = vmatprep.mubr.bf16.mxu0 %v2466
      %3488 = vmatmul.mubr.bf16.gmra.mrb[0].mxu0 %v1788
      %v3489 = vpop.f32.mrb[0].mxu0
      %v3490 = vadd.f32 %v548, %v3489
      %v3491 = vpop.f32.mrb[0].mxu0
      %v3492 = vpop.f32.mrb[0].mxu0
      %v3493 = vadd.f32 %v548, %v3492
      %v3494 = vpop.f32.mrb[0].mxu0
      %3495 = vmatprep.mubr.bf16.mxu0 %v2469
      %3496 = vmatmul.mubr.bf16.gmra.mrb[0].mxu0 %v1790
      %v3497 = vpop.f32.mrb[0].mxu0
      %v3498 = vadd.f32 %v548, %v3497
      %v3499 = vpop.f32.mrb[0].mxu0
      %v3500 = vpop.f32.mrb[0].mxu0
      %v3501 = vadd.f32 %v548, %v3500
      %v3502 = vpop.f32.mrb[0].mxu0
      %3503 = vmatprep.mubr.bf16.mxu0 %v2472
      %3504 = vmatmul.mubr.bf16.gmra.mrb[0].mxu0 %v1792
      %v3505 = vpop.f32.mrb[0].mxu0
      %v3506 = vadd.f32 %v548, %v3505
      %v3507 = vpop.f32.mrb[0].mxu0
      %v3508 = vpop.f32.mrb[0].mxu0
      %v3509 = vadd.f32 %v548, %v3508
      %v3510 = vpop.f32.mrb[0].mxu0
      %3511 = vmatprep.mubr.bf16.mxu0 %v2475
      %3512 = vmatmul.mubr.bf16.gmra.mrb[0].mxu0 %v1794
      %v3513 = vpop.f32.mrb[0].mxu0
      %v3514 = vadd.f32 %v548, %v3513
      %v3515 = vpop.f32.mrb[0].mxu0
      %v3516 = vpop.f32.mrb[0].mxu0
      %v3517 = vadd.f32 %v548, %v3516
      %v3518 = vpop.f32.mrb[0].mxu0
      %3519 = vmatprep.mubr.bf16.mxu0 %v2478
      %3520 = vmatmul.mubr.bf16.gmra.mrb[0].mxu0 %v1796
      %v3521 = vpop.f32.mrb[0].mxu0
      %v3522 = vadd.f32 %v548, %v3521
      %v3523 = vpop.f32.mrb[0].mxu0
      %v3524 = vpop.f32.mrb[0].mxu0
      %v3525 = vadd.f32 %v548, %v3524
      %v3526 = vpop.f32.mrb[0].mxu0
      %3527 = vmatprep.mubr.bf16.mxu0 %v2481
      %3528 = vmatmul.mubr.bf16.gmra.mrb[0].mxu0 %v1798
      %v3529 = vpop.f32.mrb[0].mxu0
      %v3530 = vadd.f32 %v548, %v3529
      %v3531 = vpop.f32.mrb[0].mxu0
      %v3532 = vpop.f32.mrb[0].mxu0
      %v3533 = vadd.f32 %v548, %v3532
      %v3534 = vpop.f32.mrb[0].mxu0
      %3535 = vmatprep.mubr.bf16.mxu0 %v2484
      %3536 = vmatmul.mubr.bf16.gmra.mrb[0].mxu0 %v1800
      %v3537 = vpop.f32.mrb[0].mxu0
      %v3538 = vadd.f32 %v548, %v3537
      %v3539 = vpop.f32.mrb[0].mxu0
      %v3540 = vpop.f32.mrb[0].mxu0
      %v3541 = vadd.f32 %v548, %v3540
      %v3542 = vpop.f32.mrb[0].mxu0
      %3543 = vmatprep.mubr.bf16.mxu0 %v2487
      %3544 = vmatmul.mubr.bf16.gmra.mrb[0].mxu0 %v1802
      %v3545 = vpop.f32.mrb[0].mxu0
      %v3546 = vadd.f32 %v548, %v3545
      %v3547 = vpop.f32.mrb[0].mxu0
      %v3548 = vpop.f32.mrb[0].mxu0
      %v3549 = vadd.f32 %v548, %v3548
      %v3550 = vpop.f32.mrb[0].mxu0
      %3551 = vmatprep.mubr.bf16.mxu0 %v2490
      %3552 = vmatmul.mubr.bf16.gmra.mrb[0].mxu0 %v1804
      %v3553 = vpop.f32.mrb[0].mxu0
      %v3554 = vadd.f32 %v548, %v3553
      %v3555 = vpop.f32.mrb[0].mxu0
      %v3556 = vpop.f32.mrb[0].mxu0
      %v3557 = vadd.f32 %v548, %v3556
      %v3558 = vpop.f32.mrb[0].mxu0
      %3559 = vmatprep.mubr.bf16.mxu0 %v2493
      %3560 = vmatmul.mubr.bf16.gmra.mrb[0].mxu0 %v1806
      %v3561 = vpop.f32.mrb[0].mxu0
      %v3562 = vadd.f32 %v548, %v3561
      %v3563 = vpop.f32.mrb[0].mxu0
      %v3564 = vpop.f32.mrb[0].mxu0
      %v3565 = vadd.f32 %v548, %v3564
      %v3566 = vpop.f32.mrb[0].mxu0
      %3567 = vmatprep.mubr.bf16.mxu0 %v2496
      %3568 = vmatmul.mubr.bf16.gmra.mrb[0].mxu0 %v1808
      %v3569 = vpop.f32.mrb[0].mxu0
      %v3570 = vadd.f32 %v548, %v3569
      %v3571 = vpop.f32.mrb[0].mxu0
      %v3572 = vpop.f32.mrb[0].mxu0
      %v3573 = vadd.f32 %v548, %v3572
      %v3574 = vpop.f32.mrb[0].mxu0
      %3575 = vmatprep.mubr.bf16.mxu0 %v2499
      %3576 = vmatmul.mubr.bf16.gmra.mrb[0].mxu0 %v1810
      %v3577 = vpop.f32.mrb[0].mxu0
      %v3578 = vadd.f32 %v548, %v3577
      %v3579 = vpop.f32.mrb[0].mxu0
      %v3580 = vpop.f32.mrb[0].mxu0
      %v3581 = vadd.f32 %v548, %v3580
      %v3582 = vpop.f32.mrb[0].mxu0
      %3583 = vmatprep.mubr.bf16.mxu0 %v2502
      %3584 = vmatmul.mubr.bf16.gmra.mrb[0].mxu0 %v1812
      %v3585 = vpop.f32.mrb[0].mxu0
      %v3586 = vadd.f32 %v548, %v3585
      %v3587 = vpop.f32.mrb[0].mxu0
      %v3588 = vpop.f32.mrb[0].mxu0
      %v3589 = vadd.f32 %v548, %v3588
      %v3590 = vpop.f32.mrb[0].mxu0
      %3591 = vmatprep.mubr.bf16.mxu0 %v2505
      %3592 = vmatmul.mubr.bf16.gmra.mrb[0].mxu0 %v1814
      %v3593 = vpop.f32.mrb[0].mxu0
      %v3594 = vadd.f32 %v548, %v3593
      %v3595 = vpop.f32.mrb[0].mxu0
      %v3596 = vpop.f32.mrb[0].mxu0
      %v3597 = vadd.f32 %v548, %v3596
      %v3598 = vpop.f32.mrb[0].mxu0
      %3599 = vmatprep.mubr.bf16.mxu0 %v2508
      %3600 = vmatmul.mubr.bf16.gmra.mrb[0].mxu0 %v1816
      %v3601 = vpop.f32.mrb[0].mxu0
      %v3602 = vadd.f32 %v548, %v3601
      %v3603 = vpop.f32.mrb[0].mxu0
      %v3604 = vpop.f32.mrb[0].mxu0
      %v3605 = vadd.f32 %v548, %v3604
      %v3606 = vpop.f32.mrb[0].mxu0
      %3607 = vmatprep.mubr.bf16.mxu0 %v2511
      %3608 = vmatmul.mubr.bf16.gmra.mrb[0].mxu0 %v1818
      %v3609 = vpop.f32.mrb[0].mxu0
      %v3610 = vadd.f32 %v548, %v3609
      %v3611 = vpop.f32.mrb[0].mxu0
      %v3612 = vpop.f32.mrb[0].mxu0
      %v3613 = vadd.f32 %v548, %v3612
      %v3614 = vpop.f32.mrb[0].mxu0
      %3615 = vmatprep.mubr.bf16.mxu0 %v2514
      %3616 = vmatmul.mubr.bf16.gmra.mrb[0].mxu0 %v1820
      %v3617 = vpop.f32.mrb[0].mxu0
      %v3618 = vadd.f32 %v548, %v3617
      %v3619 = vpop.f32.mrb[0].mxu0
      %v3620 = vpop.f32.mrb[0].mxu0
      %v3621 = vadd.f32 %v548, %v3620
      %v3622 = vpop.f32.mrb[0].mxu0
      %3623 = vmatprep.mubr.bf16.mxu0 %v2517
      %3624 = vmatmul.mubr.bf16.gmra.mrb[0].mxu0 %v1822
      %v3625 = vpop.f32.mrb[0].mxu0
      %v3626 = vadd.f32 %v548, %v3625
      %v3627 = vpop.f32.mrb[0].mxu0
      %v3628 = vpop.f32.mrb[0].mxu0
      %v3629 = vadd.f32 %v548, %v3628
      %v3630 = vpop.f32.mrb[0].mxu0
      %3631 = vmatprep.mubr.bf16.mxu0 %v2520
      %3632 = vmatmul.mubr.bf16.gmra.mrb[0].mxu0 %v1824
      %v3633 = vpop.f32.mrb[0].mxu0
      %v3634 = vadd.f32 %v548, %v3633
      %v3635 = vpop.f32.mrb[0].mxu0
      %v3636 = vpop.f32.mrb[0].mxu0
      %v3637 = vadd.f32 %v548, %v3636
      %v3638 = vpop.f32.mrb[0].mxu0
      %3639 = vmatprep.mubr.bf16.mxu0 %v2523
      %3640 = vmatmul.mubr.bf16.gmra.mrb[0].mxu0 %v1826
      %v3641 = vpop.f32.mrb[0].mxu0
      %v3642 = vadd.f32 %v548, %v3641
      %v3643 = vpop.f32.mrb[0].mxu0
      %v3644 = vpop.f32.mrb[0].mxu0
      %v3645 = vadd.f32 %v548, %v3644
      %v3646 = vpop.f32.mrb[0].mxu0
      %3647 = vmatprep.mubr.bf16.mxu0 %v2526
      %3648 = vmatmul.mubr.bf16.gmra.mrb[0].mxu0 %v1828
      %v3649 = vpop.f32.mrb[0].mxu0
      %v3650 = vadd.f32 %v548, %v3649
      %v3651 = vpop.f32.mrb[0].mxu0
      %v3652 = vpop.f32.mrb[0].mxu0
      %v3653 = vadd.f32 %v548, %v3652
      %v3654 = vpop.f32.mrb[0].mxu0
      %3655 = vmatprep.mubr.bf16.mxu0 %v2529
      %3656 = vmatmul.mubr.bf16.gmra.mrb[0].mxu0 %v1830
      %v3657 = vpop.f32.mrb[0].mxu0
      %v3658 = vadd.f32 %v548, %v3657
      %v3659 = vpop.f32.mrb[0].mxu0
      %v3660 = vpop.f32.mrb[0].mxu0
      %v3661 = vadd.f32 %v548, %v3660
      %v3662 = vpop.f32.mrb[0].mxu0
      %3663 = vmatprep.mubr.bf16.mxu0 %v2532
      %3664 = vmatmul.mubr.bf16.gmra.mrb[0].mxu0 %v1832
      %v3665 = vpop.f32.mrb[0].mxu0
      %v3666 = vadd.f32 %v548, %v3665
      %v3667 = vpop.f32.mrb[0].mxu0
      %v3668 = vpop.f32.mrb[0].mxu0
      %v3669 = vadd.f32 %v548, %v3668
      %v3670 = vpop.f32.mrb[0].mxu0
      %3671 = vmatprep.mubr.bf16.mxu0 %v2535
      %3672 = vmatmul.mubr.bf16.gmra.mrb[0].mxu0 %v1834
      %v3673 = vpop.f32.mrb[0].mxu0
      %v3674 = vadd.f32 %v548, %v3673
      %v3675 = vpop.f32.mrb[0].mxu0
      %v3676 = vpop.f32.mrb[0].mxu0
      %v3677 = vadd.f32 %v548, %v3676
      %v3678 = vpop.f32.mrb[0].mxu0
      %3679 = vmatprep.mubr.bf16.mxu0 %v2538
      %3680 = vmatmul.mubr.bf16.gmra.mrb[0].mxu0 %v1836
      %v3681 = vpop.f32.mrb[0].mxu0
      %v3682 = vadd.f32 %v548, %v3681
      %v3683 = vpop.f32.mrb[0].mxu0
      %v3684 = vpop.f32.mrb[0].mxu0
      %v3685 = vadd.f32 %v548, %v3684
      %v3686 = vpop.f32.mrb[0].mxu0
      %3687 = vmatprep.mubr.bf16.mxu0 %v2541
      %3688 = vmatmul.mubr.bf16.gmra.mrb[0].mxu0 %v1838
      %v3689 = vpop.f32.mrb[0].mxu0
      %v3690 = vadd.f32 %v548, %v3689
      %v3691 = vpop.f32.mrb[0].mxu0
      %v3692 = vpop.f32.mrb[0].mxu0
      %v3693 = vadd.f32 %v548, %v3692
      %v3694 = vpop.f32.mrb[0].mxu0
      %3695 = vmatprep.mubr.bf16.mxu0 %v2544
      %3696 = vmatmul.mubr.bf16.gmra.mrb[0].mxu0 %v1840
      %v3697 = vpop.f32.mrb[0].mxu0
      %v3698 = vadd.f32 %v548, %v3697
      %v3699 = vpop.f32.mrb[0].mxu0
      %v3700 = vpop.f32.mrb[0].mxu0
      %v3701 = vadd.f32 %v548, %v3700
      %v3702 = vpop.f32.mrb[0].mxu0
      %3703 = vmatprep.mubr.bf16.mxu0 %v2547
      %3704 = vmatmul.mubr.bf16.gmra.mrb[0].mxu0 %v1842
      %v3705 = vpop.f32.mrb[0].mxu0
      %v3706 = vadd.f32 %v548, %v3705
      %v3707 = vpop.f32.mrb[0].mxu0
      %v3708 = vpop.f32.mrb[0].mxu0
      %v3709 = vadd.f32 %v548, %v3708
      %v3710 = vpop.f32.mrb[0].mxu0
      %3711 = vmatprep.mubr.bf16.mxu0 %v2550
      %3712 = vmatmul.mubr.bf16.gmra.mrb[0].mxu0 %v1844
      %v3713 = vpop.f32.mrb[0].mxu0
      %v3714 = vadd.f32 %v548, %v3713
      %v3715 = vpop.f32.mrb[0].mxu0
      %v3716 = vpop.f32.mrb[0].mxu0
      %v3717 = vadd.f32 %v548, %v3716
      %v3718 = vpop.f32.mrb[0].mxu0
      %3719 = vmatprep.mubr.bf16.mxu0 %v2553
      %3720 = vmatmul.mubr.bf16.gmra.mrb[0].mxu0 %v1846
      %v3721 = vpop.f32.mrb[0].mxu0
      %v3722 = vadd.f32 %v548, %v3721
      %v3723 = vpop.f32.mrb[0].mxu0
      %v3724 = vpop.f32.mrb[0].mxu0
      %v3725 = vadd.f32 %v548, %v3724
      %v3726 = vpop.f32.mrb[0].mxu0
      %3727 = vmatprep.mubr.bf16.mxu0 %v2556
      %3728 = vmatmul.mubr.bf16.gmra.mrb[0].mxu0 %v1848
      %v3729 = vpop.f32.mrb[0].mxu0
      %v3730 = vadd.f32 %v548, %v3729
      %v3731 = vpop.f32.mrb[0].mxu0
      %v3732 = vpop.f32.mrb[0].mxu0
      %v3733 = vadd.f32 %v548, %v3732
      %v3734 = vpop.f32.mrb[0].mxu0
      %3735 = vmatprep.mubr.bf16.mxu0 %v2559
      %3736 = vmatmul.mubr.bf16.gmra.mrb[0].mxu0 %v1850
      %v3737 = vpop.f32.mrb[0].mxu0
      %v3738 = vadd.f32 %v548, %v3737
      %v3739 = vpop.f32.mrb[0].mxu0
      %v3740 = vpop.f32.mrb[0].mxu0
      %v3741 = vadd.f32 %v548, %v3740
      %v3742 = vpop.f32.mrb[0].mxu0
      %3743 = vmatprep.mubr.bf16.mxu0 %v2562
      %3744 = vmatmul.mubr.bf16.gmra.mrb[0].mxu0 %v1852
      %v3745 = vpop.f32.mrb[0].mxu0
      %v3746 = vadd.f32 %v548, %v3745
      %v3747 = vpop.f32.mrb[0].mxu0
      %v3748 = vpop.f32.mrb[0].mxu0
      %v3749 = vadd.f32 %v548, %v3748
      %v3750 = vpop.f32.mrb[0].mxu0
      %3751 = vmatprep.mubr.bf16.mxu0 %v2565
      %3752 = vmatmul.mubr.bf16.gmra.mrb[0].mxu0 %v1854
      %v3753 = vpop.f32.mrb[0].mxu0
      %v3754 = vadd.f32 %v548, %v3753
      %v3755 = vpop.f32.mrb[0].mxu0
      %v3756 = vpop.f32.mrb[0].mxu0
      %v3757 = vadd.f32 %v548, %v3756
      %v3758 = vpop.f32.mrb[0].mxu0
      %3759 = vmatprep.mubr.bf16.mxu0 %v2568
      %3760 = vmatmul.mubr.bf16.gmra.mrb[0].mxu0 %v1856
      %v3761 = vpop.f32.mrb[0].mxu0
      %v3762 = vadd.f32 %v548, %v3761
      %v3763 = vpop.f32.mrb[0].mxu0
      %v3764 = vpop.f32.mrb[0].mxu0
      %v3765 = vadd.f32 %v548, %v3764
      %v3766 = vpop.f32.mrb[0].mxu0
      %3767 = vmatprep.mubr.bf16.mxu0 %v2571
      %3768 = vmatmul.mubr.bf16.gmra.mrb[0].mxu0 %v1858
      %v3769 = vpop.f32.mrb[0].mxu0
      %v3770 = vadd.f32 %v548, %v3769
      %v3771 = vpop.f32.mrb[0].mxu0
      %v3772 = vpop.f32.mrb[0].mxu0
      %v3773 = vadd.f32 %v548, %v3772
      %v3774 = vpop.f32.mrb[0].mxu0
      %3775 = vmatprep.mubr.bf16.mxu0 %v2574
      %3776 = vmatmul.mubr.bf16.gmra.mrb[0].mxu0 %v1860
      %v3777 = vpop.f32.mrb[0].mxu0
      %v3778 = vadd.f32 %v548, %v3777
      %v3779 = vpop.f32.mrb[0].mxu0
      %v3780 = vpop.f32.mrb[0].mxu0
      %v3781 = vadd.f32 %v548, %v3780
      %v3782 = vpop.f32.mrb[0].mxu0
      %3783 = vmatprep.mubr.bf16.mxu0 %v2577
      %3784 = vmatmul.mubr.bf16.gmra.mrb[0].mxu0 %v1862
      %v3785 = vpop.f32.mrb[0].mxu0
      %v3786 = vadd.f32 %v548, %v3785
      %v3787 = vpop.f32.mrb[0].mxu0
      %v3788 = vpop.f32.mrb[0].mxu0
      %v3789 = vadd.f32 %v548, %v3788
      %v3790 = vpop.f32.mrb[0].mxu0
      %3791 = vmatprep.mubr.bf16.mxu0 %v2580
      %3792 = vmatmul.mubr.bf16.gmra.mrb[0].mxu0 %v1864
      %v3793 = vpop.f32.mrb[0].mxu0
      %v3794 = vadd.f32 %v548, %v3793
      %v3795 = vpop.f32.mrb[0].mxu0
      %v3796 = vpop.f32.mrb[0].mxu0
      %v3797 = vadd.f32 %v548, %v3796
      %v3798 = vpop.f32.mrb[0].mxu0
      %3799 = vmatprep.mubr.bf16.mxu0 %v2583
      %3800 = vmatmul.mubr.bf16.gmra.mrb[0].mxu0 %v1866
      %v3801 = vpop.f32.mrb[0].mxu0
      %v3802 = vadd.f32 %v548, %v3801
      %v3803 = vpop.f32.mrb[0].mxu0
      %v3804 = vpop.f32.mrb[0].mxu0
      %v3805 = vadd.f32 %v548, %v3804
      %v3806 = vpop.f32.mrb[0].mxu0
      %3807 = vmatprep.mubr.bf16.mxu0 %v2586
      %3808 = vmatmul.mubr.bf16.gmra.mrb[0].mxu0 %v1868
      %v3809 = vpop.f32.mrb[0].mxu0
      %v3810 = vadd.f32 %v548, %v3809
      %v3811 = vpop.f32.mrb[0].mxu0
      %v3812 = vpop.f32.mrb[0].mxu0
      %v3813 = vadd.f32 %v548, %v3812
      %v3814 = vpop.f32.mrb[0].mxu0
      %3815 = vmatprep.mubr.bf16.mxu0 %v2589
      %3816 = vmatmul.mubr.bf16.gmra.mrb[0].mxu0 %v1870
      %v3817 = vpop.f32.mrb[0].mxu0
      %v3818 = vadd.f32 %v548, %v3817
      %v3819 = vpop.f32.mrb[0].mxu0
      %v3820 = vpop.f32.mrb[0].mxu0
      %v3821 = vadd.f32 %v548, %v3820
      %v3822 = vpop.f32.mrb[0].mxu0
      %3823 = vmatprep.mubr.bf16.mxu0 %v2592
      %3824 = vmatmul.mubr.bf16.gmra.mrb[0].mxu0 %v1872
      %v3825 = vpop.f32.mrb[0].mxu0
      %v3826 = vadd.f32 %v548, %v3825
      %v3827 = vpop.f32.mrb[0].mxu0
      %v3828 = vpop.f32.mrb[0].mxu0
      %v3829 = vadd.f32 %v548, %v3828
      %v3830 = vpop.f32.mrb[0].mxu0
      %3831 = vmatprep.mubr.bf16.mxu0 %v2595
      %3832 = vmatmul.mubr.bf16.gmra.mrb[0].mxu0 %v1874
      %v3833 = vpop.f32.mrb[0].mxu0
      %v3834 = vadd.f32 %v548, %v3833
      %v3835 = vpop.f32.mrb[0].mxu0
      %v3836 = vpop.f32.mrb[0].mxu0
      %v3837 = vadd.f32 %v548, %v3836
      %v3838 = vpop.f32.mrb[0].mxu0
      %3839 = vmatprep.mubr.bf16.mxu0 %v2598
      %3840 = vmatmul.mubr.bf16.gmra.mrb[0].mxu0 %v1876
      %v3841 = vpop.f32.mrb[0].mxu0
      %v3842 = vadd.f32 %v548, %v3841
      %v3843 = vpop.f32.mrb[0].mxu0
      %v3844 = vpop.f32.mrb[0].mxu0
      %v3845 = vadd.f32 %v548, %v3844
      %v3846 = vpop.f32.mrb[0].mxu0
      %3847 = vmatprep.mubr.bf16.mxu0 %v2601
      %3848 = vmatmul.mubr.bf16.gmra.mrb[0].mxu0 %v1878
      %v3849 = vpop.f32.mrb[0].mxu0
      %v3850 = vadd.f32 %v548, %v3849
      %v3851 = vpop.f32.mrb[0].mxu0
      %v3852 = vpop.f32.mrb[0].mxu0
      %v3853 = vadd.f32 %v548, %v3852
      %v3854 = vpop.f32.mrb[0].mxu0
      %3855 = vmatprep.mubr.bf16.mxu0 %v2604
      %3856 = vmatmul.mubr.bf16.gmra.mrb[0].mxu0 %v1880
      %v3857 = vpop.f32.mrb[0].mxu0
      %v3858 = vadd.f32 %v548, %v3857
      %v3859 = vpop.f32.mrb[0].mxu0
      %v3860 = vpop.f32.mrb[0].mxu0
      %v3861 = vadd.f32 %v548, %v3860
      %v3862 = vpop.f32.mrb[0].mxu0
      %3863 = vmatprep.mubr.bf16.mxu0 %v2607
      %3864 = vmatmul.mubr.bf16.gmra.mrb[0].mxu0 %v1882
      %v3865 = vpop.f32.mrb[0].mxu0
      %v3866 = vadd.f32 %v548, %v3865
      %v3867 = vpop.f32.mrb[0].mxu0
      %v3868 = vpop.f32.mrb[0].mxu0
      %v3869 = vadd.f32 %v548, %v3868
      %v3870 = vpop.f32.mrb[0].mxu0
      %3871 = vmatprep.mubr.bf16.mxu0 %v2610
      %3872 = vmatmul.mubr.bf16.gmra.mrb[0].mxu0 %v1884
      %v3873 = vpop.f32.mrb[0].mxu0
      %v3874 = vadd.f32 %v548, %v3873
      %v3875 = vpop.f32.mrb[0].mxu0
      %v3876 = vpop.f32.mrb[0].mxu0
      %v3877 = vadd.f32 %v548, %v3876
      %v3878 = vpop.f32.mrb[0].mxu0
      %3879 = vmatprep.mubr.bf16.mxu0 %v2613
      %3880 = vmatmul.mubr.bf16.gmra.mrb[0].mxu0 %v1886
      %v3881 = vpop.f32.mrb[0].mxu0
      %v3882 = vadd.f32 %v548, %v3881
      %v3883 = vpop.f32.mrb[0].mxu0
      %v3884 = vpop.f32.mrb[0].mxu0
      %v3885 = vadd.f32 %v548, %v3884
      %v3886 = vpop.f32.mrb[0].mxu0
      %3887 = vmatprep.mubr.bf16.mxu0 %v2616
      %3888 = vmatmul.mubr.bf16.gmra.mrb[0].mxu0 %v1888
      %v3889 = vpop.f32.mrb[0].mxu0
      %v3890 = vadd.f32 %v548, %v3889
      %v3891 = vpop.f32.mrb[0].mxu0
      %v3892 = vpop.f32.mrb[0].mxu0
      %v3893 = vadd.f32 %v548, %v3892
      %v3894 = vpop.f32.mrb[0].mxu0
      %3895 = vmatprep.mubr.bf16.mxu0 %v2619
      %3896 = vmatmul.mubr.bf16.gmra.mrb[0].mxu0 %v1890
      %v3897 = vpop.f32.mrb[0].mxu0
      %v3898 = vadd.f32 %v548, %v3897
      %v3899 = vpop.f32.mrb[0].mxu0
      %v3900 = vpop.f32.mrb[0].mxu0
      %v3901 = vadd.f32 %v548, %v3900
      %v3902 = vpop.f32.mrb[0].mxu0
      %3903 = vmatprep.mubr.bf16.mxu0 %v2622
      %3904 = vmatmul.mubr.bf16.gmra.mrb[0].mxu0 %v1892
      %v3905 = vpop.f32.mrb[0].mxu0
      %v3906 = vadd.f32 %v548, %v3905
      %v3907 = vpop.f32.mrb[0].mxu0
      %v3908 = vpop.f32.mrb[0].mxu0
      %v3909 = vadd.f32 %v548, %v3908
      %v3910 = vpop.f32.mrb[0].mxu0
      %3911 = vmatprep.mubr.bf16.mxu0 %v2625
      %3912 = vmatmul.mubr.bf16.gmra.mrb[0].mxu0 %v1894
      %v3913 = vpop.f32.mrb[0].mxu0
      %v3914 = vadd.f32 %v548, %v3913
      %v3915 = vpop.f32.mrb[0].mxu0
      %v3916 = vpop.f32.mrb[0].mxu0
      %v3917 = vadd.f32 %v548, %v3916
      %v3918 = vpop.f32.mrb[0].mxu0
      %3919 = vmatprep.mubr.bf16.mxu0 %v2628
      %3920 = vmatmul.mubr.bf16.gmra.mrb[0].mxu0 %v1896
      %v3921 = vpop.f32.mrb[0].mxu0
      %v3922 = vadd.f32 %v548, %v3921
      %v3923 = vpop.f32.mrb[0].mxu0
      %v3924 = vpop.f32.mrb[0].mxu0
      %v3925 = vadd.f32 %v548, %v3924
      %v3926 = vpop.f32.mrb[0].mxu0
      %3927 = vmatprep.mubr.bf16.mxu0 %v2631
      %3928 = vmatmul.mubr.bf16.gmra.mrb[0].mxu0 %v1898
      %v3929 = vpop.f32.mrb[0].mxu0
      %v3930 = vadd.f32 %v548, %v3929
      %v3931 = vpop.f32.mrb[0].mxu0
      %v3932 = vpop.f32.mrb[0].mxu0
      %v3933 = vadd.f32 %v548, %v3932
      %v3934 = vpop.f32.mrb[0].mxu0
      %3935 = vmatprep.mubr.bf16.mxu0 %v2634
      %3936 = vmatmul.mubr.bf16.gmra.mrb[0].mxu0 %v1900
      %v3937 = vpop.f32.mrb[0].mxu0
      %v3938 = vadd.f32 %v548, %v3937
      %v3939 = vpop.f32.mrb[0].mxu0
      %v3940 = vpop.f32.mrb[0].mxu0
      %v3941 = vadd.f32 %v548, %v3940
      %v3942 = vpop.f32.mrb[0].mxu0
      %3943 = vmatprep.mubr.bf16.mxu0 %v2637
      %3944 = vmatmul.mubr.bf16.gmra.mrb[0].mxu0 %v1902
      %v3945 = vpop.f32.mrb[0].mxu0
      %v3946 = vadd.f32 %v548, %v3945
      %v3947 = vpop.f32.mrb[0].mxu0
      %v3948 = vpop.f32.mrb[0].mxu0
      %v3949 = vadd.f32 %v548, %v3948
      %v3950 = vpop.f32.mrb[0].mxu0
      %3951 = vmatprep.mubr.bf16.mxu0 %v2640
      %3952 = vmatmul.mubr.bf16.gmra.mrb[0].mxu0 %v1904
      %v3953 = vpop.f32.mrb[0].mxu0
      %v3954 = vadd.f32 %v548, %v3953
      %v3955 = vpop.f32.mrb[0].mxu0
      %v3956 = vpop.f32.mrb[0].mxu0
      %v3957 = vadd.f32 %v548, %v3956
      %v3958 = vpop.f32.mrb[0].mxu0
      %3959 = vmatprep.mubr.bf16.mxu0 %v2643
      %3960 = vmatmul.mubr.bf16.gmra.mrb[0].mxu0 %v1906
      %v3961 = vpop.f32.mrb[0].mxu0
      %v3962 = vadd.f32 %v548, %v3961
      %v3963 = vpop.f32.mrb[0].mxu0
      %v3964 = vpop.f32.mrb[0].mxu0
      %v3965 = vadd.f32 %v548, %v3964
      %v3966 = vpop.f32.mrb[0].mxu0
      %3967 = vmatprep.mubr.bf16.mxu0 %v2646
      %3968 = vmatmul.mubr.bf16.gmra.mrb[0].mxu0 %v1908
      %v3969 = vpop.f32.mrb[0].mxu0
      %v3970 = vadd.f32 %v548, %v3969
      %v3971 = vpop.f32.mrb[0].mxu0
      %v3972 = vpop.f32.mrb[0].mxu0
      %v3973 = vadd.f32 %v548, %v3972
      %v3974 = vpop.f32.mrb[0].mxu0
      %3975 = vmatprep.mubr.bf16.mxu0 %v2649
      %3976 = vmatmul.mubr.bf16.gmra.mrb[0].mxu0 %v1910
      %v3977 = vpop.f32.mrb[0].mxu0
      %v3978 = vadd.f32 %v548, %v3977
      %v3979 = vpop.f32.mrb[0].mxu0
      %v3980 = vpop.f32.mrb[0].mxu0
      %v3981 = vadd.f32 %v548, %v3980
      %v3982 = vpop.f32.mrb[0].mxu0
      %3983 = vmatprep.mubr.bf16.mxu0 %v2652
      %3984 = vmatmul.mubr.bf16.gmra.mrb[0].mxu0 %v1912
      %v3985 = vpop.f32.mrb[0].mxu0
      %v3986 = vadd.f32 %v548, %v3985
      %v3987 = vpop.f32.mrb[0].mxu0
      %v3988 = vpop.f32.mrb[0].mxu0
      %v3989 = vadd.f32 %v548, %v3988
      %v3990 = vpop.f32.mrb[0].mxu0
      %3991 = vmatprep.mubr.bf16.mxu0 %v2655
      %3992 = vmatmul.mubr.bf16.gmra.mrb[0].mxu0 %v1914
      %v3993 = vpop.f32.mrb[0].mxu0
      %v3994 = vadd.f32 %v548, %v3993
      %v3995 = vpop.f32.mrb[0].mxu0
      %v3996 = vpop.f32.mrb[0].mxu0
      %v3997 = vadd.f32 %v548, %v3996
      %v3998 = vpop.f32.mrb[0].mxu0
      %3999 = vmatprep.mubr.bf16.mxu0 %v2658
      %4000 = vmatmul.mubr.bf16.gmra.mrb[0].mxu0 %v1916
      %v4001 = vpop.f32.mrb[0].mxu0
      %v4002 = vadd.f32 %v548, %v4001
      %v4003 = vpop.f32.mrb[0].mxu0
      %v4004 = vpop.f32.mrb[0].mxu0
      %v4005 = vadd.f32 %v548, %v4004
      %v4006 = vpop.f32.mrb[0].mxu0
      %4007 = vmatprep.mubr.bf16.mxu0 %v2661
      %4008 = vmatmul.mubr.bf16.gmra.mrb[0].mxu0 %v1918
      %v4009 = vpop.f32.mrb[0].mxu0
      %v4010 = vadd.f32 %v548, %v4009
      %v4011 = vpop.f32.mrb[0].mxu0
      %v4012 = vpop.f32.mrb[0].mxu0
      %v4013 = vadd.f32 %v548, %v4012
      %v4014 = vpop.f32.mrb[0].mxu0
      %4015 = vmatprep.mubr.bf16.mxu0 %v2664
      %4016 = vmatmul.mubr.bf16.gmra.mrb[0].mxu0 %v1920
      %v4017 = vpop.f32.mrb[0].mxu0
      %v4018 = vadd.f32 %v548, %v4017
      %v4019 = vpop.f32.mrb[0].mxu0
      %v4020 = vpop.f32.mrb[0].mxu0
      %v4021 = vadd.f32 %v548, %v4020
      %v4022 = vpop.f32.mrb[0].mxu0
      %4023 = vmatprep.mubr.bf16.mxu0 %v2667
      %4024 = vmatmul.mubr.bf16.gmra.mrb[0].mxu0 %v1922
      %v4025 = vpop.f32.mrb[0].mxu0
      %v4026 = vadd.f32 %v548, %v4025
      %v4027 = vpop.f32.mrb[0].mxu0
      %v4028 = vpop.f32.mrb[0].mxu0
      %v4029 = vadd.f32 %v548, %v4028
      %v4030 = vpop.f32.mrb[0].mxu0
      %4031 = vmatprep.mubr.bf16.mxu0 %v2670
      %4032 = vmatmul.mubr.bf16.gmra.mrb[0].mxu0 %v1924
      %v4033 = vpop.f32.mrb[0].mxu0
      %v4034 = vadd.f32 %v548, %v4033
      %v4035 = vpop.f32.mrb[0].mxu0
      %v4036 = vpop.f32.mrb[0].mxu0
      %v4037 = vadd.f32 %v548, %v4036
      %v4038 = vpop.f32.mrb[0].mxu0
      %4039 = vmatprep.mubr.bf16.mxu0 %v2673
      %4040 = vmatmul.mubr.bf16.gmra.mrb[0].mxu0 %v1926
      %v4041 = vpop.f32.mrb[0].mxu0
      %v4042 = vadd.f32 %v548, %v4041
      %v4043 = vpop.f32.mrb[0].mxu0
      %v4044 = vpop.f32.mrb[0].mxu0
      %v4045 = vadd.f32 %v548, %v4044
      %v4046 = vpop.f32.mrb[0].mxu0
      %4047 = vmatprep.mubr.bf16.mxu0 %v2676
      %4048 = vmatmul.mubr.bf16.gmra.mrb[0].mxu0 %v1928
      %v4049 = vpop.f32.mrb[0].mxu0
      %v4050 = vadd.f32 %v548, %v4049
      %v4051 = vpop.f32.mrb[0].mxu0
      %v4052 = vpop.f32.mrb[0].mxu0
      %v4053 = vadd.f32 %v548, %v4052
      %v4054 = vpop.f32.mrb[0].mxu0
      %4055 = vmatprep.mubr.bf16.mxu0 %v2679
      %4056 = vmatmul.mubr.bf16.gmra.mrb[0].mxu0 %v1930
      %v4057 = vpop.f32.mrb[0].mxu0
      %v4058 = vadd.f32 %v548, %v4057
      %v4059 = vpop.f32.mrb[0].mxu0
      %v4060 = vpop.f32.mrb[0].mxu0
      %v4061 = vadd.f32 %v548, %v4060
      %v4062 = vpop.f32.mrb[0].mxu0
      %4063 = vmatprep.mubr.bf16.mxu0 %v2682
      %4064 = vmatmul.mubr.bf16.gmra.mrb[0].mxu0 %v1932
      %v4065 = vpop.f32.mrb[0].mxu0
      %v4066 = vadd.f32 %v548, %v4065
      %v4067 = vpop.f32.mrb[0].mxu0
      %v4068 = vpop.f32.mrb[0].mxu0
      %v4069 = vadd.f32 %v548, %v4068
      %v4070 = vpop.f32.mrb[0].mxu0
      %4071 = vmatprep.mubr.bf16.mxu0 %v2685
      %4072 = vmatmul.mubr.bf16.gmra.mrb[0].mxu0 %v1934
      %v4073 = vpop.f32.mrb[0].mxu0
      %v4074 = vadd.f32 %v548, %v4073
      %v4075 = vpop.f32.mrb[0].mxu0
      %v4076 = vpop.f32.mrb[0].mxu0
      %v4077 = vadd.f32 %v548, %v4076
      %v4078 = vpop.f32.mrb[0].mxu0
      %4079 = vmatprep.mubr.bf16.mxu0 %v2688
      %4080 = vmatmul.mubr.bf16.gmra.mrb[0].mxu0 %v1936
      %v4081 = vpop.f32.mrb[0].mxu0
      %v4082 = vadd.f32 %v548, %v4081
      %v4083 = vpop.f32.mrb[0].mxu0
      %v4084 = vpop.f32.mrb[0].mxu0
      %v4085 = vadd.f32 %v548, %v4084
      %v4086 = vpop.f32.mrb[0].mxu0
      %4087 = vmatprep.mubr.bf16.mxu0 %v2691
      %4088 = vmatmul.mubr.bf16.gmra.mrb[0].mxu0 %v1938
      %v4089 = vpop.f32.mrb[0].mxu0
      %v4090 = vadd.f32 %v548, %v4089
      %v4091 = vpop.f32.mrb[0].mxu0
      %v4092 = vpop.f32.mrb[0].mxu0
      %v4093 = vadd.f32 %v548, %v4092
      %v4094 = vpop.f32.mrb[0].mxu0
      %4095 = vmatprep.mubr.bf16.mxu0 %v2694
      %4096 = vmatmul.mubr.bf16.gmra.mrb[0].mxu0 %v1940
      %v4097 = vpop.f32.mrb[0].mxu0
      %v4098 = vadd.f32 %v548, %v4097
      %v4099 = vpop.f32.mrb[0].mxu0
      %v4100 = vpop.f32.mrb[0].mxu0
      %v4101 = vadd.f32 %v548, %v4100
      %v4102 = vpop.f32.mrb[0].mxu0
      %4103 = vmatprep.mubr.bf16.mxu0 %v2697
      %4104 = vmatmul.mubr.bf16.gmra.mrb[0].mxu0 %v1942
      %v4105 = vpop.f32.mrb[0].mxu0
      %v4106 = vadd.f32 %v548, %v4105
      %v4107 = vpop.f32.mrb[0].mxu0
      %v4108 = vpop.f32.mrb[0].mxu0
      %v4109 = vadd.f32 %v548, %v4108
      %v4110 = vpop.f32.mrb[0].mxu0
      %4111 = vmatprep.mubr.bf16.mxu0 %v2700
      %4112 = vmatmul.mubr.bf16.gmra.mrb[0].mxu0 %v1944
      %v4113 = vpop.f32.mrb[0].mxu0
      %v4114 = vadd.f32 %v548, %v4113
      %v4115 = vpop.f32.mrb[0].mxu0
      %v4116 = vpop.f32.mrb[0].mxu0
      %v4117 = vadd.f32 %v548, %v4116
      %v4118 = vpop.f32.mrb[0].mxu0
      %4119 = vmatprep.mubr.bf16.mxu0 %v2703
      %4120 = vmatmul.mubr.bf16.gmra.mrb[0].mxu0 %v1946
      %v4121 = vpop.f32.mrb[0].mxu0
      %v4122 = vadd.f32 %v548, %v4121
      %v4123 = vpop.f32.mrb[0].mxu0
      %v4124 = vpop.f32.mrb[0].mxu0
      %v4125 = vadd.f32 %v548, %v4124
      %v4126 = vpop.f32.mrb[0].mxu0
      %4127 = vmatprep.mubr.bf16.mxu0 %v2706
      %4128 = vmatmul.mubr.bf16.gmra.mrb[0].mxu0 %v1948
      %v4129 = vpop.f32.mrb[0].mxu0
      %v4130 = vadd.f32 %v548, %v4129
      %v4131 = vpop.f32.mrb[0].mxu0
      %v4132 = vpop.f32.mrb[0].mxu0
      %v4133 = vadd.f32 %v548, %v4132
      %v4134 = vpop.f32.mrb[0].mxu0
      %4135 = vmatprep.mubr.bf16.mxu0 %v2709
      %4136 = vmatmul.mubr.bf16.gmra.mrb[0].mxu0 %v1950
      %v4137 = vpop.f32.mrb[0].mxu0
      %v4138 = vadd.f32 %v548, %v4137
      %v4139 = vpop.f32.mrb[0].mxu0
      %v4140 = vpop.f32.mrb[0].mxu0
      %v4141 = vadd.f32 %v548, %v4140
      %v4142 = vpop.f32.mrb[0].mxu0
      %4143 = vmatprep.mubr.bf16.mxu0 %v2712
      %4144 = vmatmul.mubr.bf16.gmra.mrb[0].mxu0 %v1952
      %v4145 = vpop.f32.mrb[0].mxu0
      %v4146 = vadd.f32 %v548, %v4145
      %v4147 = vpop.f32.mrb[0].mxu0
      %v4148 = vpop.f32.mrb[0].mxu0
      %v4149 = vadd.f32 %v548, %v4148
      %v4150 = vpop.f32.mrb[0].mxu0
      %4151 = vmatprep.mubr.bf16.mxu0 %v2715
      %4152 = vmatmul.mubr.bf16.gmra.mrb[0].mxu0 %v1954
      %v4153 = vpop.f32.mrb[0].mxu0
      %v4154 = vadd.f32 %v548, %v4153
      %v4155 = vpop.f32.mrb[0].mxu0
      %v4156 = vpop.f32.mrb[0].mxu0
      %v4157 = vadd.f32 %v548, %v4156
      %v4158 = vpop.f32.mrb[0].mxu0
      %4159 = vmatprep.mubr.bf16.mxu0 %v2718
      %4160 = vmatmul.mubr.bf16.gmra.mrb[0].mxu0 %v1956
      %v4161 = vpop.f32.mrb[0].mxu0
      %v4162 = vadd.f32 %v548, %v4161
      %v4163 = vpop.f32.mrb[0].mxu0
      %v4164 = vpop.f32.mrb[0].mxu0
      %v4165 = vadd.f32 %v548, %v4164
      %v4166 = vpop.f32.mrb[0].mxu0
      %4167 = vdwg.mxu0
      %v4168 = vmax.f32 %v2762, 0.0
      %v4169 = vmax.f32 %v2765, 0.0
      %v4170 = vmax.f32 %v2770, 0.0
      %v4171 = vmax.f32 %v2773, 0.0
      %v4172 = vmax.f32 %v2778, 0.0
      %v4173 = vmax.f32 %v2781, 0.0
      %v4174 = vmax.f32 %v2786, 0.0
      %v4175 = vmax.f32 %v2789, 0.0
      %v4176 = vmax.f32 %v2794, 0.0
      %v4177 = vmax.f32 %v2797, 0.0
      %v4178 = vmax.f32 %v2802, 0.0
      %v4179 = vmax.f32 %v2805, 0.0
      %v4180 = vmax.f32 %v2810, 0.0
      %v4181 = vmax.f32 %v2813, 0.0
      %v4182 = vmax.f32 %v2818, 0.0
      %v4183 = vmax.f32 %v2821, 0.0
      %v4184 = vmax.f32 %v2826, 0.0
      %v4185 = vmax.f32 %v2829, 0.0
      %v4186 = vmax.f32 %v2834, 0.0
      %v4187 = vmax.f32 %v2837, 0.0
      %v4188 = vmax.f32 %v2842, 0.0
      %v4189 = vmax.f32 %v2845, 0.0
      %v4190 = vmax.f32 %v2850, 0.0
      %v4191 = vmax.f32 %v2853, 0.0
      %v4192 = vmax.f32 %v2858, 0.0
      %v4193 = vmax.f32 %v2861, 0.0
      %v4194 = vmax.f32 %v2866, 0.0
      %v4195 = vmax.f32 %v2869, 0.0
      %v4196 = vmax.f32 %v2874, 0.0
      %v4197 = vmax.f32 %v2877, 0.0
      %v4198 = vmax.f32 %v2882, 0.0
      %v4199 = vmax.f32 %v2885, 0.0
      %v4200 = vmax.f32 %v2890, 0.0
      %v4201 = vmax.f32 %v2893, 0.0
      %v4202 = vmax.f32 %v2898, 0.0
      %v4203 = vmax.f32 %v2901, 0.0
      %v4204 = vmax.f32 %v2906, 0.0
      %v4205 = vmax.f32 %v2909, 0.0
      %v4206 = vmax.f32 %v2914, 0.0
      %v4207 = vmax.f32 %v2917, 0.0
      %v4208 = vmax.f32 %v2922, 0.0
      %v4209 = vmax.f32 %v2925, 0.0
      %v4210 = vmax.f32 %v2930, 0.0
      %v4211 = vmax.f32 %v2933, 0.0
      %v4212 = vmax.f32 %v2938, 0.0
      %v4213 = vmax.f32 %v2941, 0.0
      %v4214 = vmax.f32 %v2946, 0.0
      %v4215 = vmax.f32 %v2949, 0.0
      %v4216 = vmax.f32 %v2954, 0.0
      %v4217 = vmax.f32 %v2957, 0.0
      %v4218 = vmax.f32 %v2962, 0.0
      %v4219 = vmax.f32 %v2965, 0.0
      %v4220 = vmax.f32 %v2970, 0.0
      %v4221 = vmax.f32 %v2973, 0.0
      %v4222 = vmax.f32 %v2978, 0.0
      %v4223 = vmax.f32 %v2981, 0.0
      %v4224 = vmax.f32 %v2986, 0.0
      %v4225 = vmax.f32 %v2989, 0.0
      %v4226 = vmax.f32 %v2994, 0.0
      %v4227 = vmax.f32 %v2997, 0.0
      %v4228 = vmax.f32 %v3002, 0.0
      %v4229 = vmax.f32 %v3005, 0.0
      %v4230 = vmax.f32 %v3010, 0.0
      %v4231 = vmax.f32 %v3013, 0.0
      %v4232 = vmax.f32 %v3018, 0.0
      %v4233 = vmax.f32 %v3021, 0.0
      %v4234 = vmax.f32 %v3026, 0.0
      %v4235 = vmax.f32 %v3029, 0.0
      %v4236 = vmax.f32 %v3034, 0.0
      %v4237 = vmax.f32 %v3037, 0.0
      %v4238 = vmax.f32 %v3042, 0.0
      %v4239 = vmax.f32 %v3045, 0.0
      %v4240 = vmax.f32 %v3050, 0.0
      %v4241 = vmax.f32 %v3053, 0.0
      %v4242 = vmax.f32 %v3058, 0.0
      %v4243 = vmax.f32 %v3061, 0.0
      %v4244 = vmax.f32 %v3066, 0.0
      %v4245 = vmax.f32 %v3069, 0.0
      %v4246 = vmax.f32 %v3074, 0.0
      %v4247 = vmax.f32 %v3077, 0.0
      %v4248 = vmax.f32 %v3082, 0.0
      %v4249 = vmax.f32 %v3085, 0.0
      %v4250 = vmax.f32 %v3090, 0.0
      %v4251 = vmax.f32 %v3093, 0.0
      %v4252 = vmax.f32 %v3098, 0.0
      %v4253 = vmax.f32 %v3101, 0.0
      %v4254 = vmax.f32 %v3106, 0.0
      %v4255 = vmax.f32 %v3109, 0.0
      %v4256 = vmax.f32 %v3114, 0.0
      %v4257 = vmax.f32 %v3117, 0.0
      %v4258 = vmax.f32 %v3122, 0.0
      %v4259 = vmax.f32 %v3125, 0.0
      %v4260 = vmax.f32 %v3130, 0.0
      %v4261 = vmax.f32 %v3133, 0.0
      %v4262 = vmax.f32 %v3138, 0.0
      %v4263 = vmax.f32 %v3141, 0.0
      %v4264 = vmax.f32 %v3146, 0.0
      %v4265 = vmax.f32 %v3149, 0.0
      %v4266 = vmax.f32 %v3154, 0.0
      %v4267 = vmax.f32 %v3157, 0.0
      %v4268 = vmax.f32 %v3162, 0.0
      %v4269 = vmax.f32 %v3165, 0.0
      %v4270 = vmax.f32 %v3170, 0.0
      %v4271 = vmax.f32 %v3173, 0.0
      %v4272 = vmax.f32 %v3178, 0.0
      %v4273 = vmax.f32 %v3181, 0.0
      %v4274 = vmax.f32 %v3186, 0.0
      %v4275 = vmax.f32 %v3189, 0.0
      %v4276 = vmax.f32 %v3194, 0.0
      %v4277 = vmax.f32 %v3197, 0.0
      %v4278 = vmax.f32 %v3202, 0.0
      %v4279 = vmax.f32 %v3205, 0.0
      %v4280 = vmax.f32 %v3210, 0.0
      %v4281 = vmax.f32 %v3213, 0.0
      %v4282 = vmax.f32 %v3218, 0.0
      %v4283 = vmax.f32 %v3221, 0.0
      %v4284 = vmax.f32 %v3226, 0.0
      %v4285 = vmax.f32 %v3229, 0.0
      %v4286 = vmax.f32 %v3234, 0.0
      %v4287 = vmax.f32 %v3237, 0.0
      %v4288 = vmax.f32 %v3242, 0.0
      %v4289 = vmax.f32 %v3245, 0.0
      %v4290 = vmax.f32 %v3250, 0.0
      %v4291 = vmax.f32 %v3253, 0.0
      %v4292 = vmax.f32 %v3258, 0.0
      %v4293 = vmax.f32 %v3261, 0.0
      %v4294 = vmax.f32 %v3266, 0.0
      %v4295 = vmax.f32 %v3269, 0.0
      %v4296 = vmax.f32 %v3274, 0.0
      %v4297 = vmax.f32 %v3277, 0.0
      %v4298 = vmax.f32 %v3282, 0.0
      %v4299 = vmax.f32 %v3285, 0.0
      %v4300 = vmax.f32 %v3290, 0.0
      %v4301 = vmax.f32 %v3293, 0.0
      %v4302 = vmax.f32 %v3298, 0.0
      %v4303 = vmax.f32 %v3301, 0.0
      %v4304 = vmax.f32 %v3306, 0.0
      %v4305 = vmax.f32 %v3309, 0.0
      %v4306 = vmax.f32 %v3314, 0.0
      %v4307 = vmax.f32 %v3317, 0.0
      %v4308 = vmax.f32 %v3322, 0.0
      %v4309 = vmax.f32 %v3325, 0.0
      %v4310 = vmax.f32 %v3330, 0.0
      %v4311 = vmax.f32 %v3333, 0.0
      %v4312 = vmax.f32 %v3338, 0.0
      %v4313 = vmax.f32 %v3341, 0.0
      %v4314 = vmax.f32 %v3346, 0.0
      %v4315 = vmax.f32 %v3349, 0.0
      %v4316 = vmax.f32 %v3354, 0.0
      %v4317 = vmax.f32 %v3357, 0.0
      %v4318 = vmax.f32 %v3362, 0.0
      %v4319 = vmax.f32 %v3365, 0.0
      %v4320 = vmax.f32 %v3370, 0.0
      %v4321 = vmax.f32 %v3373, 0.0
      %v4322 = vmax.f32 %v3378, 0.0
      %v4323 = vmax.f32 %v3381, 0.0
      %v4324 = vmax.f32 %v3386, 0.0
      %v4325 = vmax.f32 %v3389, 0.0
      %v4326 = vmax.f32 %v3394, 0.0
      %v4327 = vmax.f32 %v3397, 0.0
      %v4328 = vmax.f32 %v3402, 0.0
      %v4329 = vmax.f32 %v3405, 0.0
      %v4330 = vmax.f32 %v3410, 0.0
      %v4331 = vmax.f32 %v3413, 0.0
      %v4332 = vmax.f32 %v3418, 0.0
      %v4333 = vmax.f32 %v3421, 0.0
      %v4334 = vmax.f32 %v3426, 0.0
      %v4335 = vmax.f32 %v3429, 0.0
      %v4336 = vmax.f32 %v3434, 0.0
      %v4337 = vmax.f32 %v3437, 0.0
      %v4338 = vmax.f32 %v3442, 0.0
      %v4339 = vmax.f32 %v3445, 0.0
      %v4340 = vmax.f32 %v3450, 0.0
      %v4341 = vmax.f32 %v3453, 0.0
      %v4342 = vmax.f32 %v3458, 0.0
      %v4343 = vmax.f32 %v3461, 0.0
      %v4344 = vmax.f32 %v3466, 0.0
      %v4345 = vmax.f32 %v3469, 0.0
      %v4346 = vmax.f32 %v3474, 0.0
      %v4347 = vmax.f32 %v3477, 0.0
      %v4348 = vmax.f32 %v3482, 0.0
      %v4349 = vmax.f32 %v3485, 0.0
      %v4350 = vmax.f32 %v3490, 0.0
      %v4351 = vmax.f32 %v3493, 0.0
      %v4352 = vmax.f32 %v3498, 0.0
      %v4353 = vmax.f32 %v3501, 0.0
      %v4354 = vmax.f32 %v3506, 0.0
      %v4355 = vmax.f32 %v3509, 0.0
      %v4356 = vmax.f32 %v3514, 0.0
      %v4357 = vmax.f32 %v3517, 0.0
      %v4358 = vmax.f32 %v3522, 0.0
      %v4359 = vmax.f32 %v3525, 0.0
      %v4360 = vmax.f32 %v3530, 0.0
      %v4361 = vmax.f32 %v3533, 0.0
      %v4362 = vmax.f32 %v3538, 0.0
      %v4363 = vmax.f32 %v3541, 0.0
      %v4364 = vmax.f32 %v3546, 0.0
      %v4365 = vmax.f32 %v3549, 0.0
      %v4366 = vmax.f32 %v3554, 0.0
      %v4367 = vmax.f32 %v3557, 0.0
      %v4368 = vmax.f32 %v3562, 0.0
      %v4369 = vmax.f32 %v3565, 0.0
      %v4370 = vmax.f32 %v3570, 0.0
      %v4371 = vmax.f32 %v3573, 0.0
      %v4372 = vmax.f32 %v3578, 0.0
      %v4373 = vmax.f32 %v3581, 0.0
      %v4374 = vmax.f32 %v3586, 0.0
      %v4375 = vmax.f32 %v3589, 0.0
      %v4376 = vmax.f32 %v3594, 0.0
      %v4377 = vmax.f32 %v3597, 0.0
      %v4378 = vmax.f32 %v3602, 0.0
      %v4379 = vmax.f32 %v3605, 0.0
      %v4380 = vmax.f32 %v3610, 0.0
      %v4381 = vmax.f32 %v3613, 0.0
      %v4382 = vmax.f32 %v3618, 0.0
      %v4383 = vmax.f32 %v3621, 0.0
      %v4384 = vmax.f32 %v3626, 0.0
      %v4385 = vmax.f32 %v3629, 0.0
      %v4386 = vmax.f32 %v3634, 0.0
      %v4387 = vmax.f32 %v3637, 0.0
      %v4388 = vmax.f32 %v3642, 0.0
      %v4389 = vmax.f32 %v3645, 0.0
      %v4390 = vmax.f32 %v3650, 0.0
      %v4391 = vmax.f32 %v3653, 0.0
      %v4392 = vmax.f32 %v3658, 0.0
      %v4393 = vmax.f32 %v3661, 0.0
      %v4394 = vmax.f32 %v3666, 0.0
      %v4395 = vmax.f32 %v3669, 0.0
      %v4396 = vmax.f32 %v3674, 0.0
      %v4397 = vmax.f32 %v3677, 0.0
      %v4398 = vmax.f32 %v3682, 0.0
      %v4399 = vmax.f32 %v3685, 0.0
      %v4400 = vmax.f32 %v3690, 0.0
      %v4401 = vmax.f32 %v3693, 0.0
      %v4402 = vmax.f32 %v3698, 0.0
      %v4403 = vmax.f32 %v3701, 0.0
      %v4404 = vmax.f32 %v3706, 0.0
      %v4405 = vmax.f32 %v3709, 0.0
      %v4406 = vmax.f32 %v3714, 0.0
      %v4407 = vmax.f32 %v3717, 0.0
      %v4408 = vmax.f32 %v3722, 0.0
      %v4409 = vmax.f32 %v3725, 0.0
      %v4410 = vmax.f32 %v3730, 0.0
      %v4411 = vmax.f32 %v3733, 0.0
      %v4412 = vmax.f32 %v3738, 0.0
      %v4413 = vmax.f32 %v3741, 0.0
      %v4414 = vmax.f32 %v3746, 0.0
      %v4415 = vmax.f32 %v3749, 0.0
      %v4416 = vmax.f32 %v3754, 0.0
      %v4417 = vmax.f32 %v3757, 0.0
      %v4418 = vmax.f32 %v3762, 0.0
      %v4419 = vmax.f32 %v3765, 0.0
      %v4420 = vmax.f32 %v3770, 0.0
      %v4421 = vmax.f32 %v3773, 0.0
      %v4422 = vmax.f32 %v3778, 0.0
      %v4423 = vmax.f32 %v3781, 0.0
      %v4424 = vmax.f32 %v3786, 0.0
      %v4425 = vmax.f32 %v3789, 0.0
      %v4426 = vmax.f32 %v3794, 0.0
      %v4427 = vmax.f32 %v3797, 0.0
      %v4428 = vmax.f32 %v3802, 0.0
      %v4429 = vmax.f32 %v3805, 0.0
      %v4430 = vmax.f32 %v3810, 0.0
      %v4431 = vmax.f32 %v3813, 0.0
      %v4432 = vmax.f32 %v3818, 0.0
      %v4433 = vmax.f32 %v3821, 0.0
      %v4434 = vmax.f32 %v3826, 0.0
      %v4435 = vmax.f32 %v3829, 0.0
      %v4436 = vmax.f32 %v3834, 0.0
      %v4437 = vmax.f32 %v3837, 0.0
      %v4438 = vmax.f32 %v3842, 0.0
      %v4439 = vmax.f32 %v3845, 0.0
      %v4440 = vmax.f32 %v3850, 0.0
      %v4441 = vmax.f32 %v3853, 0.0
      %v4442 = vmax.f32 %v3858, 0.0
      %v4443 = vmax.f32 %v3861, 0.0
      %v4444 = vmax.f32 %v3866, 0.0
      %v4445 = vmax.f32 %v3869, 0.0
      %v4446 = vmax.f32 %v3874, 0.0
      %v4447 = vmax.f32 %v3877, 0.0
      %v4448 = vmax.f32 %v3882, 0.0
      %v4449 = vmax.f32 %v3885, 0.0
      %v4450 = vmax.f32 %v3890, 0.0
      %v4451 = vmax.f32 %v3893, 0.0
      %v4452 = vmax.f32 %v3898, 0.0
      %v4453 = vmax.f32 %v3901, 0.0
      %v4454 = vmax.f32 %v3906, 0.0
      %v4455 = vmax.f32 %v3909, 0.0
      %v4456 = vmax.f32 %v3914, 0.0
      %v4457 = vmax.f32 %v3917, 0.0
      %v4458 = vmax.f32 %v3922, 0.0
      %v4459 = vmax.f32 %v3925, 0.0
      %v4460 = vmax.f32 %v3930, 0.0
      %v4461 = vmax.f32 %v3933, 0.0
      %v4462 = vmax.f32 %v3938, 0.0
      %v4463 = vmax.f32 %v3941, 0.0
      %v4464 = vmax.f32 %v3946, 0.0
      %v4465 = vmax.f32 %v3949, 0.0
      %v4466 = vmax.f32 %v3954, 0.0
      %v4467 = vmax.f32 %v3957, 0.0
      %v4468 = vmax.f32 %v3962, 0.0
      %v4469 = vmax.f32 %v3965, 0.0
      %v4470 = vmax.f32 %v3970, 0.0
      %v4471 = vmax.f32 %v3973, 0.0
      %v4472 = vmax.f32 %v3978, 0.0
      %v4473 = vmax.f32 %v3981, 0.0
      %v4474 = vmax.f32 %v3986, 0.0
      %v4475 = vmax.f32 %v3989, 0.0
      %v4476 = vmax.f32 %v3994, 0.0
      %v4477 = vmax.f32 %v3997, 0.0
      %v4478 = vmax.f32 %v4002, 0.0
      %v4479 = vmax.f32 %v4005, 0.0
      %v4480 = vmax.f32 %v4010, 0.0
      %v4481 = vmax.f32 %v4013, 0.0
      %v4482 = vmax.f32 %v4018, 0.0
      %v4483 = vmax.f32 %v4021, 0.0
      %v4484 = vmax.f32 %v4026, 0.0
      %v4485 = vmax.f32 %v4029, 0.0
      %v4486 = vmax.f32 %v4034, 0.0
      %v4487 = vmax.f32 %v4037, 0.0
      %v4488 = vmax.f32 %v4042, 0.0
      %v4489 = vmax.f32 %v4045, 0.0
      %v4490 = vmax.f32 %v4050, 0.0
      %v4491 = vmax.f32 %v4053, 0.0
      %v4492 = vmax.f32 %v4058, 0.0
      %v4493 = vmax.f32 %v4061, 0.0
      %v4494 = vmax.f32 %v4066, 0.0
      %v4495 = vmax.f32 %v4069, 0.0
      %v4496 = vmax.f32 %v4074, 0.0
      %v4497 = vmax.f32 %v4077, 0.0
      %v4498 = vmax.f32 %v4082, 0.0
      %v4499 = vmax.f32 %v4085, 0.0
      %v4500 = vmax.f32 %v4090, 0.0
      %v4501 = vmax.f32 %v4093, 0.0
      %v4502 = vmax.f32 %v4098, 0.0
      %v4503 = vmax.f32 %v4101, 0.0
      %v4504 = vmax.f32 %v4106, 0.0
      %v4505 = vmax.f32 %v4109, 0.0
      %v4506 = vmax.f32 %v4114, 0.0
      %v4507 = vmax.f32 %v4117, 0.0
      %v4508 = vmax.f32 %v4122, 0.0
      %v4509 = vmax.f32 %v4125, 0.0
      %v4510 = vmax.f32 %v4130, 0.0
      %v4511 = vmax.f32 %v4133, 0.0
      %v4512 = vmax.f32 %v4138, 0.0
      %v4513 = vmax.f32 %v4141, 0.0
      %v4514 = vmax.f32 %v4146, 0.0
      %v4515 = vmax.f32 %v4149, 0.0
      %v4516 = vmax.f32 %v4154, 0.0
      %v4517 = vmax.f32 %v4157, 0.0
      %v4518 = vmax.f32 %v4162, 0.0
      %v4519 = vmax.f32 %v4165, 0.0
      %v4520 = vpack.c.bf16 %v4169, %v4168
      %v4521 = vpack.c.bf16 %v4171, %v4170
      %v4522 = vpack.c.bf16 %v4173, %v4172
      %v4523 = vpack.c.bf16 %v4175, %v4174
      %v4524 = vpack.c.bf16 %v4177, %v4176
      %v4525 = vpack.c.bf16 %v4179, %v4178
      %v4526 = vpack.c.bf16 %v4181, %v4180
      %v4527 = vpack.c.bf16 %v4183, %v4182
      %v4528 = vpack.c.bf16 %v4185, %v4184
      %v4529 = vpack.c.bf16 %v4187, %v4186
      %v4530 = vpack.c.bf16 %v4189, %v4188
      %v4531 = vpack.c.bf16 %v4191, %v4190
      %v4532 = vpack.c.bf16 %v4193, %v4192
      %v4533 = vpack.c.bf16 %v4195, %v4194
      %v4534 = vpack.c.bf16 %v4197, %v4196
      %v4535 = vpack.c.bf16 %v4199, %v4198
      %v4536 = vpack.c.bf16 %v4201, %v4200
      %v4537 = vpack.c.bf16 %v4203, %v4202
      %v4538 = vpack.c.bf16 %v4205, %v4204
      %v4539 = vpack.c.bf16 %v4207, %v4206
      %v4540 = vpack.c.bf16 %v4209, %v4208
      %v4541 = vpack.c.bf16 %v4211, %v4210
      %v4542 = vpack.c.bf16 %v4213, %v4212
      %v4543 = vpack.c.bf16 %v4215, %v4214
      %v4544 = vpack.c.bf16 %v4217, %v4216
      %v4545 = vpack.c.bf16 %v4219, %v4218
      %v4546 = vpack.c.bf16 %v4221, %v4220
      %v4547 = vpack.c.bf16 %v4223, %v4222
      %v4548 = vpack.c.bf16 %v4225, %v4224
      %v4549 = vpack.c.bf16 %v4227, %v4226
      %v4550 = vpack.c.bf16 %v4229, %v4228
      %v4551 = vpack.c.bf16 %v4231, %v4230
      %v4552 = vpack.c.bf16 %v4233, %v4232
      %v4553 = vpack.c.bf16 %v4235, %v4234
      %v4554 = vpack.c.bf16 %v4237, %v4236
      %v4555 = vpack.c.bf16 %v4239, %v4238
      %v4556 = vpack.c.bf16 %v4241, %v4240
      %v4557 = vpack.c.bf16 %v4243, %v4242
      %v4558 = vpack.c.bf16 %v4245, %v4244
      %v4559 = vpack.c.bf16 %v4247, %v4246
      %v4560 = vpack.c.bf16 %v4249, %v4248
      %v4561 = vpack.c.bf16 %v4251, %v4250
      %v4562 = vpack.c.bf16 %v4253, %v4252
      %v4563 = vpack.c.bf16 %v4255, %v4254
      %v4564 = vpack.c.bf16 %v4257, %v4256
      %v4565 = vpack.c.bf16 %v4259, %v4258
      %v4566 = vpack.c.bf16 %v4261, %v4260
      %v4567 = vpack.c.bf16 %v4263, %v4262
      %v4568 = vpack.c.bf16 %v4265, %v4264
      %v4569 = vpack.c.bf16 %v4267, %v4266
      %v4570 = vpack.c.bf16 %v4269, %v4268
      %v4571 = vpack.c.bf16 %v4271, %v4270
      %v4572 = vpack.c.bf16 %v4273, %v4272
      %v4573 = vpack.c.bf16 %v4275, %v4274
      %v4574 = vpack.c.bf16 %v4277, %v4276
      %v4575 = vpack.c.bf16 %v4279, %v4278
      %v4576 = vpack.c.bf16 %v4281, %v4280
      %v4577 = vpack.c.bf16 %v4283, %v4282
      %v4578 = vpack.c.bf16 %v4285, %v4284
      %v4579 = vpack.c.bf16 %v4287, %v4286
      %v4580 = vpack.c.bf16 %v4289, %v4288
      %v4581 = vpack.c.bf16 %v4291, %v4290
      %v4582 = vpack.c.bf16 %v4293, %v4292
      %v4583 = vpack.c.bf16 %v4295, %v4294
      %v4584 = vpack.c.bf16 %v4297, %v4296
      %v4585 = vpack.c.bf16 %v4299, %v4298
      %v4586 = vpack.c.bf16 %v4301, %v4300
      %v4587 = vpack.c.bf16 %v4303, %v4302
      %v4588 = vpack.c.bf16 %v4305, %v4304
      %v4589 = vpack.c.bf16 %v4307, %v4306
      %v4590 = vpack.c.bf16 %v4309, %v4308
      %v4591 = vpack.c.bf16 %v4311, %v4310
      %v4592 = vpack.c.bf16 %v4313, %v4312
      %v4593 = vpack.c.bf16 %v4315, %v4314
      %v4594 = vpack.c.bf16 %v4317, %v4316
      %v4595 = vpack.c.bf16 %v4319, %v4318
      %v4596 = vpack.c.bf16 %v4321, %v4320
      %v4597 = vpack.c.bf16 %v4323, %v4322
      %v4598 = vpack.c.bf16 %v4325, %v4324
      %v4599 = vpack.c.bf16 %v4327, %v4326
      %v4600 = vpack.c.bf16 %v4329, %v4328
      %v4601 = vpack.c.bf16 %v4331, %v4330
      %v4602 = vpack.c.bf16 %v4333, %v4332
      %v4603 = vpack.c.bf16 %v4335, %v4334
      %v4604 = vpack.c.bf16 %v4337, %v4336
      %v4605 = vpack.c.bf16 %v4339, %v4338
      %v4606 = vpack.c.bf16 %v4341, %v4340
      %v4607 = vpack.c.bf16 %v4343, %v4342
      %v4608 = vpack.c.bf16 %v4345, %v4344
      %v4609 = vpack.c.bf16 %v4347, %v4346
      %v4610 = vpack.c.bf16 %v4349, %v4348
      %v4611 = vpack.c.bf16 %v4351, %v4350
      %v4612 = vpack.c.bf16 %v4353, %v4352
      %v4613 = vpack.c.bf16 %v4355, %v4354
      %v4614 = vpack.c.bf16 %v4357, %v4356
      %v4615 = vpack.c.bf16 %v4359, %v4358
      %v4616 = vpack.c.bf16 %v4361, %v4360
      %v4617 = vpack.c.bf16 %v4363, %v4362
      %v4618 = vpack.c.bf16 %v4365, %v4364
      %v4619 = vpack.c.bf16 %v4367, %v4366
      %v4620 = vpack.c.bf16 %v4369, %v4368
      %v4621 = vpack.c.bf16 %v4371, %v4370
      %v4622 = vpack.c.bf16 %v4373, %v4372
      %v4623 = vpack.c.bf16 %v4375, %v4374
      %v4624 = vpack.c.bf16 %v4377, %v4376
      %v4625 = vpack.c.bf16 %v4379, %v4378
      %v4626 = vpack.c.bf16 %v4381, %v4380
      %v4627 = vpack.c.bf16 %v4383, %v4382
      %v4628 = vpack.c.bf16 %v4385, %v4384
      %v4629 = vpack.c.bf16 %v4387, %v4386
      %v4630 = vpack.c.bf16 %v4389, %v4388
      %v4631 = vpack.c.bf16 %v4391, %v4390
      %v4632 = vpack.c.bf16 %v4393, %v4392
      %v4633 = vpack.c.bf16 %v4395, %v4394
      %v4634 = vpack.c.bf16 %v4397, %v4396
      %v4635 = vpack.c.bf16 %v4399, %v4398
      %v4636 = vpack.c.bf16 %v4401, %v4400
      %v4637 = vpack.c.bf16 %v4403, %v4402
      %v4638 = vpack.c.bf16 %v4405, %v4404
      %v4639 = vpack.c.bf16 %v4407, %v4406
      %v4640 = vpack.c.bf16 %v4409, %v4408
      %v4641 = vpack.c.bf16 %v4411, %v4410
      %v4642 = vpack.c.bf16 %v4413, %v4412
      %v4643 = vpack.c.bf16 %v4415, %v4414
      %v4644 = vpack.c.bf16 %v4417, %v4416
      %v4645 = vpack.c.bf16 %v4419, %v4418
      %v4646 = vpack.c.bf16 %v4421, %v4420
      %v4647 = vpack.c.bf16 %v4423, %v4422
      %v4648 = vpack.c.bf16 %v4425, %v4424
      %v4649 = vpack.c.bf16 %v4427, %v4426
      %v4650 = vpack.c.bf16 %v4429, %v4428
      %v4651 = vpack.c.bf16 %v4431, %v4430
      %v4652 = vpack.c.bf16 %v4433, %v4432
      %v4653 = vpack.c.bf16 %v4435, %v4434
      %v4654 = vpack.c.bf16 %v4437, %v4436
      %v4655 = vpack.c.bf16 %v4439, %v4438
      %v4656 = vpack.c.bf16 %v4441, %v4440
      %v4657 = vpack.c.bf16 %v4443, %v4442
      %v4658 = vpack.c.bf16 %v4445, %v4444
      %v4659 = vpack.c.bf16 %v4447, %v4446
      %v4660 = vpack.c.bf16 %v4449, %v4448
      %v4661 = vpack.c.bf16 %v4451, %v4450
      %v4662 = vpack.c.bf16 %v4453, %v4452
      %v4663 = vpack.c.bf16 %v4455, %v4454
      %v4664 = vpack.c.bf16 %v4457, %v4456
      %v4665 = vpack.c.bf16 %v4459, %v4458
      %v4666 = vpack.c.bf16 %v4461, %v4460
      %v4667 = vpack.c.bf16 %v4463, %v4462
      %v4668 = vpack.c.bf16 %v4465, %v4464
      %v4669 = vpack.c.bf16 %v4467, %v4466
      %v4670 = vpack.c.bf16 %v4469, %v4468
      %v4671 = vpack.c.bf16 %v4471, %v4470
      %v4672 = vpack.c.bf16 %v4473, %v4472
      %v4673 = vpack.c.bf16 %v4475, %v4474
      %v4674 = vpack.c.bf16 %v4477, %v4476
      %v4675 = vpack.c.bf16 %v4479, %v4478
      %v4676 = vpack.c.bf16 %v4481, %v4480
      %v4677 = vpack.c.bf16 %v4483, %v4482
      %v4678 = vpack.c.bf16 %v4485, %v4484
      %v4679 = vpack.c.bf16 %v4487, %v4486
      %v4680 = vpack.c.bf16 %v4489, %v4488
      %v4681 = vpack.c.bf16 %v4491, %v4490
      %v4682 = vpack.c.bf16 %v4493, %v4492
      %v4683 = vpack.c.bf16 %v4495, %v4494
      %v4684 = vpack.c.bf16 %v4497, %v4496
      %v4685 = vpack.c.bf16 %v4499, %v4498
      %v4686 = vpack.c.bf16 %v4501, %v4500
      %v4687 = vpack.c.bf16 %v4503, %v4502
      %v4688 = vpack.c.bf16 %v4505, %v4504
      %v4689 = vpack.c.bf16 %v4507, %v4506
      %v4690 = vpack.c.bf16 %v4509, %v4508
      %v4691 = vpack.c.bf16 %v4511, %v4510
      %v4692 = vpack.c.bf16 %v4513, %v4512
      %v4693 = vpack.c.bf16 %v4515, %v4514
      %v4694 = vpack.c.bf16 %v4517, %v4516
      %v4695 = vpack.c.bf16 %v4519, %v4518
      %v4872 = vunpack.c.l.b16 %v4520
      %v4873 = vunpack.c.h.b16 %v4520
      %v4874 = vunpack.c.l.b16 %v4521
      %v4875 = vunpack.c.h.b16 %v4521
      %v4876 = vunpack.c.l.b16 %v4522
      %v4877 = vunpack.c.h.b16 %v4522
      %v4878 = vunpack.c.l.b16 %v4523
      %v4879 = vunpack.c.h.b16 %v4523
      %v4880 = vunpack.c.l.b16 %v4524
      %v4881 = vunpack.c.h.b16 %v4524
      %v4882 = vunpack.c.l.b16 %v4525
      %v4883 = vunpack.c.h.b16 %v4525
      %v4884 = vunpack.c.l.b16 %v4526
      %v4885 = vunpack.c.h.b16 %v4526
      %v4886 = vunpack.c.l.b16 %v4527
      %v4887 = vunpack.c.h.b16 %v4527
      %v4888 = vunpack.c.l.b16 %v4528
      %v4889 = vunpack.c.h.b16 %v4528
      %v4890 = vunpack.c.l.b16 %v4529
      %v4891 = vunpack.c.h.b16 %v4529
      %v4892 = vunpack.c.l.b16 %v4530
      %v4893 = vunpack.c.h.b16 %v4530
      %v4894 = vunpack.c.l.b16 %v4531
      %v4895 = vunpack.c.h.b16 %v4531
      %v4896 = vunpack.c.l.b16 %v4532
      %v4897 = vunpack.c.h.b16 %v4532
      %v4898 = vunpack.c.l.b16 %v4533
      %v4899 = vunpack.c.h.b16 %v4533
      %v4900 = vunpack.c.l.b16 %v4534
      %v4901 = vunpack.c.h.b16 %v4534
      %v4902 = vunpack.c.l.b16 %v4535
      %v4903 = vunpack.c.h.b16 %v4535
      %v4904 = vunpack.c.l.b16 %v4536
      %v4905 = vunpack.c.h.b16 %v4536
      %v4906 = vunpack.c.l.b16 %v4537
      %v4907 = vunpack.c.h.b16 %v4537
      %v4908 = vunpack.c.l.b16 %v4538
      %v4909 = vunpack.c.h.b16 %v4538
      %v4910 = vunpack.c.l.b16 %v4539
      %v4911 = vunpack.c.h.b16 %v4539
      %v4912 = vunpack.c.l.b16 %v4540
      %v4913 = vunpack.c.h.b16 %v4540
      %v4914 = vunpack.c.l.b16 %v4541
      %v4915 = vunpack.c.h.b16 %v4541
      %v4916 = vunpack.c.l.b16 %v4542
      %v4917 = vunpack.c.h.b16 %v4542
      %v4918 = vunpack.c.l.b16 %v4543
      %v4919 = vunpack.c.h.b16 %v4543
      %v4920 = vunpack.c.l.b16 %v4544
      %v4921 = vunpack.c.h.b16 %v4544
      %v4922 = vunpack.c.l.b16 %v4545
      %v4923 = vunpack.c.h.b16 %v4545
      %v4924 = vunpack.c.l.b16 %v4546
      %v4925 = vunpack.c.h.b16 %v4546
      %v4926 = vunpack.c.l.b16 %v4547
      %v4927 = vunpack.c.h.b16 %v4547
      %v4928 = vunpack.c.l.b16 %v4548
      %v4929 = vunpack.c.h.b16 %v4548
      %v4930 = vunpack.c.l.b16 %v4549
      %v4931 = vunpack.c.h.b16 %v4549
      %v4932 = vunpack.c.l.b16 %v4550
      %v4933 = vunpack.c.h.b16 %v4550
      %v4934 = vunpack.c.l.b16 %v4551
      %v4935 = vunpack.c.h.b16 %v4551
      %v4936 = vunpack.c.l.b16 %v4552
      %v4937 = vunpack.c.h.b16 %v4552
      %v4938 = vunpack.c.l.b16 %v4553
      %v4939 = vunpack.c.h.b16 %v4553
      %v4940 = vunpack.c.l.b16 %v4554
      %v4941 = vunpack.c.h.b16 %v4554
      %v4942 = vunpack.c.l.b16 %v4555
      %v4943 = vunpack.c.h.b16 %v4555
      %v4944 = vunpack.c.l.b16 %v4556
      %v4945 = vunpack.c.h.b16 %v4556
      %v4946 = vunpack.c.l.b16 %v4557
      %v4947 = vunpack.c.h.b16 %v4557
      %v4948 = vunpack.c.l.b16 %v4558
      %v4949 = vunpack.c.h.b16 %v4558
      %v4950 = vunpack.c.l.b16 %v4559
      %v4951 = vunpack.c.h.b16 %v4559
      %v4952 = vunpack.c.l.b16 %v4560
      %v4953 = vunpack.c.h.b16 %v4560
      %v4954 = vunpack.c.l.b16 %v4561
      %v4955 = vunpack.c.h.b16 %v4561
      %v4956 = vunpack.c.l.b16 %v4562
      %v4957 = vunpack.c.h.b16 %v4562
      %v4958 = vunpack.c.l.b16 %v4563
      %v4959 = vunpack.c.h.b16 %v4563
      %v4960 = vunpack.c.l.b16 %v4564
      %v4961 = vunpack.c.h.b16 %v4564
      %v4962 = vunpack.c.l.b16 %v4565
      %v4963 = vunpack.c.h.b16 %v4565
      %v4964 = vunpack.c.l.b16 %v4566
      %v4965 = vunpack.c.h.b16 %v4566
      %v4966 = vunpack.c.l.b16 %v4567
      %v4967 = vunpack.c.h.b16 %v4567
      %v4968 = vunpack.c.l.b16 %v4568
      %v4969 = vunpack.c.h.b16 %v4568
      %v4970 = vunpack.c.l.b16 %v4569
      %v4971 = vunpack.c.h.b16 %v4569
      %v4972 = vunpack.c.l.b16 %v4570
      %v4973 = vunpack.c.h.b16 %v4570
      %v4974 = vunpack.c.l.b16 %v4571
      %v4975 = vunpack.c.h.b16 %v4571
      %v4976 = vunpack.c.l.b16 %v4572
      %v4977 = vunpack.c.h.b16 %v4572
      %v4978 = vunpack.c.l.b16 %v4573
      %v4979 = vunpack.c.h.b16 %v4573
      %v4980 = vunpack.c.l.b16 %v4574
      %v4981 = vunpack.c.h.b16 %v4574
      %v4982 = vunpack.c.l.b16 %v4575
      %v4983 = vunpack.c.h.b16 %v4575
      %v4984 = vunpack.c.l.b16 %v4576
      %v4985 = vunpack.c.h.b16 %v4576
      %v4986 = vunpack.c.l.b16 %v4577
      %v4987 = vunpack.c.h.b16 %v4577
      %v4988 = vunpack.c.l.b16 %v4578
      %v4989 = vunpack.c.h.b16 %v4578
      %v4990 = vunpack.c.l.b16 %v4579
      %v4991 = vunpack.c.h.b16 %v4579
      %v4992 = vunpack.c.l.b16 %v4580
      %v4993 = vunpack.c.h.b16 %v4580
      %v4994 = vunpack.c.l.b16 %v4581
      %v4995 = vunpack.c.h.b16 %v4581
      %v4996 = vunpack.c.l.b16 %v4582
      %v4997 = vunpack.c.h.b16 %v4582
      %v4998 = vunpack.c.l.b16 %v4583
      %v4999 = vunpack.c.h.b16 %v4583
      %v5000 = vunpack.c.l.b16 %v4584
      %v5001 = vunpack.c.h.b16 %v4584
      %v5002 = vunpack.c.l.b16 %v4585
      %v5003 = vunpack.c.h.b16 %v4585
      %v5004 = vunpack.c.l.b16 %v4586
      %v5005 = vunpack.c.h.b16 %v4586
      %v5006 = vunpack.c.l.b16 %v4587
      %v5007 = vunpack.c.h.b16 %v4587
      %v5008 = vunpack.c.l.b16 %v4588
      %v5009 = vunpack.c.h.b16 %v4588
      %v5010 = vunpack.c.l.b16 %v4589
      %v5011 = vunpack.c.h.b16 %v4589
      %v5012 = vunpack.c.l.b16 %v4590
      %v5013 = vunpack.c.h.b16 %v4590
      %v5014 = vunpack.c.l.b16 %v4591
      %v5015 = vunpack.c.h.b16 %v4591
      %v5016 = vunpack.c.l.b16 %v4592
      %v5017 = vunpack.c.h.b16 %v4592
      %v5018 = vunpack.c.l.b16 %v4593
      %v5019 = vunpack.c.h.b16 %v4593
      %v5020 = vunpack.c.l.b16 %v4594
      %v5021 = vunpack.c.h.b16 %v4594
      %v5022 = vunpack.c.l.b16 %v4595
      %v5023 = vunpack.c.h.b16 %v4595
      %v5024 = vunpack.c.l.b16 %v4596
      %v5025 = vunpack.c.h.b16 %v4596
      %v5026 = vunpack.c.l.b16 %v4597
      %v5027 = vunpack.c.h.b16 %v4597
      %v5028 = vunpack.c.l.b16 %v4598
      %v5029 = vunpack.c.h.b16 %v4598
      %v5030 = vunpack.c.l.b16 %v4599
      %v5031 = vunpack.c.h.b16 %v4599
      %v5032 = vunpack.c.l.b16 %v4600
      %v5033 = vunpack.c.h.b16 %v4600
      %v5034 = vunpack.c.l.b16 %v4601
      %v5035 = vunpack.c.h.b16 %v4601
      %v5036 = vunpack.c.l.b16 %v4602
      %v5037 = vunpack.c.h.b16 %v4602
      %v5038 = vunpack.c.l.b16 %v4603
      %v5039 = vunpack.c.h.b16 %v4603
      %v5040 = vunpack.c.l.b16 %v4604
      %v5041 = vunpack.c.h.b16 %v4604
      %v5042 = vunpack.c.l.b16 %v4605
      %v5043 = vunpack.c.h.b16 %v4605
      %v5044 = vunpack.c.l.b16 %v4606
      %v5045 = vunpack.c.h.b16 %v4606
      %v5046 = vunpack.c.l.b16 %v4607
      %v5047 = vunpack.c.h.b16 %v4607
      %v5048 = vunpack.c.l.b16 %v4608
      %v5049 = vunpack.c.h.b16 %v4608
      %v5050 = vunpack.c.l.b16 %v4609
      %v5051 = vunpack.c.h.b16 %v4609
      %v5052 = vunpack.c.l.b16 %v4610
      %v5053 = vunpack.c.h.b16 %v4610
      %v5054 = vunpack.c.l.b16 %v4611
      %v5055 = vunpack.c.h.b16 %v4611
      %v5056 = vunpack.c.l.b16 %v4612
      %v5057 = vunpack.c.h.b16 %v4612
      %v5058 = vunpack.c.l.b16 %v4613
      %v5059 = vunpack.c.h.b16 %v4613
      %v5060 = vunpack.c.l.b16 %v4614
      %v5061 = vunpack.c.h.b16 %v4614
      %v5062 = vunpack.c.l.b16 %v4615
      %v5063 = vunpack.c.h.b16 %v4615
      %v5064 = vunpack.c.l.b16 %v4616
      %v5065 = vunpack.c.h.b16 %v4616
      %v5066 = vunpack.c.l.b16 %v4617
      %v5067 = vunpack.c.h.b16 %v4617
      %v5068 = vunpack.c.l.b16 %v4618
      %v5069 = vunpack.c.h.b16 %v4618
      %v5070 = vunpack.c.l.b16 %v4619
      %v5071 = vunpack.c.h.b16 %v4619
      %v5072 = vunpack.c.l.b16 %v4620
      %v5073 = vunpack.c.h.b16 %v4620
      %v5074 = vunpack.c.l.b16 %v4621
      %v5075 = vunpack.c.h.b16 %v4621
      %v5076 = vunpack.c.l.b16 %v4622
      %v5077 = vunpack.c.h.b16 %v4622
      %v5078 = vunpack.c.l.b16 %v4623
      %v5079 = vunpack.c.h.b16 %v4623
      %v5080 = vunpack.c.l.b16 %v4624
      %v5081 = vunpack.c.h.b16 %v4624
      %v5082 = vunpack.c.l.b16 %v4625
      %v5083 = vunpack.c.h.b16 %v4625
      %v5084 = vunpack.c.l.b16 %v4626
      %v5085 = vunpack.c.h.b16 %v4626
      %v5086 = vunpack.c.l.b16 %v4627
      %v5087 = vunpack.c.h.b16 %v4627
      %v5088 = vunpack.c.l.b16 %v4628
      %v5089 = vunpack.c.h.b16 %v4628
      %v5090 = vunpack.c.l.b16 %v4629
      %v5091 = vunpack.c.h.b16 %v4629
      %v5092 = vunpack.c.l.b16 %v4630
      %v5093 = vunpack.c.h.b16 %v4630
      %v5094 = vunpack.c.l.b16 %v4631
      %v5095 = vunpack.c.h.b16 %v4631
      %v5096 = vunpack.c.l.b16 %v4632
      %v5097 = vunpack.c.h.b16 %v4632
      %v5098 = vunpack.c.l.b16 %v4633
      %v5099 = vunpack.c.h.b16 %v4633
      %v5100 = vunpack.c.l.b16 %v4634
      %v5101 = vunpack.c.h.b16 %v4634
      %v5102 = vunpack.c.l.b16 %v4635
      %v5103 = vunpack.c.h.b16 %v4635
      %v5104 = vunpack.c.l.b16 %v4636
      %v5105 = vunpack.c.h.b16 %v4636
      %v5106 = vunpack.c.l.b16 %v4637
      %v5107 = vunpack.c.h.b16 %v4637
      %v5108 = vunpack.c.l.b16 %v4638
      %v5109 = vunpack.c.h.b16 %v4638
      %v5110 = vunpack.c.l.b16 %v4639
      %v5111 = vunpack.c.h.b16 %v4639
      %v5112 = vunpack.c.l.b16 %v4640
      %v5113 = vunpack.c.h.b16 %v4640
      %v5114 = vunpack.c.l.b16 %v4641
      %v5115 = vunpack.c.h.b16 %v4641
      %v5116 = vunpack.c.l.b16 %v4642
      %v5117 = vunpack.c.h.b16 %v4642
      %v5118 = vunpack.c.l.b16 %v4643
      %v5119 = vunpack.c.h.b16 %v4643
      %v5120 = vunpack.c.l.b16 %v4644
      %v5121 = vunpack.c.h.b16 %v4644
      %v5122 = vunpack.c.l.b16 %v4645
      %v5123 = vunpack.c.h.b16 %v4645
      %v5124 = vunpack.c.l.b16 %v4646
      %v5125 = vunpack.c.h.b16 %v4646
      %v5126 = vunpack.c.l.b16 %v4647
      %v5127 = vunpack.c.h.b16 %v4647
      %v5128 = vunpack.c.l.b16 %v4648
      %v5129 = vunpack.c.h.b16 %v4648
      %v5130 = vunpack.c.l.b16 %v4649
      %v5131 = vunpack.c.h.b16 %v4649
      %v5132 = vunpack.c.l.b16 %v4650
      %v5133 = vunpack.c.h.b16 %v4650
      %v5134 = vunpack.c.l.b16 %v4651
      %v5135 = vunpack.c.h.b16 %v4651
      %v5136 = vunpack.c.l.b16 %v4652
      %v5137 = vunpack.c.h.b16 %v4652
      %v5138 = vunpack.c.l.b16 %v4653
      %v5139 = vunpack.c.h.b16 %v4653
      %v5140 = vunpack.c.l.b16 %v4654
      %v5141 = vunpack.c.h.b16 %v4654
      %v5142 = vunpack.c.l.b16 %v4655
      %v5143 = vunpack.c.h.b16 %v4655
      %v5144 = vunpack.c.l.b16 %v4656
      %v5145 = vunpack.c.h.b16 %v4656
      %v5146 = vunpack.c.l.b16 %v4657
      %v5147 = vunpack.c.h.b16 %v4657
      %v5148 = vunpack.c.l.b16 %v4658
      %v5149 = vunpack.c.h.b16 %v4658
      %v5150 = vunpack.c.l.b16 %v4659
      %v5151 = vunpack.c.h.b16 %v4659
      %v5152 = vunpack.c.l.b16 %v4660
      %v5153 = vunpack.c.h.b16 %v4660
      %v5154 = vunpack.c.l.b16 %v4661
      %v5155 = vunpack.c.h.b16 %v4661
      %v5156 = vunpack.c.l.b16 %v4662
      %v5157 = vunpack.c.h.b16 %v4662
      %v5158 = vunpack.c.l.b16 %v4663
      %v5159 = vunpack.c.h.b16 %v4663
      %v5160 = vunpack.c.l.b16 %v4664
      %v5161 = vunpack.c.h.b16 %v4664
      %v5162 = vunpack.c.l.b16 %v4665
      %v5163 = vunpack.c.h.b16 %v4665
      %v5164 = vunpack.c.l.b16 %v4666
      %v5165 = vunpack.c.h.b16 %v4666
      %v5166 = vunpack.c.l.b16 %v4667
      %v5167 = vunpack.c.h.b16 %v4667
      %v5168 = vunpack.c.l.b16 %v4668
      %v5169 = vunpack.c.h.b16 %v4668
      %v5170 = vunpack.c.l.b16 %v4669
      %v5171 = vunpack.c.h.b16 %v4669
      %v5172 = vunpack.c.l.b16 %v4670
      %v5173 = vunpack.c.h.b16 %v4670
      %v5174 = vunpack.c.l.b16 %v4671
      %v5175 = vunpack.c.h.b16 %v4671
      %v5176 = vunpack.c.l.b16 %v4672
      %v5177 = vunpack.c.h.b16 %v4672
      %v5178 = vunpack.c.l.b16 %v4673
      %v5179 = vunpack.c.h.b16 %v4673
      %v5180 = vunpack.c.l.b16 %v4674
      %v5181 = vunpack.c.h.b16 %v4674
      %v5182 = vunpack.c.l.b16 %v4675
      %v5183 = vunpack.c.h.b16 %v4675
      %v5184 = vunpack.c.l.b16 %v4676
      %v5185 = vunpack.c.h.b16 %v4676
      %v5186 = vunpack.c.l.b16 %v4677
      %v5187 = vunpack.c.h.b16 %v4677
      %v5188 = vunpack.c.l.b16 %v4678
      %v5189 = vunpack.c.h.b16 %v4678
      %v5190 = vunpack.c.l.b16 %v4679
      %v5191 = vunpack.c.h.b16 %v4679
      %v5192 = vunpack.c.l.b16 %v4680
      %v5193 = vunpack.c.h.b16 %v4680
      %v5194 = vunpack.c.l.b16 %v4681
      %v5195 = vunpack.c.h.b16 %v4681
      %v5196 = vunpack.c.l.b16 %v4682
      %v5197 = vunpack.c.h.b16 %v4682
      %v5198 = vunpack.c.l.b16 %v4683
      %v5199 = vunpack.c.h.b16 %v4683
      %v5200 = vunpack.c.l.b16 %v4684
      %v5201 = vunpack.c.h.b16 %v4684
      %v5202 = vunpack.c.l.b16 %v4685
      %v5203 = vunpack.c.h.b16 %v4685
      %v5204 = vunpack.c.l.b16 %v4686
      %v5205 = vunpack.c.h.b16 %v4686
      %v5206 = vunpack.c.l.b16 %v4687
      %v5207 = vunpack.c.h.b16 %v4687
      %v5208 = vunpack.c.l.b16 %v4688
      %v5209 = vunpack.c.h.b16 %v4688
      %v5210 = vunpack.c.l.b16 %v4689
      %v5211 = vunpack.c.h.b16 %v4689
      %v5212 = vunpack.c.l.b16 %v4690
      %v5213 = vunpack.c.h.b16 %v4690
      %v5214 = vunpack.c.l.b16 %v4691
      %v5215 = vunpack.c.h.b16 %v4691
      %v5216 = vunpack.c.l.b16 %v4692
      %v5217 = vunpack.c.h.b16 %v4692
      %v5218 = vunpack.c.l.b16 %v4693
      %v5219 = vunpack.c.h.b16 %v4693
      %v5220 = vunpack.c.l.b16 %v4694
      %v5221 = vunpack.c.h.b16 %v4694
      %v5222 = vunpack.c.l.b16 %v4695
      %v5223 = vunpack.c.h.b16 %v4695
      %v5224 = vpack.c.b16 %v4872, %v4872
      %v5225 = vpack.c.b16 %v4873, %v4873
      %v5226 = vpack.c.b16 %v4874, %v4874
      %v5227 = vpack.c.b16 %v4875, %v4875
      %v5228 = vpack.c.b16 %v4876, %v4876
      %v5229 = vpack.c.b16 %v4877, %v4877
      %v5230 = vpack.c.b16 %v4878, %v4878
      %v5231 = vpack.c.b16 %v4879, %v4879
      %v5232 = vpack.c.b16 %v4880, %v4880
      %v5233 = vpack.c.b16 %v4881, %v4881
      %v5234 = vpack.c.b16 %v4882, %v4882
      %v5235 = vpack.c.b16 %v4883, %v4883
      %v5236 = vpack.c.b16 %v4884, %v4884
      %v5237 = vpack.c.b16 %v4885, %v4885
      %v5238 = vpack.c.b16 %v4886, %v4886
      %v5239 = vpack.c.b16 %v4887, %v4887
      %v5240 = vpack.c.b16 %v4888, %v4888
      %v5241 = vpack.c.b16 %v4889, %v4889
      %v5242 = vpack.c.b16 %v4890, %v4890
      %v5243 = vpack.c.b16 %v4891, %v4891
      %v5244 = vpack.c.b16 %v4892, %v4892
      %v5245 = vpack.c.b16 %v4893, %v4893
      %v5246 = vpack.c.b16 %v4894, %v4894
      %v5247 = vpack.c.b16 %v4895, %v4895
      %v5248 = vpack.c.b16 %v4896, %v4896
      %v5249 = vpack.c.b16 %v4897, %v4897
      %v5250 = vpack.c.b16 %v4898, %v4898
      %v5251 = vpack.c.b16 %v4899, %v4899
      %v5252 = vpack.c.b16 %v4900, %v4900
      %v5253 = vpack.c.b16 %v4901, %v4901
      %v5254 = vpack.c.b16 %v4902, %v4902
      %v5255 = vpack.c.b16 %v4903, %v4903
      %v5256 = vpack.c.b16 %v4904, %v4904
      %v5257 = vpack.c.b16 %v4905, %v4905
      %v5258 = vpack.c.b16 %v4906, %v4906
      %v5259 = vpack.c.b16 %v4907, %v4907
      %v5260 = vpack.c.b16 %v4908, %v4908
      %v5261 = vpack.c.b16 %v4909, %v4909
      %v5262 = vpack.c.b16 %v4910, %v4910
      %v5263 = vpack.c.b16 %v4911, %v4911
      %v5264 = vpack.c.b16 %v4912, %v4912
      %v5265 = vpack.c.b16 %v4913, %v4913
      %v5266 = vpack.c.b16 %v4914, %v4914
      %v5267 = vpack.c.b16 %v4915, %v4915
      %v5268 = vpack.c.b16 %v4916, %v4916
      %v5269 = vpack.c.b16 %v4917, %v4917
      %v5270 = vpack.c.b16 %v4918, %v4918
      %v5271 = vpack.c.b16 %v4919, %v4919
      %v5272 = vpack.c.b16 %v4920, %v4920
      %v5273 = vpack.c.b16 %v4921, %v4921
      %v5274 = vpack.c.b16 %v4922, %v4922
      %v5275 = vpack.c.b16 %v4923, %v4923
      %v5276 = vpack.c.b16 %v4924, %v4924
      %v5277 = vpack.c.b16 %v4925, %v4925
      %v5278 = vpack.c.b16 %v4926, %v4926
      %v5279 = vpack.c.b16 %v4927, %v4927
      %v5280 = vpack.c.b16 %v4928, %v4928
      %v5281 = vpack.c.b16 %v4929, %v4929
      %v5282 = vpack.c.b16 %v4930, %v4930
      %v5283 = vpack.c.b16 %v4931, %v4931
      %v5284 = vpack.c.b16 %v4932, %v4932
      %v5285 = vpack.c.b16 %v4933, %v4933
      %v5286 = vpack.c.b16 %v4934, %v4934
      %v5287 = vpack.c.b16 %v4935, %v4935
      %v5288 = vpack.c.b16 %v4936, %v4936
      %v5289 = vpack.c.b16 %v4937, %v4937
      %v5290 = vpack.c.b16 %v4938, %v4938
      %v5291 = vpack.c.b16 %v4939, %v4939
      %v5292 = vpack.c.b16 %v4940, %v4940
      %v5293 = vpack.c.b16 %v4941, %v4941
      %v5294 = vpack.c.b16 %v4942, %v4942
      %v5295 = vpack.c.b16 %v4943, %v4943
      %v5296 = vpack.c.b16 %v4944, %v4944
      %v5297 = vpack.c.b16 %v4945, %v4945
      %v5298 = vpack.c.b16 %v4946, %v4946
      %v5299 = vpack.c.b16 %v4947, %v4947
      %v5300 = vpack.c.b16 %v4948, %v4948
      %v5301 = vpack.c.b16 %v4949, %v4949
      %v5302 = vpack.c.b16 %v4950, %v4950
      %v5303 = vpack.c.b16 %v4951, %v4951
      %v5304 = vpack.c.b16 %v4952, %v4952
      %v5305 = vpack.c.b16 %v4953, %v4953
      %v5306 = vpack.c.b16 %v4954, %v4954
      %v5307 = vpack.c.b16 %v4955, %v4955
      %v5308 = vpack.c.b16 %v4956, %v4956
      %v5309 = vpack.c.b16 %v4957, %v4957
      %v5310 = vpack.c.b16 %v4958, %v4958
      %v5311 = vpack.c.b16 %v4959, %v4959
      %v5312 = vpack.c.b16 %v4960, %v4960
      %v5313 = vpack.c.b16 %v4961, %v4961
      %v5314 = vpack.c.b16 %v4962, %v4962
      %v5315 = vpack.c.b16 %v4963, %v4963
      %v5316 = vpack.c.b16 %v4964, %v4964
      %v5317 = vpack.c.b16 %v4965, %v4965
      %v5318 = vpack.c.b16 %v4966, %v4966
      %v5319 = vpack.c.b16 %v4967, %v4967
      %v5320 = vpack.c.b16 %v4968, %v4968
      %v5321 = vpack.c.b16 %v4969, %v4969
      %v5322 = vpack.c.b16 %v4970, %v4970
      %v5323 = vpack.c.b16 %v4971, %v4971
      %v5324 = vpack.c.b16 %v4972, %v4972
      %v5325 = vpack.c.b16 %v4973, %v4973
      %v5326 = vpack.c.b16 %v4974, %v4974
      %v5327 = vpack.c.b16 %v4975, %v4975
      %v5328 = vpack.c.b16 %v4976, %v4976
      %v5329 = vpack.c.b16 %v4977, %v4977
      %v5330 = vpack.c.b16 %v4978, %v4978
      %v5331 = vpack.c.b16 %v4979, %v4979
      %v5332 = vpack.c.b16 %v4980, %v4980
      %v5333 = vpack.c.b16 %v4981, %v4981
      %v5334 = vpack.c.b16 %v4982, %v4982
      %v5335 = vpack.c.b16 %v4983, %v4983
      %v5336 = vpack.c.b16 %v4984, %v4984
      %v5337 = vpack.c.b16 %v4985, %v4985
      %v5338 = vpack.c.b16 %v4986, %v4986
      %v5339 = vpack.c.b16 %v4987, %v4987
      %v5340 = vpack.c.b16 %v4988, %v4988
      %v5341 = vpack.c.b16 %v4989, %v4989
      %v5342 = vpack.c.b16 %v4990, %v4990
      %v5343 = vpack.c.b16 %v4991, %v4991
      %v5344 = vpack.c.b16 %v4992, %v4992
      %v5345 = vpack.c.b16 %v4993, %v4993
      %v5346 = vpack.c.b16 %v4994, %v4994
      %v5347 = vpack.c.b16 %v4995, %v4995
      %v5348 = vpack.c.b16 %v4996, %v4996
      %v5349 = vpack.c.b16 %v4997, %v4997
      %v5350 = vpack.c.b16 %v4998, %v4998
      %v5351 = vpack.c.b16 %v4999, %v4999
      %v5352 = vpack.c.b16 %v5000, %v5000
      %v5353 = vpack.c.b16 %v5001, %v5001
      %v5354 = vpack.c.b16 %v5002, %v5002
      %v5355 = vpack.c.b16 %v5003, %v5003
      %v5356 = vpack.c.b16 %v5004, %v5004
      %v5357 = vpack.c.b16 %v5005, %v5005
      %v5358 = vpack.c.b16 %v5006, %v5006
      %v5359 = vpack.c.b16 %v5007, %v5007
      %v5360 = vpack.c.b16 %v5008, %v5008
      %v5361 = vpack.c.b16 %v5009, %v5009
      %v5362 = vpack.c.b16 %v5010, %v5010
      %v5363 = vpack.c.b16 %v5011, %v5011
      %v5364 = vpack.c.b16 %v5012, %v5012
      %v5365 = vpack.c.b16 %v5013, %v5013
      %v5366 = vpack.c.b16 %v5014, %v5014
      %v5367 = vpack.c.b16 %v5015, %v5015
      %v5368 = vpack.c.b16 %v5016, %v5016
      %v5369 = vpack.c.b16 %v5017, %v5017
      %v5370 = vpack.c.b16 %v5018, %v5018
      %v5371 = vpack.c.b16 %v5019, %v5019
      %v5372 = vpack.c.b16 %v5020, %v5020
      %v5373 = vpack.c.b16 %v5021, %v5021
      %v5374 = vpack.c.b16 %v5022, %v5022
      %v5375 = vpack.c.b16 %v5023, %v5023
      %v5376 = vpack.c.b16 %v5024, %v5024
      %v5377 = vpack.c.b16 %v5025, %v5025
      %v5378 = vpack.c.b16 %v5026, %v5026
      %v5379 = vpack.c.b16 %v5027, %v5027
      %v5380 = vpack.c.b16 %v5028, %v5028
      %v5381 = vpack.c.b16 %v5029, %v5029
      %v5382 = vpack.c.b16 %v5030, %v5030
      %v5383 = vpack.c.b16 %v5031, %v5031
      %v5384 = vpack.c.b16 %v5032, %v5032
      %v5385 = vpack.c.b16 %v5033, %v5033
      %v5386 = vpack.c.b16 %v5034, %v5034
      %v5387 = vpack.c.b16 %v5035, %v5035
      %v5388 = vpack.c.b16 %v5036, %v5036
      %v5389 = vpack.c.b16 %v5037, %v5037
      %v5390 = vpack.c.b16 %v5038, %v5038
      %v5391 = vpack.c.b16 %v5039, %v5039
      %v5392 = vpack.c.b16 %v5040, %v5040
      %v5393 = vpack.c.b16 %v5041, %v5041
      %v5394 = vpack.c.b16 %v5042, %v5042
      %v5395 = vpack.c.b16 %v5043, %v5043
      %v5396 = vpack.c.b16 %v5044, %v5044
      %v5397 = vpack.c.b16 %v5045, %v5045
      %v5398 = vpack.c.b16 %v5046, %v5046
      %v5399 = vpack.c.b16 %v5047, %v5047
      %v5400 = vpack.c.b16 %v5048, %v5048
      %v5401 = vpack.c.b16 %v5049, %v5049
      %v5402 = vpack.c.b16 %v5050, %v5050
      %v5403 = vpack.c.b16 %v5051, %v5051
      %v5404 = vpack.c.b16 %v5052, %v5052
      %v5405 = vpack.c.b16 %v5053, %v5053
      %v5406 = vpack.c.b16 %v5054, %v5054
      %v5407 = vpack.c.b16 %v5055, %v5055
      %v5408 = vpack.c.b16 %v5056, %v5056
      %v5409 = vpack.c.b16 %v5057, %v5057
      %v5410 = vpack.c.b16 %v5058, %v5058
      %v5411 = vpack.c.b16 %v5059, %v5059
      %v5412 = vpack.c.b16 %v5060, %v5060
      %v5413 = vpack.c.b16 %v5061, %v5061
      %v5414 = vpack.c.b16 %v5062, %v5062
      %v5415 = vpack.c.b16 %v5063, %v5063
      %v5416 = vpack.c.b16 %v5064, %v5064
      %v5417 = vpack.c.b16 %v5065, %v5065
      %v5418 = vpack.c.b16 %v5066, %v5066
      %v5419 = vpack.c.b16 %v5067, %v5067
      %v5420 = vpack.c.b16 %v5068, %v5068
      %v5421 = vpack.c.b16 %v5069, %v5069
      %v5422 = vpack.c.b16 %v5070, %v5070
      %v5423 = vpack.c.b16 %v5071, %v5071
      %v5424 = vpack.c.b16 %v5072, %v5072
      %v5425 = vpack.c.b16 %v5073, %v5073
      %v5426 = vpack.c.b16 %v5074, %v5074
      %v5427 = vpack.c.b16 %v5075, %v5075
      %v5428 = vpack.c.b16 %v5076, %v5076
      %v5429 = vpack.c.b16 %v5077, %v5077
      %v5430 = vpack.c.b16 %v5078, %v5078
      %v5431 = vpack.c.b16 %v5079, %v5079
      %v5432 = vpack.c.b16 %v5080, %v5080
      %v5433 = vpack.c.b16 %v5081, %v5081
      %v5434 = vpack.c.b16 %v5082, %v5082
      %v5435 = vpack.c.b16 %v5083, %v5083
      %v5436 = vpack.c.b16 %v5084, %v5084
      %v5437 = vpack.c.b16 %v5085, %v5085
      %v5438 = vpack.c.b16 %v5086, %v5086
      %v5439 = vpack.c.b16 %v5087, %v5087
      %v5440 = vpack.c.b16 %v5088, %v5088
      %v5441 = vpack.c.b16 %v5089, %v5089
      %v5442 = vpack.c.b16 %v5090, %v5090
      %v5443 = vpack.c.b16 %v5091, %v5091
      %v5444 = vpack.c.b16 %v5092, %v5092
      %v5445 = vpack.c.b16 %v5093, %v5093
      %v5446 = vpack.c.b16 %v5094, %v5094
      %v5447 = vpack.c.b16 %v5095, %v5095
      %v5448 = vpack.c.b16 %v5096, %v5096
      %v5449 = vpack.c.b16 %v5097, %v5097
      %v5450 = vpack.c.b16 %v5098, %v5098
      %v5451 = vpack.c.b16 %v5099, %v5099
      %v5452 = vpack.c.b16 %v5100, %v5100
      %v5453 = vpack.c.b16 %v5101, %v5101
      %v5454 = vpack.c.b16 %v5102, %v5102
      %v5455 = vpack.c.b16 %v5103, %v5103
      %v5456 = vpack.c.b16 %v5104, %v5104
      %v5457 = vpack.c.b16 %v5105, %v5105
      %v5458 = vpack.c.b16 %v5106, %v5106
      %v5459 = vpack.c.b16 %v5107, %v5107
      %v5460 = vpack.c.b16 %v5108, %v5108
      %v5461 = vpack.c.b16 %v5109, %v5109
      %v5462 = vpack.c.b16 %v5110, %v5110
      %v5463 = vpack.c.b16 %v5111, %v5111
      %v5464 = vpack.c.b16 %v5112, %v5112
      %v5465 = vpack.c.b16 %v5113, %v5113
      %v5466 = vpack.c.b16 %v5114, %v5114
      %v5467 = vpack.c.b16 %v5115, %v5115
      %v5468 = vpack.c.b16 %v5116, %v5116
      %v5469 = vpack.c.b16 %v5117, %v5117
      %v5470 = vpack.c.b16 %v5118, %v5118
      %v5471 = vpack.c.b16 %v5119, %v5119
      %v5472 = vpack.c.b16 %v5120, %v5120
      %v5473 = vpack.c.b16 %v5121, %v5121
      %v5474 = vpack.c.b16 %v5122, %v5122
      %v5475 = vpack.c.b16 %v5123, %v5123
      %v5476 = vpack.c.b16 %v5124, %v5124
      %v5477 = vpack.c.b16 %v5125, %v5125
      %v5478 = vpack.c.b16 %v5126, %v5126
      %v5479 = vpack.c.b16 %v5127, %v5127
      %v5480 = vpack.c.b16 %v5128, %v5128
      %v5481 = vpack.c.b16 %v5129, %v5129
      %v5482 = vpack.c.b16 %v5130, %v5130
      %v5483 = vpack.c.b16 %v5131, %v5131
      %v5484 = vpack.c.b16 %v5132, %v5132
      %v5485 = vpack.c.b16 %v5133, %v5133
      %v5486 = vpack.c.b16 %v5134, %v5134
      %v5487 = vpack.c.b16 %v5135, %v5135
      %v5488 = vpack.c.b16 %v5136, %v5136
      %v5489 = vpack.c.b16 %v5137, %v5137
      %v5490 = vpack.c.b16 %v5138, %v5138
      %v5491 = vpack.c.b16 %v5139, %v5139
      %v5492 = vpack.c.b16 %v5140, %v5140
      %v5493 = vpack.c.b16 %v5141, %v5141
      %v5494 = vpack.c.b16 %v5142, %v5142
      %v5495 = vpack.c.b16 %v5143, %v5143
      %v5496 = vpack.c.b16 %v5144, %v5144
      %v5497 = vpack.c.b16 %v5145, %v5145
      %v5498 = vpack.c.b16 %v5146, %v5146
      %v5499 = vpack.c.b16 %v5147, %v5147
      %v5500 = vpack.c.b16 %v5148, %v5148
      %v5501 = vpack.c.b16 %v5149, %v5149
      %v5502 = vpack.c.b16 %v5150, %v5150
      %v5503 = vpack.c.b16 %v5151, %v5151
      %v5504 = vpack.c.b16 %v5152, %v5152
      %v5505 = vpack.c.b16 %v5153, %v5153
      %v5506 = vpack.c.b16 %v5154, %v5154
      %v5507 = vpack.c.b16 %v5155, %v5155
      %v5508 = vpack.c.b16 %v5156, %v5156
      %v5509 = vpack.c.b16 %v5157, %v5157
      %v5510 = vpack.c.b16 %v5158, %v5158
      %v5511 = vpack.c.b16 %v5159, %v5159
      %v5512 = vpack.c.b16 %v5160, %v5160
      %v5513 = vpack.c.b16 %v5161, %v5161
      %v5514 = vpack.c.b16 %v5162, %v5162
      %v5515 = vpack.c.b16 %v5163, %v5163
      %v5516 = vpack.c.b16 %v5164, %v5164
      %v5517 = vpack.c.b16 %v5165, %v5165
      %v5518 = vpack.c.b16 %v5166, %v5166
      %v5519 = vpack.c.b16 %v5167, %v5167
      %v5520 = vpack.c.b16 %v5168, %v5168
      %v5521 = vpack.c.b16 %v5169, %v5169
      %v5522 = vpack.c.b16 %v5170, %v5170
      %v5523 = vpack.c.b16 %v5171, %v5171
      %v5524 = vpack.c.b16 %v5172, %v5172
      %v5525 = vpack.c.b16 %v5173, %v5173
      %v5526 = vpack.c.b16 %v5174, %v5174
      %v5527 = vpack.c.b16 %v5175, %v5175
      %v5528 = vpack.c.b16 %v5176, %v5176
      %v5529 = vpack.c.b16 %v5177, %v5177
      %v5530 = vpack.c.b16 %v5178, %v5178
      %v5531 = vpack.c.b16 %v5179, %v5179
      %v5532 = vpack.c.b16 %v5180, %v5180
      %v5533 = vpack.c.b16 %v5181, %v5181
      %v5534 = vpack.c.b16 %v5182, %v5182
      %v5535 = vpack.c.b16 %v5183, %v5183
      %v5536 = vpack.c.b16 %v5184, %v5184
      %v5537 = vpack.c.b16 %v5185, %v5185
      %v5538 = vpack.c.b16 %v5186, %v5186
      %v5539 = vpack.c.b16 %v5187, %v5187
      %v5540 = vpack.c.b16 %v5188, %v5188
      %v5541 = vpack.c.b16 %v5189, %v5189
      %v5542 = vpack.c.b16 %v5190, %v5190
      %v5543 = vpack.c.b16 %v5191, %v5191
      %v5544 = vpack.c.b16 %v5192, %v5192
      %v5545 = vpack.c.b16 %v5193, %v5193
      %v5546 = vpack.c.b16 %v5194, %v5194
      %v5547 = vpack.c.b16 %v5195, %v5195
      %v5548 = vpack.c.b16 %v5196, %v5196
      %v5549 = vpack.c.b16 %v5197, %v5197
      %v5550 = vpack.c.b16 %v5198, %v5198
      %v5551 = vpack.c.b16 %v5199, %v5199
      %v5552 = vpack.c.b16 %v5200, %v5200
      %v5553 = vpack.c.b16 %v5201, %v5201
      %v5554 = vpack.c.b16 %v5202, %v5202
      %v5555 = vpack.c.b16 %v5203, %v5203
      %v5556 = vpack.c.b16 %v5204, %v5204
      %v5557 = vpack.c.b16 %v5205, %v5205
      %v5558 = vpack.c.b16 %v5206, %v5206
      %v5559 = vpack.c.b16 %v5207, %v5207
      %v5560 = vpack.c.b16 %v5208, %v5208
      %v5561 = vpack.c.b16 %v5209, %v5209
      %v5562 = vpack.c.b16 %v5210, %v5210
      %v5563 = vpack.c.b16 %v5211, %v5211
      %v5564 = vpack.c.b16 %v5212, %v5212
      %v5565 = vpack.c.b16 %v5213, %v5213
      %v5566 = vpack.c.b16 %v5214, %v5214
      %v5567 = vpack.c.b16 %v5215, %v5215
      %v5568 = vpack.c.b16 %v5216, %v5216
      %v5569 = vpack.c.b16 %v5217, %v5217
      %v5570 = vpack.c.b16 %v5218, %v5218
      %v5571 = vpack.c.b16 %v5219, %v5219
      %v5572 = vpack.c.b16 %v5220, %v5220
      %v5573 = vpack.c.b16 %v5221, %v5221
      %v5574 = vpack.c.b16 %v5222, %v5222
      %v5575 = vpack.c.b16 %v5223, %v5223
      %vm5928 = vcmask 125952
      %5929 = vst.msk [vmem:[%s170] sm:$0xf] %vm5928, %v5224
      %5930 = vst.msk [vmem:[%s170 + $0x4] sm:$0xf] %vm5928, %v5225
      %5931 = vst.msk [vmem:[%s170 + $0x8] sm:$0xf] %vm5928, %v5226
      %5932 = vst.msk [vmem:[%s170 + $0xc] sm:$0xf] %vm5928, %v5227
      %5933 = vst.msk [vmem:[%s170 + $0x10] sm:$0xf] %vm5928, %v5228
      %5934 = vst.msk [vmem:[%s170 + $0x14] sm:$0xf] %vm5928, %v5229
      %5935 = vst.msk [vmem:[%s170 + $0x18] sm:$0xf] %vm5928, %v5230
      %5936 = vst.msk [vmem:[%s170 + $0x1c] sm:$0xf] %vm5928, %v5231
      %5937 = vst.msk [vmem:[%s170 + $0x20] sm:$0xf] %vm5928, %v5232
      %5938 = vst.msk [vmem:[%s170 + $0x24] sm:$0xf] %vm5928, %v5233
      %5939 = vst.msk [vmem:[%s170 + $0x28] sm:$0xf] %vm5928, %v5234
      %5940 = vst.msk [vmem:[%s170 + $0x2c] sm:$0xf] %vm5928, %v5235
      %5941 = vst.msk [vmem:[%s170 + $0x30] sm:$0xf] %vm5928, %v5236
      %5942 = vst.msk [vmem:[%s170 + $0x34] sm:$0xf] %vm5928, %v5237
      %5943 = vst.msk [vmem:[%s170 + $0x38] sm:$0xf] %vm5928, %v5238
      %5944 = vst.msk [vmem:[%s170 + $0x3c] sm:$0xf] %vm5928, %v5239
      %5945 = vst.msk [vmem:[%s170 + $0x40] sm:$0xf] %vm5928, %v5240
      %5946 = vst.msk [vmem:[%s170 + $0x44] sm:$0xf] %vm5928, %v5241
      %5947 = vst.msk [vmem:[%s170 + $0x48] sm:$0xf] %vm5928, %v5242
      %5948 = vst.msk [vmem:[%s170 + $0x4c] sm:$0xf] %vm5928, %v5243
      %5949 = vst.msk [vmem:[%s170 + $0x50] sm:$0xf] %vm5928, %v5244
      %5950 = vst.msk [vmem:[%s170 + $0x54] sm:$0xf] %vm5928, %v5245
      %5951 = vst.msk [vmem:[%s170 + $0x58] sm:$0xf] %vm5928, %v5246
      %5952 = vst.msk [vmem:[%s170 + $0x5c] sm:$0xf] %vm5928, %v5247
      %5953 = vst.msk [vmem:[%s170 + $0x60] sm:$0xf] %vm5928, %v5248
      %5954 = vst.msk [vmem:[%s170 + $0x64] sm:$0xf] %vm5928, %v5249
      %5955 = vst.msk [vmem:[%s170 + $0x68] sm:$0xf] %vm5928, %v5250
      %5956 = vst.msk [vmem:[%s170 + $0x6c] sm:$0xf] %vm5928, %v5251
      %5957 = vst.msk [vmem:[%s170 + $0x70] sm:$0xf] %vm5928, %v5252
      %5958 = vst.msk [vmem:[%s170 + $0x74] sm:$0xf] %vm5928, %v5253
      %5959 = vst.msk [vmem:[%s170 + $0x78] sm:$0xf] %vm5928, %v5254
      %5960 = vst.msk [vmem:[%s170 + $0x7c] sm:$0xf] %vm5928, %v5255
      %5961 = vst.msk [vmem:[%s170 + $0x80] sm:$0xf] %vm5928, %v5256
      %5962 = vst.msk [vmem:[%s170 + $0x84] sm:$0xf] %vm5928, %v5257
      %5963 = vst.msk [vmem:[%s170 + $0x88] sm:$0xf] %vm5928, %v5258
      %5964 = vst.msk [vmem:[%s170 + $0x8c] sm:$0xf] %vm5928, %v5259
      %5965 = vst.msk [vmem:[%s170 + $0x90] sm:$0xf] %vm5928, %v5260
      %5966 = vst.msk [vmem:[%s170 + $0x94] sm:$0xf] %vm5928, %v5261
      %5967 = vst.msk [vmem:[%s170 + $0x98] sm:$0xf] %vm5928, %v5262
      %5968 = vst.msk [vmem:[%s170 + $0x9c] sm:$0xf] %vm5928, %v5263
      %5969 = vst.msk [vmem:[%s170 + $0xa0] sm:$0xf] %vm5928, %v5264
      %5970 = vst.msk [vmem:[%s170 + $0xa4] sm:$0xf] %vm5928, %v5265
      %5971 = vst.msk [vmem:[%s170 + $0xa8] sm:$0xf] %vm5928, %v5266
      %5972 = vst.msk [vmem:[%s170 + $0xac] sm:$0xf] %vm5928, %v5267
      %5973 = vst.msk [vmem:[%s170 + $0xb0] sm:$0xf] %vm5928, %v5268
      %5974 = vst.msk [vmem:[%s170 + $0xb4] sm:$0xf] %vm5928, %v5269
      %5975 = vst.msk [vmem:[%s170 + $0xb8] sm:$0xf] %vm5928, %v5270
      %5976 = vst.msk [vmem:[%s170 + $0xbc] sm:$0xf] %vm5928, %v5271
      %5977 = vst.msk [vmem:[%s170 + $0xc0] sm:$0xf] %vm5928, %v5272
      %5978 = vst.msk [vmem:[%s170 + $0xc4] sm:$0xf] %vm5928, %v5273
      %5979 = vst.msk [vmem:[%s170 + $0xc8] sm:$0xf] %vm5928, %v5274
      %5980 = vst.msk [vmem:[%s170 + $0xcc] sm:$0xf] %vm5928, %v5275
      %5981 = vst.msk [vmem:[%s170 + $0xd0] sm:$0xf] %vm5928, %v5276
      %5982 = vst.msk [vmem:[%s170 + $0xd4] sm:$0xf] %vm5928, %v5277
      %5983 = vst.msk [vmem:[%s170 + $0xd8] sm:$0xf] %vm5928, %v5278
      %5984 = vst.msk [vmem:[%s170 + $0xdc] sm:$0xf] %vm5928, %v5279
      %5985 = vst.msk [vmem:[%s170 + $0xe0] sm:$0xf] %vm5928, %v5280
      %5986 = vst.msk [vmem:[%s170 + $0xe4] sm:$0xf] %vm5928, %v5281
      %5987 = vst.msk [vmem:[%s170 + $0xe8] sm:$0xf] %vm5928, %v5282
      %5988 = vst.msk [vmem:[%s170 + $0xec] sm:$0xf] %vm5928, %v5283
      %5989 = vst.msk [vmem:[%s170 + $0xf0] sm:$0xf] %vm5928, %v5284
      %5990 = vst.msk [vmem:[%s170 + $0xf4] sm:$0xf] %vm5928, %v5285
      %5991 = vst.msk [vmem:[%s170 + $0xf8] sm:$0xf] %vm5928, %v5286
      %5992 = vst.msk [vmem:[%s170 + $0xfc] sm:$0xf] %vm5928, %v5287
      %5993 = vst.msk [vmem:[%s170 + $0x100] sm:$0xf] %vm5928, %v5288
      %5994 = vst.msk [vmem:[%s170 + $0x104] sm:$0xf] %vm5928, %v5289
      %5995 = vst.msk [vmem:[%s170 + $0x108] sm:$0xf] %vm5928, %v5290
      %5996 = vst.msk [vmem:[%s170 + $0x10c] sm:$0xf] %vm5928, %v5291
      %5997 = vst.msk [vmem:[%s170 + $0x110] sm:$0xf] %vm5928, %v5292
      %5998 = vst.msk [vmem:[%s170 + $0x114] sm:$0xf] %vm5928, %v5293
      %5999 = vst.msk [vmem:[%s170 + $0x118] sm:$0xf] %vm5928, %v5294
      %6000 = vst.msk [vmem:[%s170 + $0x11c] sm:$0xf] %vm5928, %v5295
      %6001 = vst.msk [vmem:[%s170 + $0x120] sm:$0xf] %vm5928, %v5296
      %6002 = vst.msk [vmem:[%s170 + $0x124] sm:$0xf] %vm5928, %v5297
      %6003 = vst.msk [vmem:[%s170 + $0x128] sm:$0xf] %vm5928, %v5298
      %6004 = vst.msk [vmem:[%s170 + $0x12c] sm:$0xf] %vm5928, %v5299
      %6005 = vst.msk [vmem:[%s170 + $0x130] sm:$0xf] %vm5928, %v5300
      %6006 = vst.msk [vmem:[%s170 + $0x134] sm:$0xf] %vm5928, %v5301
      %6007 = vst.msk [vmem:[%s170 + $0x138] sm:$0xf] %vm5928, %v5302
      %6008 = vst.msk [vmem:[%s170 + $0x13c] sm:$0xf] %vm5928, %v5303
      %6009 = vst.msk [vmem:[%s170 + $0x140] sm:$0xf] %vm5928, %v5304
      %6010 = vst.msk [vmem:[%s170 + $0x144] sm:$0xf] %vm5928, %v5305
      %6011 = vst.msk [vmem:[%s170 + $0x148] sm:$0xf] %vm5928, %v5306
      %6012 = vst.msk [vmem:[%s170 + $0x14c] sm:$0xf] %vm5928, %v5307
      %6013 = vst.msk [vmem:[%s170 + $0x150] sm:$0xf] %vm5928, %v5308
      %6014 = vst.msk [vmem:[%s170 + $0x154] sm:$0xf] %vm5928, %v5309
      %6015 = vst.msk [vmem:[%s170 + $0x158] sm:$0xf] %vm5928, %v5310
      %6016 = vst.msk [vmem:[%s170 + $0x15c] sm:$0xf] %vm5928, %v5311
      %6017 = vst.msk [vmem:[%s170 + $0x160] sm:$0xf] %vm5928, %v5312
      %6018 = vst.msk [vmem:[%s170 + $0x164] sm:$0xf] %vm5928, %v5313
      %6019 = vst.msk [vmem:[%s170 + $0x168] sm:$0xf] %vm5928, %v5314
      %6020 = vst.msk [vmem:[%s170 + $0x16c] sm:$0xf] %vm5928, %v5315
      %6021 = vst.msk [vmem:[%s170 + $0x170] sm:$0xf] %vm5928, %v5316
      %6022 = vst.msk [vmem:[%s170 + $0x174] sm:$0xf] %vm5928, %v5317
      %6023 = vst.msk [vmem:[%s170 + $0x178] sm:$0xf] %vm5928, %v5318
      %6024 = vst.msk [vmem:[%s170 + $0x17c] sm:$0xf] %vm5928, %v5319
      %6025 = vst.msk [vmem:[%s170 + $0x180] sm:$0xf] %vm5928, %v5320
      %6026 = vst.msk [vmem:[%s170 + $0x184] sm:$0xf] %vm5928, %v5321
      %6027 = vst.msk [vmem:[%s170 + $0x188] sm:$0xf] %vm5928, %v5322
      %6028 = vst.msk [vmem:[%s170 + $0x18c] sm:$0xf] %vm5928, %v5323
      %6029 = vst.msk [vmem:[%s170 + $0x190] sm:$0xf] %vm5928, %v5324
      %6030 = vst.msk [vmem:[%s170 + $0x194] sm:$0xf] %vm5928, %v5325
      %6031 = vst.msk [vmem:[%s170 + $0x198] sm:$0xf] %vm5928, %v5326
      %6032 = vst.msk [vmem:[%s170 + $0x19c] sm:$0xf] %vm5928, %v5327
      %6033 = vst.msk [vmem:[%s170 + $0x1a0] sm:$0xf] %vm5928, %v5328
      %6034 = vst.msk [vmem:[%s170 + $0x1a4] sm:$0xf] %vm5928, %v5329
      %6035 = vst.msk [vmem:[%s170 + $0x1a8] sm:$0xf] %vm5928, %v5330
      %6036 = vst.msk [vmem:[%s170 + $0x1ac] sm:$0xf] %vm5928, %v5331
      %6037 = vst.msk [vmem:[%s170 + $0x1b0] sm:$0xf] %vm5928, %v5332
      %6038 = vst.msk [vmem:[%s170 + $0x1b4] sm:$0xf] %vm5928, %v5333
      %6039 = vst.msk [vmem:[%s170 + $0x1b8] sm:$0xf] %vm5928, %v5334
      %6040 = vst.msk [vmem:[%s170 + $0x1bc] sm:$0xf] %vm5928, %v5335
      %6041 = vst.msk [vmem:[%s170 + $0x1c0] sm:$0xf] %vm5928, %v5336
      %6042 = vst.msk [vmem:[%s170 + $0x1c4] sm:$0xf] %vm5928, %v5337
      %6043 = vst.msk [vmem:[%s170 + $0x1c8] sm:$0xf] %vm5928, %v5338
      %6044 = vst.msk [vmem:[%s170 + $0x1cc] sm:$0xf] %vm5928, %v5339
      %6045 = vst.msk [vmem:[%s170 + $0x1d0] sm:$0xf] %vm5928, %v5340
      %6046 = vst.msk [vmem:[%s170 + $0x1d4] sm:$0xf] %vm5928, %v5341
      %6047 = vst.msk [vmem:[%s170 + $0x1d8] sm:$0xf] %vm5928, %v5342
      %6048 = vst.msk [vmem:[%s170 + $0x1dc] sm:$0xf] %vm5928, %v5343
      %6049 = vst.msk [vmem:[%s170 + $0x1e0] sm:$0xf] %vm5928, %v5344
      %6050 = vst.msk [vmem:[%s170 + $0x1e4] sm:$0xf] %vm5928, %v5345
      %6051 = vst.msk [vmem:[%s170 + $0x1e8] sm:$0xf] %vm5928, %v5346
      %6052 = vst.msk [vmem:[%s170 + $0x1ec] sm:$0xf] %vm5928, %v5347
      %6053 = vst.msk [vmem:[%s170 + $0x1f0] sm:$0xf] %vm5928, %v5348
      %6054 = vst.msk [vmem:[%s170 + $0x1f4] sm:$0xf] %vm5928, %v5349
      %6055 = vst.msk [vmem:[%s170 + $0x1f8] sm:$0xf] %vm5928, %v5350
      %6056 = vst.msk [vmem:[%s170 + $0x1fc] sm:$0xf] %vm5928, %v5351
      %6057 = vst.msk [vmem:[%s170 + $0x200] sm:$0xf] %vm5928, %v5352
      %6058 = vst.msk [vmem:[%s170 + $0x204] sm:$0xf] %vm5928, %v5353
      %6059 = vst.msk [vmem:[%s170 + $0x208] sm:$0xf] %vm5928, %v5354
      %6060 = vst.msk [vmem:[%s170 + $0x20c] sm:$0xf] %vm5928, %v5355
      %6061 = vst.msk [vmem:[%s170 + $0x210] sm:$0xf] %vm5928, %v5356
      %6062 = vst.msk [vmem:[%s170 + $0x214] sm:$0xf] %vm5928, %v5357
      %6063 = vst.msk [vmem:[%s170 + $0x218] sm:$0xf] %vm5928, %v5358
      %6064 = vst.msk [vmem:[%s170 + $0x21c] sm:$0xf] %vm5928, %v5359
      %6065 = vst.msk [vmem:[%s170 + $0x220] sm:$0xf] %vm5928, %v5360
      %6066 = vst.msk [vmem:[%s170 + $0x224] sm:$0xf] %vm5928, %v5361
      %6067 = vst.msk [vmem:[%s170 + $0x228] sm:$0xf] %vm5928, %v5362
      %6068 = vst.msk [vmem:[%s170 + $0x22c] sm:$0xf] %vm5928, %v5363
      %6069 = vst.msk [vmem:[%s170 + $0x230] sm:$0xf] %vm5928, %v5364
      %6070 = vst.msk [vmem:[%s170 + $0x234] sm:$0xf] %vm5928, %v5365
      %6071 = vst.msk [vmem:[%s170 + $0x238] sm:$0xf] %vm5928, %v5366
      %6072 = vst.msk [vmem:[%s170 + $0x23c] sm:$0xf] %vm5928, %v5367
      %6073 = vst.msk [vmem:[%s170 + $0x240] sm:$0xf] %vm5928, %v5368
      %6074 = vst.msk [vmem:[%s170 + $0x244] sm:$0xf] %vm5928, %v5369
      %6075 = vst.msk [vmem:[%s170 + $0x248] sm:$0xf] %vm5928, %v5370
      %6076 = vst.msk [vmem:[%s170 + $0x24c] sm:$0xf] %vm5928, %v5371
      %6077 = vst.msk [vmem:[%s170 + $0x250] sm:$0xf] %vm5928, %v5372
      %6078 = vst.msk [vmem:[%s170 + $0x254] sm:$0xf] %vm5928, %v5373
      %6079 = vst.msk [vmem:[%s170 + $0x258] sm:$0xf] %vm5928, %v5374
      %6080 = vst.msk [vmem:[%s170 + $0x25c] sm:$0xf] %vm5928, %v5375
      %6081 = vst.msk [vmem:[%s170 + $0x260] sm:$0xf] %vm5928, %v5376
      %6082 = vst.msk [vmem:[%s170 + $0x264] sm:$0xf] %vm5928, %v5377
      %6083 = vst.msk [vmem:[%s170 + $0x268] sm:$0xf] %vm5928, %v5378
      %6084 = vst.msk [vmem:[%s170 + $0x26c] sm:$0xf] %vm5928, %v5379
      %6085 = vst.msk [vmem:[%s170 + $0x270] sm:$0xf] %vm5928, %v5380
      %6086 = vst.msk [vmem:[%s170 + $0x274] sm:$0xf] %vm5928, %v5381
      %6087 = vst.msk [vmem:[%s170 + $0x278] sm:$0xf] %vm5928, %v5382
      %6088 = vst.msk [vmem:[%s170 + $0x27c] sm:$0xf] %vm5928, %v5383
      %6089 = vst.msk [vmem:[%s170 + $0x280] sm:$0xf] %vm5928, %v5384
      %6090 = vst.msk [vmem:[%s170 + $0x284] sm:$0xf] %vm5928, %v5385
      %6091 = vst.msk [vmem:[%s170 + $0x288] sm:$0xf] %vm5928, %v5386
      %6092 = vst.msk [vmem:[%s170 + $0x28c] sm:$0xf] %vm5928, %v5387
      %6093 = vst.msk [vmem:[%s170 + $0x290] sm:$0xf] %vm5928, %v5388
      %6094 = vst.msk [vmem:[%s170 + $0x294] sm:$0xf] %vm5928, %v5389
      %6095 = vst.msk [vmem:[%s170 + $0x298] sm:$0xf] %vm5928, %v5390
      %6096 = vst.msk [vmem:[%s170 + $0x29c] sm:$0xf] %vm5928, %v5391
      %6097 = vst.msk [vmem:[%s170 + $0x2a0] sm:$0xf] %vm5928, %v5392
      %6098 = vst.msk [vmem:[%s170 + $0x2a4] sm:$0xf] %vm5928, %v5393
      %6099 = vst.msk [vmem:[%s170 + $0x2a8] sm:$0xf] %vm5928, %v5394
      %6100 = vst.msk [vmem:[%s170 + $0x2ac] sm:$0xf] %vm5928, %v5395
      %6101 = vst.msk [vmem:[%s170 + $0x2b0] sm:$0xf] %vm5928, %v5396
      %6102 = vst.msk [vmem:[%s170 + $0x2b4] sm:$0xf] %vm5928, %v5397
      %6103 = vst.msk [vmem:[%s170 + $0x2b8] sm:$0xf] %vm5928, %v5398
      %6104 = vst.msk [vmem:[%s170 + $0x2bc] sm:$0xf] %vm5928, %v5399
      %6105 = vst.msk [vmem:[%s170 + $0x2c0] sm:$0xf] %vm5928, %v5400
      %6106 = vst.msk [vmem:[%s170 + $0x2c4] sm:$0xf] %vm5928, %v5401
      %6107 = vst.msk [vmem:[%s170 + $0x2c8] sm:$0xf] %vm5928, %v5402
      %6108 = vst.msk [vmem:[%s170 + $0x2cc] sm:$0xf] %vm5928, %v5403
      %6109 = vst.msk [vmem:[%s170 + $0x2d0] sm:$0xf] %vm5928, %v5404
      %6110 = vst.msk [vmem:[%s170 + $0x2d4] sm:$0xf] %vm5928, %v5405
      %6111 = vst.msk [vmem:[%s170 + $0x2d8] sm:$0xf] %vm5928, %v5406
      %6112 = vst.msk [vmem:[%s170 + $0x2dc] sm:$0xf] %vm5928, %v5407
      %6113 = vst.msk [vmem:[%s170 + $0x2e0] sm:$0xf] %vm5928, %v5408
      %6114 = vst.msk [vmem:[%s170 + $0x2e4] sm:$0xf] %vm5928, %v5409
      %6115 = vst.msk [vmem:[%s170 + $0x2e8] sm:$0xf] %vm5928, %v5410
      %6116 = vst.msk [vmem:[%s170 + $0x2ec] sm:$0xf] %vm5928, %v5411
      %6117 = vst.msk [vmem:[%s170 + $0x2f0] sm:$0xf] %vm5928, %v5412
      %6118 = vst.msk [vmem:[%s170 + $0x2f4] sm:$0xf] %vm5928, %v5413
      %6119 = vst.msk [vmem:[%s170 + $0x2f8] sm:$0xf] %vm5928, %v5414
      %6120 = vst.msk [vmem:[%s170 + $0x2fc] sm:$0xf] %vm5928, %v5415
      %6121 = vst.msk [vmem:[%s170 + $0x300] sm:$0xf] %vm5928, %v5416
      %6122 = vst.msk [vmem:[%s170 + $0x304] sm:$0xf] %vm5928, %v5417
      %6123 = vst.msk [vmem:[%s170 + $0x308] sm:$0xf] %vm5928, %v5418
      %6124 = vst.msk [vmem:[%s170 + $0x30c] sm:$0xf] %vm5928, %v5419
      %6125 = vst.msk [vmem:[%s170 + $0x310] sm:$0xf] %vm5928, %v5420
      %6126 = vst.msk [vmem:[%s170 + $0x314] sm:$0xf] %vm5928, %v5421
      %6127 = vst.msk [vmem:[%s170 + $0x318] sm:$0xf] %vm5928, %v5422
      %6128 = vst.msk [vmem:[%s170 + $0x31c] sm:$0xf] %vm5928, %v5423
      %6129 = vst.msk [vmem:[%s170 + $0x320] sm:$0xf] %vm5928, %v5424
      %6130 = vst.msk [vmem:[%s170 + $0x324] sm:$0xf] %vm5928, %v5425
      %6131 = vst.msk [vmem:[%s170 + $0x328] sm:$0xf] %vm5928, %v5426
      %6132 = vst.msk [vmem:[%s170 + $0x32c] sm:$0xf] %vm5928, %v5427
      %6133 = vst.msk [vmem:[%s170 + $0x330] sm:$0xf] %vm5928, %v5428
      %6134 = vst.msk [vmem:[%s170 + $0x334] sm:$0xf] %vm5928, %v5429
      %6135 = vst.msk [vmem:[%s170 + $0x338] sm:$0xf] %vm5928, %v5430
      %6136 = vst.msk [vmem:[%s170 + $0x33c] sm:$0xf] %vm5928, %v5431
      %6137 = vst.msk [vmem:[%s170 + $0x340] sm:$0xf] %vm5928, %v5432
      %6138 = vst.msk [vmem:[%s170 + $0x344] sm:$0xf] %vm5928, %v5433
      %6139 = vst.msk [vmem:[%s170 + $0x348] sm:$0xf] %vm5928, %v5434
      %6140 = vst.msk [vmem:[%s170 + $0x34c] sm:$0xf] %vm5928, %v5435
      %6141 = vst.msk [vmem:[%s170 + $0x350] sm:$0xf] %vm5928, %v5436
      %6142 = vst.msk [vmem:[%s170 + $0x354] sm:$0xf] %vm5928, %v5437
      %6143 = vst.msk [vmem:[%s170 + $0x358] sm:$0xf] %vm5928, %v5438
      %6144 = vst.msk [vmem:[%s170 + $0x35c] sm:$0xf] %vm5928, %v5439
      %6145 = vst.msk [vmem:[%s170 + $0x360] sm:$0xf] %vm5928, %v5440
      %6146 = vst.msk [vmem:[%s170 + $0x364] sm:$0xf] %vm5928, %v5441
      %6147 = vst.msk [vmem:[%s170 + $0x368] sm:$0xf] %vm5928, %v5442
      %6148 = vst.msk [vmem:[%s170 + $0x36c] sm:$0xf] %vm5928, %v5443
      %6149 = vst.msk [vmem:[%s170 + $0x370] sm:$0xf] %vm5928, %v5444
      %6150 = vst.msk [vmem:[%s170 + $0x374] sm:$0xf] %vm5928, %v5445
      %6151 = vst.msk [vmem:[%s170 + $0x378] sm:$0xf] %vm5928, %v5446
      %6152 = vst.msk [vmem:[%s170 + $0x37c] sm:$0xf] %vm5928, %v5447
      %6153 = vst.msk [vmem:[%s170 + $0x380] sm:$0xf] %vm5928, %v5448
      %6154 = vst.msk [vmem:[%s170 + $0x384] sm:$0xf] %vm5928, %v5449
      %6155 = vst.msk [vmem:[%s170 + $0x388] sm:$0xf] %vm5928, %v5450
      %6156 = vst.msk [vmem:[%s170 + $0x38c] sm:$0xf] %vm5928, %v5451
      %6157 = vst.msk [vmem:[%s170 + $0x390] sm:$0xf] %vm5928, %v5452
      %6158 = vst.msk [vmem:[%s170 + $0x394] sm:$0xf] %vm5928, %v5453
      %6159 = vst.msk [vmem:[%s170 + $0x398] sm:$0xf] %vm5928, %v5454
      %6160 = vst.msk [vmem:[%s170 + $0x39c] sm:$0xf] %vm5928, %v5455
      %6161 = vst.msk [vmem:[%s170 + $0x3a0] sm:$0xf] %vm5928, %v5456
      %6162 = vst.msk [vmem:[%s170 + $0x3a4] sm:$0xf] %vm5928, %v5457
      %6163 = vst.msk [vmem:[%s170 + $0x3a8] sm:$0xf] %vm5928, %v5458
      %6164 = vst.msk [vmem:[%s170 + $0x3ac] sm:$0xf] %vm5928, %v5459
      %6165 = vst.msk [vmem:[%s170 + $0x3b0] sm:$0xf] %vm5928, %v5460
      %6166 = vst.msk [vmem:[%s170 + $0x3b4] sm:$0xf] %vm5928, %v5461
      %6167 = vst.msk [vmem:[%s170 + $0x3b8] sm:$0xf] %vm5928, %v5462
      %6168 = vst.msk [vmem:[%s170 + $0x3bc] sm:$0xf] %vm5928, %v5463
      %6169 = vst.msk [vmem:[%s170 + $0x3c0] sm:$0xf] %vm5928, %v5464
      %6170 = vst.msk [vmem:[%s170 + $0x3c4] sm:$0xf] %vm5928, %v5465
      %6171 = vst.msk [vmem:[%s170 + $0x3c8] sm:$0xf] %vm5928, %v5466
      %6172 = vst.msk [vmem:[%s170 + $0x3cc] sm:$0xf] %vm5928, %v5467
      %6173 = vst.msk [vmem:[%s170 + $0x3d0] sm:$0xf] %vm5928, %v5468
      %6174 = vst.msk [vmem:[%s170 + $0x3d4] sm:$0xf] %vm5928, %v5469
      %6175 = vst.msk [vmem:[%s170 + $0x3d8] sm:$0xf] %vm5928, %v5470
      %6176 = vst.msk [vmem:[%s170 + $0x3dc] sm:$0xf] %vm5928, %v5471
      %6177 = vst.msk [vmem:[%s170 + $0x3e0] sm:$0xf] %vm5928, %v5472
      %6178 = vst.msk [vmem:[%s170 + $0x3e4] sm:$0xf] %vm5928, %v5473
      %6179 = vst.msk [vmem:[%s170 + $0x3e8] sm:$0xf] %vm5928, %v5474
      %6180 = vst.msk [vmem:[%s170 + $0x3ec] sm:$0xf] %vm5928, %v5475
      %6181 = vst.msk [vmem:[%s170 + $0x3f0] sm:$0xf] %vm5928, %v5476
      %6182 = vst.msk [vmem:[%s170 + $0x3f4] sm:$0xf] %vm5928, %v5477
      %6183 = vst.msk [vmem:[%s170 + $0x3f8] sm:$0xf] %vm5928, %v5478
      %6184 = vst.msk [vmem:[%s170 + $0x3fc] sm:$0xf] %vm5928, %v5479
      %6185 = vst.msk [vmem:[%s170 + $0x400] sm:$0xf] %vm5928, %v5480
      %6186 = vst.msk [vmem:[%s170 + $0x404] sm:$0xf] %vm5928, %v5481
      %6187 = vst.msk [vmem:[%s170 + $0x408] sm:$0xf] %vm5928, %v5482
      %6188 = vst.msk [vmem:[%s170 + $0x40c] sm:$0xf] %vm5928, %v5483
      %6189 = vst.msk [vmem:[%s170 + $0x410] sm:$0xf] %vm5928, %v5484
      %6190 = vst.msk [vmem:[%s170 + $0x414] sm:$0xf] %vm5928, %v5485
      %6191 = vst.msk [vmem:[%s170 + $0x418] sm:$0xf] %vm5928, %v5486
      %6192 = vst.msk [vmem:[%s170 + $0x41c] sm:$0xf] %vm5928, %v5487
      %6193 = vst.msk [vmem:[%s170 + $0x420] sm:$0xf] %vm5928, %v5488
      %6194 = vst.msk [vmem:[%s170 + $0x424] sm:$0xf] %vm5928, %v5489
      %6195 = vst.msk [vmem:[%s170 + $0x428] sm:$0xf] %vm5928, %v5490
      %6196 = vst.msk [vmem:[%s170 + $0x42c] sm:$0xf] %vm5928, %v5491
      %6197 = vst.msk [vmem:[%s170 + $0x430] sm:$0xf] %vm5928, %v5492
      %6198 = vst.msk [vmem:[%s170 + $0x434] sm:$0xf] %vm5928, %v5493
      %6199 = vst.msk [vmem:[%s170 + $0x438] sm:$0xf] %vm5928, %v5494
      %6200 = vst.msk [vmem:[%s170 + $0x43c] sm:$0xf] %vm5928, %v5495
      %6201 = vst.msk [vmem:[%s170 + $0x440] sm:$0xf] %vm5928, %v5496
      %6202 = vst.msk [vmem:[%s170 + $0x444] sm:$0xf] %vm5928, %v5497
      %6203 = vst.msk [vmem:[%s170 + $0x448] sm:$0xf] %vm5928, %v5498
      %6204 = vst.msk [vmem:[%s170 + $0x44c] sm:$0xf] %vm5928, %v5499
      %6205 = vst.msk [vmem:[%s170 + $0x450] sm:$0xf] %vm5928, %v5500
      %6206 = vst.msk [vmem:[%s170 + $0x454] sm:$0xf] %vm5928, %v5501
      %6207 = vst.msk [vmem:[%s170 + $0x458] sm:$0xf] %vm5928, %v5502
      %6208 = vst.msk [vmem:[%s170 + $0x45c] sm:$0xf] %vm5928, %v5503
      %6209 = vst.msk [vmem:[%s170 + $0x460] sm:$0xf] %vm5928, %v5504
      %6210 = vst.msk [vmem:[%s170 + $0x464] sm:$0xf] %vm5928, %v5505
      %6211 = vst.msk [vmem:[%s170 + $0x468] sm:$0xf] %vm5928, %v5506
      %6212 = vst.msk [vmem:[%s170 + $0x46c] sm:$0xf] %vm5928, %v5507
      %6213 = vst.msk [vmem:[%s170 + $0x470] sm:$0xf] %vm5928, %v5508
      %6214 = vst.msk [vmem:[%s170 + $0x474] sm:$0xf] %vm5928, %v5509
      %6215 = vst.msk [vmem:[%s170 + $0x478] sm:$0xf] %vm5928, %v5510
      %6216 = vst.msk [vmem:[%s170 + $0x47c] sm:$0xf] %vm5928, %v5511
      %6217 = vst.msk [vmem:[%s170 + $0x480] sm:$0xf] %vm5928, %v5512
      %6218 = vst.msk [vmem:[%s170 + $0x484] sm:$0xf] %vm5928, %v5513
      %6219 = vst.msk [vmem:[%s170 + $0x488] sm:$0xf] %vm5928, %v5514
      %6220 = vst.msk [vmem:[%s170 + $0x48c] sm:$0xf] %vm5928, %v5515
      %6221 = vst.msk [vmem:[%s170 + $0x490] sm:$0xf] %vm5928, %v5516
      %6222 = vst.msk [vmem:[%s170 + $0x494] sm:$0xf] %vm5928, %v5517
      %6223 = vst.msk [vmem:[%s170 + $0x498] sm:$0xf] %vm5928, %v5518
      %6224 = vst.msk [vmem:[%s170 + $0x49c] sm:$0xf] %vm5928, %v5519
      %6225 = vst.msk [vmem:[%s170 + $0x4a0] sm:$0xf] %vm5928, %v5520
      %6226 = vst.msk [vmem:[%s170 + $0x4a4] sm:$0xf] %vm5928, %v5521
      %6227 = vst.msk [vmem:[%s170 + $0x4a8] sm:$0xf] %vm5928, %v5522
      %6228 = vst.msk [vmem:[%s170 + $0x4ac] sm:$0xf] %vm5928, %v5523
      %6229 = vst.msk [vmem:[%s170 + $0x4b0] sm:$0xf] %vm5928, %v5524
      %6230 = vst.msk [vmem:[%s170 + $0x4b4] sm:$0xf] %vm5928, %v5525
      %6231 = vst.msk [vmem:[%s170 + $0x4b8] sm:$0xf] %vm5928, %v5526
      %6232 = vst.msk [vmem:[%s170 + $0x4bc] sm:$0xf] %vm5928, %v5527
      %6233 = vst.msk [vmem:[%s170 + $0x4c0] sm:$0xf] %vm5928, %v5528
      %6234 = vst.msk [vmem:[%s170 + $0x4c4] sm:$0xf] %vm5928, %v5529
      %6235 = vst.msk [vmem:[%s170 + $0x4c8] sm:$0xf] %vm5928, %v5530
      %6236 = vst.msk [vmem:[%s170 + $0x4cc] sm:$0xf] %vm5928, %v5531
      %6237 = vst.msk [vmem:[%s170 + $0x4d0] sm:$0xf] %vm5928, %v5532
      %6238 = vst.msk [vmem:[%s170 + $0x4d4] sm:$0xf] %vm5928, %v5533
      %6239 = vst.msk [vmem:[%s170 + $0x4d8] sm:$0xf] %vm5928, %v5534
      %6240 = vst.msk [vmem:[%s170 + $0x4dc] sm:$0xf] %vm5928, %v5535
      %6241 = vst.msk [vmem:[%s170 + $0x4e0] sm:$0xf] %vm5928, %v5536
      %6242 = vst.msk [vmem:[%s170 + $0x4e4] sm:$0xf] %vm5928, %v5537
      %6243 = vst.msk [vmem:[%s170 + $0x4e8] sm:$0xf] %vm5928, %v5538
      %6244 = vst.msk [vmem:[%s170 + $0x4ec] sm:$0xf] %vm5928, %v5539
      %6245 = vst.msk [vmem:[%s170 + $0x4f0] sm:$0xf] %vm5928, %v5540
      %6246 = vst.msk [vmem:[%s170 + $0x4f4] sm:$0xf] %vm5928, %v5541
      %6247 = vst.msk [vmem:[%s170 + $0x4f8] sm:$0xf] %vm5928, %v5542
      %6248 = vst.msk [vmem:[%s170 + $0x4fc] sm:$0xf] %vm5928, %v5543
      %6249 = vst.msk [vmem:[%s170 + $0x500] sm:$0xf] %vm5928, %v5544
      %6250 = vst.msk [vmem:[%s170 + $0x504] sm:$0xf] %vm5928, %v5545
      %6251 = vst.msk [vmem:[%s170 + $0x508] sm:$0xf] %vm5928, %v5546
      %6252 = vst.msk [vmem:[%s170 + $0x50c] sm:$0xf] %vm5928, %v5547
      %6253 = vst.msk [vmem:[%s170 + $0x510] sm:$0xf] %vm5928, %v5548
      %6254 = vst.msk [vmem:[%s170 + $0x514] sm:$0xf] %vm5928, %v5549
      %6255 = vst.msk [vmem:[%s170 + $0x518] sm:$0xf] %vm5928, %v5550
      %6256 = vst.msk [vmem:[%s170 + $0x51c] sm:$0xf] %vm5928, %v5551
      %6257 = vst.msk [vmem:[%s170 + $0x520] sm:$0xf] %vm5928, %v5552
      %6258 = vst.msk [vmem:[%s170 + $0x524] sm:$0xf] %vm5928, %v5553
      %6259 = vst.msk [vmem:[%s170 + $0x528] sm:$0xf] %vm5928, %v5554
      %6260 = vst.msk [vmem:[%s170 + $0x52c] sm:$0xf] %vm5928, %v5555
      %6261 = vst.msk [vmem:[%s170 + $0x530] sm:$0xf] %vm5928, %v5556
      %6262 = vst.msk [vmem:[%s170 + $0x534] sm:$0xf] %vm5928, %v5557
      %6263 = vst.msk [vmem:[%s170 + $0x538] sm:$0xf] %vm5928, %v5558
      %6264 = vst.msk [vmem:[%s170 + $0x53c] sm:$0xf] %vm5928, %v5559
      %6265 = vst.msk [vmem:[%s170 + $0x540] sm:$0xf] %vm5928, %v5560
      %6266 = vst.msk [vmem:[%s170 + $0x544] sm:$0xf] %vm5928, %v5561
      %6267 = vst.msk [vmem:[%s170 + $0x548] sm:$0xf] %vm5928, %v5562
      %6268 = vst.msk [vmem:[%s170 + $0x54c] sm:$0xf] %vm5928, %v5563
      %6269 = vst.msk [vmem:[%s170 + $0x550] sm:$0xf] %vm5928, %v5564
      %6270 = vst.msk [vmem:[%s170 + $0x554] sm:$0xf] %vm5928, %v5565
      %6271 = vst.msk [vmem:[%s170 + $0x558] sm:$0xf] %vm5928, %v5566
      %6272 = vst.msk [vmem:[%s170 + $0x55c] sm:$0xf] %vm5928, %v5567
      %6273 = vst.msk [vmem:[%s170 + $0x560] sm:$0xf] %vm5928, %v5568
      %6274 = vst.msk [vmem:[%s170 + $0x564] sm:$0xf] %vm5928, %v5569
      %6275 = vst.msk [vmem:[%s170 + $0x568] sm:$0xf] %vm5928, %v5570
      %6276 = vst.msk [vmem:[%s170 + $0x56c] sm:$0xf] %vm5928, %v5571
      %6277 = vst.msk [vmem:[%s170 + $0x570] sm:$0xf] %vm5928, %v5572
      %6278 = vst.msk [vmem:[%s170 + $0x574] sm:$0xf] %vm5928, %v5573
      %6279 = vst.msk [vmem:[%s170 + $0x578] sm:$0xf] %vm5928, %v5574
      %vm6280 = vcmask 122880
      %vm6281 = vsmask.f32 256
      %vm6282 = vmand %vm6280, %vm6281
      %v6283 = vld [vmem:[%s170 + $0x57c] sm:$0x1]
      %v6284 = vsel %vm6282, %v5575, %v6283
      %6285 = vst [vmem:[%s170 + $0x57c] sm:$0x1] %v6284
      %p6286 = scmp.lt.s32.totalorder %s14, 1
      %s6287 = scalar_select %p6286, %s14, 1
      %s6288 = smul.addr %s6287, 352
      %s6289 = smul.addr %s6288, 4
      %s6290 = scalar_lea.vmem %s3, %s6289
      // Predicated region
      $region33: #{encoder_s_forward.6} parent=31 // pred_check
        %p6291 = pneg %p100
      $region34: #{encoder_s_forward.6} parent=31 // pred_check_branch
        %6293 = sbr.rel (%p6291) target = $region36
      $region35: #{encoder_s_forward.6} parent=31 // pred_region
        _
      $region36: #{encoder_s_forward.6} parent=31 // pred_fallthru
        _
    $region32: #{encoder_s_forward.6} parent=5 // pred_fallthru
      _
    %p6294 = scmp.le.s32.totalorder 2, %s9
    // Predicated region
    $region37: #{encoder_s_forward.6} parent=5 // pred_check
      %p6295 = pneg %p6294
    $region38: #{encoder_s_forward.6} parent=5 // pred_check_branch
      %6297 = sbr.rel (%p6295) target = $region40
    $region39: #{encoder_s_forward.6} parent=5 // pred_region
      %s6298 = ssub.s32 %s9, 2
      // Predicated region
      $region41: #{encoder_s_forward.6} parent=39 // pred_check
        %p6299 = pneg %p106
      $region42: #{encoder_s_forward.6} parent=39 // pred_check_branch
        %6301 = sbr.rel (%p6299) target = $region44
      $region43: #{encoder_s_forward.6} parent=39 // pred_region
        %p6302 = scmp.lt.s32.totalorder %s15, 1
        %s6303 = scalar_select %p6302, %s15, 1
        %s6304 = smul.addr %s6303, 352
        %s6305 = smul.addr %s6304, 4
        %s6306 = scalar_lea.vmem %s3, %s6305
      $region44: #{encoder_s_forward.6} parent=39 // pred_fallthru
        _
    $region40: #{encoder_s_forward.6} parent=5 // pred_fallthru
      _
  $region6: #{encoder_s_forward.6} parent=0 // loop_footer
    %s13 = sadd.s32 1, %s9
  $region7: #{encoder_s_forward.6} parent=0 // loop_footer_branch
    %8 = sbr.rel target = $region3
  $region8: #{encoder_s_forward.6} parent=0 // loop_exit
    _

// kernel: encoder_s_forward.7
$region0: #{encoder_s_forward.7}
  #allocation0 [shape = 'u32[]', space=smem, size = 0x4, offset = 0x4, fixed_abs, tag = 'smem constant byte address 0x4 - core index']
  #allocation1 [shape = 'u32[144,128]{1,0:T(1,128)}', space=vmem, size = 0x12000, scoped, tag = 'internal scratch']
  %s0 = inlined_call_operand.vmem [shape: bf16[2,484,400], index: 0, kind: input, shape index: {}]
  %s1 = inlined_call_operand.vmem [shape: bf16[400,32], index: 1, kind: input, shape index: {}]
  %s2 = inlined_call_operand.vmem [shape: f32[1,32], index: 2, kind: input, shape index: {}]
  %s3 = inlined_call_operand.vmem [shape: bf16[2,484,32], index: 3, kind: output, shape index: {}]
  %s4 = sld [smem:[#allocation0]]
  $region45: #{encoder_s_forward.7} parent=0
    _
  %s6 = ssub.s32 1, %s4
  %s7 = scalar_select 0, %s6, %s4
  loop: start=0, step=1, limit=4
  $region2: #{encoder_s_forward.7} parent=0 // loop_pre_header
    _
  $region3: #{encoder_s_forward.7} parent=0 // loop_header
    %s9 = sphi 0, %s13
    %p10 = scmp.ge.s32.totalorder %s9, 4
    %s19 = sphi 0, %s21
    %s22 = sphi 0, %s19
    %s23 = sphi 0, %s22
    %s39 = sphi 0, %s23
    %s43 = sphi 0, %s43
    %s45 = sphi 0, %s43
    %s46 = sphi 0, %s45
    %s60 = sphi 0, %s46
    %s64 = sphi 0, %s64
    %s66 = sphi 0, %s64
    %s67 = sphi 0, %s66
    %s81 = sphi 0, %s67
    %s87 = sphi 0, %s89
    %s90 = sphi 0, %s87
    %s91 = sphi 0, %s90
    %s107 = sphi 0, %s91
  $region4: #{encoder_s_forward.7} parent=0 // loop_header_branch
    %12 = sbr.rel (%p10) target = $region8
  $region5: #{encoder_s_forward.7} parent=0 // loop_body
    %s14 = ssub.s32 %s9, 1
    %s15 = ssub.s32 %s9, 2
    %s16 = sadd.s32 %s9, 1
    %s17 = ssub.s32 %s9, %s16
    %p18 = scmp.eq.s32.totalorder %s17, 0
    %s20 = sadd.s32 %s19, 1
    %s21 = scalar_select %p18, %s19, %s20
    %p24 = pneg %p18
    %p25 = scmp.eq.s32.totalorder %s9, 1
    %p26 = por %p24, %p25
    %p27 = scmp.ne.s32.totalorder %s19, %s22
    %p28 = scmp.eq.s32.totalorder %s9, 0
    %p29 = por %p27, %p28
    %p30 = scmp.ne.s32.totalorder %s19, %s22
    %p31 = scmp.eq.s32.totalorder %s14, 1
    %p32 = por %p30, %p31
    %p33 = scmp.ne.s32.totalorder %s22, %s23
    %p34 = scmp.eq.s32.totalorder %s14, 0
    %p35 = por %p33, %p34
    %p36 = scmp.ne.s32.totalorder %s22, %s23
    %p37 = scmp.eq.s32.totalorder %s15, 1
    %p38 = por %p36, %p37
    %p40 = scmp.ne.s32.totalorder %s23, %s39
    %p41 = scmp.eq.s32.totalorder %s15, 0
    %p42 = por %p40, %p41
    %s44 = sadd.s32 %s43, 1
    %p47 = scmp.eq.s32.totalorder %s9, 1
    %p48 = scmp.ne.s32.totalorder %s43, %s45
    %p49 = scmp.eq.s32.totalorder %s9, 0
    %p50 = por %p48, %p49
    %p51 = scmp.ne.s32.totalorder %s43, %s45
    %p52 = scmp.eq.s32.totalorder %s14, 1
    %p53 = por %p51, %p52
    %p54 = scmp.ne.s32.totalorder %s45, %s46
    %p55 = scmp.eq.s32.totalorder %s14, 0
    %p56 = por %p54, %p55
    %p57 = scmp.ne.s32.totalorder %s45, %s46
    %p58 = scmp.eq.s32.totalorder %s15, 1
    %p59 = por %p57, %p58
    %p61 = scmp.ne.s32.totalorder %s46, %s60
    %p62 = scmp.eq.s32.totalorder %s15, 0
    %p63 = por %p61, %p62
    %s65 = sadd.s32 %s64, 1
    %p68 = scmp.eq.s32.totalorder %s9, 1
    %p69 = scmp.ne.s32.totalorder %s64, %s66
    %p70 = scmp.eq.s32.totalorder %s9, 0
    %p71 = por %p69, %p70
    %p72 = scmp.ne.s32.totalorder %s64, %s66
    %p73 = scmp.eq.s32.totalorder %s14, 1
    %p74 = por %p72, %p73
    %p75 = scmp.ne.s32.totalorder %s66, %s67
    %p76 = scmp.eq.s32.totalorder %s14, 0
    %p77 = por %p75, %p76
    %p78 = scmp.ne.s32.totalorder %s66, %s67
    %p79 = scmp.eq.s32.totalorder %s15, 1
    %p80 = por %p78, %p79
    %p82 = scmp.ne.s32.totalorder %s67, %s81
    %p83 = scmp.eq.s32.totalorder %s15, 0
    %p84 = por %p82, %p83
    %s85 = ssub.s32 %s9, %s16
    %p86 = scmp.eq.s32.totalorder %s85, 0
    %s88 = sadd.s32 %s87, 1
    %s89 = scalar_select %p86, %s87, %s88
    %p92 = pneg %p86
    %p93 = scmp.eq.s32.totalorder %s9, 1
    %p94 = por %p92, %p93
    %p95 = scmp.ne.s32.totalorder %s87, %s90
    %p96 = scmp.eq.s32.totalorder %s9, 0
    %p97 = por %p95, %p96
    %p98 = scmp.ne.s32.totalorder %s87, %s90
    %p99 = scmp.eq.s32.totalorder %s14, 1
    %p100 = por %p98, %p99
    %p101 = scmp.ne.s32.totalorder %s90, %s91
    %p102 = scmp.eq.s32.totalorder %s14, 0
    %p103 = por %p101, %p102
    %p104 = scmp.ne.s32.totalorder %s90, %s91
    %p105 = scmp.eq.s32.totalorder %s15, 1
    %p106 = por %p104, %p105
    %p108 = scmp.ne.s32.totalorder %s91, %s107
    %p109 = scmp.eq.s32.totalorder %s15, 0
    %p110 = por %p108, %p109
    %p111 = scmp.le.s32.totalorder 1, %s9
    %p112 = scmp.lt.s32.totalorder %s9, 3
    %p113 = pnand %p111, %p112
    %p114 = pneg %p113
    // Predicated region
    $region9: #{encoder_s_forward.7} parent=5 // pred_check
      _
    $region10: #{encoder_s_forward.7} parent=5 // pred_check_branch
      %116 = sbr.rel (%p113) target = $region12
    $region11: #{encoder_s_forward.7} parent=5 // pred_region
      %s117 = ssub.s32 %s9, 1
      // Predicated region
      $region13: #{encoder_s_forward.7} parent=11 // pred_check
        %p118 = pneg %p56
      $region14: #{encoder_s_forward.7} parent=11 // pred_check_branch
        %120 = sbr.rel (%p118) target = $region16
      $region15: #{encoder_s_forward.7} parent=11 // pred_region
        _
      $region16: #{encoder_s_forward.7} parent=11 // pred_fallthru
        _
      // Predicated region
      $region17: #{encoder_s_forward.7} parent=11 // pred_check
        %p121 = pneg %p77
      $region18: #{encoder_s_forward.7} parent=11 // pred_check_branch
        %123 = sbr.rel (%p121) target = $region20
      $region19: #{encoder_s_forward.7} parent=11 // pred_region
        _
      $region20: #{encoder_s_forward.7} parent=11 // pred_fallthru
        _
    $region12: #{encoder_s_forward.7} parent=5 // pred_fallthru
      _
    %p124 = scmp.lt.s32.totalorder %s9, 2
    // Predicated region
    $region21: #{encoder_s_forward.7} parent=5 // pred_check
      %p125 = pneg %p124
    $region22: #{encoder_s_forward.7} parent=5 // pred_check_branch
      %127 = sbr.rel (%p125) target = $region24
    $region23: #{encoder_s_forward.7} parent=5 // pred_region
      // Predicated region
      $region25: #{encoder_s_forward.7} parent=23 // pred_check
        %p128 = pneg %p29
      $region26: #{encoder_s_forward.7} parent=23 // pred_check_branch
        %130 = sbr.rel (%p128) target = $region28
      $region27: #{encoder_s_forward.7} parent=23 // pred_region
        %p131 = scmp.lt.s32.totalorder %s9, 1
        %s132 = scalar_select %p131, %s9, 1
        %s133 = smul.addr %s132, 244
        %s134 = smul.addr %s133, 4
        %s135 = scalar_lea.vmem %s0, %s134
      $region28: #{encoder_s_forward.7} parent=23 // pred_fallthru
        _
    $region24: #{encoder_s_forward.7} parent=5 // pred_fallthru
      _
    %p136 = scmp.le.s32.totalorder 1, %s9
    %p137 = scmp.lt.s32.totalorder %s9, 3
    %p138 = pnand %p136, %p137
    %p139 = pneg %p138
    // Predicated region
    $region29: #{encoder_s_forward.7} parent=5 // pred_check
      _
    $region30: #{encoder_s_forward.7} parent=5 // pred_check_branch
      %141 = sbr.rel (%p138) target = $region32
    $region31: #{encoder_s_forward.7} parent=5 // pred_region
      %s142 = ssub.s32 %s9, 1
      %p143 = scmp.lt.s32.totalorder %s14, 1
      %s144 = scalar_select %p143, %s14, 1
      %s145 = smul.addr %s144, 244
      %s146 = smul.addr %s145, 4
      %s147 = scalar_lea.vmem %s0, %s146
      %p148 = pneg %p35
      %p149 = pneg %p32
      %p150 = pneg %p56
      %p151 = pneg %p53
      %p152 = pneg %p77
      %p153 = pneg %p74
      %p154 = pneg %p103
      %p155 = pneg %p100
      %p156 = scmp.lt.s32.totalorder %s14, 1
      %s157 = scalar_select %p156, %s14, 1
      %s158 = smul.addr %s157, 61
      %s159 = smul.addr %s158, 4
      %s160 = scalar_lea.vmem %s3, %s159
      %p161 = scmp.lt.s32.totalorder %s14, 1
      %s162 = scalar_select %p161, %s14, 1
      %s163 = smul.addr %s162, 244
      %s164 = smul.addr %s163, 4
      %s165 = scalar_lea.vmem %s0, %s164
      %p166 = scmp.lt.s32.totalorder %s14, 1
      %s167 = scalar_select %p166, %s14, 1
      %s168 = smul.addr %s167, 61
      %s169 = smul.addr %s168, 4
      %s170 = scalar_lea.vmem %s3, %s169
      %v172 = vld [vmem:[%s165] sm:$0xff]
      %v173 = vld [vmem:[%s165 + $0x8] sm:$0xff]
      %v174 = vld [vmem:[%s165 + $0x10] sm:$0xff]
      %v175 = vld [vmem:[%s165 + $0x18] sm:$0xff]
      %v176 = vld [vmem:[%s165 + $0x20] sm:$0xff]
      %v177 = vld [vmem:[%s165 + $0x28] sm:$0xff]
      %v178 = vld [vmem:[%s165 + $0x30] sm:$0xff]
      %v179 = vld [vmem:[%s165 + $0x38] sm:$0xff]
      %v180 = vld [vmem:[%s165 + $0x40] sm:$0xff]
      %v181 = vld [vmem:[%s165 + $0x48] sm:$0xff]
      %v182 = vld [vmem:[%s165 + $0x50] sm:$0xff]
      %v183 = vld [vmem:[%s165 + $0x58] sm:$0xff]
      %v184 = vld [vmem:[%s165 + $0x60] sm:$0xff]
      %v185 = vld [vmem:[%s165 + $0x68] sm:$0xff]
      %v186 = vld [vmem:[%s165 + $0x70] sm:$0xff]
      %v187 = vld [vmem:[%s165 + $0x78] sm:$0xff]
      %v188 = vld [vmem:[%s165 + $0x80] sm:$0xff]
      %v189 = vld [vmem:[%s165 + $0x88] sm:$0xff]
      %v190 = vld [vmem:[%s165 + $0x90] sm:$0xff]
      %v191 = vld [vmem:[%s165 + $0x98] sm:$0xff]
      %v192 = vld [vmem:[%s165 + $0xa0] sm:$0xff]
      %v193 = vld [vmem:[%s165 + $0xa8] sm:$0xff]
      %v194 = vld [vmem:[%s165 + $0xb0] sm:$0xff]
      %v195 = vld [vmem:[%s165 + $0xb8] sm:$0xff]
      %v196 = vld [vmem:[%s165 + $0xc0] sm:$0xff]
      %v197 = vld [vmem:[%s165 + $0xc8] sm:$0xff]
      %v198 = vld [vmem:[%s165 + $0xd0] sm:$0xff]
      %v199 = vld [vmem:[%s165 + $0xd8] sm:$0xff]
      %v200 = vld [vmem:[%s165 + $0xe0] sm:$0xff]
      %v201 = vld [vmem:[%s165 + $0xe8] sm:$0xff]
      %v202 = vld [vmem:[%s165 + $0xf0] sm:$0xff]
      %v203 = vld [vmem:[%s165 + $0xf8] sm:$0xff]
      %v204 = vld [vmem:[%s165 + $0x100] sm:$0xff]
      %v205 = vld [vmem:[%s165 + $0x108] sm:$0xff]
      %v206 = vld [vmem:[%s165 + $0x110] sm:$0xff]
      %v207 = vld [vmem:[%s165 + $0x118] sm:$0xff]
      %v208 = vld [vmem:[%s165 + $0x120] sm:$0xff]
      %v209 = vld [vmem:[%s165 + $0x128] sm:$0xff]
      %v210 = vld [vmem:[%s165 + $0x130] sm:$0xff]
      %v211 = vld [vmem:[%s165 + $0x138] sm:$0xff]
      %v212 = vld [vmem:[%s165 + $0x140] sm:$0xff]
      %v213 = vld [vmem:[%s165 + $0x148] sm:$0xff]
      %v214 = vld [vmem:[%s165 + $0x150] sm:$0xff]
      %v215 = vld [vmem:[%s165 + $0x158] sm:$0xff]
      %v216 = vld [vmem:[%s165 + $0x160] sm:$0xff]
      %v217 = vld [vmem:[%s165 + $0x168] sm:$0xff]
      %v218 = vld [vmem:[%s165 + $0x170] sm:$0xff]
      %v219 = vld [vmem:[%s165 + $0x178] sm:$0xff]
      %v220 = vld [vmem:[%s165 + $0x180] sm:$0xff]
      %v221 = vld [vmem:[%s165 + $0x188] sm:$0xff]
      %v222 = vld [vmem:[%s165 + $0x190] sm:$0xff]
      %v223 = vld [vmem:[%s165 + $0x198] sm:$0xff]
      %v224 = vld [vmem:[%s165 + $0x1a0] sm:$0xff]
      %v225 = vld [vmem:[%s165 + $0x1a8] sm:$0xff]
      %v226 = vld [vmem:[%s165 + $0x1b0] sm:$0xff]
      %v227 = vld [vmem:[%s165 + $0x1b8] sm:$0xff]
      %v228 = vld [vmem:[%s165 + $0x1c0] sm:$0xff]
      %v229 = vld [vmem:[%s165 + $0x1c8] sm:$0xff]
      %v230 = vld [vmem:[%s165 + $0x1d0] sm:$0xff]
      %v231 = vld [vmem:[%s165 + $0x1d8] sm:$0xff]
      %v232 = vld [vmem:[%s165 + $0x1e0] sm:$0xff]
      %v233 = vld [vmem:[%s165 + $0x1e8] sm:$0xff]
      %v234 = vld [vmem:[%s165 + $0x1f0] sm:$0xff]
      %v235 = vld [vmem:[%s165 + $0x1f8] sm:$0xff]
      %v236 = vld [vmem:[%s165 + $0x200] sm:$0xff]
      %v237 = vld [vmem:[%s165 + $0x208] sm:$0xff]
      %v238 = vld [vmem:[%s165 + $0x210] sm:$0xff]
      %v239 = vld [vmem:[%s165 + $0x218] sm:$0xff]
      %v240 = vld [vmem:[%s165 + $0x220] sm:$0xff]
      %v241 = vld [vmem:[%s165 + $0x228] sm:$0xff]
      %v242 = vld [vmem:[%s165 + $0x230] sm:$0xff]
      %v243 = vld [vmem:[%s165 + $0x238] sm:$0xff]
      %v244 = vld [vmem:[%s165 + $0x240] sm:$0xff]
      %v245 = vld [vmem:[%s165 + $0x248] sm:$0xff]
      %v246 = vld [vmem:[%s165 + $0x250] sm:$0xff]
      %v247 = vld [vmem:[%s165 + $0x258] sm:$0xff]
      %v248 = vld [vmem:[%s165 + $0x260] sm:$0xff]
      %v249 = vld [vmem:[%s165 + $0x268] sm:$0xff]
      %v250 = vld [vmem:[%s165 + $0x270] sm:$0xff]
      %v251 = vld [vmem:[%s165 + $0x278] sm:$0xff]
      %v252 = vld [vmem:[%s165 + $0x280] sm:$0xff]
      %v253 = vld [vmem:[%s165 + $0x288] sm:$0xff]
      %v254 = vld [vmem:[%s165 + $0x290] sm:$0xff]
      %v255 = vld [vmem:[%s165 + $0x298] sm:$0xff]
      %v256 = vld [vmem:[%s165 + $0x2a0] sm:$0xff]
      %v257 = vld [vmem:[%s165 + $0x2a8] sm:$0xff]
      %v258 = vld [vmem:[%s165 + $0x2b0] sm:$0xff]
      %v259 = vld [vmem:[%s165 + $0x2b8] sm:$0xff]
      %v260 = vld [vmem:[%s165 + $0x2c0] sm:$0xff]
      %v261 = vld [vmem:[%s165 + $0x2c8] sm:$0xff]
      %v262 = vld [vmem:[%s165 + $0x2d0] sm:$0xff]
      %v263 = vld [vmem:[%s165 + $0x2d8] sm:$0xff]
      %v264 = vld [vmem:[%s165 + $0x2e0] sm:$0xff]
      %v265 = vld [vmem:[%s165 + $0x2e8] sm:$0xff]
      %v266 = vld [vmem:[%s165 + $0x2f0] sm:$0xff]
      %v267 = vld [vmem:[%s165 + $0x2f8] sm:$0xff]
      %v268 = vld [vmem:[%s165 + $0x300] sm:$0xff]
      %v269 = vld [vmem:[%s165 + $0x308] sm:$0xff]
      %v270 = vld [vmem:[%s165 + $0x310] sm:$0xff]
      %v271 = vld [vmem:[%s165 + $0x318] sm:$0xff]
      %v272 = vld [vmem:[%s165 + $0x320] sm:$0xff]
      %v273 = vld [vmem:[%s165 + $0x328] sm:$0xff]
      %v274 = vld [vmem:[%s165 + $0x330] sm:$0xff]
      %v275 = vld [vmem:[%s165 + $0x338] sm:$0xff]
      %v276 = vld [vmem:[%s165 + $0x340] sm:$0xff]
      %v277 = vld [vmem:[%s165 + $0x348] sm:$0xff]
      %v278 = vld [vmem:[%s165 + $0x350] sm:$0xff]
      %v279 = vld [vmem:[%s165 + $0x358] sm:$0xff]
      %v280 = vld [vmem:[%s165 + $0x360] sm:$0xff]
      %v281 = vld [vmem:[%s165 + $0x368] sm:$0xff]
      %v282 = vld [vmem:[%s165 + $0x370] sm:$0xff]
      %v283 = vld [vmem:[%s165 + $0x378] sm:$0xff]
      %v284 = vld [vmem:[%s165 + $0x380] sm:$0xff]
      %v285 = vld [vmem:[%s165 + $0x388] sm:$0xff]
      %v286 = vld [vmem:[%s165 + $0x390] sm:$0xff]
      %v287 = vld [vmem:[%s165 + $0x398] sm:$0xff]
      %v288 = vld [vmem:[%s165 + $0x3a0] sm:$0xff]
      %v289 = vld [vmem:[%s165 + $0x3a8] sm:$0xff]
      %v290 = vld [vmem:[%s165 + $0x3b0] sm:$0xff]
      %v291 = vld [vmem:[%s165 + $0x3b8] sm:$0xff]
      %v292 = vld [vmem:[%s165 + $0x3c0] sm:$0x33]
      %v293 = vld [vmem:[%s165 + $0x3c8] sm:$0x33]
      %v294 = vld [vmem:[%s1] sm:$0xf]
      %v295 = vld [vmem:[%s1 + $0x4] sm:$0xf]
      %v296 = vld [vmem:[%s1 + $0x8] sm:$0xf]
      %v297 = vld [vmem:[%s1 + $0xc] sm:$0xf]
      %v298 = vld [vmem:[%s1 + $0x10] sm:$0xf]
      %v299 = vld [vmem:[%s1 + $0x14] sm:$0xf]
      %v300 = vld [vmem:[%s1 + $0x18] sm:$0xf]
      %v301 = vld [vmem:[%s1 + $0x1c] sm:$0xf]
      %v302 = vld [vmem:[%s1 + $0x20] sm:$0xf]
      %v303 = vld [vmem:[%s1 + $0x24] sm:$0xf]
      %v304 = vld [vmem:[%s1 + $0x28] sm:$0xf]
      %v305 = vld [vmem:[%s1 + $0x2c] sm:$0xf]
      %v306 = vld [vmem:[%s1 + $0x30] sm:$0xf]
      %v307 = vld [vmem:[%s1 + $0x34] sm:$0xf]
      %v308 = vld [vmem:[%s1 + $0x38] sm:$0xf]
      %v309 = vld [vmem:[%s1 + $0x3c] sm:$0xf]
      %v310 = vld [vmem:[%s1 + $0x40] sm:$0xf]
      %v311 = vld [vmem:[%s1 + $0x44] sm:$0xf]
      %v312 = vld [vmem:[%s1 + $0x48] sm:$0xf]
      %v313 = vld [vmem:[%s1 + $0x4c] sm:$0xf]
      %v314 = vld [vmem:[%s1 + $0x50] sm:$0xf]
      %v315 = vld [vmem:[%s1 + $0x54] sm:$0xf]
      %v316 = vld [vmem:[%s1 + $0x58] sm:$0xf]
      %v317 = vld [vmem:[%s1 + $0x5c] sm:$0xf]
      %v318 = vld [vmem:[%s1 + $0x60] sm:$0xf]
      %v319 = vld [vmem:[%s1 + $0x64] sm:$0xf]
      %v320 = vld [vmem:[%s1 + $0x68] sm:$0xf]
      %v321 = vld [vmem:[%s1 + $0x6c] sm:$0xf]
      %v322 = vld [vmem:[%s1 + $0x70] sm:$0xf]
      %v323 = vld [vmem:[%s1 + $0x74] sm:$0xf]
      %v324 = vld [vmem:[%s1 + $0x78] sm:$0xf]
      %v325 = vld [vmem:[%s1 + $0x7c] sm:$0xf]
      %v326 = vld [vmem:[%s1 + $0x80] sm:$0xf]
      %v327 = vld [vmem:[%s1 + $0x84] sm:$0xf]
      %v328 = vld [vmem:[%s1 + $0x88] sm:$0xf]
      %v329 = vld [vmem:[%s1 + $0x8c] sm:$0xf]
      %v330 = vld [vmem:[%s1 + $0x90] sm:$0xf]
      %v331 = vld [vmem:[%s1 + $0x94] sm:$0xf]
      %v332 = vld [vmem:[%s1 + $0x98] sm:$0xf]
      %v333 = vld [vmem:[%s1 + $0x9c] sm:$0xf]
      %v334 = vld [vmem:[%s1 + $0xa0] sm:$0xf]
      %v335 = vld [vmem:[%s1 + $0xa4] sm:$0xf]
      %v336 = vld [vmem:[%s1 + $0xa8] sm:$0xf]
      %v337 = vld [vmem:[%s1 + $0xac] sm:$0xf]
      %v338 = vld [vmem:[%s1 + $0xb0] sm:$0xf]
      %v339 = vld [vmem:[%s1 + $0xb4] sm:$0xf]
      %v340 = vld [vmem:[%s1 + $0xb8] sm:$0xf]
      %v341 = vld [vmem:[%s1 + $0xbc] sm:$0xf]
      %v342 = vld [vmem:[%s1 + $0xc0] sm:$0xf]
      %v343 = vld [vmem:[%s1 + $0xc4] sm:$0xf]
      %v344 = vld [vmem:[%s2] sm:$0x1]
      %v346 = vlaneseq
      %v347 = vshrl.u32 %v346, 7
      %v348 = vsub.s32 0, %v347
      %v349 = vrot.slane %v344, %v348
      %v473 = vunpack.c.l.b16 %v172
      %v474 = vunpack.c.h.b16 %v172
      %v475 = vunpack.c.l.b16 %v173
      %v476 = vunpack.c.h.b16 %v173
      %v477 = vunpack.c.l.b16 %v174
      %v478 = vunpack.c.h.b16 %v174
      %v479 = vunpack.c.l.b16 %v175
      %v480 = vunpack.c.h.b16 %v175
      %v481 = vunpack.c.l.b16 %v176
      %v482 = vunpack.c.h.b16 %v176
      %v483 = vunpack.c.l.b16 %v177
      %v484 = vunpack.c.h.b16 %v177
      %v485 = vunpack.c.l.b16 %v178
      %v486 = vunpack.c.h.b16 %v178
      %v487 = vunpack.c.l.b16 %v179
      %v488 = vunpack.c.h.b16 %v179
      %v489 = vunpack.c.l.b16 %v180
      %v490 = vunpack.c.h.b16 %v180
      %v491 = vunpack.c.l.b16 %v181
      %v492 = vunpack.c.h.b16 %v181
      %v493 = vunpack.c.l.b16 %v182
      %v494 = vunpack.c.h.b16 %v182
      %v495 = vunpack.c.l.b16 %v183
      %v496 = vunpack.c.h.b16 %v183
      %v497 = vunpack.c.l.b16 %v184
      %v498 = vunpack.c.h.b16 %v184
      %v499 = vunpack.c.l.b16 %v185
      %v500 = vunpack.c.h.b16 %v185
      %v501 = vunpack.c.l.b16 %v186
      %v502 = vunpack.c.h.b16 %v186
      %v503 = vunpack.c.l.b16 %v187
      %v504 = vunpack.c.h.b16 %v187
      %v505 = vunpack.c.l.b16 %v188
      %v506 = vunpack.c.h.b16 %v188
      %v507 = vunpack.c.l.b16 %v189
      %v508 = vunpack.c.h.b16 %v189
      %v509 = vunpack.c.l.b16 %v190
      %v510 = vunpack.c.h.b16 %v190
      %v511 = vunpack.c.l.b16 %v191
      %v512 = vunpack.c.h.b16 %v191
      %v513 = vunpack.c.l.b16 %v192
      %v514 = vunpack.c.h.b16 %v192
      %v515 = vunpack.c.l.b16 %v193
      %v516 = vunpack.c.h.b16 %v193
      %v517 = vunpack.c.l.b16 %v194
      %v518 = vunpack.c.h.b16 %v194
      %v519 = vunpack.c.l.b16 %v195
      %v520 = vunpack.c.h.b16 %v195
      %v521 = vunpack.c.l.b16 %v196
      %v522 = vunpack.c.h.b16 %v196
      %v523 = vunpack.c.l.b16 %v197
      %v524 = vunpack.c.h.b16 %v197
      %v525 = vunpack.c.l.b16 %v198
      %v526 = vunpack.c.h.b16 %v198
      %v527 = vunpack.c.l.b16 %v199
      %v528 = vunpack.c.h.b16 %v199
      %v529 = vunpack.c.l.b16 %v200
      %v530 = vunpack.c.h.b16 %v200
      %v531 = vunpack.c.l.b16 %v201
      %v532 = vunpack.c.h.b16 %v201
      %v533 = vunpack.c.l.b16 %v202
      %v534 = vunpack.c.h.b16 %v202
      %v535 = vunpack.c.l.b16 %v203
      %v536 = vunpack.c.h.b16 %v203
      %v537 = vunpack.c.l.b16 %v204
      %v538 = vunpack.c.h.b16 %v204
      %v539 = vunpack.c.l.b16 %v205
      %v540 = vunpack.c.h.b16 %v205
      %v541 = vunpack.c.l.b16 %v206
      %v542 = vunpack.c.h.b16 %v206
      %v543 = vunpack.c.l.b16 %v207
      %v544 = vunpack.c.h.b16 %v207
      %v545 = vunpack.c.l.b16 %v208
      %v546 = vunpack.c.h.b16 %v208
      %v547 = vunpack.c.l.b16 %v209
      %v548 = vunpack.c.h.b16 %v209
      %v549 = vunpack.c.l.b16 %v210
      %v550 = vunpack.c.h.b16 %v210
      %v551 = vunpack.c.l.b16 %v211
      %v552 = vunpack.c.h.b16 %v211
      %v553 = vunpack.c.l.b16 %v212
      %v554 = vunpack.c.h.b16 %v212
      %v555 = vunpack.c.l.b16 %v213
      %v556 = vunpack.c.h.b16 %v213
      %v557 = vunpack.c.l.b16 %v214
      %v558 = vunpack.c.h.b16 %v214
      %v559 = vunpack.c.l.b16 %v215
      %v560 = vunpack.c.h.b16 %v215
      %v561 = vunpack.c.l.b16 %v216
      %v562 = vunpack.c.h.b16 %v216
      %v563 = vunpack.c.l.b16 %v217
      %v564 = vunpack.c.h.b16 %v217
      %v565 = vunpack.c.l.b16 %v218
      %v566 = vunpack.c.h.b16 %v218
      %v567 = vunpack.c.l.b16 %v219
      %v568 = vunpack.c.h.b16 %v219
      %v569 = vunpack.c.l.b16 %v220
      %v570 = vunpack.c.h.b16 %v220
      %v571 = vunpack.c.l.b16 %v221
      %v572 = vunpack.c.h.b16 %v221
      %v573 = vunpack.c.l.b16 %v222
      %v574 = vunpack.c.h.b16 %v222
      %v575 = vunpack.c.l.b16 %v223
      %v576 = vunpack.c.h.b16 %v223
      %v577 = vunpack.c.l.b16 %v224
      %v578 = vunpack.c.h.b16 %v224
      %v579 = vunpack.c.l.b16 %v225
      %v580 = vunpack.c.h.b16 %v225
      %v581 = vunpack.c.l.b16 %v226
      %v582 = vunpack.c.h.b16 %v226
      %v583 = vunpack.c.l.b16 %v227
      %v584 = vunpack.c.h.b16 %v227
      %v585 = vunpack.c.l.b16 %v228
      %v586 = vunpack.c.h.b16 %v228
      %v587 = vunpack.c.l.b16 %v229
      %v588 = vunpack.c.h.b16 %v229
      %v589 = vunpack.c.l.b16 %v230
      %v590 = vunpack.c.h.b16 %v230
      %v591 = vunpack.c.l.b16 %v231
      %v592 = vunpack.c.h.b16 %v231
      %v593 = vunpack.c.l.b16 %v232
      %v594 = vunpack.c.h.b16 %v232
      %v595 = vunpack.c.l.b16 %v233
      %v596 = vunpack.c.h.b16 %v233
      %v597 = vunpack.c.l.b16 %v234
      %v598 = vunpack.c.h.b16 %v234
      %v599 = vunpack.c.l.b16 %v235
      %v600 = vunpack.c.h.b16 %v235
      %v601 = vunpack.c.l.b16 %v236
      %v602 = vunpack.c.h.b16 %v236
      %v603 = vunpack.c.l.b16 %v237
      %v604 = vunpack.c.h.b16 %v237
      %v605 = vunpack.c.l.b16 %v238
      %v606 = vunpack.c.h.b16 %v238
      %v607 = vunpack.c.l.b16 %v239
      %v608 = vunpack.c.h.b16 %v239
      %v609 = vunpack.c.l.b16 %v240
      %v610 = vunpack.c.h.b16 %v240
      %v611 = vunpack.c.l.b16 %v241
      %v612 = vunpack.c.h.b16 %v241
      %v613 = vunpack.c.l.b16 %v242
      %v614 = vunpack.c.h.b16 %v242
      %v615 = vunpack.c.l.b16 %v243
      %v616 = vunpack.c.h.b16 %v243
      %v617 = vunpack.c.l.b16 %v244
      %v618 = vunpack.c.h.b16 %v244
      %v619 = vunpack.c.l.b16 %v245
      %v620 = vunpack.c.h.b16 %v245
      %v621 = vunpack.c.l.b16 %v246
      %v622 = vunpack.c.h.b16 %v246
      %v623 = vunpack.c.l.b16 %v247
      %v624 = vunpack.c.h.b16 %v247
      %v625 = vunpack.c.l.b16 %v248
      %v626 = vunpack.c.h.b16 %v248
      %v627 = vunpack.c.l.b16 %v249
      %v628 = vunpack.c.h.b16 %v249
      %v629 = vunpack.c.l.b16 %v250
      %v630 = vunpack.c.h.b16 %v250
      %v631 = vunpack.c.l.b16 %v251
      %v632 = vunpack.c.h.b16 %v251
      %v633 = vunpack.c.l.b16 %v252
      %v634 = vunpack.c.h.b16 %v252
      %v635 = vunpack.c.l.b16 %v253
      %v636 = vunpack.c.h.b16 %v253
      %v637 = vunpack.c.l.b16 %v254
      %v638 = vunpack.c.h.b16 %v254
      %v639 = vunpack.c.l.b16 %v255
      %v640 = vunpack.c.h.b16 %v255
      %v641 = vunpack.c.l.b16 %v256
      %v642 = vunpack.c.h.b16 %v256
      %v643 = vunpack.c.l.b16 %v257
      %v644 = vunpack.c.h.b16 %v257
      %v645 = vunpack.c.l.b16 %v258
      %v646 = vunpack.c.h.b16 %v258
      %v647 = vunpack.c.l.b16 %v259
      %v648 = vunpack.c.h.b16 %v259
      %v649 = vunpack.c.l.b16 %v260
      %v650 = vunpack.c.h.b16 %v260
      %v651 = vunpack.c.l.b16 %v261
      %v652 = vunpack.c.h.b16 %v261
      %v653 = vunpack.c.l.b16 %v262
      %v654 = vunpack.c.h.b16 %v262
      %v655 = vunpack.c.l.b16 %v263
      %v656 = vunpack.c.h.b16 %v263
      %v657 = vunpack.c.l.b16 %v264
      %v658 = vunpack.c.h.b16 %v264
      %v659 = vunpack.c.l.b16 %v265
      %v660 = vunpack.c.h.b16 %v265
      %v661 = vunpack.c.l.b16 %v266
      %v662 = vunpack.c.h.b16 %v266
      %v663 = vunpack.c.l.b16 %v267
      %v664 = vunpack.c.h.b16 %v267
      %v665 = vunpack.c.l.b16 %v268
      %v666 = vunpack.c.h.b16 %v268
      %v667 = vunpack.c.l.b16 %v269
      %v668 = vunpack.c.h.b16 %v269
      %v669 = vunpack.c.l.b16 %v270
      %v670 = vunpack.c.h.b16 %v270
      %v671 = vunpack.c.l.b16 %v271
      %v672 = vunpack.c.h.b16 %v271
      %v673 = vunpack.c.l.b16 %v272
      %v674 = vunpack.c.h.b16 %v272
      %v675 = vunpack.c.l.b16 %v273
      %v676 = vunpack.c.h.b16 %v273
      %v677 = vunpack.c.l.b16 %v274
      %v678 = vunpack.c.h.b16 %v274
      %v679 = vunpack.c.l.b16 %v275
      %v680 = vunpack.c.h.b16 %v275
      %v681 = vunpack.c.l.b16 %v276
      %v682 = vunpack.c.h.b16 %v276
      %v683 = vunpack.c.l.b16 %v277
      %v684 = vunpack.c.h.b16 %v277
      %v685 = vunpack.c.l.b16 %v278
      %v686 = vunpack.c.h.b16 %v278
      %v687 = vunpack.c.l.b16 %v279
      %v688 = vunpack.c.h.b16 %v279
      %v689 = vunpack.c.l.b16 %v280
      %v690 = vunpack.c.h.b16 %v280
      %v691 = vunpack.c.l.b16 %v281
      %v692 = vunpack.c.h.b16 %v281
      %v693 = vunpack.c.l.b16 %v282
      %v694 = vunpack.c.h.b16 %v282
      %v695 = vunpack.c.l.b16 %v283
      %v696 = vunpack.c.h.b16 %v283
      %v697 = vunpack.c.l.b16 %v284
      %v698 = vunpack.c.h.b16 %v284
      %v699 = vunpack.c.l.b16 %v285
      %v700 = vunpack.c.h.b16 %v285
      %v701 = vunpack.c.l.b16 %v286
      %v702 = vunpack.c.h.b16 %v286
      %v703 = vunpack.c.l.b16 %v287
      %v704 = vunpack.c.h.b16 %v287
      %v705 = vunpack.c.l.b16 %v288
      %v706 = vunpack.c.h.b16 %v288
      %v707 = vunpack.c.l.b16 %v289
      %v708 = vunpack.c.h.b16 %v289
      %v709 = vunpack.c.l.b16 %v290
      %v710 = vunpack.c.h.b16 %v290
      %v711 = vunpack.c.l.b16 %v291
      %v712 = vunpack.c.h.b16 %v291
      %v713 = vunpack.c.l.b16 %v292
      %v714 = vunpack.c.h.b16 %v292
      %v715 = vunpack.c.l.b16 %v293
      %v716 = vunpack.c.h.b16 %v293
      %v717 = vpack.c.b16 %v477, %v473
      %v718 = vpack.c.b16 %v478, %v474
      %v719 = vpack.c.b16 %v479, %v475
      %v720 = vpack.c.b16 %v480, %v476
      %v721 = vpack.c.b16 %v485, %v481
      %v722 = vpack.c.b16 %v486, %v482
      %v723 = vpack.c.b16 %v487, %v483
      %v724 = vpack.c.b16 %v488, %v484
      %v725 = vpack.c.b16 %v493, %v489
      %v726 = vpack.c.b16 %v494, %v490
      %v727 = vpack.c.b16 %v495, %v491
      %v728 = vpack.c.b16 %v496, %v492
      %v729 = vpack.c.b16 %v501, %v497
      %v730 = vpack.c.b16 %v502, %v498
      %v731 = vpack.c.b16 %v503, %v499
      %v732 = vpack.c.b16 %v504, %v500
      %v733 = vpack.c.b16 %v509, %v505
      %v734 = vpack.c.b16 %v510, %v506
      %v735 = vpack.c.b16 %v511, %v507
      %v736 = vpack.c.b16 %v512, %v508
      %v737 = vpack.c.b16 %v517, %v513
      %v738 = vpack.c.b16 %v518, %v514
      %v739 = vpack.c.b16 %v519, %v515
      %v740 = vpack.c.b16 %v520, %v516
      %v741 = vpack.c.b16 %v525, %v521
      %v742 = vpack.c.b16 %v526, %v522
      %v743 = vpack.c.b16 %v527, %v523
      %v744 = vpack.c.b16 %v528, %v524
      %v745 = vpack.c.b16 %v533, %v529
      %v746 = vpack.c.b16 %v534, %v530
      %v747 = vpack.c.b16 %v535, %v531
      %v748 = vpack.c.b16 %v536, %v532
      %v749 = vpack.c.b16 %v541, %v537
      %v750 = vpack.c.b16 %v542, %v538
      %v751 = vpack.c.b16 %v543, %v539
      %v752 = vpack.c.b16 %v544, %v540
      %v753 = vpack.c.b16 %v549, %v545
      %v754 = vpack.c.b16 %v550, %v546
      %v755 = vpack.c.b16 %v551, %v547
      %v756 = vpack.c.b16 %v552, %v548
      %v757 = vpack.c.b16 %v557, %v553
      %v758 = vpack.c.b16 %v558, %v554
      %v759 = vpack.c.b16 %v559, %v555
      %v760 = vpack.c.b16 %v560, %v556
      %v761 = vpack.c.b16 %v565, %v561
      %v762 = vpack.c.b16 %v566, %v562
      %v763 = vpack.c.b16 %v567, %v563
      %v764 = vpack.c.b16 %v568, %v564
      %v765 = vpack.c.b16 %v573, %v569
      %v766 = vpack.c.b16 %v574, %v570
      %v767 = vpack.c.b16 %v575, %v571
      %v768 = vpack.c.b16 %v576, %v572
      %v769 = vpack.c.b16 %v581, %v577
      %v770 = vpack.c.b16 %v582, %v578
      %v771 = vpack.c.b16 %v583, %v579
      %v772 = vpack.c.b16 %v584, %v580
      %v773 = vpack.c.b16 %v589, %v585
      %v774 = vpack.c.b16 %v590, %v586
      %v775 = vpack.c.b16 %v591, %v587
      %v776 = vpack.c.b16 %v592, %v588
      %v777 = vpack.c.b16 %v597, %v593
      %v778 = vpack.c.b16 %v598, %v594
      %v779 = vpack.c.b16 %v599, %v595
      %v780 = vpack.c.b16 %v600, %v596
      %v781 = vpack.c.b16 %v605, %v601
      %v782 = vpack.c.b16 %v606, %v602
      %v783 = vpack.c.b16 %v607, %v603
      %v784 = vpack.c.b16 %v608, %v604
      %v785 = vpack.c.b16 %v613, %v609
      %v786 = vpack.c.b16 %v614, %v610
      %v787 = vpack.c.b16 %v615, %v611
      %v788 = vpack.c.b16 %v616, %v612
      %v789 = vpack.c.b16 %v621, %v617
      %v790 = vpack.c.b16 %v622, %v618
      %v791 = vpack.c.b16 %v623, %v619
      %v792 = vpack.c.b16 %v624, %v620
      %v793 = vpack.c.b16 %v629, %v625
      %v794 = vpack.c.b16 %v630, %v626
      %v795 = vpack.c.b16 %v631, %v627
      %v796 = vpack.c.b16 %v632, %v628
      %v797 = vpack.c.b16 %v637, %v633
      %v798 = vpack.c.b16 %v638, %v634
      %v799 = vpack.c.b16 %v639, %v635
      %v800 = vpack.c.b16 %v640, %v636
      %v801 = vpack.c.b16 %v645, %v641
      %v802 = vpack.c.b16 %v646, %v642
      %v803 = vpack.c.b16 %v647, %v643
      %v804 = vpack.c.b16 %v648, %v644
      %v805 = vpack.c.b16 %v653, %v649
      %v806 = vpack.c.b16 %v654, %v650
      %v807 = vpack.c.b16 %v655, %v651
      %v808 = vpack.c.b16 %v656, %v652
      %v809 = vpack.c.b16 %v661, %v657
      %v810 = vpack.c.b16 %v662, %v658
      %v811 = vpack.c.b16 %v663, %v659
      %v812 = vpack.c.b16 %v664, %v660
      %v813 = vpack.c.b16 %v669, %v665
      %v814 = vpack.c.b16 %v670, %v666
      %v815 = vpack.c.b16 %v671, %v667
      %v816 = vpack.c.b16 %v672, %v668
      %v817 = vpack.c.b16 %v677, %v673
      %v818 = vpack.c.b16 %v678, %v674
      %v819 = vpack.c.b16 %v679, %v675
      %v820 = vpack.c.b16 %v680, %v676
      %v821 = vpack.c.b16 %v685, %v681
      %v822 = vpack.c.b16 %v686, %v682
      %v823 = vpack.c.b16 %v687, %v683
      %v824 = vpack.c.b16 %v688, %v684
      %v825 = vpack.c.b16 %v693, %v689
      %v826 = vpack.c.b16 %v694, %v690
      %v827 = vpack.c.b16 %v695, %v691
      %v828 = vpack.c.b16 %v696, %v692
      %v829 = vpack.c.b16 %v701, %v697
      %v830 = vpack.c.b16 %v702, %v698
      %v831 = vpack.c.b16 %v703, %v699
      %v832 = vpack.c.b16 %v704, %v700
      %v833 = vpack.c.b16 %v709, %v705
      %v834 = vpack.c.b16 %v710, %v706
      %v835 = vpack.c.b16 %v711, %v707
      %v836 = vpack.c.b16 %v712, %v708
      %v837 = vpack.c.b16 %v713, %v713
      %v838 = vpack.c.b16 %v714, %v714
      %v839 = vpack.c.b16 %v715, %v715
      %v840 = vpack.c.b16 %v716, %v716
      %v984 = vunpack.c.l.b16 %v294
      %v985 = vunpack.c.l.b16 %v295
      %v986 = vunpack.c.l.b16 %v296
      %v987 = vunpack.c.l.b16 %v297
      %v988 = vunpack.c.l.b16 %v298
      %v989 = vunpack.c.l.b16 %v299
      %v990 = vunpack.c.l.b16 %v300
      %v991 = vunpack.c.l.b16 %v301
      %v992 = vunpack.c.l.b16 %v302
      %v993 = vunpack.c.l.b16 %v303
      %v994 = vunpack.c.l.b16 %v304
      %v995 = vunpack.c.l.b16 %v305
      %v996 = vunpack.c.l.b16 %v306
      %v997 = vunpack.c.l.b16 %v307
      %v998 = vunpack.c.l.b16 %v308
      %v999 = vunpack.c.l.b16 %v309
      %v1000 = vunpack.c.l.b16 %v310
      %v1001 = vunpack.c.l.b16 %v311
      %v1002 = vunpack.c.l.b16 %v312
      %v1003 = vunpack.c.l.b16 %v313
      %v1004 = vunpack.c.l.b16 %v314
      %v1005 = vunpack.c.l.b16 %v315
      %v1006 = vunpack.c.l.b16 %v316
      %v1007 = vunpack.c.l.b16 %v317
      %v1008 = vunpack.c.l.b16 %v318
      %v1009 = vunpack.c.l.b16 %v319
      %v1010 = vunpack.c.l.b16 %v320
      %v1011 = vunpack.c.l.b16 %v321
      %v1012 = vunpack.c.l.b16 %v322
      %v1013 = vunpack.c.l.b16 %v323
      %v1014 = vunpack.c.l.b16 %v324
      %v1015 = vunpack.c.l.b16 %v325
      %v1016 = vunpack.c.l.b16 %v326
      %v1017 = vunpack.c.l.b16 %v327
      %v1018 = vunpack.c.l.b16 %v328
      %v1019 = vunpack.c.l.b16 %v329
      %v1020 = vunpack.c.l.b16 %v330
      %v1021 = vunpack.c.l.b16 %v331
      %v1022 = vunpack.c.l.b16 %v332
      %v1023 = vunpack.c.l.b16 %v333
      %v1024 = vunpack.c.l.b16 %v334
      %v1025 = vunpack.c.l.b16 %v335
      %v1026 = vunpack.c.l.b16 %v336
      %v1027 = vunpack.c.l.b16 %v337
      %v1028 = vunpack.c.l.b16 %v338
      %v1029 = vunpack.c.l.b16 %v339
      %v1030 = vunpack.c.l.b16 %v340
      %v1031 = vunpack.c.l.b16 %v341
      %v1032 = vunpack.c.l.b16 %v342
      %v1033 = vunpack.c.l.b16 %v343
      %v1034 = vpack.c.b16 %v985, %v984
      %v1035 = vpack.c.b16 %v987, %v986
      %v1036 = vpack.c.b16 %v989, %v988
      %v1037 = vpack.c.b16 %v991, %v990
      %v1038 = vpack.c.b16 %v993, %v992
      %v1039 = vpack.c.b16 %v995, %v994
      %v1040 = vpack.c.b16 %v997, %v996
      %v1041 = vpack.c.b16 %v999, %v998
      %v1042 = vpack.c.b16 %v1001, %v1000
      %v1043 = vpack.c.b16 %v1003, %v1002
      %v1044 = vpack.c.b16 %v1005, %v1004
      %v1045 = vpack.c.b16 %v1007, %v1006
      %v1046 = vpack.c.b16 %v1009, %v1008
      %v1047 = vpack.c.b16 %v1011, %v1010
      %v1048 = vpack.c.b16 %v1013, %v1012
      %v1049 = vpack.c.b16 %v1015, %v1014
      %v1050 = vpack.c.b16 %v1017, %v1016
      %v1051 = vpack.c.b16 %v1019, %v1018
      %v1052 = vpack.c.b16 %v1021, %v1020
      %v1053 = vpack.c.b16 %v1023, %v1022
      %v1054 = vpack.c.b16 %v1025, %v1024
      %v1055 = vpack.c.b16 %v1027, %v1026
      %v1056 = vpack.c.b16 %v1029, %v1028
      %v1057 = vpack.c.b16 %v1031, %v1030
      %v1058 = vpack.c.b16 %v1033, %v1032
      %vm1084 = vcmask 130048
      %v1086 = vsel %vm1084, %v720, 0
      %v1089 = vsel %vm1084, %v724, 0
      %v1092 = vsel %vm1084, %v728, 0
      %v1095 = vsel %vm1084, %v732, 0
      %v1098 = vsel %vm1084, %v736, 0
      %v1101 = vsel %vm1084, %v740, 0
      %v1104 = vsel %vm1084, %v744, 0
      %v1107 = vsel %vm1084, %v748, 0
      %v1110 = vsel %vm1084, %v752, 0
      %v1113 = vsel %vm1084, %v756, 0
      %v1116 = vsel %vm1084, %v760, 0
      %v1119 = vsel %vm1084, %v764, 0
      %v1122 = vsel %vm1084, %v768, 0
      %v1125 = vsel %vm1084, %v772, 0
      %v1128 = vsel %vm1084, %v776, 0
      %v1131 = vsel %vm1084, %v780, 0
      %v1134 = vsel %vm1084, %v784, 0
      %v1137 = vsel %vm1084, %v788, 0
      %v1140 = vsel %vm1084, %v792, 0
      %v1143 = vsel %vm1084, %v796, 0
      %v1146 = vsel %vm1084, %v800, 0
      %v1149 = vsel %vm1084, %v804, 0
      %v1152 = vsel %vm1084, %v808, 0
      %v1155 = vsel %vm1084, %v812, 0
      %v1158 = vsel %vm1084, %v816, 0
      %v1161 = vsel %vm1084, %v820, 0
      %v1164 = vsel %vm1084, %v824, 0
      %v1167 = vsel %vm1084, %v828, 0
      %v1170 = vsel %vm1084, %v832, 0
      %v1173 = vsel %vm1084, %v836, 0
      %v1176 = vsel %vm1084, %v840, 0
      %1178 = vmatprep.subr.bf16.mxu0 0
      %1179 = vmatpush1.bf16.msra.mxu0 %v1034
      %1180 = vmatprep.subr.bf16.mxu0 0
      %1181 = vmatpush1.bf16.msra.mxu0 %v1035
      %1182 = vmatprep.subr.bf16.mxu0 0
      %1183 = vmatpush1.bf16.msra.mxu0 %v1036
      %1184 = vmatprep.subr.bf16.mxu0 0
      %1185 = vmatpush1.bf16.msra.mxu0 %v1037
      %1186 = vmatprep.subr.bf16.mxu0 0
      %1187 = vmatpush1.bf16.msra.mxu0 %v1038
      %1188 = vmatprep.subr.bf16.mxu0 0
      %1189 = vmatpush1.bf16.msra.mxu0 %v1039
      %1190 = vmatprep.subr.bf16.mxu0 0
      %1191 = vmatpush1.bf16.msra.mxu0 %v1040
      %1192 = vmatprep.subr.bf16.mxu0 0
      %1193 = vmatpush1.bf16.msra.mxu0 %v1041
      %1194 = vmatprep.subr.bf16.mxu0 0
      %1195 = vmatpush1.bf16.msra.mxu0 %v1042
      %1196 = vmatprep.subr.bf16.mxu0 0
      %1197 = vmatpush1.bf16.msra.mxu0 %v1043
      %1198 = vmatprep.subr.bf16.mxu0 0
      %1199 = vmatpush1.bf16.msra.mxu0 %v1044
      %1200 = vmatprep.subr.bf16.mxu0 0
      %1201 = vmatpush1.bf16.msra.mxu0 %v1045
      %1202 = vmatprep.subr.bf16.mxu0 0
      %1203 = vmatpush1.bf16.msra.mxu0 %v1046
      %1204 = vmatprep.subr.bf16.mxu0 0
      %1205 = vmatpush1.bf16.msra.mxu0 %v1047
      %1206 = vmatprep.subr.bf16.mxu0 0
      %1207 = vmatpush1.bf16.msra.mxu0 %v1048
      %1208 = vmatprep.subr.bf16.mxu0 0
      %1209 = vmatpush1.bf16.msra.mxu0 %v1049
      %1210 = vmatprep.mubr.bf16.mxu0 %v718
      %1211 = vmatmul.mubr.bf16.gmra.mrb[0].mxu0 %v717
      %v1212 = vpop.f32.mrb[0].mxu0
      %v1213 = vadd.f32 %v349, %v1212
      %v1214 = vpop.f32.mrb[0].mxu0
      %v1215 = vpop.f32.mrb[0].mxu0
      %v1216 = vadd.f32 %v349, %v1215
      %v1217 = vpop.f32.mrb[0].mxu0
      %1218 = vmatprep.mubr.bf16.mxu0 %v722
      %1219 = vmatmul.mubr.bf16.gmra.mrb[0].mxu0 %v721
      %v1220 = vpop.f32.mrb[0].mxu0
      %v1221 = vadd.f32 %v349, %v1220
      %v1222 = vpop.f32.mrb[0].mxu0
      %v1223 = vpop.f32.mrb[0].mxu0
      %v1224 = vadd.f32 %v349, %v1223
      %v1225 = vpop.f32.mrb[0].mxu0
      %1226 = vmatprep.mubr.bf16.mxu0 %v726
      %1227 = vmatmul.mubr.bf16.gmra.mrb[0].mxu0 %v725
      %v1228 = vpop.f32.mrb[0].mxu0
      %v1229 = vadd.f32 %v349, %v1228
      %v1230 = vpop.f32.mrb[0].mxu0
      %v1231 = vpop.f32.mrb[0].mxu0
      %v1232 = vadd.f32 %v349, %v1231
      %v1233 = vpop.f32.mrb[0].mxu0
      %1234 = vmatprep.mubr.bf16.mxu0 %v730
      %1235 = vmatmul.mubr.bf16.gmra.mrb[0].mxu0 %v729
      %v1236 = vpop.f32.mrb[0].mxu0
      %v1237 = vadd.f32 %v349, %v1236
      %v1238 = vpop.f32.mrb[0].mxu0
      %v1239 = vpop.f32.mrb[0].mxu0
      %v1240 = vadd.f32 %v349, %v1239
      %v1241 = vpop.f32.mrb[0].mxu0
      %1242 = vmatprep.mubr.bf16.mxu0 %v734
      %1243 = vmatmul.mubr.bf16.gmra.mrb[0].mxu0 %v733
      %v1244 = vpop.f32.mrb[0].mxu0
      %v1245 = vadd.f32 %v349, %v1244
      %v1246 = vpop.f32.mrb[0].mxu0
      %v1247 = vpop.f32.mrb[0].mxu0
      %v1248 = vadd.f32 %v349, %v1247
      %v1249 = vpop.f32.mrb[0].mxu0
      %1250 = vmatprep.mubr.bf16.mxu0 %v738
      %1251 = vmatmul.mubr.bf16.gmra.mrb[0].mxu0 %v737
      %v1252 = vpop.f32.mrb[0].mxu0
      %v1253 = vadd.f32 %v349, %v1252
      %v1254 = vpop.f32.mrb[0].mxu0
      %v1255 = vpop.f32.mrb[0].mxu0
      %v1256 = vadd.f32 %v349, %v1255
      %v1257 = vpop.f32.mrb[0].mxu0
      %1258 = vmatprep.mubr.bf16.mxu0 %v742
      %1259 = vmatmul.mubr.bf16.gmra.mrb[0].mxu0 %v741
      %v1260 = vpop.f32.mrb[0].mxu0
      %v1261 = vadd.f32 %v349, %v1260
      %v1262 = vpop.f32.mrb[0].mxu0
      %v1263 = vpop.f32.mrb[0].mxu0
      %v1264 = vadd.f32 %v349, %v1263
      %v1265 = vpop.f32.mrb[0].mxu0
      %1266 = vmatprep.mubr.bf16.mxu0 %v746
      %1267 = vmatmul.mubr.bf16.gmra.mrb[0].mxu0 %v745
      %v1268 = vpop.f32.mrb[0].mxu0
      %v1269 = vadd.f32 %v349, %v1268
      %v1270 = vpop.f32.mrb[0].mxu0
      %v1271 = vpop.f32.mrb[0].mxu0
      %v1272 = vadd.f32 %v349, %v1271
      %v1273 = vpop.f32.mrb[0].mxu0
      %1274 = vmatprep.mubr.bf16.mxu0 %v750
      %1275 = vmatmul.mubr.bf16.gmra.mrb[0].mxu0 %v749
      %v1276 = vpop.f32.mrb[0].mxu0
      %v1277 = vadd.f32 %v349, %v1276
      %v1278 = vpop.f32.mrb[0].mxu0
      %v1279 = vpop.f32.mrb[0].mxu0
      %v1280 = vadd.f32 %v349, %v1279
      %v1281 = vpop.f32.mrb[0].mxu0
      %1282 = vmatprep.mubr.bf16.mxu0 %v754
      %1283 = vmatmul.mubr.bf16.gmra.mrb[0].mxu0 %v753
      %v1284 = vpop.f32.mrb[0].mxu0
      %v1285 = vadd.f32 %v349, %v1284
      %v1286 = vpop.f32.mrb[0].mxu0
      %v1287 = vpop.f32.mrb[0].mxu0
      %v1288 = vadd.f32 %v349, %v1287
      %v1289 = vpop.f32.mrb[0].mxu0
      %1290 = vmatprep.mubr.bf16.mxu0 %v758
      %1291 = vmatmul.mubr.bf16.gmra.mrb[0].mxu0 %v757
      %v1292 = vpop.f32.mrb[0].mxu0
      %v1293 = vadd.f32 %v349, %v1292
      %v1294 = vpop.f32.mrb[0].mxu0
      %v1295 = vpop.f32.mrb[0].mxu0
      %v1296 = vadd.f32 %v349, %v1295
      %v1297 = vpop.f32.mrb[0].mxu0
      %1298 = vmatprep.mubr.bf16.mxu0 %v762
      %1299 = vmatmul.mubr.bf16.gmra.mrb[0].mxu0 %v761
      %v1300 = vpop.f32.mrb[0].mxu0
      %v1301 = vadd.f32 %v349, %v1300
      %v1302 = vpop.f32.mrb[0].mxu0
      %v1303 = vpop.f32.mrb[0].mxu0
      %v1304 = vadd.f32 %v349, %v1303
      %v1305 = vpop.f32.mrb[0].mxu0
      %1306 = vmatprep.mubr.bf16.mxu0 %v766
      %1307 = vmatmul.mubr.bf16.gmra.mrb[0].mxu0 %v765
      %v1308 = vpop.f32.mrb[0].mxu0
      %v1309 = vadd.f32 %v349, %v1308
      %v1310 = vpop.f32.mrb[0].mxu0
      %v1311 = vpop.f32.mrb[0].mxu0
      %v1312 = vadd.f32 %v349, %v1311
      %v1313 = vpop.f32.mrb[0].mxu0
      %1314 = vmatprep.mubr.bf16.mxu0 %v770
      %1315 = vmatmul.mubr.bf16.gmra.mrb[0].mxu0 %v769
      %v1316 = vpop.f32.mrb[0].mxu0
      %v1317 = vadd.f32 %v349, %v1316
      %v1318 = vpop.f32.mrb[0].mxu0
      %v1319 = vpop.f32.mrb[0].mxu0
      %v1320 = vadd.f32 %v349, %v1319
      %v1321 = vpop.f32.mrb[0].mxu0
      %1322 = vmatprep.mubr.bf16.mxu0 %v774
      %1323 = vmatmul.mubr.bf16.gmra.mrb[0].mxu0 %v773
      %v1324 = vpop.f32.mrb[0].mxu0
      %v1325 = vadd.f32 %v349, %v1324
      %v1326 = vpop.f32.mrb[0].mxu0
      %v1327 = vpop.f32.mrb[0].mxu0
      %v1328 = vadd.f32 %v349, %v1327
      %v1329 = vpop.f32.mrb[0].mxu0
      %1330 = vmatprep.mubr.bf16.mxu0 %v778
      %1331 = vmatmul.mubr.bf16.gmra.mrb[0].mxu0 %v777
      %v1332 = vpop.f32.mrb[0].mxu0
      %v1333 = vadd.f32 %v349, %v1332
      %v1334 = vpop.f32.mrb[0].mxu0
      %v1335 = vpop.f32.mrb[0].mxu0
      %v1336 = vadd.f32 %v349, %v1335
      %v1337 = vpop.f32.mrb[0].mxu0
      %1338 = vmatprep.mubr.bf16.mxu0 %v782
      %1339 = vmatmul.mubr.bf16.gmra.mrb[0].mxu0 %v781
      %v1340 = vpop.f32.mrb[0].mxu0
      %v1341 = vadd.f32 %v349, %v1340
      %v1342 = vpop.f32.mrb[0].mxu0
      %v1343 = vpop.f32.mrb[0].mxu0
      %v1344 = vadd.f32 %v349, %v1343
      %v1345 = vpop.f32.mrb[0].mxu0
      %1346 = vmatprep.mubr.bf16.mxu0 %v786
      %1347 = vmatmul.mubr.bf16.gmra.mrb[0].mxu0 %v785
      %v1348 = vpop.f32.mrb[0].mxu0
      %v1349 = vadd.f32 %v349, %v1348
      %v1350 = vpop.f32.mrb[0].mxu0
      %v1351 = vpop.f32.mrb[0].mxu0
      %v1352 = vadd.f32 %v349, %v1351
      %v1353 = vpop.f32.mrb[0].mxu0
      %1354 = vmatprep.mubr.bf16.mxu0 %v790
      %1355 = vmatmul.mubr.bf16.gmra.mrb[0].mxu0 %v789
      %v1356 = vpop.f32.mrb[0].mxu0
      %v1357 = vadd.f32 %v349, %v1356
      %v1358 = vpop.f32.mrb[0].mxu0
      %v1359 = vpop.f32.mrb[0].mxu0
      %v1360 = vadd.f32 %v349, %v1359
      %v1361 = vpop.f32.mrb[0].mxu0
      %1362 = vmatprep.mubr.bf16.mxu0 %v794
      %1363 = vmatmul.mubr.bf16.gmra.mrb[0].mxu0 %v793
      %v1364 = vpop.f32.mrb[0].mxu0
      %v1365 = vadd.f32 %v349, %v1364
      %v1366 = vpop.f32.mrb[0].mxu0
      %v1367 = vpop.f32.mrb[0].mxu0
      %v1368 = vadd.f32 %v349, %v1367
      %v1369 = vpop.f32.mrb[0].mxu0
      %1370 = vmatprep.mubr.bf16.mxu0 %v798
      %1371 = vmatmul.mubr.bf16.gmra.mrb[0].mxu0 %v797
      %v1372 = vpop.f32.mrb[0].mxu0
      %v1373 = vadd.f32 %v349, %v1372
      %v1374 = vpop.f32.mrb[0].mxu0
      %v1375 = vpop.f32.mrb[0].mxu0
      %v1376 = vadd.f32 %v349, %v1375
      %v1377 = vpop.f32.mrb[0].mxu0
      %1378 = vmatprep.mubr.bf16.mxu0 %v802
      %1379 = vmatmul.mubr.bf16.gmra.mrb[0].mxu0 %v801
      %v1380 = vpop.f32.mrb[0].mxu0
      %v1381 = vadd.f32 %v349, %v1380
      %v1382 = vpop.f32.mrb[0].mxu0
      %v1383 = vpop.f32.mrb[0].mxu0
      %v1384 = vadd.f32 %v349, %v1383
      %v1385 = vpop.f32.mrb[0].mxu0
      %1386 = vmatprep.mubr.bf16.mxu0 %v806
      %1387 = vmatmul.mubr.bf16.gmra.mrb[0].mxu0 %v805
      %v1388 = vpop.f32.mrb[0].mxu0
      %v1389 = vadd.f32 %v349, %v1388
      %v1390 = vpop.f32.mrb[0].mxu0
      %v1391 = vpop.f32.mrb[0].mxu0
      %v1392 = vadd.f32 %v349, %v1391
      %v1393 = vpop.f32.mrb[0].mxu0
      %1394 = vmatprep.mubr.bf16.mxu0 %v810
      %1395 = vmatmul.mubr.bf16.gmra.mrb[0].mxu0 %v809
      %v1396 = vpop.f32.mrb[0].mxu0
      %v1397 = vadd.f32 %v349, %v1396
      %v1398 = vpop.f32.mrb[0].mxu0
      %v1399 = vpop.f32.mrb[0].mxu0
      %v1400 = vadd.f32 %v349, %v1399
      %v1401 = vpop.f32.mrb[0].mxu0
      %1402 = vmatprep.mubr.bf16.mxu0 %v814
      %1403 = vmatmul.mubr.bf16.gmra.mrb[0].mxu0 %v813
      %v1404 = vpop.f32.mrb[0].mxu0
      %v1405 = vadd.f32 %v349, %v1404
      %v1406 = vpop.f32.mrb[0].mxu0
      %v1407 = vpop.f32.mrb[0].mxu0
      %v1408 = vadd.f32 %v349, %v1407
      %v1409 = vpop.f32.mrb[0].mxu0
      %1410 = vmatprep.mubr.bf16.mxu0 %v818
      %1411 = vmatmul.mubr.bf16.gmra.mrb[0].mxu0 %v817
      %v1412 = vpop.f32.mrb[0].mxu0
      %v1413 = vadd.f32 %v349, %v1412
      %v1414 = vpop.f32.mrb[0].mxu0
      %v1415 = vpop.f32.mrb[0].mxu0
      %v1416 = vadd.f32 %v349, %v1415
      %v1417 = vpop.f32.mrb[0].mxu0
      %1418 = vmatprep.mubr.bf16.mxu0 %v822
      %1419 = vmatmul.mubr.bf16.gmra.mrb[0].mxu0 %v821
      %v1420 = vpop.f32.mrb[0].mxu0
      %v1421 = vadd.f32 %v349, %v1420
      %v1422 = vpop.f32.mrb[0].mxu0
      %v1423 = vpop.f32.mrb[0].mxu0
      %v1424 = vadd.f32 %v349, %v1423
      %v1425 = vpop.f32.mrb[0].mxu0
      %1426 = vmatprep.mubr.bf16.mxu0 %v826
      %1427 = vmatmul.mubr.bf16.gmra.mrb[0].mxu0 %v825
      %v1428 = vpop.f32.mrb[0].mxu0
      %v1429 = vadd.f32 %v349, %v1428
      %v1430 = vpop.f32.mrb[0].mxu0
      %v1431 = vpop.f32.mrb[0].mxu0
      %v1432 = vadd.f32 %v349, %v1431
      %v1433 = vpop.f32.mrb[0].mxu0
      %1434 = vmatprep.mubr.bf16.mxu0 %v830
      %1435 = vmatmul.mubr.bf16.gmra.mrb[0].mxu0 %v829
      %v1436 = vpop.f32.mrb[0].mxu0
      %v1437 = vadd.f32 %v349, %v1436
      %v1438 = vpop.f32.mrb[0].mxu0
      %v1439 = vpop.f32.mrb[0].mxu0
      %v1440 = vadd.f32 %v349, %v1439
      %v1441 = vpop.f32.mrb[0].mxu0
      %1442 = vmatprep.mubr.bf16.mxu0 %v834
      %1443 = vmatmul.mubr.bf16.gmra.mrb[0].mxu0 %v833
      %v1444 = vpop.f32.mrb[0].mxu0
      %v1445 = vadd.f32 %v349, %v1444
      %v1446 = vpop.f32.mrb[0].mxu0
      %v1447 = vpop.f32.mrb[0].mxu0
      %v1448 = vadd.f32 %v349, %v1447
      %v1449 = vpop.f32.mrb[0].mxu0
      %1450 = vmatprep.mubr.bf16.mxu0 %v838
      %1451 = vmatmul.mubr.bf16.gmra.mrb[0].mxu0 %v837
      %v1452 = vpop.f32.mrb[0].mxu0
      %v1453 = vadd.f32 %v349, %v1452
      %v1454 = vpop.f32.mrb[0].mxu0
      %v1455 = vpop.f32.mrb[0].mxu0
      %v1456 = vpop.f32.mrb[0].mxu0
      %1457 = vdwg.mxu0
      %1458 = vmatprep.subr.bf16.mxu0 0
      %1459 = vmatpush1.bf16.msra.mxu0 %v1050
      %1460 = vmatprep.subr.bf16.mxu0 0
      %1461 = vmatpush1.bf16.msra.mxu0 %v1051
      %1462 = vmatprep.subr.bf16.mxu0 0
      %1463 = vmatpush1.bf16.msra.mxu0 %v1052
      %1464 = vmatprep.subr.bf16.mxu0 0
      %1465 = vmatpush1.bf16.msra.mxu0 %v1053
      %1466 = vmatprep.subr.bf16.mxu0 0
      %1467 = vmatpush1.bf16.msra.mxu0 %v1054
      %1468 = vmatprep.subr.bf16.mxu0 0
      %1469 = vmatpush1.bf16.msra.mxu0 %v1055
      %1470 = vmatprep.subr.bf16.mxu0 0
      %1471 = vmatpush1.bf16.msra.mxu0 %v1056
      %1472 = vmatprep.subr.bf16.mxu0 0
      %1473 = vmatpush1.bf16.msra.mxu0 %v1057
      %1474 = vmatprep.subr.bf16.mxu0 0
      %1475 = vmatpush1.bf16.msra.mxu0 %v1058
      %1476 = vmatprep.subr.bf16.mxu0 0
      %1477 = vmatpush1.bf16.msra.mxu0 0
      %1478 = vmatprep.subr.bf16.mxu0 0
      %1479 = vmatpush1.bf16.msra.mxu0 0
      %1480 = vmatprep.subr.bf16.mxu0 0
      %1481 = vmatpush1.bf16.msra.mxu0 0
      %1482 = vmatprep.subr.bf16.mxu0 0
      %1483 = vmatpush1.bf16.msra.mxu0 0
      %1484 = vmatprep.subr.bf16.mxu0 0
      %1485 = vmatpush1.bf16.msra.mxu0 0
      %1486 = vmatprep.subr.bf16.mxu0 0
      %1487 = vmatpush1.bf16.msra.mxu0 0
      %1488 = vmatprep.subr.bf16.mxu0 0
      %1489 = vmatpush1.bf16.msra.mxu0 0
      %1490 = vmatprep.mubr.bf16.mxu0 %v1086
      %1491 = vmatmul.mubr.bf16.gmra.mrb[0].mxu0 %v719
      %v1492 = vpop.f32.mrb[0].mxu0
      %v1493 = vadd.f32 %v1213, %v1492
      %v1494 = vpop.f32.mrb[0].mxu0
      %v1495 = vpop.f32.mrb[0].mxu0
      %v1496 = vadd.f32 %v1216, %v1495
      %v1497 = vpop.f32.mrb[0].mxu0
      %1498 = vmatprep.mubr.bf16.mxu0 %v1089
      %1499 = vmatmul.mubr.bf16.gmra.mrb[0].mxu0 %v723
      %v1500 = vpop.f32.mrb[0].mxu0
      %v1501 = vadd.f32 %v1221, %v1500
      %v1502 = vpop.f32.mrb[0].mxu0
      %v1503 = vpop.f32.mrb[0].mxu0
      %v1504 = vadd.f32 %v1224, %v1503
      %v1505 = vpop.f32.mrb[0].mxu0
      %1506 = vmatprep.mubr.bf16.mxu0 %v1092
      %1507 = vmatmul.mubr.bf16.gmra.mrb[0].mxu0 %v727
      %v1508 = vpop.f32.mrb[0].mxu0
      %v1509 = vadd.f32 %v1229, %v1508
      %v1510 = vpop.f32.mrb[0].mxu0
      %v1511 = vpop.f32.mrb[0].mxu0
      %v1512 = vadd.f32 %v1232, %v1511
      %v1513 = vpop.f32.mrb[0].mxu0
      %1514 = vmatprep.mubr.bf16.mxu0 %v1095
      %1515 = vmatmul.mubr.bf16.gmra.mrb[0].mxu0 %v731
      %v1516 = vpop.f32.mrb[0].mxu0
      %v1517 = vadd.f32 %v1237, %v1516
      %v1518 = vpop.f32.mrb[0].mxu0
      %v1519 = vpop.f32.mrb[0].mxu0
      %v1520 = vadd.f32 %v1240, %v1519
      %v1521 = vpop.f32.mrb[0].mxu0
      %1522 = vmatprep.mubr.bf16.mxu0 %v1098
      %1523 = vmatmul.mubr.bf16.gmra.mrb[0].mxu0 %v735
      %v1524 = vpop.f32.mrb[0].mxu0
      %v1525 = vadd.f32 %v1245, %v1524
      %v1526 = vpop.f32.mrb[0].mxu0
      %v1527 = vpop.f32.mrb[0].mxu0
      %v1528 = vadd.f32 %v1248, %v1527
      %v1529 = vpop.f32.mrb[0].mxu0
      %1530 = vmatprep.mubr.bf16.mxu0 %v1101
      %1531 = vmatmul.mubr.bf16.gmra.mrb[0].mxu0 %v739
      %v1532 = vpop.f32.mrb[0].mxu0
      %v1533 = vadd.f32 %v1253, %v1532
      %v1534 = vpop.f32.mrb[0].mxu0
      %v1535 = vpop.f32.mrb[0].mxu0
      %v1536 = vadd.f32 %v1256, %v1535
      %v1537 = vpop.f32.mrb[0].mxu0
      %1538 = vmatprep.mubr.bf16.mxu0 %v1104
      %1539 = vmatmul.mubr.bf16.gmra.mrb[0].mxu0 %v743
      %v1540 = vpop.f32.mrb[0].mxu0
      %v1541 = vadd.f32 %v1261, %v1540
      %v1542 = vpop.f32.mrb[0].mxu0
      %v1543 = vpop.f32.mrb[0].mxu0
      %v1544 = vadd.f32 %v1264, %v1543
      %v1545 = vpop.f32.mrb[0].mxu0
      %1546 = vmatprep.mubr.bf16.mxu0 %v1107
      %1547 = vmatmul.mubr.bf16.gmra.mrb[0].mxu0 %v747
      %v1548 = vpop.f32.mrb[0].mxu0
      %v1549 = vadd.f32 %v1269, %v1548
      %v1550 = vpop.f32.mrb[0].mxu0
      %v1551 = vpop.f32.mrb[0].mxu0
      %v1552 = vadd.f32 %v1272, %v1551
      %v1553 = vpop.f32.mrb[0].mxu0
      %1554 = vmatprep.mubr.bf16.mxu0 %v1110
      %1555 = vmatmul.mubr.bf16.gmra.mrb[0].mxu0 %v751
      %v1556 = vpop.f32.mrb[0].mxu0
      %v1557 = vadd.f32 %v1277, %v1556
      %v1558 = vpop.f32.mrb[0].mxu0
      %v1559 = vpop.f32.mrb[0].mxu0
      %v1560 = vadd.f32 %v1280, %v1559
      %v1561 = vpop.f32.mrb[0].mxu0
      %1562 = vmatprep.mubr.bf16.mxu0 %v1113
      %1563 = vmatmul.mubr.bf16.gmra.mrb[0].mxu0 %v755
      %v1564 = vpop.f32.mrb[0].mxu0
      %v1565 = vadd.f32 %v1285, %v1564
      %v1566 = vpop.f32.mrb[0].mxu0
      %v1567 = vpop.f32.mrb[0].mxu0
      %v1568 = vadd.f32 %v1288, %v1567
      %v1569 = vpop.f32.mrb[0].mxu0
      %1570 = vmatprep.mubr.bf16.mxu0 %v1116
      %1571 = vmatmul.mubr.bf16.gmra.mrb[0].mxu0 %v759
      %v1572 = vpop.f32.mrb[0].mxu0
      %v1573 = vadd.f32 %v1293, %v1572
      %v1574 = vpop.f32.mrb[0].mxu0
      %v1575 = vpop.f32.mrb[0].mxu0
      %v1576 = vadd.f32 %v1296, %v1575
      %v1577 = vpop.f32.mrb[0].mxu0
      %1578 = vmatprep.mubr.bf16.mxu0 %v1119
      %1579 = vmatmul.mubr.bf16.gmra.mrb[0].mxu0 %v763
      %v1580 = vpop.f32.mrb[0].mxu0
      %v1581 = vadd.f32 %v1301, %v1580
      %v1582 = vpop.f32.mrb[0].mxu0
      %v1583 = vpop.f32.mrb[0].mxu0
      %v1584 = vadd.f32 %v1304, %v1583
      %v1585 = vpop.f32.mrb[0].mxu0
      %1586 = vmatprep.mubr.bf16.mxu0 %v1122
      %1587 = vmatmul.mubr.bf16.gmra.mrb[0].mxu0 %v767
      %v1588 = vpop.f32.mrb[0].mxu0
      %v1589 = vadd.f32 %v1309, %v1588
      %v1590 = vpop.f32.mrb[0].mxu0
      %v1591 = vpop.f32.mrb[0].mxu0
      %v1592 = vadd.f32 %v1312, %v1591
      %v1593 = vpop.f32.mrb[0].mxu0
      %1594 = vmatprep.mubr.bf16.mxu0 %v1125
      %1595 = vmatmul.mubr.bf16.gmra.mrb[0].mxu0 %v771
      %v1596 = vpop.f32.mrb[0].mxu0
      %v1597 = vadd.f32 %v1317, %v1596
      %v1598 = vpop.f32.mrb[0].mxu0
      %v1599 = vpop.f32.mrb[0].mxu0
      %v1600 = vadd.f32 %v1320, %v1599
      %v1601 = vpop.f32.mrb[0].mxu0
      %1602 = vmatprep.mubr.bf16.mxu0 %v1128
      %1603 = vmatmul.mubr.bf16.gmra.mrb[0].mxu0 %v775
      %v1604 = vpop.f32.mrb[0].mxu0
      %v1605 = vadd.f32 %v1325, %v1604
      %v1606 = vpop.f32.mrb[0].mxu0
      %v1607 = vpop.f32.mrb[0].mxu0
      %v1608 = vadd.f32 %v1328, %v1607
      %v1609 = vpop.f32.mrb[0].mxu0
      %1610 = vmatprep.mubr.bf16.mxu0 %v1131
      %1611 = vmatmul.mubr.bf16.gmra.mrb[0].mxu0 %v779
      %v1612 = vpop.f32.mrb[0].mxu0
      %v1613 = vadd.f32 %v1333, %v1612
      %v1614 = vpop.f32.mrb[0].mxu0
      %v1615 = vpop.f32.mrb[0].mxu0
      %v1616 = vadd.f32 %v1336, %v1615
      %v1617 = vpop.f32.mrb[0].mxu0
      %1618 = vmatprep.mubr.bf16.mxu0 %v1134
      %1619 = vmatmul.mubr.bf16.gmra.mrb[0].mxu0 %v783
      %v1620 = vpop.f32.mrb[0].mxu0
      %v1621 = vadd.f32 %v1341, %v1620
      %v1622 = vpop.f32.mrb[0].mxu0
      %v1623 = vpop.f32.mrb[0].mxu0
      %v1624 = vadd.f32 %v1344, %v1623
      %v1625 = vpop.f32.mrb[0].mxu0
      %1626 = vmatprep.mubr.bf16.mxu0 %v1137
      %1627 = vmatmul.mubr.bf16.gmra.mrb[0].mxu0 %v787
      %v1628 = vpop.f32.mrb[0].mxu0
      %v1629 = vadd.f32 %v1349, %v1628
      %v1630 = vpop.f32.mrb[0].mxu0
      %v1631 = vpop.f32.mrb[0].mxu0
      %v1632 = vadd.f32 %v1352, %v1631
      %v1633 = vpop.f32.mrb[0].mxu0
      %1634 = vmatprep.mubr.bf16.mxu0 %v1140
      %1635 = vmatmul.mubr.bf16.gmra.mrb[0].mxu0 %v791
      %v1636 = vpop.f32.mrb[0].mxu0
      %v1637 = vadd.f32 %v1357, %v1636
      %v1638 = vpop.f32.mrb[0].mxu0
      %v1639 = vpop.f32.mrb[0].mxu0
      %v1640 = vadd.f32 %v1360, %v1639
      %v1641 = vpop.f32.mrb[0].mxu0
      %1642 = vmatprep.mubr.bf16.mxu0 %v1143
      %1643 = vmatmul.mubr.bf16.gmra.mrb[0].mxu0 %v795
      %v1644 = vpop.f32.mrb[0].mxu0
      %v1645 = vadd.f32 %v1365, %v1644
      %v1646 = vpop.f32.mrb[0].mxu0
      %v1647 = vpop.f32.mrb[0].mxu0
      %v1648 = vadd.f32 %v1368, %v1647
      %v1649 = vpop.f32.mrb[0].mxu0
      %1650 = vmatprep.mubr.bf16.mxu0 %v1146
      %1651 = vmatmul.mubr.bf16.gmra.mrb[0].mxu0 %v799
      %v1652 = vpop.f32.mrb[0].mxu0
      %v1653 = vadd.f32 %v1373, %v1652
      %v1654 = vpop.f32.mrb[0].mxu0
      %v1655 = vpop.f32.mrb[0].mxu0
      %v1656 = vadd.f32 %v1376, %v1655
      %v1657 = vpop.f32.mrb[0].mxu0
      %1658 = vmatprep.mubr.bf16.mxu0 %v1149
      %1659 = vmatmul.mubr.bf16.gmra.mrb[0].mxu0 %v803
      %v1660 = vpop.f32.mrb[0].mxu0
      %v1661 = vadd.f32 %v1381, %v1660
      %v1662 = vpop.f32.mrb[0].mxu0
      %v1663 = vpop.f32.mrb[0].mxu0
      %v1664 = vadd.f32 %v1384, %v1663
      %v1665 = vpop.f32.mrb[0].mxu0
      %1666 = vmatprep.mubr.bf16.mxu0 %v1152
      %1667 = vmatmul.mubr.bf16.gmra.mrb[0].mxu0 %v807
      %v1668 = vpop.f32.mrb[0].mxu0
      %v1669 = vadd.f32 %v1389, %v1668
      %v1670 = vpop.f32.mrb[0].mxu0
      %v1671 = vpop.f32.mrb[0].mxu0
      %v1672 = vadd.f32 %v1392, %v1671
      %v1673 = vpop.f32.mrb[0].mxu0
      %1674 = vmatprep.mubr.bf16.mxu0 %v1155
      %1675 = vmatmul.mubr.bf16.gmra.mrb[0].mxu0 %v811
      %v1676 = vpop.f32.mrb[0].mxu0
      %v1677 = vadd.f32 %v1397, %v1676
      %v1678 = vpop.f32.mrb[0].mxu0
      %v1679 = vpop.f32.mrb[0].mxu0
      %v1680 = vadd.f32 %v1400, %v1679
      %v1681 = vpop.f32.mrb[0].mxu0
      %1682 = vmatprep.mubr.bf16.mxu0 %v1158
      %1683 = vmatmul.mubr.bf16.gmra.mrb[0].mxu0 %v815
      %v1684 = vpop.f32.mrb[0].mxu0
      %v1685 = vadd.f32 %v1405, %v1684
      %v1686 = vpop.f32.mrb[0].mxu0
      %v1687 = vpop.f32.mrb[0].mxu0
      %v1688 = vadd.f32 %v1408, %v1687
      %v1689 = vpop.f32.mrb[0].mxu0
      %1690 = vmatprep.mubr.bf16.mxu0 %v1161
      %1691 = vmatmul.mubr.bf16.gmra.mrb[0].mxu0 %v819
      %v1692 = vpop.f32.mrb[0].mxu0
      %v1693 = vadd.f32 %v1413, %v1692
      %v1694 = vpop.f32.mrb[0].mxu0
      %v1695 = vpop.f32.mrb[0].mxu0
      %v1696 = vadd.f32 %v1416, %v1695
      %v1697 = vpop.f32.mrb[0].mxu0
      %1698 = vmatprep.mubr.bf16.mxu0 %v1164
      %1699 = vmatmul.mubr.bf16.gmra.mrb[0].mxu0 %v823
      %v1700 = vpop.f32.mrb[0].mxu0
      %v1701 = vadd.f32 %v1421, %v1700
      %v1702 = vpop.f32.mrb[0].mxu0
      %v1703 = vpop.f32.mrb[0].mxu0
      %v1704 = vadd.f32 %v1424, %v1703
      %v1705 = vpop.f32.mrb[0].mxu0
      %1706 = vmatprep.mubr.bf16.mxu0 %v1167
      %1707 = vmatmul.mubr.bf16.gmra.mrb[0].mxu0 %v827
      %v1708 = vpop.f32.mrb[0].mxu0
      %v1709 = vadd.f32 %v1429, %v1708
      %v1710 = vpop.f32.mrb[0].mxu0
      %v1711 = vpop.f32.mrb[0].mxu0
      %v1712 = vadd.f32 %v1432, %v1711
      %v1713 = vpop.f32.mrb[0].mxu0
      %1714 = vmatprep.mubr.bf16.mxu0 %v1170
      %1715 = vmatmul.mubr.bf16.gmra.mrb[0].mxu0 %v831
      %v1716 = vpop.f32.mrb[0].mxu0
      %v1717 = vadd.f32 %v1437, %v1716
      %v1718 = vpop.f32.mrb[0].mxu0
      %v1719 = vpop.f32.mrb[0].mxu0
      %v1720 = vadd.f32 %v1440, %v1719
      %v1721 = vpop.f32.mrb[0].mxu0
      %1722 = vmatprep.mubr.bf16.mxu0 %v1173
      %1723 = vmatmul.mubr.bf16.gmra.mrb[0].mxu0 %v835
      %v1724 = vpop.f32.mrb[0].mxu0
      %v1725 = vadd.f32 %v1445, %v1724
      %v1726 = vpop.f32.mrb[0].mxu0
      %v1727 = vpop.f32.mrb[0].mxu0
      %v1728 = vadd.f32 %v1448, %v1727
      %v1729 = vpop.f32.mrb[0].mxu0
      %1730 = vmatprep.mubr.bf16.mxu0 %v1176
      %1731 = vmatmul.mubr.bf16.gmra.mrb[0].mxu0 %v839
      %v1732 = vpop.f32.mrb[0].mxu0
      %v1733 = vadd.f32 %v1453, %v1732
      %v1734 = vpop.f32.mrb[0].mxu0
      %v1735 = vpop.f32.mrb[0].mxu0
      %v1736 = vpop.f32.mrb[0].mxu0
      %1737 = vdwg.mxu0
      %v1738 = vmax.f32 %v1493, 0.0
      %v1739 = vmax.f32 %v1496, 0.0
      %v1740 = vmax.f32 %v1501, 0.0
      %v1741 = vmax.f32 %v1504, 0.0
      %v1742 = vmax.f32 %v1509, 0.0
      %v1743 = vmax.f32 %v1512, 0.0
      %v1744 = vmax.f32 %v1517, 0.0
      %v1745 = vmax.f32 %v1520, 0.0
      %v1746 = vmax.f32 %v1525, 0.0
      %v1747 = vmax.f32 %v1528, 0.0
      %v1748 = vmax.f32 %v1533, 0.0
      %v1749 = vmax.f32 %v1536, 0.0
      %v1750 = vmax.f32 %v1541, 0.0
      %v1751 = vmax.f32 %v1544, 0.0
      %v1752 = vmax.f32 %v1549, 0.0
      %v1753 = vmax.f32 %v1552, 0.0
      %v1754 = vmax.f32 %v1557, 0.0
      %v1755 = vmax.f32 %v1560, 0.0
      %v1756 = vmax.f32 %v1565, 0.0
      %v1757 = vmax.f32 %v1568, 0.0
      %v1758 = vmax.f32 %v1573, 0.0
      %v1759 = vmax.f32 %v1576, 0.0
      %v1760 = vmax.f32 %v1581, 0.0
      %v1761 = vmax.f32 %v1584, 0.0
      %v1762 = vmax.f32 %v1589, 0.0
      %v1763 = vmax.f32 %v1592, 0.0
      %v1764 = vmax.f32 %v1597, 0.0
      %v1765 = vmax.f32 %v1600, 0.0
      %v1766 = vmax.f32 %v1605, 0.0
      %v1767 = vmax.f32 %v1608, 0.0
      %v1768 = vmax.f32 %v1613, 0.0
      %v1769 = vmax.f32 %v1616, 0.0
      %v1770 = vmax.f32 %v1621, 0.0
      %v1771 = vmax.f32 %v1624, 0.0
      %v1772 = vmax.f32 %v1629, 0.0
      %v1773 = vmax.f32 %v1632, 0.0
      %v1774 = vmax.f32 %v1637, 0.0
      %v1775 = vmax.f32 %v1640, 0.0
      %v1776 = vmax.f32 %v1645, 0.0
      %v1777 = vmax.f32 %v1648, 0.0
      %v1778 = vmax.f32 %v1653, 0.0
      %v1779 = vmax.f32 %v1656, 0.0
      %v1780 = vmax.f32 %v1661, 0.0
      %v1781 = vmax.f32 %v1664, 0.0
      %v1782 = vmax.f32 %v1669, 0.0
      %v1783 = vmax.f32 %v1672, 0.0
      %v1784 = vmax.f32 %v1677, 0.0
      %v1785 = vmax.f32 %v1680, 0.0
      %v1786 = vmax.f32 %v1685, 0.0
      %v1787 = vmax.f32 %v1688, 0.0
      %v1788 = vmax.f32 %v1693, 0.0
      %v1789 = vmax.f32 %v1696, 0.0
      %v1790 = vmax.f32 %v1701, 0.0
      %v1791 = vmax.f32 %v1704, 0.0
      %v1792 = vmax.f32 %v1709, 0.0
      %v1793 = vmax.f32 %v1712, 0.0
      %v1794 = vmax.f32 %v1717, 0.0
      %v1795 = vmax.f32 %v1720, 0.0
      %v1796 = vmax.f32 %v1725, 0.0
      %v1797 = vmax.f32 %v1728, 0.0
      %v1798 = vmax.f32 %v1733, 0.0
      %v1799 = vpack.c.bf16 %v1739, %v1738
      %v1800 = vpack.c.bf16 %v1741, %v1740
      %v1801 = vpack.c.bf16 %v1743, %v1742
      %v1802 = vpack.c.bf16 %v1745, %v1744
      %v1803 = vpack.c.bf16 %v1747, %v1746
      %v1804 = vpack.c.bf16 %v1749, %v1748
      %v1805 = vpack.c.bf16 %v1751, %v1750
      %v1806 = vpack.c.bf16 %v1753, %v1752
      %v1807 = vpack.c.bf16 %v1755, %v1754
      %v1808 = vpack.c.bf16 %v1757, %v1756
      %v1809 = vpack.c.bf16 %v1759, %v1758
      %v1810 = vpack.c.bf16 %v1761, %v1760
      %v1811 = vpack.c.bf16 %v1763, %v1762
      %v1812 = vpack.c.bf16 %v1765, %v1764
      %v1813 = vpack.c.bf16 %v1767, %v1766
      %v1814 = vpack.c.bf16 %v1769, %v1768
      %v1815 = vpack.c.bf16 %v1771, %v1770
      %v1816 = vpack.c.bf16 %v1773, %v1772
      %v1817 = vpack.c.bf16 %v1775, %v1774
      %v1818 = vpack.c.bf16 %v1777, %v1776
      %v1819 = vpack.c.bf16 %v1779, %v1778
      %v1820 = vpack.c.bf16 %v1781, %v1780
      %v1821 = vpack.c.bf16 %v1783, %v1782
      %v1822 = vpack.c.bf16 %v1785, %v1784
      %v1823 = vpack.c.bf16 %v1787, %v1786
      %v1824 = vpack.c.bf16 %v1789, %v1788
      %v1825 = vpack.c.bf16 %v1791, %v1790
      %v1826 = vpack.c.bf16 %v1793, %v1792
      %v1827 = vpack.c.bf16 %v1795, %v1794
      %v1828 = vpack.c.bf16 %v1797, %v1796
      %v1829 = vpack.c.bf16 %v1798, %v1798
      %v1861 = vunpack.c.l.b16 %v1799
      %v1862 = vunpack.c.h.b16 %v1799
      %v1863 = vunpack.c.l.b16 %v1800
      %v1864 = vunpack.c.h.b16 %v1800
      %v1865 = vunpack.c.l.b16 %v1801
      %v1866 = vunpack.c.h.b16 %v1801
      %v1867 = vunpack.c.l.b16 %v1802
      %v1868 = vunpack.c.h.b16 %v1802
      %v1869 = vunpack.c.l.b16 %v1803
      %v1870 = vunpack.c.h.b16 %v1803
      %v1871 = vunpack.c.l.b16 %v1804
      %v1872 = vunpack.c.h.b16 %v1804
      %v1873 = vunpack.c.l.b16 %v1805
      %v1874 = vunpack.c.h.b16 %v1805
      %v1875 = vunpack.c.l.b16 %v1806
      %v1876 = vunpack.c.h.b16 %v1806
      %v1877 = vunpack.c.l.b16 %v1807
      %v1878 = vunpack.c.h.b16 %v1807
      %v1879 = vunpack.c.l.b16 %v1808
      %v1880 = vunpack.c.h.b16 %v1808
      %v1881 = vunpack.c.l.b16 %v1809
      %v1882 = vunpack.c.h.b16 %v1809
      %v1883 = vunpack.c.l.b16 %v1810
      %v1884 = vunpack.c.h.b16 %v1810
      %v1885 = vunpack.c.l.b16 %v1811
      %v1886 = vunpack.c.h.b16 %v1811
      %v1887 = vunpack.c.l.b16 %v1812
      %v1888 = vunpack.c.h.b16 %v1812
      %v1889 = vunpack.c.l.b16 %v1813
      %v1890 = vunpack.c.h.b16 %v1813
      %v1891 = vunpack.c.l.b16 %v1814
      %v1892 = vunpack.c.h.b16 %v1814
      %v1893 = vunpack.c.l.b16 %v1815
      %v1894 = vunpack.c.h.b16 %v1815
      %v1895 = vunpack.c.l.b16 %v1816
      %v1896 = vunpack.c.h.b16 %v1816
      %v1897 = vunpack.c.l.b16 %v1817
      %v1898 = vunpack.c.h.b16 %v1817
      %v1899 = vunpack.c.l.b16 %v1818
      %v1900 = vunpack.c.h.b16 %v1818
      %v1901 = vunpack.c.l.b16 %v1819
      %v1902 = vunpack.c.h.b16 %v1819
      %v1903 = vunpack.c.l.b16 %v1820
      %v1904 = vunpack.c.h.b16 %v1820
      %v1905 = vunpack.c.l.b16 %v1821
      %v1906 = vunpack.c.h.b16 %v1821
      %v1907 = vunpack.c.l.b16 %v1822
      %v1908 = vunpack.c.h.b16 %v1822
      %v1909 = vunpack.c.l.b16 %v1823
      %v1910 = vunpack.c.h.b16 %v1823
      %v1911 = vunpack.c.l.b16 %v1824
      %v1912 = vunpack.c.h.b16 %v1824
      %v1913 = vunpack.c.l.b16 %v1825
      %v1914 = vunpack.c.h.b16 %v1825
      %v1915 = vunpack.c.l.b16 %v1826
      %v1916 = vunpack.c.h.b16 %v1826
      %v1917 = vunpack.c.l.b16 %v1827
      %v1918 = vunpack.c.h.b16 %v1827
      %v1919 = vunpack.c.l.b16 %v1828
      %v1920 = vunpack.c.h.b16 %v1828
      %v1921 = vunpack.c.l.b16 %v1829
      %v1922 = vpack.c.b16 %v1861, %v1861
      %v1923 = vpack.c.b16 %v1862, %v1862
      %v1924 = vpack.c.b16 %v1863, %v1863
      %v1925 = vpack.c.b16 %v1864, %v1864
      %v1926 = vpack.c.b16 %v1865, %v1865
      %v1927 = vpack.c.b16 %v1866, %v1866
      %v1928 = vpack.c.b16 %v1867, %v1867
      %v1929 = vpack.c.b16 %v1868, %v1868
      %v1930 = vpack.c.b16 %v1869, %v1869
      %v1931 = vpack.c.b16 %v1870, %v1870
      %v1932 = vpack.c.b16 %v1871, %v1871
      %v1933 = vpack.c.b16 %v1872, %v1872
      %v1934 = vpack.c.b16 %v1873, %v1873
      %v1935 = vpack.c.b16 %v1874, %v1874
      %v1936 = vpack.c.b16 %v1875, %v1875
      %v1937 = vpack.c.b16 %v1876, %v1876
      %v1938 = vpack.c.b16 %v1877, %v1877
      %v1939 = vpack.c.b16 %v1878, %v1878
      %v1940 = vpack.c.b16 %v1879, %v1879
      %v1941 = vpack.c.b16 %v1880, %v1880
      %v1942 = vpack.c.b16 %v1881, %v1881
      %v1943 = vpack.c.b16 %v1882, %v1882
      %v1944 = vpack.c.b16 %v1883, %v1883
      %v1945 = vpack.c.b16 %v1884, %v1884
      %v1946 = vpack.c.b16 %v1885, %v1885
      %v1947 = vpack.c.b16 %v1886, %v1886
      %v1948 = vpack.c.b16 %v1887, %v1887
      %v1949 = vpack.c.b16 %v1888, %v1888
      %v1950 = vpack.c.b16 %v1889, %v1889
      %v1951 = vpack.c.b16 %v1890, %v1890
      %v1952 = vpack.c.b16 %v1891, %v1891
      %v1953 = vpack.c.b16 %v1892, %v1892
      %v1954 = vpack.c.b16 %v1893, %v1893
      %v1955 = vpack.c.b16 %v1894, %v1894
      %v1956 = vpack.c.b16 %v1895, %v1895
      %v1957 = vpack.c.b16 %v1896, %v1896
      %v1958 = vpack.c.b16 %v1897, %v1897
      %v1959 = vpack.c.b16 %v1898, %v1898
      %v1960 = vpack.c.b16 %v1899, %v1899
      %v1961 = vpack.c.b16 %v1900, %v1900
      %v1962 = vpack.c.b16 %v1901, %v1901
      %v1963 = vpack.c.b16 %v1902, %v1902
      %v1964 = vpack.c.b16 %v1903, %v1903
      %v1965 = vpack.c.b16 %v1904, %v1904
      %v1966 = vpack.c.b16 %v1905, %v1905
      %v1967 = vpack.c.b16 %v1906, %v1906
      %v1968 = vpack.c.b16 %v1907, %v1907
      %v1969 = vpack.c.b16 %v1908, %v1908
      %v1970 = vpack.c.b16 %v1909, %v1909
      %v1971 = vpack.c.b16 %v1910, %v1910
      %v1972 = vpack.c.b16 %v1911, %v1911
      %v1973 = vpack.c.b16 %v1912, %v1912
      %v1974 = vpack.c.b16 %v1913, %v1913
      %v1975 = vpack.c.b16 %v1914, %v1914
      %v1976 = vpack.c.b16 %v1915, %v1915
      %v1977 = vpack.c.b16 %v1916, %v1916
      %v1978 = vpack.c.b16 %v1917, %v1917
      %v1979 = vpack.c.b16 %v1918, %v1918
      %v1980 = vpack.c.b16 %v1919, %v1919
      %v1981 = vpack.c.b16 %v1920, %v1920
      %v1982 = vpack.c.b16 %v1921, %v1921
      %vm2044 = vcmask 257024
      %2045 = vst.msk [vmem:[%s170] sm:$0xf] %vm2044, %v1922
      %2046 = vst.msk [vmem:[%s170 + $0x4] sm:$0xf] %vm2044, %v1923
      %2047 = vst.msk [vmem:[%s170 + $0x8] sm:$0xf] %vm2044, %v1924
      %2048 = vst.msk [vmem:[%s170 + $0xc] sm:$0xf] %vm2044, %v1925
      %2049 = vst.msk [vmem:[%s170 + $0x10] sm:$0xf] %vm2044, %v1926
      %2050 = vst.msk [vmem:[%s170 + $0x14] sm:$0xf] %vm2044, %v1927
      %2051 = vst.msk [vmem:[%s170 + $0x18] sm:$0xf] %vm2044, %v1928
      %2052 = vst.msk [vmem:[%s170 + $0x1c] sm:$0xf] %vm2044, %v1929
      %2053 = vst.msk [vmem:[%s170 + $0x20] sm:$0xf] %vm2044, %v1930
      %2054 = vst.msk [vmem:[%s170 + $0x24] sm:$0xf] %vm2044, %v1931
      %2055 = vst.msk [vmem:[%s170 + $0x28] sm:$0xf] %vm2044, %v1932
      %2056 = vst.msk [vmem:[%s170 + $0x2c] sm:$0xf] %vm2044, %v1933
      %2057 = vst.msk [vmem:[%s170 + $0x30] sm:$0xf] %vm2044, %v1934
      %2058 = vst.msk [vmem:[%s170 + $0x34] sm:$0xf] %vm2044, %v1935
      %2059 = vst.msk [vmem:[%s170 + $0x38] sm:$0xf] %vm2044, %v1936
      %2060 = vst.msk [vmem:[%s170 + $0x3c] sm:$0xf] %vm2044, %v1937
      %2061 = vst.msk [vmem:[%s170 + $0x40] sm:$0xf] %vm2044, %v1938
      %2062 = vst.msk [vmem:[%s170 + $0x44] sm:$0xf] %vm2044, %v1939
      %2063 = vst.msk [vmem:[%s170 + $0x48] sm:$0xf] %vm2044, %v1940
      %2064 = vst.msk [vmem:[%s170 + $0x4c] sm:$0xf] %vm2044, %v1941
      %2065 = vst.msk [vmem:[%s170 + $0x50] sm:$0xf] %vm2044, %v1942
      %2066 = vst.msk [vmem:[%s170 + $0x54] sm:$0xf] %vm2044, %v1943
      %2067 = vst.msk [vmem:[%s170 + $0x58] sm:$0xf] %vm2044, %v1944
      %2068 = vst.msk [vmem:[%s170 + $0x5c] sm:$0xf] %vm2044, %v1945
      %2069 = vst.msk [vmem:[%s170 + $0x60] sm:$0xf] %vm2044, %v1946
      %2070 = vst.msk [vmem:[%s170 + $0x64] sm:$0xf] %vm2044, %v1947
      %2071 = vst.msk [vmem:[%s170 + $0x68] sm:$0xf] %vm2044, %v1948
      %2072 = vst.msk [vmem:[%s170 + $0x6c] sm:$0xf] %vm2044, %v1949
      %2073 = vst.msk [vmem:[%s170 + $0x70] sm:$0xf] %vm2044, %v1950
      %2074 = vst.msk [vmem:[%s170 + $0x74] sm:$0xf] %vm2044, %v1951
      %2075 = vst.msk [vmem:[%s170 + $0x78] sm:$0xf] %vm2044, %v1952
      %2076 = vst.msk [vmem:[%s170 + $0x7c] sm:$0xf] %vm2044, %v1953
      %2077 = vst.msk [vmem:[%s170 + $0x80] sm:$0xf] %vm2044, %v1954
      %2078 = vst.msk [vmem:[%s170 + $0x84] sm:$0xf] %vm2044, %v1955
      %2079 = vst.msk [vmem:[%s170 + $0x88] sm:$0xf] %vm2044, %v1956
      %2080 = vst.msk [vmem:[%s170 + $0x8c] sm:$0xf] %vm2044, %v1957
      %2081 = vst.msk [vmem:[%s170 + $0x90] sm:$0xf] %vm2044, %v1958
      %2082 = vst.msk [vmem:[%s170 + $0x94] sm:$0xf] %vm2044, %v1959
      %2083 = vst.msk [vmem:[%s170 + $0x98] sm:$0xf] %vm2044, %v1960
      %2084 = vst.msk [vmem:[%s170 + $0x9c] sm:$0xf] %vm2044, %v1961
      %2085 = vst.msk [vmem:[%s170 + $0xa0] sm:$0xf] %vm2044, %v1962
      %2086 = vst.msk [vmem:[%s170 + $0xa4] sm:$0xf] %vm2044, %v1963
      %2087 = vst.msk [vmem:[%s170 + $0xa8] sm:$0xf] %vm2044, %v1964
      %2088 = vst.msk [vmem:[%s170 + $0xac] sm:$0xf] %vm2044, %v1965
      %2089 = vst.msk [vmem:[%s170 + $0xb0] sm:$0xf] %vm2044, %v1966
      %2090 = vst.msk [vmem:[%s170 + $0xb4] sm:$0xf] %vm2044, %v1967
      %2091 = vst.msk [vmem:[%s170 + $0xb8] sm:$0xf] %vm2044, %v1968
      %2092 = vst.msk [vmem:[%s170 + $0xbc] sm:$0xf] %vm2044, %v1969
      %2093 = vst.msk [vmem:[%s170 + $0xc0] sm:$0xf] %vm2044, %v1970
      %2094 = vst.msk [vmem:[%s170 + $0xc4] sm:$0xf] %vm2044, %v1971
      %2095 = vst.msk [vmem:[%s170 + $0xc8] sm:$0xf] %vm2044, %v1972
      %2096 = vst.msk [vmem:[%s170 + $0xcc] sm:$0xf] %vm2044, %v1973
      %2097 = vst.msk [vmem:[%s170 + $0xd0] sm:$0xf] %vm2044, %v1974
      %2098 = vst.msk [vmem:[%s170 + $0xd4] sm:$0xf] %vm2044, %v1975
      %2099 = vst.msk [vmem:[%s170 + $0xd8] sm:$0xf] %vm2044, %v1976
      %2100 = vst.msk [vmem:[%s170 + $0xdc] sm:$0xf] %vm2044, %v1977
      %2101 = vst.msk [vmem:[%s170 + $0xe0] sm:$0xf] %vm2044, %v1978
      %2102 = vst.msk [vmem:[%s170 + $0xe4] sm:$0xf] %vm2044, %v1979
      %2103 = vst.msk [vmem:[%s170 + $0xe8] sm:$0xf] %vm2044, %v1980
      %2104 = vst.msk [vmem:[%s170 + $0xec] sm:$0xf] %vm2044, %v1981
      %vm2105 = vcmask 254976
      %2106 = vst.msk [vmem:[%s170 + $0xf0] sm:$0x3] %vm2105, %v1982
      %p2107 = scmp.lt.s32.totalorder %s14, 1
      %s2108 = scalar_select %p2107, %s14, 1
      %s2109 = smul.addr %s2108, 61
      %s2110 = smul.addr %s2109, 4
      %s2111 = scalar_lea.vmem %s3, %s2110
      // Predicated region
      $region33: #{encoder_s_forward.7} parent=31 // pred_check
        %p2112 = pneg %p100
      $region34: #{encoder_s_forward.7} parent=31 // pred_check_branch
        %2114 = sbr.rel (%p2112) target = $region36
      $region35: #{encoder_s_forward.7} parent=31 // pred_region
        _
      $region36: #{encoder_s_forward.7} parent=31 // pred_fallthru
        _
    $region32: #{encoder_s_forward.7} parent=5 // pred_fallthru
      _
    %p2115 = scmp.le.s32.totalorder 2, %s9
    // Predicated region
    $region37: #{encoder_s_forward.7} parent=5 // pred_check
      %p2116 = pneg %p2115
    $region38: #{encoder_s_forward.7} parent=5 // pred_check_branch
      %2118 = sbr.rel (%p2116) target = $region40
    $region39: #{encoder_s_forward.7} parent=5 // pred_region
      %s2119 = ssub.s32 %s9, 2
      // Predicated region
      $region41: #{encoder_s_forward.7} parent=39 // pred_check
        %p2120 = pneg %p106
      $region42: #{encoder_s_forward.7} parent=39 // pred_check_branch
        %2122 = sbr.rel (%p2120) target = $region44
      $region43: #{encoder_s_forward.7} parent=39 // pred_region
        %p2123 = scmp.lt.s32.totalorder %s15, 1
        %s2124 = scalar_select %p2123, %s15, 1
        %s2125 = smul.addr %s2124, 61
        %s2126 = smul.addr %s2125, 4
        %s2127 = scalar_lea.vmem %s3, %s2126
      $region44: #{encoder_s_forward.7} parent=39 // pred_fallthru
        _
    $region40: #{encoder_s_forward.7} parent=5 // pred_fallthru
      _
  $region6: #{encoder_s_forward.7} parent=0 // loop_footer
    %s13 = sadd.s32 1, %s9
  $region7: #{encoder_s_forward.7} parent=0 // loop_footer_branch
    %8 = sbr.rel target = $region3
  $region8: #{encoder_s_forward.7} parent=0 // loop_exit
    _

// kernel: encoder_s_forward.8
$region0: #{encoder_s_forward.8}
  #allocation0 [shape = 'u32[]', space=smem, size = 0x4, offset = 0x4, fixed_abs, tag = 'smem constant byte address 0x4 - core index']
  #allocation1 [shape = 'u32[144,128]{1,0:T(1,128)}', space=vmem, size = 0x12000, scoped, tag = 'internal scratch']
  %s0 = inlined_call_operand.vmem [shape: bf16[2,49,800], index: 0, kind: input, shape index: {}]
  %s1 = inlined_call_operand.vmem [shape: bf16[800,32], index: 1, kind: input, shape index: {}]
  %s2 = inlined_call_operand.vmem [shape: f32[1,32], index: 2, kind: input, shape index: {}]
  %s3 = inlined_call_operand.vmem [shape: bf16[2,49,32], index: 3, kind: output, shape index: {}]
  %s4 = sld [smem:[#allocation0]]
  $region45: #{encoder_s_forward.8} parent=0
    _
  %s6 = ssub.s32 1, %s4
  %s7 = scalar_select 0, %s6, %s4
  loop: start=0, step=1, limit=4
  $region2: #{encoder_s_forward.8} parent=0 // loop_pre_header
    _
  $region3: #{encoder_s_forward.8} parent=0 // loop_header
    %s9 = sphi 0, %s13
    %p10 = scmp.ge.s32.totalorder %s9, 4
    %s19 = sphi 0, %s21
    %s22 = sphi 0, %s19
    %s23 = sphi 0, %s22
    %s39 = sphi 0, %s23
    %s43 = sphi 0, %s43
    %s45 = sphi 0, %s43
    %s46 = sphi 0, %s45
    %s60 = sphi 0, %s46
    %s64 = sphi 0, %s64
    %s66 = sphi 0, %s64
    %s67 = sphi 0, %s66
    %s81 = sphi 0, %s67
    %s87 = sphi 0, %s89
    %s90 = sphi 0, %s87
    %s91 = sphi 0, %s90
    %s107 = sphi 0, %s91
  $region4: #{encoder_s_forward.8} parent=0 // loop_header_branch
    %12 = sbr.rel (%p10) target = $region8
  $region5: #{encoder_s_forward.8} parent=0 // loop_body
    %s14 = ssub.s32 %s9, 1
    %s15 = ssub.s32 %s9, 2
    %s16 = sadd.s32 %s9, 1
    %s17 = ssub.s32 %s9, %s16
    %p18 = scmp.eq.s32.totalorder %s17, 0
    %s20 = sadd.s32 %s19, 1
    %s21 = scalar_select %p18, %s19, %s20
    %p24 = pneg %p18
    %p25 = scmp.eq.s32.totalorder %s9, 1
    %p26 = por %p24, %p25
    %p27 = scmp.ne.s32.totalorder %s19, %s22
    %p28 = scmp.eq.s32.totalorder %s9, 0
    %p29 = por %p27, %p28
    %p30 = scmp.ne.s32.totalorder %s19, %s22
    %p31 = scmp.eq.s32.totalorder %s14, 1
    %p32 = por %p30, %p31
    %p33 = scmp.ne.s32.totalorder %s22, %s23
    %p34 = scmp.eq.s32.totalorder %s14, 0
    %p35 = por %p33, %p34
    %p36 = scmp.ne.s32.totalorder %s22, %s23
    %p37 = scmp.eq.s32.totalorder %s15, 1
    %p38 = por %p36, %p37
    %p40 = scmp.ne.s32.totalorder %s23, %s39
    %p41 = scmp.eq.s32.totalorder %s15, 0
    %p42 = por %p40, %p41
    %s44 = sadd.s32 %s43, 1
    %p47 = scmp.eq.s32.totalorder %s9, 1
    %p48 = scmp.ne.s32.totalorder %s43, %s45
    %p49 = scmp.eq.s32.totalorder %s9, 0
    %p50 = por %p48, %p49
    %p51 = scmp.ne.s32.totalorder %s43, %s45
    %p52 = scmp.eq.s32.totalorder %s14, 1
    %p53 = por %p51, %p52
    %p54 = scmp.ne.s32.totalorder %s45, %s46
    %p55 = scmp.eq.s32.totalorder %s14, 0
    %p56 = por %p54, %p55
    %p57 = scmp.ne.s32.totalorder %s45, %s46
    %p58 = scmp.eq.s32.totalorder %s15, 1
    %p59 = por %p57, %p58
    %p61 = scmp.ne.s32.totalorder %s46, %s60
    %p62 = scmp.eq.s32.totalorder %s15, 0
    %p63 = por %p61, %p62
    %s65 = sadd.s32 %s64, 1
    %p68 = scmp.eq.s32.totalorder %s9, 1
    %p69 = scmp.ne.s32.totalorder %s64, %s66
    %p70 = scmp.eq.s32.totalorder %s9, 0
    %p71 = por %p69, %p70
    %p72 = scmp.ne.s32.totalorder %s64, %s66
    %p73 = scmp.eq.s32.totalorder %s14, 1
    %p74 = por %p72, %p73
    %p75 = scmp.ne.s32.totalorder %s66, %s67
    %p76 = scmp.eq.s32.totalorder %s14, 0
    %p77 = por %p75, %p76
    %p78 = scmp.ne.s32.totalorder %s66, %s67
    %p79 = scmp.eq.s32.totalorder %s15, 1
    %p80 = por %p78, %p79
    %p82 = scmp.ne.s32.totalorder %s67, %s81
    %p83 = scmp.eq.s32.totalorder %s15, 0
    %p84 = por %p82, %p83
    %s85 = ssub.s32 %s9, %s16
    %p86 = scmp.eq.s32.totalorder %s85, 0
    %s88 = sadd.s32 %s87, 1
    %s89 = scalar_select %p86, %s87, %s88
    %p92 = pneg %p86
    %p93 = scmp.eq.s32.totalorder %s9, 1
    %p94 = por %p92, %p93
    %p95 = scmp.ne.s32.totalorder %s87, %s90
    %p96 = scmp.eq.s32.totalorder %s9, 0
    %p97 = por %p95, %p96
    %p98 = scmp.ne.s32.totalorder %s87, %s90
    %p99 = scmp.eq.s32.totalorder %s14, 1
    %p100 = por %p98, %p99
    %p101 = scmp.ne.s32.totalorder %s90, %s91
    %p102 = scmp.eq.s32.totalorder %s14, 0
    %p103 = por %p101, %p102
    %p104 = scmp.ne.s32.totalorder %s90, %s91
    %p105 = scmp.eq.s32.totalorder %s15, 1
    %p106 = por %p104, %p105
    %p108 = scmp.ne.s32.totalorder %s91, %s107
    %p109 = scmp.eq.s32.totalorder %s15, 0
    %p110 = por %p108, %p109
    %p111 = scmp.le.s32.totalorder 1, %s9
    %p112 = scmp.lt.s32.totalorder %s9, 3
    %p113 = pnand %p111, %p112
    %p114 = pneg %p113
    // Predicated region
    $region9: #{encoder_s_forward.8} parent=5 // pred_check
      _
    $region10: #{encoder_s_forward.8} parent=5 // pred_check_branch
      %116 = sbr.rel (%p113) target = $region12
    $region11: #{encoder_s_forward.8} parent=5 // pred_region
      %s117 = ssub.s32 %s9, 1
      // Predicated region
      $region13: #{encoder_s_forward.8} parent=11 // pred_check
        %p118 = pneg %p56
      $region14: #{encoder_s_forward.8} parent=11 // pred_check_branch
        %120 = sbr.rel (%p118) target = $region16
      $region15: #{encoder_s_forward.8} parent=11 // pred_region
        _
      $region16: #{encoder_s_forward.8} parent=11 // pred_fallthru
        _
      // Predicated region
      $region17: #{encoder_s_forward.8} parent=11 // pred_check
        %p121 = pneg %p77
      $region18: #{encoder_s_forward.8} parent=11 // pred_check_branch
        %123 = sbr.rel (%p121) target = $region20
      $region19: #{encoder_s_forward.8} parent=11 // pred_region
        _
      $region20: #{encoder_s_forward.8} parent=11 // pred_fallthru
        _
    $region12: #{encoder_s_forward.8} parent=5 // pred_fallthru
      _
    %p124 = scmp.lt.s32.totalorder %s9, 2
    // Predicated region
    $region21: #{encoder_s_forward.8} parent=5 // pred_check
      %p125 = pneg %p124
    $region22: #{encoder_s_forward.8} parent=5 // pred_check_branch
      %127 = sbr.rel (%p125) target = $region24
    $region23: #{encoder_s_forward.8} parent=5 // pred_region
      // Predicated region
      $region25: #{encoder_s_forward.8} parent=23 // pred_check
        %p128 = pneg %p29
      $region26: #{encoder_s_forward.8} parent=23 // pred_check_branch
        %130 = sbr.rel (%p128) target = $region28
      $region27: #{encoder_s_forward.8} parent=23 // pred_region
        %p131 = scmp.lt.s32.totalorder %s9, 1
        %s132 = scalar_select %p131, %s9, 1
        %s133 = smul.addr %s132, 49
        %s134 = smul.addr %s133, 4
        %s135 = scalar_lea.vmem %s0, %s134
      $region28: #{encoder_s_forward.8} parent=23 // pred_fallthru
        _
    $region24: #{encoder_s_forward.8} parent=5 // pred_fallthru
      _
    %p136 = scmp.le.s32.totalorder 1, %s9
    %p137 = scmp.lt.s32.totalorder %s9, 3
    %p138 = pnand %p136, %p137
    %p139 = pneg %p138
    // Predicated region
    $region29: #{encoder_s_forward.8} parent=5 // pred_check
      _
    $region30: #{encoder_s_forward.8} parent=5 // pred_check_branch
      %141 = sbr.rel (%p138) target = $region32
    $region31: #{encoder_s_forward.8} parent=5 // pred_region
      %s142 = ssub.s32 %s9, 1
      %p143 = scmp.lt.s32.totalorder %s14, 1
      %s144 = scalar_select %p143, %s14, 1
      %s145 = smul.addr %s144, 49
      %s146 = smul.addr %s145, 4
      %s147 = scalar_lea.vmem %s0, %s146
      %p148 = pneg %p35
      %p149 = pneg %p32
      %p150 = pneg %p56
      %p151 = pneg %p53
      %p152 = pneg %p77
      %p153 = pneg %p74
      %p154 = pneg %p103
      %p155 = pneg %p100
      %p156 = scmp.lt.s32.totalorder %s14, 1
      %s157 = scalar_select %p156, %s14, 1
      %s158 = smul.addr %s157, 7
      %s159 = smul.addr %s158, 4
      %s160 = scalar_lea.vmem %s3, %s159
      %p161 = scmp.lt.s32.totalorder %s14, 1
      %s162 = scalar_select %p161, %s14, 1
      %s163 = smul.addr %s162, 49
      %s164 = smul.addr %s163, 4
      %s165 = scalar_lea.vmem %s0, %s164
      %p166 = scmp.lt.s32.totalorder %s14, 1
      %s167 = scalar_select %p166, %s14, 1
      %s168 = smul.addr %s167, 7
      %s169 = smul.addr %s168, 4
      %s170 = scalar_lea.vmem %s3, %s169
      %v172 = vld [vmem:[%s165] sm:$0xff]
      %v173 = vld [vmem:[%s165 + $0x8] sm:$0xff]
      %v174 = vld [vmem:[%s165 + $0x10] sm:$0xff]
      %v175 = vld [vmem:[%s165 + $0x18] sm:$0xf]
      %v176 = vld [vmem:[%s165 + $0x1c] sm:$0xff]
      %v177 = vld [vmem:[%s165 + $0x24] sm:$0xff]
      %v178 = vld [vmem:[%s165 + $0x2c] sm:$0xff]
      %v179 = vld [vmem:[%s165 + $0x34] sm:$0xf]
      %v180 = vld [vmem:[%s165 + $0x38] sm:$0xff]
      %v181 = vld [vmem:[%s165 + $0x40] sm:$0xff]
      %v182 = vld [vmem:[%s165 + $0x48] sm:$0xff]
      %v183 = vld [vmem:[%s165 + $0x50] sm:$0xf]
      %v184 = vld [vmem:[%s165 + $0x54] sm:$0xff]
      %v185 = vld [vmem:[%s165 + $0x5c] sm:$0xff]
      %v186 = vld [vmem:[%s165 + $0x64] sm:$0xff]
      %v187 = vld [vmem:[%s165 + $0x6c] sm:$0xf]
      %v188 = vld [vmem:[%s165 + $0x70] sm:$0xff]
      %v189 = vld [vmem:[%s165 + $0x78] sm:$0xff]
      %v190 = vld [vmem:[%s165 + $0x80] sm:$0xff]
      %v191 = vld [vmem:[%s165 + $0x88] sm:$0xf]
      %v192 = vld [vmem:[%s165 + $0x8c] sm:$0xff]
      %v193 = vld [vmem:[%s165 + $0x94] sm:$0xff]
      %v194 = vld [vmem:[%s165 + $0x9c] sm:$0xff]
      %v195 = vld [vmem:[%s165 + $0xa4] sm:$0xf]
      %v196 = vld [vmem:[%s165 + $0xa8] sm:$0x11]
      %v197 = vld [vmem:[%s165 + $0xb0] sm:$0x11]
      %v198 = vld [vmem:[%s165 + $0xb8] sm:$0x11]
      %v199 = vld [vmem:[%s165 + $0xc0] sm:$0x1]
      %v200 = vld [vmem:[%s1] sm:$0xf]
      %v201 = vld [vmem:[%s1 + $0x4] sm:$0xf]
      %v202 = vld [vmem:[%s1 + $0x8] sm:$0xf]
      %v203 = vld [vmem:[%s1 + $0xc] sm:$0xf]
      %v204 = vld [vmem:[%s1 + $0x10] sm:$0xf]
      %v205 = vld [vmem:[%s1 + $0x14] sm:$0xf]
      %v206 = vld [vmem:[%s1 + $0x18] sm:$0xf]
      %v207 = vld [vmem:[%s1 + $0x1c] sm:$0xf]
      %v208 = vld [vmem:[%s1 + $0x20] sm:$0xf]
      %v209 = vld [vmem:[%s1 + $0x24] sm:$0xf]
      %v210 = vld [vmem:[%s1 + $0x28] sm:$0xf]
      %v211 = vld [vmem:[%s1 + $0x2c] sm:$0xf]
      %v212 = vld [vmem:[%s1 + $0x30] sm:$0xf]
      %v213 = vld [vmem:[%s1 + $0x34] sm:$0xf]
      %v214 = vld [vmem:[%s1 + $0x38] sm:$0xf]
      %v215 = vld [vmem:[%s1 + $0x3c] sm:$0xf]
      %v216 = vld [vmem:[%s1 + $0x40] sm:$0xf]
      %v217 = vld [vmem:[%s1 + $0x44] sm:$0xf]
      %v218 = vld [vmem:[%s1 + $0x48] sm:$0xf]
      %v219 = vld [vmem:[%s1 + $0x4c] sm:$0xf]
      %v220 = vld [vmem:[%s1 + $0x50] sm:$0xf]
      %v221 = vld [vmem:[%s1 + $0x54] sm:$0xf]
      %v222 = vld [vmem:[%s1 + $0x58] sm:$0xf]
      %v223 = vld [vmem:[%s1 + $0x5c] sm:$0xf]
      %v224 = vld [vmem:[%s1 + $0x60] sm:$0xf]
      %v225 = vld [vmem:[%s1 + $0x64] sm:$0xf]
      %v226 = vld [vmem:[%s1 + $0x68] sm:$0xf]
      %v227 = vld [vmem:[%s1 + $0x6c] sm:$0xf]
      %v228 = vld [vmem:[%s1 + $0x70] sm:$0xf]
      %v229 = vld [vmem:[%s1 + $0x74] sm:$0xf]
      %v230 = vld [vmem:[%s1 + $0x78] sm:$0xf]
      %v231 = vld [vmem:[%s1 + $0x7c] sm:$0xf]
      %v232 = vld [vmem:[%s1 + $0x80] sm:$0xf]
      %v233 = vld [vmem:[%s1 + $0x84] sm:$0xf]
      %v234 = vld [vmem:[%s1 + $0x88] sm:$0xf]
      %v235 = vld [vmem:[%s1 + $0x8c] sm:$0xf]
      %v236 = vld [vmem:[%s1 + $0x90] sm:$0xf]
      %v237 = vld [vmem:[%s1 + $0x94] sm:$0xf]
      %v238 = vld [vmem:[%s1 + $0x98] sm:$0xf]
      %v239 = vld [vmem:[%s1 + $0x9c] sm:$0xf]
      %v240 = vld [vmem:[%s1 + $0xa0] sm:$0xf]
      %v241 = vld [vmem:[%s1 + $0xa4] sm:$0xf]
      %v242 = vld [vmem:[%s1 + $0xa8] sm:$0xf]
      %v243 = vld [vmem:[%s1 + $0xac] sm:$0xf]
      %v244 = vld [vmem:[%s1 + $0xb0] sm:$0xf]
      %v245 = vld [vmem:[%s1 + $0xb4] sm:$0xf]
      %v246 = vld [vmem:[%s1 + $0xb8] sm:$0xf]
      %v247 = vld [vmem:[%s1 + $0xbc] sm:$0xf]
      %v248 = vld [vmem:[%s1 + $0xc0] sm:$0xf]
      %v249 = vld [vmem:[%s1 + $0xc4] sm:$0xf]
      %v250 = vld [vmem:[%s1 + $0xc8] sm:$0xf]
      %v251 = vld [vmem:[%s1 + $0xcc] sm:$0xf]
      %v252 = vld [vmem:[%s1 + $0xd0] sm:$0xf]
      %v253 = vld [vmem:[%s1 + $0xd4] sm:$0xf]
      %v254 = vld [vmem:[%s1 + $0xd8] sm:$0xf]
      %v255 = vld [vmem:[%s1 + $0xdc] sm:$0xf]
      %v256 = vld [vmem:[%s1 + $0xe0] sm:$0xf]
      %v257 = vld [vmem:[%s1 + $0xe4] sm:$0xf]
      %v258 = vld [vmem:[%s1 + $0xe8] sm:$0xf]
      %v259 = vld [vmem:[%s1 + $0xec] sm:$0xf]
      %v260 = vld [vmem:[%s1 + $0xf0] sm:$0xf]
      %v261 = vld [vmem:[%s1 + $0xf4] sm:$0xf]
      %v262 = vld [vmem:[%s1 + $0xf8] sm:$0xf]
      %v263 = vld [vmem:[%s1 + $0xfc] sm:$0xf]
      %v264 = vld [vmem:[%s1 + $0x100] sm:$0xf]
      %v265 = vld [vmem:[%s1 + $0x104] sm:$0xf]
      %v266 = vld [vmem:[%s1 + $0x108] sm:$0xf]
      %v267 = vld [vmem:[%s1 + $0x10c] sm:$0xf]
      %v268 = vld [vmem:[%s1 + $0x110] sm:$0xf]
      %v269 = vld [vmem:[%s1 + $0x114] sm:$0xf]
      %v270 = vld [vmem:[%s1 + $0x118] sm:$0xf]
      %v271 = vld [vmem:[%s1 + $0x11c] sm:$0xf]
      %v272 = vld [vmem:[%s1 + $0x120] sm:$0xf]
      %v273 = vld [vmem:[%s1 + $0x124] sm:$0xf]
      %v274 = vld [vmem:[%s1 + $0x128] sm:$0xf]
      %v275 = vld [vmem:[%s1 + $0x12c] sm:$0xf]
      %v276 = vld [vmem:[%s1 + $0x130] sm:$0xf]
      %v277 = vld [vmem:[%s1 + $0x134] sm:$0xf]
      %v278 = vld [vmem:[%s1 + $0x138] sm:$0xf]
      %v279 = vld [vmem:[%s1 + $0x13c] sm:$0xf]
      %v280 = vld [vmem:[%s1 + $0x140] sm:$0xf]
      %v281 = vld [vmem:[%s1 + $0x144] sm:$0xf]
      %v282 = vld [vmem:[%s1 + $0x148] sm:$0xf]
      %v283 = vld [vmem:[%s1 + $0x14c] sm:$0xf]
      %v284 = vld [vmem:[%s1 + $0x150] sm:$0xf]
      %v285 = vld [vmem:[%s1 + $0x154] sm:$0xf]
      %v286 = vld [vmem:[%s1 + $0x158] sm:$0xf]
      %v287 = vld [vmem:[%s1 + $0x15c] sm:$0xf]
      %v288 = vld [vmem:[%s1 + $0x160] sm:$0xf]
      %v289 = vld [vmem:[%s1 + $0x164] sm:$0xf]
      %v290 = vld [vmem:[%s1 + $0x168] sm:$0xf]
      %v291 = vld [vmem:[%s1 + $0x16c] sm:$0xf]
      %v292 = vld [vmem:[%s1 + $0x170] sm:$0xf]
      %v293 = vld [vmem:[%s1 + $0x174] sm:$0xf]
      %v294 = vld [vmem:[%s1 + $0x178] sm:$0xf]
      %v295 = vld [vmem:[%s1 + $0x17c] sm:$0xf]
      %v296 = vld [vmem:[%s1 + $0x180] sm:$0xf]
      %v297 = vld [vmem:[%s1 + $0x184] sm:$0xf]
      %v298 = vld [vmem:[%s1 + $0x188] sm:$0xf]
      %v299 = vld [vmem:[%s1 + $0x18c] sm:$0xf]
      %v300 = vld [vmem:[%s2] sm:$0x1]
      %v302 = vlaneseq
      %v303 = vshrl.u32 %v302, 7
      %v304 = vsub.s32 0, %v303
      %v305 = vrot.slane %v300, %v304
      %v335 = vunpack.c.l.b16 %v172
      %v336 = vunpack.c.h.b16 %v172
      %v337 = vunpack.c.l.b16 %v173
      %v338 = vunpack.c.h.b16 %v173
      %v339 = vunpack.c.l.b16 %v174
      %v340 = vunpack.c.h.b16 %v174
      %v341 = vunpack.c.l.b16 %v175
      %v342 = vunpack.c.l.b16 %v176
      %v343 = vunpack.c.h.b16 %v176
      %v344 = vunpack.c.l.b16 %v177
      %v345 = vunpack.c.h.b16 %v177
      %v346 = vunpack.c.l.b16 %v178
      %v347 = vunpack.c.h.b16 %v178
      %v348 = vunpack.c.l.b16 %v179
      %v349 = vunpack.c.l.b16 %v180
      %v350 = vunpack.c.h.b16 %v180
      %v351 = vunpack.c.l.b16 %v181
      %v352 = vunpack.c.h.b16 %v181
      %v353 = vunpack.c.l.b16 %v182
      %v354 = vunpack.c.h.b16 %v182
      %v355 = vunpack.c.l.b16 %v183
      %v356 = vunpack.c.l.b16 %v184
      %v357 = vunpack.c.h.b16 %v184
      %v358 = vunpack.c.l.b16 %v185
      %v359 = vunpack.c.h.b16 %v185
      %v360 = vunpack.c.l.b16 %v186
      %v361 = vunpack.c.h.b16 %v186
      %v362 = vunpack.c.l.b16 %v187
      %v363 = vunpack.c.l.b16 %v188
      %v364 = vunpack.c.h.b16 %v188
      %v365 = vunpack.c.l.b16 %v189
      %v366 = vunpack.c.h.b16 %v189
      %v367 = vunpack.c.l.b16 %v190
      %v368 = vunpack.c.h.b16 %v190
      %v369 = vunpack.c.l.b16 %v191
      %v370 = vunpack.c.l.b16 %v192
      %v371 = vunpack.c.h.b16 %v192
      %v372 = vunpack.c.l.b16 %v193
      %v373 = vunpack.c.h.b16 %v193
      %v374 = vunpack.c.l.b16 %v194
      %v375 = vunpack.c.h.b16 %v194
      %v376 = vunpack.c.l.b16 %v195
      %v377 = vunpack.c.l.b16 %v196
      %v378 = vunpack.c.h.b16 %v196
      %v379 = vunpack.c.l.b16 %v197
      %v380 = vunpack.c.h.b16 %v197
      %v381 = vunpack.c.l.b16 %v198
      %v382 = vunpack.c.h.b16 %v198
      %v383 = vunpack.c.l.b16 %v199
      %v384 = vpack.c.b16 %v342, %v335
      %v385 = vpack.c.b16 %v343, %v336
      %v386 = vpack.c.b16 %v344, %v337
      %v387 = vpack.c.b16 %v345, %v338
      %v388 = vpack.c.b16 %v346, %v339
      %v389 = vpack.c.b16 %v347, %v340
      %v390 = vpack.c.b16 %v348, %v341
      %v391 = vpack.c.b16 %v356, %v349
      %v392 = vpack.c.b16 %v357, %v350
      %v393 = vpack.c.b16 %v358, %v351
      %v394 = vpack.c.b16 %v359, %v352
      %v395 = vpack.c.b16 %v360, %v353
      %v396 = vpack.c.b16 %v361, %v354
      %v397 = vpack.c.b16 %v362, %v355
      %v398 = vpack.c.b16 %v370, %v363
      %v399 = vpack.c.b16 %v371, %v364
      %v400 = vpack.c.b16 %v372, %v365
      %v401 = vpack.c.b16 %v373, %v366
      %v402 = vpack.c.b16 %v374, %v367
      %v403 = vpack.c.b16 %v375, %v368
      %v404 = vpack.c.b16 %v376, %v369
      %v405 = vpack.c.b16 %v377, %v377
      %v406 = vpack.c.b16 %v378, %v378
      %v407 = vpack.c.b16 %v379, %v379
      %v408 = vpack.c.b16 %v380, %v380
      %v409 = vpack.c.b16 %v381, %v381
      %v410 = vpack.c.b16 %v382, %v382
      %v411 = vpack.c.b16 %v383, %v383
      %v536 = vunpack.c.l.b16 %v200
      %v537 = vunpack.c.l.b16 %v201
      %v538 = vunpack.c.l.b16 %v202
      %v539 = vunpack.c.l.b16 %v203
      %v540 = vunpack.c.l.b16 %v204
      %v541 = vunpack.c.l.b16 %v205
      %v542 = vunpack.c.l.b16 %v206
      %v543 = vunpack.c.l.b16 %v207
      %v544 = vunpack.c.l.b16 %v208
      %v545 = vunpack.c.l.b16 %v209
      %v546 = vunpack.c.l.b16 %v210
      %v547 = vunpack.c.l.b16 %v211
      %v548 = vunpack.c.l.b16 %v212
      %v549 = vunpack.c.l.b16 %v213
      %v550 = vunpack.c.l.b16 %v214
      %v551 = vunpack.c.l.b16 %v215
      %v552 = vunpack.c.l.b16 %v216
      %v553 = vunpack.c.l.b16 %v217
      %v554 = vunpack.c.l.b16 %v218
      %v555 = vunpack.c.l.b16 %v219
      %v556 = vunpack.c.l.b16 %v220
      %v557 = vunpack.c.l.b16 %v221
      %v558 = vunpack.c.l.b16 %v222
      %v559 = vunpack.c.l.b16 %v223
      %v560 = vunpack.c.l.b16 %v224
      %v561 = vunpack.c.l.b16 %v225
      %v562 = vunpack.c.l.b16 %v226
      %v563 = vunpack.c.l.b16 %v227
      %v564 = vunpack.c.l.b16 %v228
      %v565 = vunpack.c.l.b16 %v229
      %v566 = vunpack.c.l.b16 %v230
      %v567 = vunpack.c.l.b16 %v231
      %v568 = vunpack.c.l.b16 %v232
      %v569 = vunpack.c.l.b16 %v233
      %v570 = vunpack.c.l.b16 %v234
      %v571 = vunpack.c.l.b16 %v235
      %v572 = vunpack.c.l.b16 %v236
      %v573 = vunpack.c.l.b16 %v237
      %v574 = vunpack.c.l.b16 %v238
      %v575 = vunpack.c.l.b16 %v239
      %v576 = vunpack.c.l.b16 %v240
      %v577 = vunpack.c.l.b16 %v241
      %v578 = vunpack.c.l.b16 %v242
      %v579 = vunpack.c.l.b16 %v243
      %v580 = vunpack.c.l.b16 %v244
      %v581 = vunpack.c.l.b16 %v245
      %v582 = vunpack.c.l.b16 %v246
      %v583 = vunpack.c.l.b16 %v247
      %v584 = vunpack.c.l.b16 %v248
      %v585 = vunpack.c.l.b16 %v249
      %v586 = vunpack.c.l.b16 %v250
      %v587 = vunpack.c.l.b16 %v251
      %v588 = vunpack.c.l.b16 %v252
      %v589 = vunpack.c.l.b16 %v253
      %v590 = vunpack.c.l.b16 %v254
      %v591 = vunpack.c.l.b16 %v255
      %v592 = vunpack.c.l.b16 %v256
      %v593 = vunpack.c.l.b16 %v257
      %v594 = vunpack.c.l.b16 %v258
      %v595 = vunpack.c.l.b16 %v259
      %v596 = vunpack.c.l.b16 %v260
      %v597 = vunpack.c.l.b16 %v261
      %v598 = vunpack.c.l.b16 %v262
      %v599 = vunpack.c.l.b16 %v263
      %v600 = vunpack.c.l.b16 %v264
      %v601 = vunpack.c.l.b16 %v265
      %v602 = vunpack.c.l.b16 %v266
      %v603 = vunpack.c.l.b16 %v267
      %v604 = vunpack.c.l.b16 %v268
      %v605 = vunpack.c.l.b16 %v269
      %v606 = vunpack.c.l.b16 %v270
      %v607 = vunpack.c.l.b16 %v271
      %v608 = vunpack.c.l.b16 %v272
      %v609 = vunpack.c.l.b16 %v273
      %v610 = vunpack.c.l.b16 %v274
      %v611 = vunpack.c.l.b16 %v275
      %v612 = vunpack.c.l.b16 %v276
      %v613 = vunpack.c.l.b16 %v277
      %v614 = vunpack.c.l.b16 %v278
      %v615 = vunpack.c.l.b16 %v279
      %v616 = vunpack.c.l.b16 %v280
      %v617 = vunpack.c.l.b16 %v281
      %v618 = vunpack.c.l.b16 %v282
      %v619 = vunpack.c.l.b16 %v283
      %v620 = vunpack.c.l.b16 %v284
      %v621 = vunpack.c.l.b16 %v285
      %v622 = vunpack.c.l.b16 %v286
      %v623 = vunpack.c.l.b16 %v287
      %v624 = vunpack.c.l.b16 %v288
      %v625 = vunpack.c.l.b16 %v289
      %v626 = vunpack.c.l.b16 %v290
      %v627 = vunpack.c.l.b16 %v291
      %v628 = vunpack.c.l.b16 %v292
      %v629 = vunpack.c.l.b16 %v293
      %v630 = vunpack.c.l.b16 %v294
      %v631 = vunpack.c.l.b16 %v295
      %v632 = vunpack.c.l.b16 %v296
      %v633 = vunpack.c.l.b16 %v297
      %v634 = vunpack.c.l.b16 %v298
      %v635 = vunpack.c.l.b16 %v299
      %v636 = vpack.c.b16 %v537, %v536
      %v637 = vpack.c.b16 %v539, %v538
      %v638 = vpack.c.b16 %v541, %v540
      %v639 = vpack.c.b16 %v543, %v542
      %v640 = vpack.c.b16 %v545, %v544
      %v641 = vpack.c.b16 %v547, %v546
      %v642 = vpack.c.b16 %v549, %v548
      %v643 = vpack.c.b16 %v551, %v550
      %v644 = vpack.c.b16 %v553, %v552
      %v645 = vpack.c.b16 %v555, %v554
      %v646 = vpack.c.b16 %v557, %v556
      %v647 = vpack.c.b16 %v559, %v558
      %v648 = vpack.c.b16 %v561, %v560
      %v649 = vpack.c.b16 %v563, %v562
      %v650 = vpack.c.b16 %v565, %v564
      %v651 = vpack.c.b16 %v567, %v566
      %v652 = vpack.c.b16 %v569, %v568
      %v653 = vpack.c.b16 %v571, %v570
      %v654 = vpack.c.b16 %v573, %v572
      %v655 = vpack.c.b16 %v575, %v574
      %v656 = vpack.c.b16 %v577, %v576
      %v657 = vpack.c.b16 %v579, %v578
      %v658 = vpack.c.b16 %v581, %v580
      %v659 = vpack.c.b16 %v583, %v582
      %v660 = vpack.c.b16 %v585, %v584
      %v661 = vpack.c.b16 %v587, %v586
      %v662 = vpack.c.b16 %v589, %v588
      %v663 = vpack.c.b16 %v591, %v590
      %v664 = vpack.c.b16 %v593, %v592
      %v665 = vpack.c.b16 %v595, %v594
      %v666 = vpack.c.b16 %v597, %v596
      %v667 = vpack.c.b16 %v599, %v598
      %v668 = vpack.c.b16 %v601, %v600
      %v669 = vpack.c.b16 %v603, %v602
      %v670 = vpack.c.b16 %v605, %v604
      %v671 = vpack.c.b16 %v607, %v606
      %v672 = vpack.c.b16 %v609, %v608
      %v673 = vpack.c.b16 %v611, %v610
      %v674 = vpack.c.b16 %v613, %v612
      %v675 = vpack.c.b16 %v615, %v614
      %v676 = vpack.c.b16 %v617, %v616
      %v677 = vpack.c.b16 %v619, %v618
      %v678 = vpack.c.b16 %v621, %v620
      %v679 = vpack.c.b16 %v623, %v622
      %v680 = vpack.c.b16 %v625, %v624
      %v681 = vpack.c.b16 %v627, %v626
      %v682 = vpack.c.b16 %v629, %v628
      %v683 = vpack.c.b16 %v631, %v630
      %v684 = vpack.c.b16 %v633, %v632
      %v685 = vpack.c.b16 %v635, %v634
      %vm736 = vcmask 261120
      %v738 = vsel %vm736, %v390, 0
      %v741 = vsel %vm736, %v397, 0
      %v744 = vsel %vm736, %v404, 0
      %v747 = vsel %vm736, %v411, 0
      %749 = vmatprep.subr.bf16.mxu0 0
      %750 = vmatpush1.bf16.msra.mxu0 %v636
      %751 = vmatprep.subr.bf16.mxu0 0
      %752 = vmatpush1.bf16.msra.mxu0 %v637
      %753 = vmatprep.subr.bf16.mxu0 0
      %754 = vmatpush1.bf16.msra.mxu0 %v638
      %755 = vmatprep.subr.bf16.mxu0 0
      %756 = vmatpush1.bf16.msra.mxu0 %v639
      %757 = vmatprep.subr.bf16.mxu0 0
      %758 = vmatpush1.bf16.msra.mxu0 %v640
      %759 = vmatprep.subr.bf16.mxu0 0
      %760 = vmatpush1.bf16.msra.mxu0 %v641
      %761 = vmatprep.subr.bf16.mxu0 0
      %762 = vmatpush1.bf16.msra.mxu0 %v642
      %763 = vmatprep.subr.bf16.mxu0 0
      %764 = vmatpush1.bf16.msra.mxu0 %v643
      %765 = vmatprep.subr.bf16.mxu0 0
      %766 = vmatpush1.bf16.msra.mxu0 %v644
      %767 = vmatprep.subr.bf16.mxu0 0
      %768 = vmatpush1.bf16.msra.mxu0 %v645
      %769 = vmatprep.subr.bf16.mxu0 0
      %770 = vmatpush1.bf16.msra.mxu0 %v646
      %771 = vmatprep.subr.bf16.mxu0 0
      %772 = vmatpush1.bf16.msra.mxu0 %v647
      %773 = vmatprep.subr.bf16.mxu0 0
      %774 = vmatpush1.bf16.msra.mxu0 %v648
      %775 = vmatprep.subr.bf16.mxu0 0
      %776 = vmatpush1.bf16.msra.mxu0 %v649
      %777 = vmatprep.subr.bf16.mxu0 0
      %778 = vmatpush1.bf16.msra.mxu0 %v650
      %779 = vmatprep.subr.bf16.mxu0 0
      %780 = vmatpush1.bf16.msra.mxu0 %v651
      %781 = vmatprep.mubr.bf16.mxu0 %v385
      %782 = vmatmul.mubr.bf16.gmra.mrb[0].mxu0 %v384
      %v783 = vpop.f32.mrb[0].mxu0
      %v784 = vadd.f32 %v305, %v783
      %v785 = vpop.f32.mrb[0].mxu0
      %v786 = vpop.f32.mrb[0].mxu0
      %v787 = vadd.f32 %v305, %v786
      %v788 = vpop.f32.mrb[0].mxu0
      %789 = vmatprep.mubr.bf16.mxu0 %v392
      %790 = vmatmul.mubr.bf16.gmra.mrb[0].mxu0 %v391
      %v791 = vpop.f32.mrb[0].mxu0
      %v792 = vadd.f32 %v305, %v791
      %v793 = vpop.f32.mrb[0].mxu0
      %v794 = vpop.f32.mrb[0].mxu0
      %v795 = vadd.f32 %v305, %v794
      %v796 = vpop.f32.mrb[0].mxu0
      %797 = vmatprep.mubr.bf16.mxu0 %v399
      %798 = vmatmul.mubr.bf16.gmra.mrb[0].mxu0 %v398
      %v799 = vpop.f32.mrb[0].mxu0
      %v800 = vadd.f32 %v305, %v799
      %v801 = vpop.f32.mrb[0].mxu0
      %v802 = vpop.f32.mrb[0].mxu0
      %v803 = vadd.f32 %v305, %v802
      %v804 = vpop.f32.mrb[0].mxu0
      %805 = vmatprep.mubr.bf16.mxu0 %v406
      %806 = vmatmul.mubr.bf16.gmra.mrb[0].mxu0 %v405
      %v807 = vpop.f32.mrb[0].mxu0
      %v808 = vadd.f32 %v305, %v807
      %v809 = vpop.f32.mrb[0].mxu0
      %v810 = vpop.f32.mrb[0].mxu0
      %v811 = vpop.f32.mrb[0].mxu0
      %812 = vdwg.mxu0
      %813 = vmatprep.subr.bf16.mxu0 0
      %814 = vmatpush1.bf16.msra.mxu0 %v652
      %815 = vmatprep.subr.bf16.mxu0 0
      %816 = vmatpush1.bf16.msra.mxu0 %v653
      %817 = vmatprep.subr.bf16.mxu0 0
      %818 = vmatpush1.bf16.msra.mxu0 %v654
      %819 = vmatprep.subr.bf16.mxu0 0
      %820 = vmatpush1.bf16.msra.mxu0 %v655
      %821 = vmatprep.subr.bf16.mxu0 0
      %822 = vmatpush1.bf16.msra.mxu0 %v656
      %823 = vmatprep.subr.bf16.mxu0 0
      %824 = vmatpush1.bf16.msra.mxu0 %v657
      %825 = vmatprep.subr.bf16.mxu0 0
      %826 = vmatpush1.bf16.msra.mxu0 %v658
      %827 = vmatprep.subr.bf16.mxu0 0
      %828 = vmatpush1.bf16.msra.mxu0 %v659
      %829 = vmatprep.subr.bf16.mxu0 0
      %830 = vmatpush1.bf16.msra.mxu0 %v660
      %831 = vmatprep.subr.bf16.mxu0 0
      %832 = vmatpush1.bf16.msra.mxu0 %v661
      %833 = vmatprep.subr.bf16.mxu0 0
      %834 = vmatpush1.bf16.msra.mxu0 %v662
      %835 = vmatprep.subr.bf16.mxu0 0
      %836 = vmatpush1.bf16.msra.mxu0 %v663
      %837 = vmatprep.subr.bf16.mxu0 0
      %838 = vmatpush1.bf16.msra.mxu0 %v664
      %839 = vmatprep.subr.bf16.mxu0 0
      %840 = vmatpush1.bf16.msra.mxu0 %v665
      %841 = vmatprep.subr.bf16.mxu0 0
      %842 = vmatpush1.bf16.msra.mxu0 %v666
      %843 = vmatprep.subr.bf16.mxu0 0
      %844 = vmatpush1.bf16.msra.mxu0 %v667
      %845 = vmatprep.mubr.bf16.mxu0 %v387
      %846 = vmatmul.mubr.bf16.gmra.mrb[0].mxu0 %v386
      %v847 = vpop.f32.mrb[0].mxu0
      %v848 = vadd.f32 %v784, %v847
      %v849 = vpop.f32.mrb[0].mxu0
      %v850 = vpop.f32.mrb[0].mxu0
      %v851 = vadd.f32 %v787, %v850
      %v852 = vpop.f32.mrb[0].mxu0
      %853 = vmatprep.mubr.bf16.mxu0 %v394
      %854 = vmatmul.mubr.bf16.gmra.mrb[0].mxu0 %v393
      %v855 = vpop.f32.mrb[0].mxu0
      %v856 = vadd.f32 %v792, %v855
      %v857 = vpop.f32.mrb[0].mxu0
      %v858 = vpop.f32.mrb[0].mxu0
      %v859 = vadd.f32 %v795, %v858
      %v860 = vpop.f32.mrb[0].mxu0
      %861 = vmatprep.mubr.bf16.mxu0 %v401
      %862 = vmatmul.mubr.bf16.gmra.mrb[0].mxu0 %v400
      %v863 = vpop.f32.mrb[0].mxu0
      %v864 = vadd.f32 %v800, %v863
      %v865 = vpop.f32.mrb[0].mxu0
      %v866 = vpop.f32.mrb[0].mxu0
      %v867 = vadd.f32 %v803, %v866
      %v868 = vpop.f32.mrb[0].mxu0
      %869 = vmatprep.mubr.bf16.mxu0 %v408
      %870 = vmatmul.mubr.bf16.gmra.mrb[0].mxu0 %v407
      %v871 = vpop.f32.mrb[0].mxu0
      %v872 = vadd.f32 %v808, %v871
      %v873 = vpop.f32.mrb[0].mxu0
      %v874 = vpop.f32.mrb[0].mxu0
      %v875 = vpop.f32.mrb[0].mxu0
      %876 = vdwg.mxu0
      %877 = vmatprep.subr.bf16.mxu0 0
      %878 = vmatpush1.bf16.msra.mxu0 %v668
      %879 = vmatprep.subr.bf16.mxu0 0
      %880 = vmatpush1.bf16.msra.mxu0 %v669
      %881 = vmatprep.subr.bf16.mxu0 0
      %882 = vmatpush1.bf16.msra.mxu0 %v670
      %883 = vmatprep.subr.bf16.mxu0 0
      %884 = vmatpush1.bf16.msra.mxu0 %v671
      %885 = vmatprep.subr.bf16.mxu0 0
      %886 = vmatpush1.bf16.msra.mxu0 %v672
      %887 = vmatprep.subr.bf16.mxu0 0
      %888 = vmatpush1.bf16.msra.mxu0 %v673
      %889 = vmatprep.subr.bf16.mxu0 0
      %890 = vmatpush1.bf16.msra.mxu0 %v674
      %891 = vmatprep.subr.bf16.mxu0 0
      %892 = vmatpush1.bf16.msra.mxu0 %v675
      %893 = vmatprep.subr.bf16.mxu0 0
      %894 = vmatpush1.bf16.msra.mxu0 %v676
      %895 = vmatprep.subr.bf16.mxu0 0
      %896 = vmatpush1.bf16.msra.mxu0 %v677
      %897 = vmatprep.subr.bf16.mxu0 0
      %898 = vmatpush1.bf16.msra.mxu0 %v678
      %899 = vmatprep.subr.bf16.mxu0 0
      %900 = vmatpush1.bf16.msra.mxu0 %v679
      %901 = vmatprep.subr.bf16.mxu0 0
      %902 = vmatpush1.bf16.msra.mxu0 %v680
      %903 = vmatprep.subr.bf16.mxu0 0
      %904 = vmatpush1.bf16.msra.mxu0 %v681
      %905 = vmatprep.subr.bf16.mxu0 0
      %906 = vmatpush1.bf16.msra.mxu0 %v682
      %907 = vmatprep.subr.bf16.mxu0 0
      %908 = vmatpush1.bf16.msra.mxu0 %v683
      %909 = vmatprep.mubr.bf16.mxu0 %v389
      %910 = vmatmul.mubr.bf16.gmra.mrb[0].mxu0 %v388
      %v911 = vpop.f32.mrb[0].mxu0
      %v912 = vadd.f32 %v848, %v911
      %v913 = vpop.f32.mrb[0].mxu0
      %v914 = vpop.f32.mrb[0].mxu0
      %v915 = vadd.f32 %v851, %v914
      %v916 = vpop.f32.mrb[0].mxu0
      %917 = vmatprep.mubr.bf16.mxu0 %v396
      %918 = vmatmul.mubr.bf16.gmra.mrb[0].mxu0 %v395
      %v919 = vpop.f32.mrb[0].mxu0
      %v920 = vadd.f32 %v856, %v919
      %v921 = vpop.f32.mrb[0].mxu0
      %v922 = vpop.f32.mrb[0].mxu0
      %v923 = vadd.f32 %v859, %v922
      %v924 = vpop.f32.mrb[0].mxu0
      %925 = vmatprep.mubr.bf16.mxu0 %v403
      %926 = vmatmul.mubr.bf16.gmra.mrb[0].mxu0 %v402
      %v927 = vpop.f32.mrb[0].mxu0
      %v928 = vadd.f32 %v864, %v927
      %v929 = vpop.f32.mrb[0].mxu0
      %v930 = vpop.f32.mrb[0].mxu0
      %v931 = vadd.f32 %v867, %v930
      %v932 = vpop.f32.mrb[0].mxu0
      %933 = vmatprep.mubr.bf16.mxu0 %v410
      %934 = vmatmul.mubr.bf16.gmra.mrb[0].mxu0 %v409
      %v935 = vpop.f32.mrb[0].mxu0
      %v936 = vadd.f32 %v872, %v935
      %v937 = vpop.f32.mrb[0].mxu0
      %v938 = vpop.f32.mrb[0].mxu0
      %v939 = vpop.f32.mrb[0].mxu0
      %940 = vdwg.mxu0
      %941 = vmatprep.subr.bf16.mxu0 0
      %942 = vmatpush1.bf16.msra.mxu0 %v684
      %943 = vmatprep.subr.bf16.mxu0 0
      %944 = vmatpush1.bf16.msra.mxu0 %v685
      %945 = vmatprep.subr.bf16.mxu0 0
      %946 = vmatpush1.bf16.msra.mxu0 0
      %947 = vmatprep.subr.bf16.mxu0 0
      %948 = vmatpush1.bf16.msra.mxu0 0
      %949 = vmatprep.subr.bf16.mxu0 0
      %950 = vmatpush1.bf16.msra.mxu0 0
      %951 = vmatprep.subr.bf16.mxu0 0
      %952 = vmatpush1.bf16.msra.mxu0 0
      %953 = vmatprep.subr.bf16.mxu0 0
      %954 = vmatpush1.bf16.msra.mxu0 0
      %955 = vmatprep.subr.bf16.mxu0 0
      %956 = vmatpush1.bf16.msra.mxu0 0
      %957 = vmatprep.subr.bf16.mxu0 0
      %958 = vmatpush1.bf16.msra.mxu0 0
      %959 = vmatprep.subr.bf16.mxu0 0
      %960 = vmatpush1.bf16.msra.mxu0 0
      %961 = vmatprep.subr.bf16.mxu0 0
      %962 = vmatpush1.bf16.msra.mxu0 0
      %963 = vmatprep.subr.bf16.mxu0 0
      %964 = vmatpush1.bf16.msra.mxu0 0
      %965 = vmatprep.subr.bf16.mxu0 0
      %966 = vmatpush1.bf16.msra.mxu0 0
      %967 = vmatprep.subr.bf16.mxu0 0
      %968 = vmatpush1.bf16.msra.mxu0 0
      %969 = vmatprep.subr.bf16.mxu0 0
      %970 = vmatpush1.bf16.msra.mxu0 0
      %971 = vmatprep.subr.bf16.mxu0 0
      %972 = vmatpush1.bf16.msra.mxu0 0
      %973 = vmatprep.mubr.bf16.mxu0 0
      %974 = vmatmul.mubr.bf16.gmra.mrb[0].mxu0 %v738
      %v975 = vpop.f32.mrb[0].mxu0
      %v976 = vadd.f32 %v912, %v975
      %v977 = vpop.f32.mrb[0].mxu0
      %v978 = vpop.f32.mrb[0].mxu0
      %v979 = vadd.f32 %v915, %v978
      %v980 = vpop.f32.mrb[0].mxu0
      %981 = vmatprep.mubr.bf16.mxu0 0
      %982 = vmatmul.mubr.bf16.gmra.mrb[0].mxu0 %v741
      %v983 = vpop.f32.mrb[0].mxu0
      %v984 = vadd.f32 %v920, %v983
      %v985 = vpop.f32.mrb[0].mxu0
      %v986 = vpop.f32.mrb[0].mxu0
      %v987 = vadd.f32 %v923, %v986
      %v988 = vpop.f32.mrb[0].mxu0
      %989 = vmatprep.mubr.bf16.mxu0 0
      %990 = vmatmul.mubr.bf16.gmra.mrb[0].mxu0 %v744
      %v991 = vpop.f32.mrb[0].mxu0
      %v992 = vadd.f32 %v928, %v991
      %v993 = vpop.f32.mrb[0].mxu0
      %v994 = vpop.f32.mrb[0].mxu0
      %v995 = vadd.f32 %v931, %v994
      %v996 = vpop.f32.mrb[0].mxu0
      %997 = vmatprep.mubr.bf16.mxu0 0
      %998 = vmatmul.mubr.bf16.gmra.mrb[0].mxu0 %v747
      %v999 = vpop.f32.mrb[0].mxu0
      %v1000 = vadd.f32 %v936, %v999
      %v1001 = vpop.f32.mrb[0].mxu0
      %v1002 = vpop.f32.mrb[0].mxu0
      %v1003 = vpop.f32.mrb[0].mxu0
      %1004 = vdwg.mxu0
      %v1005 = vmax.f32 %v976, 0.0
      %v1006 = vmax.f32 %v979, 0.0
      %v1007 = vmax.f32 %v984, 0.0
      %v1008 = vmax.f32 %v987, 0.0
      %v1009 = vmax.f32 %v992, 0.0
      %v1010 = vmax.f32 %v995, 0.0
      %v1011 = vmax.f32 %v1000, 0.0
      %v1012 = vpack.c.bf16 %v1006, %v1005
      %v1013 = vpack.c.bf16 %v1008, %v1007
      %v1014 = vpack.c.bf16 %v1010, %v1009
      %v1015 = vpack.c.bf16 %v1011, %v1011
      %v1020 = vunpack.c.l.b16 %v1012
      %v1021 = vunpack.c.h.b16 %v1012
      %v1022 = vunpack.c.l.b16 %v1013
      %v1023 = vunpack.c.h.b16 %v1013
      %v1024 = vunpack.c.l.b16 %v1014
      %v1025 = vunpack.c.h.b16 %v1014
      %v1026 = vunpack.c.l.b16 %v1015
      %v1027 = vpack.c.b16 %v1020, %v1020
      %v1028 = vpack.c.b16 %v1021, %v1021
      %v1029 = vpack.c.b16 %v1022, %v1022
      %v1030 = vpack.c.b16 %v1023, %v1023
      %v1031 = vpack.c.b16 %v1024, %v1024
      %v1032 = vpack.c.b16 %v1025, %v1025
      %v1033 = vpack.c.b16 %v1026, %v1026
      %vm1041 = vcmask 257024
      %1042 = vst.msk [vmem:[%s170] sm:$0xf] %vm1041, %v1027
      %1043 = vst.msk [vmem:[%s170 + $0x4] sm:$0xf] %vm1041, %v1028
      %1044 = vst.msk [vmem:[%s170 + $0x8] sm:$0xf] %vm1041, %v1029
      %1045 = vst.msk [vmem:[%s170 + $0xc] sm:$0xf] %vm1041, %v1030
      %1046 = vst.msk [vmem:[%s170 + $0x10] sm:$0xf] %vm1041, %v1031
      %1047 = vst.msk [vmem:[%s170 + $0x14] sm:$0xf] %vm1041, %v1032
      %vm1048 = vcmask 253952
      %vm1049 = vsmask.f32 256
      %vm1050 = vmand %vm1048, %vm1049
      %v1051 = vld [vmem:[%s170 + $0x18] sm:$0x1]
      %v1052 = vsel %vm1050, %v1033, %v1051
      %1053 = vst [vmem:[%s170 + $0x18] sm:$0x1] %v1052
      %p1054 = scmp.lt.s32.totalorder %s14, 1
      %s1055 = scalar_select %p1054, %s14, 1
      %s1056 = smul.addr %s1055, 7
      %s1057 = smul.addr %s1056, 4
      %s1058 = scalar_lea.vmem %s3, %s1057
      // Predicated region
      $region33: #{encoder_s_forward.8} parent=31 // pred_check
        %p1059 = pneg %p100
      $region34: #{encoder_s_forward.8} parent=31 // pred_check_branch
        %1061 = sbr.rel (%p1059) target = $region36
      $region35: #{encoder_s_forward.8} parent=31 // pred_region
        _
      $region36: #{encoder_s_forward.8} parent=31 // pred_fallthru
        _
    $region32: #{encoder_s_forward.8} parent=5 // pred_fallthru
      _
    %p1062 = scmp.le.s32.totalorder 2, %s9
    // Predicated region
    $region37: #{encoder_s_forward.8} parent=5 // pred_check
      %p1063 = pneg %p1062
    $region38: #{encoder_s_forward.8} parent=5 // pred_check_branch
      %1065 = sbr.rel (%p1063) target = $region40
    $region39: #{encoder_s_forward.8} parent=5 // pred_region
      %s1066 = ssub.s32 %s9, 2
      // Predicated region
      $region41: #{encoder_s_forward.8} parent=39 // pred_check
        %p1067 = pneg %p106
      $region42: #{encoder_s_forward.8} parent=39 // pred_check_branch
        %1069 = sbr.rel (%p1067) target = $region44
      $region43: #{encoder_s_forward.8} parent=39 // pred_region
        %p1070 = scmp.lt.s32.totalorder %s15, 1
        %s1071 = scalar_select %p1070, %s15, 1
        %s1072 = smul.addr %s1071, 7
        %s1073 = smul.addr %s1072, 4
        %s1074 = scalar_lea.vmem %s3, %s1073
      $region44: #{encoder_s_forward.8} parent=39 // pred_fallthru
        _
    $region40: #{encoder_s_forward.8} parent=5 // pred_fallthru
      _
  $region6: #{encoder_s_forward.8} parent=0 // loop_footer
    %s13 = sadd.s32 1, %s9
  $region7: #{encoder_s_forward.8} parent=0 // loop_footer_branch
    %8 = sbr.rel target = $region3
  $region8: #{encoder_s_forward.8} parent=0 // loop_exit
    _

// kernel: encoder_s_forward.9
$region0: #{encoder_s_forward.9}
  #allocation0 [shape = 'u32[]', space=smem, size = 0x4, offset = 0x4, fixed_abs, tag = 'smem constant byte address 0x4 - core index']
  #allocation1 [shape = 'u32[144,128]{1,0:T(1,128)}', space=vmem, size = 0x12000, scoped, tag = 'internal scratch']
  %s0 = inlined_call_operand.vmem [shape: bf16[2,25,288], index: 0, kind: input, shape index: {}]
  %s1 = inlined_call_operand.vmem [shape: bf16[288,64], index: 1, kind: input, shape index: {}]
  %s2 = inlined_call_operand.vmem [shape: f32[1,64], index: 2, kind: input, shape index: {}]
  %s3 = inlined_call_operand.vmem [shape: bf16[2,25,64], index: 3, kind: output, shape index: {}]
  %s4 = sld [smem:[#allocation0]]
  $region45: #{encoder_s_forward.9} parent=0
    _
  %s6 = ssub.s32 1, %s4
  %s7 = scalar_select 0, %s6, %s4
  loop: start=0, step=1, limit=4
  $region2: #{encoder_s_forward.9} parent=0 // loop_pre_header
    _
  $region3: #{encoder_s_forward.9} parent=0 // loop_header
    %s9 = sphi 0, %s13
    %p10 = scmp.ge.s32.totalorder %s9, 4
    %s19 = sphi 0, %s21
    %s22 = sphi 0, %s19
    %s23 = sphi 0, %s22
    %s39 = sphi 0, %s23
    %s43 = sphi 0, %s43
    %s45 = sphi 0, %s43
    %s46 = sphi 0, %s45
    %s60 = sphi 0, %s46
    %s64 = sphi 0, %s64
    %s66 = sphi 0, %s64
    %s67 = sphi 0, %s66
    %s81 = sphi 0, %s67
    %s87 = sphi 0, %s89
    %s90 = sphi 0, %s87
    %s91 = sphi 0, %s90
    %s107 = sphi 0, %s91
  $region4: #{encoder_s_forward.9} parent=0 // loop_header_branch
    %12 = sbr.rel (%p10) target = $region8
  $region5: #{encoder_s_forward.9} parent=0 // loop_body
    %s14 = ssub.s32 %s9, 1
    %s15 = ssub.s32 %s9, 2
    %s16 = sadd.s32 %s9, 1
    %s17 = ssub.s32 %s9, %s16
    %p18 = scmp.eq.s32.totalorder %s17, 0
    %s20 = sadd.s32 %s19, 1
    %s21 = scalar_select %p18, %s19, %s20
    %p24 = pneg %p18
    %p25 = scmp.eq.s32.totalorder %s9, 1
    %p26 = por %p24, %p25
    %p27 = scmp.ne.s32.totalorder %s19, %s22
    %p28 = scmp.eq.s32.totalorder %s9, 0
    %p29 = por %p27, %p28
    %p30 = scmp.ne.s32.totalorder %s19, %s22
    %p31 = scmp.eq.s32.totalorder %s14, 1
    %p32 = por %p30, %p31
    %p33 = scmp.ne.s32.totalorder %s22, %s23
    %p34 = scmp.eq.s32.totalorder %s14, 0
    %p35 = por %p33, %p34
    %p36 = scmp.ne.s32.totalorder %s22, %s23
    %p37 = scmp.eq.s32.totalorder %s15, 1
    %p38 = por %p36, %p37
    %p40 = scmp.ne.s32.totalorder %s23, %s39
    %p41 = scmp.eq.s32.totalorder %s15, 0
    %p42 = por %p40, %p41
    %s44 = sadd.s32 %s43, 1
    %p47 = scmp.eq.s32.totalorder %s9, 1
    %p48 = scmp.ne.s32.totalorder %s43, %s45
    %p49 = scmp.eq.s32.totalorder %s9, 0
    %p50 = por %p48, %p49
    %p51 = scmp.ne.s32.totalorder %s43, %s45
    %p52 = scmp.eq.s32.totalorder %s14, 1
    %p53 = por %p51, %p52
    %p54 = scmp.ne.s32.totalorder %s45, %s46
    %p55 = scmp.eq.s32.totalorder %s14, 0
    %p56 = por %p54, %p55
    %p57 = scmp.ne.s32.totalorder %s45, %s46
    %p58 = scmp.eq.s32.totalorder %s15, 1
    %p59 = por %p57, %p58
    %p61 = scmp.ne.s32.totalorder %s46, %s60
    %p62 = scmp.eq.s32.totalorder %s15, 0
    %p63 = por %p61, %p62
    %s65 = sadd.s32 %s64, 1
    %p68 = scmp.eq.s32.totalorder %s9, 1
    %p69 = scmp.ne.s32.totalorder %s64, %s66
    %p70 = scmp.eq.s32.totalorder %s9, 0
    %p71 = por %p69, %p70
    %p72 = scmp.ne.s32.totalorder %s64, %s66
    %p73 = scmp.eq.s32.totalorder %s14, 1
    %p74 = por %p72, %p73
    %p75 = scmp.ne.s32.totalorder %s66, %s67
    %p76 = scmp.eq.s32.totalorder %s14, 0
    %p77 = por %p75, %p76
    %p78 = scmp.ne.s32.totalorder %s66, %s67
    %p79 = scmp.eq.s32.totalorder %s15, 1
    %p80 = por %p78, %p79
    %p82 = scmp.ne.s32.totalorder %s67, %s81
    %p83 = scmp.eq.s32.totalorder %s15, 0
    %p84 = por %p82, %p83
    %s85 = ssub.s32 %s9, %s16
    %p86 = scmp.eq.s32.totalorder %s85, 0
    %s88 = sadd.s32 %s87, 1
    %s89 = scalar_select %p86, %s87, %s88
    %p92 = pneg %p86
    %p93 = scmp.eq.s32.totalorder %s9, 1
    %p94 = por %p92, %p93
    %p95 = scmp.ne.s32.totalorder %s87, %s90
    %p96 = scmp.eq.s32.totalorder %s9, 0
    %p97 = por %p95, %p96
    %p98 = scmp.ne.s32.totalorder %s87, %s90
    %p99 = scmp.eq.s32.totalorder %s14, 1
    %p100 = por %p98, %p99
    %p101 = scmp.ne.s32.totalorder %s90, %s91
    %p102 = scmp.eq.s32.totalorder %s14, 0
    %p103 = por %p101, %p102
    %p104 = scmp.ne.s32.totalorder %s90, %s91
    %p105 = scmp.eq.s32.totalorder %s15, 1
    %p106 = por %p104, %p105
    %p108 = scmp.ne.s32.totalorder %s91, %s107
    %p109 = scmp.eq.s32.totalorder %s15, 0
    %p110 = por %p108, %p109
    %p111 = scmp.le.s32.totalorder 1, %s9
    %p112 = scmp.lt.s32.totalorder %s9, 3
    %p113 = pnand %p111, %p112
    %p114 = pneg %p113
    // Predicated region
    $region9: #{encoder_s_forward.9} parent=5 // pred_check
      _
    $region10: #{encoder_s_forward.9} parent=5 // pred_check_branch
      %116 = sbr.rel (%p113) target = $region12
    $region11: #{encoder_s_forward.9} parent=5 // pred_region
      %s117 = ssub.s32 %s9, 1
      // Predicated region
      $region13: #{encoder_s_forward.9} parent=11 // pred_check
        %p118 = pneg %p56
      $region14: #{encoder_s_forward.9} parent=11 // pred_check_branch
        %120 = sbr.rel (%p118) target = $region16
      $region15: #{encoder_s_forward.9} parent=11 // pred_region
        _
      $region16: #{encoder_s_forward.9} parent=11 // pred_fallthru
        _
      // Predicated region
      $region17: #{encoder_s_forward.9} parent=11 // pred_check
        %p121 = pneg %p77
      $region18: #{encoder_s_forward.9} parent=11 // pred_check_branch
        %123 = sbr.rel (%p121) target = $region20
      $region19: #{encoder_s_forward.9} parent=11 // pred_region
        _
      $region20: #{encoder_s_forward.9} parent=11 // pred_fallthru
        _
    $region12: #{encoder_s_forward.9} parent=5 // pred_fallthru
      _
    %p124 = scmp.lt.s32.totalorder %s9, 2
    // Predicated region
    $region21: #{encoder_s_forward.9} parent=5 // pred_check
      %p125 = pneg %p124
    $region22: #{encoder_s_forward.9} parent=5 // pred_check_branch
      %127 = sbr.rel (%p125) target = $region24
    $region23: #{encoder_s_forward.9} parent=5 // pred_region
      // Predicated region
      $region25: #{encoder_s_forward.9} parent=23 // pred_check
        %p128 = pneg %p29
      $region26: #{encoder_s_forward.9} parent=23 // pred_check_branch
        %130 = sbr.rel (%p128) target = $region28
      $region27: #{encoder_s_forward.9} parent=23 // pred_region
        %p131 = scmp.lt.s32.totalorder %s9, 1
        %s132 = scalar_select %p131, %s9, 1
        %s133 = smul.addr %s132, 12
        %s134 = smul.addr %s133, 4
        %s135 = scalar_lea.vmem %s0, %s134
      $region28: #{encoder_s_forward.9} parent=23 // pred_fallthru
        _
    $region24: #{encoder_s_forward.9} parent=5 // pred_fallthru
      _
    %p136 = scmp.le.s32.totalorder 1, %s9
    %p137 = scmp.lt.s32.totalorder %s9, 3
    %p138 = pnand %p136, %p137
    %p139 = pneg %p138
    // Predicated region
    $region29: #{encoder_s_forward.9} parent=5 // pred_check
      _
    $region30: #{encoder_s_forward.9} parent=5 // pred_check_branch
      %141 = sbr.rel (%p138) target = $region32
    $region31: #{encoder_s_forward.9} parent=5 // pred_region
      %s142 = ssub.s32 %s9, 1
      %p143 = scmp.lt.s32.totalorder %s14, 1
      %s144 = scalar_select %p143, %s14, 1
      %s145 = smul.addr %s144, 12
      %s146 = smul.addr %s145, 4
      %s147 = scalar_lea.vmem %s0, %s146
      %p148 = pneg %p35
      %p149 = pneg %p32
      %p150 = pneg %p56
      %p151 = pneg %p53
      %p152 = pneg %p77
      %p153 = pneg %p74
      %p154 = pneg %p103
      %p155 = pneg %p100
      %p156 = scmp.lt.s32.totalorder %s14, 1
      %s157 = scalar_select %p156, %s14, 1
      %s158 = smul.addr %s157, 4
      %s159 = smul.addr %s158, 4
      %s160 = scalar_lea.vmem %s3, %s159
      %p161 = scmp.lt.s32.totalorder %s14, 1
      %s162 = scalar_select %p161, %s14, 1
      %s163 = smul.addr %s162, 12
      %s164 = smul.addr %s163, 4
      %s165 = scalar_lea.vmem %s0, %s164
      %p166 = scmp.lt.s32.totalorder %s14, 1
      %s167 = scalar_select %p166, %s14, 1
      %s168 = smul.addr %s167, 4
      %s169 = smul.addr %s168, 4
      %s170 = scalar_lea.vmem %s3, %s169
      %v172 = vld [vmem:[%s165] sm:$0xff]
      %v173 = vld [vmem:[%s165 + $0x8] sm:$0xf]
      %v174 = vld [vmem:[%s165 + $0xc] sm:$0xff]
      %v175 = vld [vmem:[%s165 + $0x14] sm:$0xf]
      %v176 = vld [vmem:[%s165 + $0x18] sm:$0xff]
      %v177 = vld [vmem:[%s165 + $0x20] sm:$0xf]
      %v178 = vld [vmem:[%s165 + $0x24] sm:$0x11]
      %v179 = vld [vmem:[%s165 + $0x2c] sm:$0x1]
      %v180 = vld [vmem:[%s1] sm:$0xf]
      %v181 = vld [vmem:[%s1 + $0x4] sm:$0xf]
      %v182 = vld [vmem:[%s1 + $0x8] sm:$0xf]
      %v183 = vld [vmem:[%s1 + $0xc] sm:$0xf]
      %v184 = vld [vmem:[%s1 + $0x10] sm:$0xf]
      %v185 = vld [vmem:[%s1 + $0x14] sm:$0xf]
      %v186 = vld [vmem:[%s1 + $0x18] sm:$0xf]
      %v187 = vld [vmem:[%s1 + $0x1c] sm:$0xf]
      %v188 = vld [vmem:[%s1 + $0x20] sm:$0xf]
      %v189 = vld [vmem:[%s1 + $0x24] sm:$0xf]
      %v190 = vld [vmem:[%s1 + $0x28] sm:$0xf]
      %v191 = vld [vmem:[%s1 + $0x2c] sm:$0xf]
      %v192 = vld [vmem:[%s1 + $0x30] sm:$0xf]
      %v193 = vld [vmem:[%s1 + $0x34] sm:$0xf]
      %v194 = vld [vmem:[%s1 + $0x38] sm:$0xf]
      %v195 = vld [vmem:[%s1 + $0x3c] sm:$0xf]
      %v196 = vld [vmem:[%s1 + $0x40] sm:$0xf]
      %v197 = vld [vmem:[%s1 + $0x44] sm:$0xf]
      %v198 = vld [vmem:[%s1 + $0x48] sm:$0xf]
      %v199 = vld [vmem:[%s1 + $0x4c] sm:$0xf]
      %v200 = vld [vmem:[%s1 + $0x50] sm:$0xf]
      %v201 = vld [vmem:[%s1 + $0x54] sm:$0xf]
      %v202 = vld [vmem:[%s1 + $0x58] sm:$0xf]
      %v203 = vld [vmem:[%s1 + $0x5c] sm:$0xf]
      %v204 = vld [vmem:[%s1 + $0x60] sm:$0xf]
      %v205 = vld [vmem:[%s1 + $0x64] sm:$0xf]
      %v206 = vld [vmem:[%s1 + $0x68] sm:$0xf]
      %v207 = vld [vmem:[%s1 + $0x6c] sm:$0xf]
      %v208 = vld [vmem:[%s1 + $0x70] sm:$0xf]
      %v209 = vld [vmem:[%s1 + $0x74] sm:$0xf]
      %v210 = vld [vmem:[%s1 + $0x78] sm:$0xf]
      %v211 = vld [vmem:[%s1 + $0x7c] sm:$0xf]
      %v212 = vld [vmem:[%s1 + $0x80] sm:$0xf]
      %v213 = vld [vmem:[%s1 + $0x84] sm:$0xf]
      %v214 = vld [vmem:[%s1 + $0x88] sm:$0xf]
      %v215 = vld [vmem:[%s1 + $0x8c] sm:$0xf]
      %v216 = vld [vmem:[%s2] sm:$0x1]
      %v218 = vlaneseq
      %v219 = vshrl.u32 %v218, 7
      %v220 = vsub.s32 0, %v219
      %v221 = vrot.slane %v216, %v220
      %v231 = vunpack.c.l.b16 %v172
      %v232 = vunpack.c.h.b16 %v172
      %v233 = vunpack.c.l.b16 %v173
      %v234 = vunpack.c.l.b16 %v174
      %v235 = vunpack.c.h.b16 %v174
      %v236 = vunpack.c.l.b16 %v175
      %v237 = vunpack.c.l.b16 %v176
      %v238 = vunpack.c.h.b16 %v176
      %v239 = vunpack.c.l.b16 %v177
      %v240 = vunpack.c.l.b16 %v178
      %v241 = vunpack.c.h.b16 %v178
      %v242 = vunpack.c.l.b16 %v179
      %v243 = vpack.c.b16 %v234, %v231
      %v244 = vpack.c.b16 %v235, %v232
      %v245 = vpack.c.b16 %v236, %v233
      %v246 = vpack.c.b16 %v240, %v237
      %v247 = vpack.c.b16 %v241, %v238
      %v248 = vpack.c.b16 %v242, %v239
      %v289 = vunpack.c.l.b16 %v180
      %v290 = vunpack.c.l.b16 %v181
      %v291 = vunpack.c.l.b16 %v182
      %v292 = vunpack.c.l.b16 %v183
      %v293 = vunpack.c.l.b16 %v184
      %v294 = vunpack.c.l.b16 %v185
      %v295 = vunpack.c.l.b16 %v186
      %v296 = vunpack.c.l.b16 %v187
      %v297 = vunpack.c.l.b16 %v188
      %v298 = vunpack.c.l.b16 %v189
      %v299 = vunpack.c.l.b16 %v190
      %v300 = vunpack.c.l.b16 %v191
      %v301 = vunpack.c.l.b16 %v192
      %v302 = vunpack.c.l.b16 %v193
      %v303 = vunpack.c.l.b16 %v194
      %v304 = vunpack.c.l.b16 %v195
      %v305 = vunpack.c.l.b16 %v196
      %v306 = vunpack.c.l.b16 %v197
      %v307 = vunpack.c.l.b16 %v198
      %v308 = vunpack.c.l.b16 %v199
      %v309 = vunpack.c.l.b16 %v200
      %v310 = vunpack.c.l.b16 %v201
      %v311 = vunpack.c.l.b16 %v202
      %v312 = vunpack.c.l.b16 %v203
      %v313 = vunpack.c.l.b16 %v204
      %v314 = vunpack.c.l.b16 %v205
      %v315 = vunpack.c.l.b16 %v206
      %v316 = vunpack.c.l.b16 %v207
      %v317 = vunpack.c.l.b16 %v208
      %v318 = vunpack.c.l.b16 %v209
      %v319 = vunpack.c.l.b16 %v210
      %v320 = vunpack.c.l.b16 %v211
      %v321 = vunpack.c.l.b16 %v212
      %v322 = vunpack.c.l.b16 %v213
      %v323 = vunpack.c.l.b16 %v214
      %v324 = vunpack.c.l.b16 %v215
      %v325 = vpack.c.b16 %v290, %v289
      %v326 = vpack.c.b16 %v292, %v291
      %v327 = vpack.c.b16 %v294, %v293
      %v328 = vpack.c.b16 %v296, %v295
      %v329 = vpack.c.b16 %v298, %v297
      %v330 = vpack.c.b16 %v300, %v299
      %v331 = vpack.c.b16 %v302, %v301
      %v332 = vpack.c.b16 %v304, %v303
      %v333 = vpack.c.b16 %v306, %v305
      %v334 = vpack.c.b16 %v308, %v307
      %v335 = vpack.c.b16 %v310, %v309
      %v336 = vpack.c.b16 %v312, %v311
      %v337 = vpack.c.b16 %v314, %v313
      %v338 = vpack.c.b16 %v316, %v315
      %v339 = vpack.c.b16 %v318, %v317
      %v340 = vpack.c.b16 %v320, %v319
      %v341 = vpack.c.b16 %v322, %v321
      %v342 = vpack.c.b16 %v324, %v323
      %vm361 = vcmask 261120
      %v363 = vsel %vm361, %v245, 0
      %v366 = vsel %vm361, %v248, 0
      %368 = vmatprep.subr.bf16.mxu0 0
      %369 = vmatpush1.bf16.msra.mxu0 %v325
      %370 = vmatprep.subr.bf16.mxu0 0
      %371 = vmatpush1.bf16.msra.mxu0 %v326
      %372 = vmatprep.subr.bf16.mxu0 0
      %373 = vmatpush1.bf16.msra.mxu0 %v327
      %374 = vmatprep.subr.bf16.mxu0 0
      %375 = vmatpush1.bf16.msra.mxu0 %v328
      %376 = vmatprep.subr.bf16.mxu0 0
      %377 = vmatpush1.bf16.msra.mxu0 %v329
      %378 = vmatprep.subr.bf16.mxu0 0
      %379 = vmatpush1.bf16.msra.mxu0 %v330
      %380 = vmatprep.subr.bf16.mxu0 0
      %381 = vmatpush1.bf16.msra.mxu0 %v331
      %382 = vmatprep.subr.bf16.mxu0 0
      %383 = vmatpush1.bf16.msra.mxu0 %v332
      %384 = vmatprep.subr.bf16.mxu0 0
      %385 = vmatpush1.bf16.msra.mxu0 %v333
      %386 = vmatprep.subr.bf16.mxu0 0
      %387 = vmatpush1.bf16.msra.mxu0 %v334
      %388 = vmatprep.subr.bf16.mxu0 0
      %389 = vmatpush1.bf16.msra.mxu0 %v335
      %390 = vmatprep.subr.bf16.mxu0 0
      %391 = vmatpush1.bf16.msra.mxu0 %v336
      %392 = vmatprep.subr.bf16.mxu0 0
      %393 = vmatpush1.bf16.msra.mxu0 %v337
      %394 = vmatprep.subr.bf16.mxu0 0
      %395 = vmatpush1.bf16.msra.mxu0 %v338
      %396 = vmatprep.subr.bf16.mxu0 0
      %397 = vmatpush1.bf16.msra.mxu0 %v339
      %398 = vmatprep.subr.bf16.mxu0 0
      %399 = vmatpush1.bf16.msra.mxu0 %v340
      %400 = vmatprep.mubr.bf16.mxu0 %v244
      %401 = vmatmul.mubr.bf16.gmra.mrb[0].mxu0 %v243
      %v402 = vpop.f32.mrb[0].mxu0
      %v403 = vadd.f32 %v221, %v402
      %v404 = vpop.f32.mrb[0].mxu0
      %v405 = vpop.f32.mrb[0].mxu0
      %v406 = vadd.f32 %v221, %v405
      %v407 = vpop.f32.mrb[0].mxu0
      %408 = vmatprep.mubr.bf16.mxu0 %v247
      %409 = vmatmul.mubr.bf16.gmra.mrb[0].mxu0 %v246
      %v410 = vpop.f32.mrb[0].mxu0
      %v411 = vadd.f32 %v221, %v410
      %v412 = vpop.f32.mrb[0].mxu0
      %v413 = vpop.f32.mrb[0].mxu0
      %v414 = vadd.f32 %v221, %v413
      %v415 = vpop.f32.mrb[0].mxu0
      %416 = vdwg.mxu0
      %417 = vmatprep.subr.bf16.mxu0 0
      %418 = vmatpush1.bf16.msra.mxu0 %v341
      %419 = vmatprep.subr.bf16.mxu0 0
      %420 = vmatpush1.bf16.msra.mxu0 %v342
      %421 = vmatprep.subr.bf16.mxu0 0
      %422 = vmatpush1.bf16.msra.mxu0 0
      %423 = vmatprep.subr.bf16.mxu0 0
      %424 = vmatpush1.bf16.msra.mxu0 0
      %425 = vmatprep.subr.bf16.mxu0 0
      %426 = vmatpush1.bf16.msra.mxu0 0
      %427 = vmatprep.subr.bf16.mxu0 0
      %428 = vmatpush1.bf16.msra.mxu0 0
      %429 = vmatprep.subr.bf16.mxu0 0
      %430 = vmatpush1.bf16.msra.mxu0 0
      %431 = vmatprep.subr.bf16.mxu0 0
      %432 = vmatpush1.bf16.msra.mxu0 0
      %433 = vmatprep.subr.bf16.mxu0 0
      %434 = vmatpush1.bf16.msra.mxu0 0
      %435 = vmatprep.subr.bf16.mxu0 0
      %436 = vmatpush1.bf16.msra.mxu0 0
      %437 = vmatprep.subr.bf16.mxu0 0
      %438 = vmatpush1.bf16.msra.mxu0 0
      %439 = vmatprep.subr.bf16.mxu0 0
      %440 = vmatpush1.bf16.msra.mxu0 0
      %441 = vmatprep.subr.bf16.mxu0 0
      %442 = vmatpush1.bf16.msra.mxu0 0
      %443 = vmatprep.subr.bf16.mxu0 0
      %444 = vmatpush1.bf16.msra.mxu0 0
      %445 = vmatprep.subr.bf16.mxu0 0
      %446 = vmatpush1.bf16.msra.mxu0 0
      %447 = vmatprep.subr.bf16.mxu0 0
      %448 = vmatpush1.bf16.msra.mxu0 0
      %449 = vmatprep.mubr.bf16.mxu0 0
      %450 = vmatmul.mubr.bf16.gmra.mrb[0].mxu0 %v363
      %v451 = vpop.f32.mrb[0].mxu0
      %v452 = vadd.f32 %v403, %v451
      %v453 = vpop.f32.mrb[0].mxu0
      %v454 = vpop.f32.mrb[0].mxu0
      %v455 = vadd.f32 %v406, %v454
      %v456 = vpop.f32.mrb[0].mxu0
      %457 = vmatprep.mubr.bf16.mxu0 0
      %458 = vmatmul.mubr.bf16.gmra.mrb[0].mxu0 %v366
      %v459 = vpop.f32.mrb[0].mxu0
      %v460 = vadd.f32 %v411, %v459
      %v461 = vpop.f32.mrb[0].mxu0
      %v462 = vpop.f32.mrb[0].mxu0
      %v463 = vadd.f32 %v414, %v462
      %v464 = vpop.f32.mrb[0].mxu0
      %465 = vdwg.mxu0
      %v466 = vmax.f32 %v452, 0.0
      %v467 = vmax.f32 %v455, 0.0
      %v468 = vmax.f32 %v460, 0.0
      %v469 = vmax.f32 %v463, 0.0
      %v470 = vpack.c.bf16 %v467, %v466
      %v471 = vpack.c.bf16 %v469, %v468
      %v474 = vunpack.c.l.b16 %v470
      %v475 = vunpack.c.h.b16 %v470
      %v476 = vunpack.c.l.b16 %v471
      %v477 = vunpack.c.h.b16 %v471
      %v478 = vpack.c.b16 %v474, %v474
      %v479 = vpack.c.b16 %v475, %v475
      %v480 = vpack.c.b16 %v476, %v476
      %v481 = vpack.c.b16 %v477, %v477
      %vm486 = vcmask 519168
      %487 = vst.msk [vmem:[%s170] sm:$0xf] %vm486, %v478
      %488 = vst.msk [vmem:[%s170 + $0x4] sm:$0xf] %vm486, %v479
      %489 = vst.msk [vmem:[%s170 + $0x8] sm:$0xf] %vm486, %v480
      %vm490 = vcmask 516096
      %vm491 = vsmask.f32 256
      %vm492 = vmand %vm490, %vm491
      %v493 = vld [vmem:[%s170 + $0xc] sm:$0x1]
      %v494 = vsel %vm492, %v481, %v493
      %495 = vst [vmem:[%s170 + $0xc] sm:$0x1] %v494
      %p496 = scmp.lt.s32.totalorder %s14, 1
      %s497 = scalar_select %p496, %s14, 1
      %s498 = smul.addr %s497, 4
      %s499 = smul.addr %s498, 4
      %s500 = scalar_lea.vmem %s3, %s499
      // Predicated region
      $region33: #{encoder_s_forward.9} parent=31 // pred_check
        %p501 = pneg %p100
      $region34: #{encoder_s_forward.9} parent=31 // pred_check_branch
        %503 = sbr.rel (%p501) target = $region36
      $region35: #{encoder_s_forward.9} parent=31 // pred_region
        _
      $region36: #{encoder_s_forward.9} parent=31 // pred_fallthru
        _
    $region32: #{encoder_s_forward.9} parent=5 // pred_fallthru
      _
    %p504 = scmp.le.s32.totalorder 2, %s9
    // Predicated region
    $region37: #{encoder_s_forward.9} parent=5 // pred_check
      %p505 = pneg %p504
    $region38: #{encoder_s_forward.9} parent=5 // pred_check_branch
      %507 = sbr.rel (%p505) target = $region40
    $region39: #{encoder_s_forward.9} parent=5 // pred_region
      %s508 = ssub.s32 %s9, 2
      // Predicated region
      $region41: #{encoder_s_forward.9} parent=39 // pred_check
        %p509 = pneg %p106
      $region42: #{encoder_s_forward.9} parent=39 // pred_check_branch
        %511 = sbr.rel (%p509) target = $region44
      $region43: #{encoder_s_forward.9} parent=39 // pred_region
        %p512 = scmp.lt.s32.totalorder %s15, 1
        %s513 = scalar_select %p512, %s15, 1
        %s514 = smul.addr %s513, 4
        %s515 = smul.addr %s514, 4
        %s516 = scalar_lea.vmem %s3, %s515
      $region44: #{encoder_s_forward.9} parent=39 // pred_fallthru
        _
    $region40: #{encoder_s_forward.9} parent=5 // pred_fallthru
      _
  $region6: #{encoder_s_forward.9} parent=0 // loop_footer
    %s13 = sadd.s32 1, %s9
  $region7: #{encoder_s_forward.9} parent=0 // loop_footer_branch
    %8 = sbr.rel target = $region3
  $region8: #{encoder_s_forward.9} parent=0 // loop_exit
    _

// kernel: encoder_s_forward.10
$region0: #{encoder_s_forward.10}
  #allocation0 [shape = 'u32[]', space=smem, size = 0x4, offset = 0x4, fixed_abs, tag = 'smem constant byte address 0x4 - core index']
  #allocation1 [shape = 'u32[144,128]{1,0:T(1,128)}', space=vmem, size = 0x12000, scoped, tag = 'internal scratch']
  %s0 = inlined_call_operand.vmem [shape: bf16[2,16,256], index: 0, kind: input, shape index: {}]
  %s1 = inlined_call_operand.vmem [shape: bf16[256,64], index: 1, kind: input, shape index: {}]
  %s2 = inlined_call_operand.vmem [shape: f32[1,64], index: 2, kind: input, shape index: {}]
  %s3 = inlined_call_operand.vmem [shape: bf16[2,16,64], index: 3, kind: output, shape index: {}]
  %s4 = sld [smem:[#allocation0]]
  $region45: #{encoder_s_forward.10} parent=0
    _
  %s6 = ssub.s32 1, %s4
  %s7 = scalar_select 0, %s6, %s4
  loop: start=0, step=1, limit=4
  $region2: #{encoder_s_forward.10} parent=0 // loop_pre_header
    _
  $region3: #{encoder_s_forward.10} parent=0 // loop_header
    %s9 = sphi 0, %s13
    %p10 = scmp.ge.s32.totalorder %s9, 4
    %s19 = sphi 0, %s21
    %s22 = sphi 0, %s19
    %s23 = sphi 0, %s22
    %s39 = sphi 0, %s23
    %s43 = sphi 0, %s43
    %s45 = sphi 0, %s43
    %s46 = sphi 0, %s45
    %s60 = sphi 0, %s46
    %s64 = sphi 0, %s64
    %s66 = sphi 0, %s64
    %s67 = sphi 0, %s66
    %s81 = sphi 0, %s67
    %s87 = sphi 0, %s89
    %s90 = sphi 0, %s87
    %s91 = sphi 0, %s90
    %s107 = sphi 0, %s91
  $region4: #{encoder_s_forward.10} parent=0 // loop_header_branch
    %12 = sbr.rel (%p10) target = $region8
  $region5: #{encoder_s_forward.10} parent=0 // loop_body
    %s14 = ssub.s32 %s9, 1
    %s15 = ssub.s32 %s9, 2
    %s16 = sadd.s32 %s9, 1
    %s17 = ssub.s32 %s9, %s16
    %p18 = scmp.eq.s32.totalorder %s17, 0
    %s20 = sadd.s32 %s19, 1
    %s21 = scalar_select %p18, %s19, %s20
    %p24 = pneg %p18
    %p25 = scmp.eq.s32.totalorder %s9, 1
    %p26 = por %p24, %p25
    %p27 = scmp.ne.s32.totalorder %s19, %s22
    %p28 = scmp.eq.s32.totalorder %s9, 0
    %p29 = por %p27, %p28
    %p30 = scmp.ne.s32.totalorder %s19, %s22
    %p31 = scmp.eq.s32.totalorder %s14, 1
    %p32 = por %p30, %p31
    %p33 = scmp.ne.s32.totalorder %s22, %s23
    %p34 = scmp.eq.s32.totalorder %s14, 0
    %p35 = por %p33, %p34
    %p36 = scmp.ne.s32.totalorder %s22, %s23
    %p37 = scmp.eq.s32.totalorder %s15, 1
    %p38 = por %p36, %p37
    %p40 = scmp.ne.s32.totalorder %s23, %s39
    %p41 = scmp.eq.s32.totalorder %s15, 0
    %p42 = por %p40, %p41
    %s44 = sadd.s32 %s43, 1
    %p47 = scmp.eq.s32.totalorder %s9, 1
    %p48 = scmp.ne.s32.totalorder %s43, %s45
    %p49 = scmp.eq.s32.totalorder %s9, 0
    %p50 = por %p48, %p49
    %p51 = scmp.ne.s32.totalorder %s43, %s45
    %p52 = scmp.eq.s32.totalorder %s14, 1
    %p53 = por %p51, %p52
    %p54 = scmp.ne.s32.totalorder %s45, %s46
    %p55 = scmp.eq.s32.totalorder %s14, 0
    %p56 = por %p54, %p55
    %p57 = scmp.ne.s32.totalorder %s45, %s46
    %p58 = scmp.eq.s32.totalorder %s15, 1
    %p59 = por %p57, %p58
    %p61 = scmp.ne.s32.totalorder %s46, %s60
    %p62 = scmp.eq.s32.totalorder %s15, 0
    %p63 = por %p61, %p62
    %s65 = sadd.s32 %s64, 1
    %p68 = scmp.eq.s32.totalorder %s9, 1
    %p69 = scmp.ne.s32.totalorder %s64, %s66
    %p70 = scmp.eq.s32.totalorder %s9, 0
    %p71 = por %p69, %p70
    %p72 = scmp.ne.s32.totalorder %s64, %s66
    %p73 = scmp.eq.s32.totalorder %s14, 1
    %p74 = por %p72, %p73
    %p75 = scmp.ne.s32.totalorder %s66, %s67
    %p76 = scmp.eq.s32.totalorder %s14, 0
    %p77 = por %p75, %p76
    %p78 = scmp.ne.s32.totalorder %s66, %s67
    %p79 = scmp.eq.s32.totalorder %s15, 1
    %p80 = por %p78, %p79
    %p82 = scmp.ne.s32.totalorder %s67, %s81
    %p83 = scmp.eq.s32.totalorder %s15, 0
    %p84 = por %p82, %p83
    %s85 = ssub.s32 %s9, %s16
    %p86 = scmp.eq.s32.totalorder %s85, 0
    %s88 = sadd.s32 %s87, 1
    %s89 = scalar_select %p86, %s87, %s88
    %p92 = pneg %p86
    %p93 = scmp.eq.s32.totalorder %s9, 1
    %p94 = por %p92, %p93
    %p95 = scmp.ne.s32.totalorder %s87, %s90
    %p96 = scmp.eq.s32.totalorder %s9, 0
    %p97 = por %p95, %p96
    %p98 = scmp.ne.s32.totalorder %s87, %s90
    %p99 = scmp.eq.s32.totalorder %s14, 1
    %p100 = por %p98, %p99
    %p101 = scmp.ne.s32.totalorder %s90, %s91
    %p102 = scmp.eq.s32.totalorder %s14, 0
    %p103 = por %p101, %p102
    %p104 = scmp.ne.s32.totalorder %s90, %s91
    %p105 = scmp.eq.s32.totalorder %s15, 1
    %p106 = por %p104, %p105
    %p108 = scmp.ne.s32.totalorder %s91, %s107
    %p109 = scmp.eq.s32.totalorder %s15, 0
    %p110 = por %p108, %p109
    %p111 = scmp.le.s32.totalorder 1, %s9
    %p112 = scmp.lt.s32.totalorder %s9, 3
    %p113 = pnand %p111, %p112
    %p114 = pneg %p113
    // Predicated region
    $region9: #{encoder_s_forward.10} parent=5 // pred_check
      _
    $region10: #{encoder_s_forward.10} parent=5 // pred_check_branch
      %116 = sbr.rel (%p113) target = $region12
    $region11: #{encoder_s_forward.10} parent=5 // pred_region
      %s117 = ssub.s32 %s9, 1
      // Predicated region
      $region13: #{encoder_s_forward.10} parent=11 // pred_check
        %p118 = pneg %p56
      $region14: #{encoder_s_forward.10} parent=11 // pred_check_branch
        %120 = sbr.rel (%p118) target = $region16
      $region15: #{encoder_s_forward.10} parent=11 // pred_region
        _
      $region16: #{encoder_s_forward.10} parent=11 // pred_fallthru
        _
      // Predicated region
      $region17: #{encoder_s_forward.10} parent=11 // pred_check
        %p121 = pneg %p77
      $region18: #{encoder_s_forward.10} parent=11 // pred_check_branch
        %123 = sbr.rel (%p121) target = $region20
      $region19: #{encoder_s_forward.10} parent=11 // pred_region
        _
      $region20: #{encoder_s_forward.10} parent=11 // pred_fallthru
        _
    $region12: #{encoder_s_forward.10} parent=5 // pred_fallthru
      _
    %p124 = scmp.lt.s32.totalorder %s9, 2
    // Predicated region
    $region21: #{encoder_s_forward.10} parent=5 // pred_check
      %p125 = pneg %p124
    $region22: #{encoder_s_forward.10} parent=5 // pred_check_branch
      %127 = sbr.rel (%p125) target = $region24
    $region23: #{encoder_s_forward.10} parent=5 // pred_region
      // Predicated region
      $region25: #{encoder_s_forward.10} parent=23 // pred_check
        %p128 = pneg %p29
      $region26: #{encoder_s_forward.10} parent=23 // pred_check_branch
        %130 = sbr.rel (%p128) target = $region28
      $region27: #{encoder_s_forward.10} parent=23 // pred_region
        %p131 = scmp.lt.s32.totalorder %s9, 1
        %s132 = scalar_select %p131, %s9, 1
        %s133 = smul.addr %s132, 4
        %s134 = smul.addr %s133, 4
        %s135 = scalar_lea.vmem %s0, %s134
      $region28: #{encoder_s_forward.10} parent=23 // pred_fallthru
        _
    $region24: #{encoder_s_forward.10} parent=5 // pred_fallthru
      _
    %p136 = scmp.le.s32.totalorder 1, %s9
    %p137 = scmp.lt.s32.totalorder %s9, 3
    %p138 = pnand %p136, %p137
    %p139 = pneg %p138
    // Predicated region
    $region29: #{encoder_s_forward.10} parent=5 // pred_check
      _
    $region30: #{encoder_s_forward.10} parent=5 // pred_check_branch
      %141 = sbr.rel (%p138) target = $region32
    $region31: #{encoder_s_forward.10} parent=5 // pred_region
      %s142 = ssub.s32 %s9, 1
      %p143 = scmp.lt.s32.totalorder %s14, 1
      %s144 = scalar_select %p143, %s14, 1
      %s145 = smul.addr %s144, 4
      %s146 = smul.addr %s145, 4
      %s147 = scalar_lea.vmem %s0, %s146
      %p148 = pneg %p35
      %p149 = pneg %p32
      %p150 = pneg %p56
      %p151 = pneg %p53
      %p152 = pneg %p77
      %p153 = pneg %p74
      %p154 = pneg %p103
      %p155 = pneg %p100
      %p156 = scmp.lt.s32.totalorder %s14, 1
      %s157 = scalar_select %p156, %s14, 1
      %s158 = smul.addr %s157, 2
      %s159 = smul.addr %s158, 4
      %s160 = scalar_lea.vmem %s3, %s159
      %p161 = scmp.lt.s32.totalorder %s14, 1
      %s162 = scalar_select %p161, %s14, 1
      %s163 = smul.addr %s162, 4
      %s164 = smul.addr %s163, 4
      %s165 = scalar_lea.vmem %s0, %s164
      %p166 = scmp.lt.s32.totalorder %s14, 1
      %s167 = scalar_select %p166, %s14, 1
      %s168 = smul.addr %s167, 2
      %s169 = smul.addr %s168, 4
      %s170 = scalar_lea.vmem %s3, %s169
      %v172 = vld [vmem:[%s165] sm:$0xff]
      %v173 = vld [vmem:[%s165 + $0x8] sm:$0xff]
      %v174 = vld [vmem:[%s1] sm:$0xf]
      %v175 = vld [vmem:[%s1 + $0x4] sm:$0xf]
      %v176 = vld [vmem:[%s1 + $0x8] sm:$0xf]
      %v177 = vld [vmem:[%s1 + $0xc] sm:$0xf]
      %v178 = vld [vmem:[%s1 + $0x10] sm:$0xf]
      %v179 = vld [vmem:[%s1 + $0x14] sm:$0xf]
      %v180 = vld [vmem:[%s1 + $0x18] sm:$0xf]
      %v181 = vld [vmem:[%s1 + $0x1c] sm:$0xf]
      %v182 = vld [vmem:[%s1 + $0x20] sm:$0xf]
      %v183 = vld [vmem:[%s1 + $0x24] sm:$0xf]
      %v184 = vld [vmem:[%s1 + $0x28] sm:$0xf]
      %v185 = vld [vmem:[%s1 + $0x2c] sm:$0xf]
      %v186 = vld [vmem:[%s1 + $0x30] sm:$0xf]
      %v187 = vld [vmem:[%s1 + $0x34] sm:$0xf]
      %v188 = vld [vmem:[%s1 + $0x38] sm:$0xf]
      %v189 = vld [vmem:[%s1 + $0x3c] sm:$0xf]
      %v190 = vld [vmem:[%s1 + $0x40] sm:$0xf]
      %v191 = vld [vmem:[%s1 + $0x44] sm:$0xf]
      %v192 = vld [vmem:[%s1 + $0x48] sm:$0xf]
      %v193 = vld [vmem:[%s1 + $0x4c] sm:$0xf]
      %v194 = vld [vmem:[%s1 + $0x50] sm:$0xf]
      %v195 = vld [vmem:[%s1 + $0x54] sm:$0xf]
      %v196 = vld [vmem:[%s1 + $0x58] sm:$0xf]
      %v197 = vld [vmem:[%s1 + $0x5c] sm:$0xf]
      %v198 = vld [vmem:[%s1 + $0x60] sm:$0xf]
      %v199 = vld [vmem:[%s1 + $0x64] sm:$0xf]
      %v200 = vld [vmem:[%s1 + $0x68] sm:$0xf]
      %v201 = vld [vmem:[%s1 + $0x6c] sm:$0xf]
      %v202 = vld [vmem:[%s1 + $0x70] sm:$0xf]
      %v203 = vld [vmem:[%s1 + $0x74] sm:$0xf]
      %v204 = vld [vmem:[%s1 + $0x78] sm:$0xf]
      %v205 = vld [vmem:[%s1 + $0x7c] sm:$0xf]
      %v206 = vld [vmem:[%s2] sm:$0x1]
      %v208 = vlaneseq
      %v209 = vshrl.u32 %v208, 7
      %v210 = vsub.s32 0, %v209
      %v211 = vrot.slane %v206, %v210
      %v215 = vunpack.c.l.b16 %v172
      %v216 = vunpack.c.h.b16 %v172
      %v217 = vunpack.c.l.b16 %v173
      %v218 = vunpack.c.h.b16 %v173
      %v219 = vpack.c.b16 %v217, %v215
      %v220 = vpack.c.b16 %v218, %v216
      %v255 = vunpack.c.l.b16 %v174
      %v256 = vunpack.c.l.b16 %v175
      %v257 = vunpack.c.l.b16 %v176
      %v258 = vunpack.c.l.b16 %v177
      %v259 = vunpack.c.l.b16 %v178
      %v260 = vunpack.c.l.b16 %v179
      %v261 = vunpack.c.l.b16 %v180
      %v262 = vunpack.c.l.b16 %v181
      %v263 = vunpack.c.l.b16 %v182
      %v264 = vunpack.c.l.b16 %v183
      %v265 = vunpack.c.l.b16 %v184
      %v266 = vunpack.c.l.b16 %v185
      %v267 = vunpack.c.l.b16 %v186
      %v268 = vunpack.c.l.b16 %v187
      %v269 = vunpack.c.l.b16 %v188
      %v270 = vunpack.c.l.b16 %v189
      %v271 = vunpack.c.l.b16 %v190
      %v272 = vunpack.c.l.b16 %v191
      %v273 = vunpack.c.l.b16 %v192
      %v274 = vunpack.c.l.b16 %v193
      %v275 = vunpack.c.l.b16 %v194
      %v276 = vunpack.c.l.b16 %v195
      %v277 = vunpack.c.l.b16 %v196
      %v278 = vunpack.c.l.b16 %v197
      %v279 = vunpack.c.l.b16 %v198
      %v280 = vunpack.c.l.b16 %v199
      %v281 = vunpack.c.l.b16 %v200
      %v282 = vunpack.c.l.b16 %v201
      %v283 = vunpack.c.l.b16 %v202
      %v284 = vunpack.c.l.b16 %v203
      %v285 = vunpack.c.l.b16 %v204
      %v286 = vunpack.c.l.b16 %v205
      %v287 = vpack.c.b16 %v256, %v255
      %v288 = vpack.c.b16 %v258, %v257
      %v289 = vpack.c.b16 %v260, %v259
      %v290 = vpack.c.b16 %v262, %v261
      %v291 = vpack.c.b16 %v264, %v263
      %v292 = vpack.c.b16 %v266, %v265
      %v293 = vpack.c.b16 %v268, %v267
      %v294 = vpack.c.b16 %v270, %v269
      %v295 = vpack.c.b16 %v272, %v271
      %v296 = vpack.c.b16 %v274, %v273
      %v297 = vpack.c.b16 %v276, %v275
      %v298 = vpack.c.b16 %v278, %v277
      %v299 = vpack.c.b16 %v280, %v279
      %v300 = vpack.c.b16 %v282, %v281
      %v301 = vpack.c.b16 %v284, %v283
      %v302 = vpack.c.b16 %v286, %v285
      %319 = vmatprep.subr.bf16.mxu0 0
      %320 = vmatpush1.bf16.msra.mxu0 %v287
      %321 = vmatprep.subr.bf16.mxu0 0
      %322 = vmatpush1.bf16.msra.mxu0 %v288
      %323 = vmatprep.subr.bf16.mxu0 0
      %324 = vmatpush1.bf16.msra.mxu0 %v289
      %325 = vmatprep.subr.bf16.mxu0 0
      %326 = vmatpush1.bf16.msra.mxu0 %v290
      %327 = vmatprep.subr.bf16.mxu0 0
      %328 = vmatpush1.bf16.msra.mxu0 %v291
      %329 = vmatprep.subr.bf16.mxu0 0
      %330 = vmatpush1.bf16.msra.mxu0 %v292
      %331 = vmatprep.subr.bf16.mxu0 0
      %332 = vmatpush1.bf16.msra.mxu0 %v293
      %333 = vmatprep.subr.bf16.mxu0 0
      %334 = vmatpush1.bf16.msra.mxu0 %v294
      %335 = vmatprep.subr.bf16.mxu0 0
      %336 = vmatpush1.bf16.msra.mxu0 %v295
      %337 = vmatprep.subr.bf16.mxu0 0
      %338 = vmatpush1.bf16.msra.mxu0 %v296
      %339 = vmatprep.subr.bf16.mxu0 0
      %340 = vmatpush1.bf16.msra.mxu0 %v297
      %341 = vmatprep.subr.bf16.mxu0 0
      %342 = vmatpush1.bf16.msra.mxu0 %v298
      %343 = vmatprep.subr.bf16.mxu0 0
      %344 = vmatpush1.bf16.msra.mxu0 %v299
      %345 = vmatprep.subr.bf16.mxu0 0
      %346 = vmatpush1.bf16.msra.mxu0 %v300
      %347 = vmatprep.subr.bf16.mxu0 0
      %348 = vmatpush1.bf16.msra.mxu0 %v301
      %349 = vmatprep.subr.bf16.mxu0 0
      %350 = vmatpush1.bf16.msra.mxu0 %v302
      %351 = vmatprep.mubr.bf16.mxu0 %v220
      %352 = vmatmul.mubr.bf16.gmra.mrb[0].mxu0 %v219
      %v353 = vpop.f32.mrb[0].mxu0
      %v354 = vadd.f32 %v211, %v353
      %v355 = vpop.f32.mrb[0].mxu0
      %v356 = vpop.f32.mrb[0].mxu0
      %v357 = vadd.f32 %v211, %v356
      %v358 = vpop.f32.mrb[0].mxu0
      %359 = vdwg.mxu0
      %v360 = vmax.f32 %v354, 0.0
      %v361 = vmax.f32 %v357, 0.0
      %v362 = vpack.c.bf16 %v361, %v360
      %v364 = vunpack.c.l.b16 %v362
      %v365 = vunpack.c.h.b16 %v362
      %v366 = vpack.c.b16 %v364, %v364
      %v367 = vpack.c.b16 %v365, %v365
      %vm370 = vcmask 519168
      %371 = vst.msk [vmem:[%s170] sm:$0xf] %vm370, %v366
      %372 = vst.msk [vmem:[%s170 + $0x4] sm:$0xf] %vm370, %v367
      %p373 = scmp.lt.s32.totalorder %s14, 1
      %s374 = scalar_select %p373, %s14, 1
      %s375 = smul.addr %s374, 2
      %s376 = smul.addr %s375, 4
      %s377 = scalar_lea.vmem %s3, %s376
      // Predicated region
      $region33: #{encoder_s_forward.10} parent=31 // pred_check
        %p378 = pneg %p100
      $region34: #{encoder_s_forward.10} parent=31 // pred_check_branch
        %380 = sbr.rel (%p378) target = $region36
      $region35: #{encoder_s_forward.10} parent=31 // pred_region
        _
      $region36: #{encoder_s_forward.10} parent=31 // pred_fallthru
        _
    $region32: #{encoder_s_forward.10} parent=5 // pred_fallthru
      _
    %p381 = scmp.le.s32.totalorder 2, %s9
    // Predicated region
    $region37: #{encoder_s_forward.10} parent=5 // pred_check
      %p382 = pneg %p381
    $region38: #{encoder_s_forward.10} parent=5 // pred_check_branch
      %384 = sbr.rel (%p382) target = $region40
    $region39: #{encoder_s_forward.10} parent=5 // pred_region
      %s385 = ssub.s32 %s9, 2
      // Predicated region
      $region41: #{encoder_s_forward.10} parent=39 // pred_check
        %p386 = pneg %p106
      $region42: #{encoder_s_forward.10} parent=39 // pred_check_branch
        %388 = sbr.rel (%p386) target = $region44
      $region43: #{encoder_s_forward.10} parent=39 // pred_region
        %p389 = scmp.lt.s32.totalorder %s15, 1
        %s390 = scalar_select %p389, %s15, 1
        %s391 = smul.addr %s390, 2
        %s392 = smul.addr %s391, 4
        %s393 = scalar_lea.vmem %s3, %s392
      $region44: #{encoder_s_forward.10} parent=39 // pred_fallthru
        _
    $region40: #{encoder_s_forward.10} parent=5 // pred_fallthru
      _
  $region6: #{encoder_s_forward.10} parent=0 // loop_footer
    %s13 = sadd.s32 1, %s9
  $region7: #{encoder_s_forward.10} parent=0 // loop_footer_branch
    %8 = sbr.rel target = $region3
  $region8: #{encoder_s_forward.10} parent=0 // loop_exit
    _

// kernel: encoder_s_forward.11
$region0: #{encoder_s_forward.11}
  #allocation0 [shape = 'u32[]', space=smem, size = 0x4, offset = 0x4, fixed_abs, tag = 'smem constant byte address 0x4 - core index']
  #allocation1 [shape = 'u32[144,128]{1,0:T(1,128)}', space=vmem, size = 0x12000, scoped, tag = 'internal scratch']
  %s0 = inlined_call_operand.vmem [shape: bf16[2,1024], index: 0, kind: input, shape index: {}]
  %s1 = inlined_call_operand.vmem [shape: bf16[1024,128], index: 1, kind: input, shape index: {}]
  %s2 = inlined_call_operand.vmem [shape: f32[1,128], index: 2, kind: input, shape index: {}]
  %s3 = inlined_call_operand.vmem [shape: bf16[128,64], index: 3, kind: input, shape index: {}]
  %s4 = inlined_call_operand.vmem [shape: f32[1,64], index: 4, kind: input, shape index: {}]
  %s5 = inlined_call_operand.hbm [shape: f32[2,64], index: 5, kind: output, shape index: {}]
  %s6 = sld [smem:[#allocation0]]
  $region30: #{encoder_s_forward.11} parent=0
    _
  %s8 = ssub.s32 1, %s6
  %s9 = scalar_select 0, %s8, %s6
  $region1: #{encoder_s_forward.11} parent=0
    #allocation2 [shape = 'u8[1024]{0}', space=vmem, size = 0x400, scoped, tag = 'output window, operand 0, single buffered']
    #allocation3 [shape = 's32[1]{0}', space=sflag, size = 0x4, scoped, tag = 'scoped memory for encoder_s_forward.11']
    %10 = vsyncpa [#allocation3], 0
    // Predicated region
    $region2: #{encoder_s_forward.11} parent=1 // pred_check
      _
    $region3: #{encoder_s_forward.11} parent=1 // pred_check_branch
      %12 = sbr.rel (0) target = $region5
    $region4: #{encoder_s_forward.11} parent=1 // pred_region
      _
    $region5: #{encoder_s_forward.11} parent=1 // pred_fallthru
      _
    // Predicated region
    $region6: #{encoder_s_forward.11} parent=1 // pred_check
      _
    $region7: #{encoder_s_forward.11} parent=1 // pred_check_branch
      %14 = sbr.rel (0) target = $region9
    $region8: #{encoder_s_forward.11} parent=1 // pred_region
      _
    $region9: #{encoder_s_forward.11} parent=1 // pred_fallthru
      _
    // Predicated region
    $region10: #{encoder_s_forward.11} parent=1 // pred_check
      _
    $region11: #{encoder_s_forward.11} parent=1 // pred_check_branch
      %16 = sbr.rel (0) target = $region13
    $region12: #{encoder_s_forward.11} parent=1 // pred_region
      _
    $region13: #{encoder_s_forward.11} parent=1 // pred_fallthru
      _
    // Predicated region
    $region14: #{encoder_s_forward.11} parent=1 // pred_check
      _
    $region15: #{encoder_s_forward.11} parent=1 // pred_check_branch
      %18 = sbr.rel (0) target = $region17
    $region16: #{encoder_s_forward.11} parent=1 // pred_region
      _
    $region17: #{encoder_s_forward.11} parent=1 // pred_fallthru
      _
    // Predicated region
    $region18: #{encoder_s_forward.11} parent=1 // pred_check
      _
    $region19: #{encoder_s_forward.11} parent=1 // pred_check_branch
      %20 = sbr.rel (0) target = $region21
    $region20: #{encoder_s_forward.11} parent=1 // pred_region
      _
    $region21: #{encoder_s_forward.11} parent=1 // pred_fallthru
      _
    %v22 = vld [vmem:[%s0] sm:$0xff]
    %v23 = vld [vmem:[%s1] sm:$0xf]
    %v24 = vld [vmem:[%s1 + $0x4] sm:$0xf]
    %v25 = vld [vmem:[%s1 + $0x8] sm:$0xf]
    %v26 = vld [vmem:[%s1 + $0xc] sm:$0xf]
    %v27 = vld [vmem:[%s1 + $0x10] sm:$0xf]
    %v28 = vld [vmem:[%s1 + $0x14] sm:$0xf]
    %v29 = vld [vmem:[%s1 + $0x18] sm:$0xf]
    %v30 = vld [vmem:[%s1 + $0x1c] sm:$0xf]
    %v31 = vld [vmem:[%s1 + $0x20] sm:$0xf]
    %v32 = vld [vmem:[%s1 + $0x24] sm:$0xf]
    %v33 = vld [vmem:[%s1 + $0x28] sm:$0xf]
    %v34 = vld [vmem:[%s1 + $0x2c] sm:$0xf]
    %v35 = vld [vmem:[%s1 + $0x30] sm:$0xf]
    %v36 = vld [vmem:[%s1 + $0x34] sm:$0xf]
    %v37 = vld [vmem:[%s1 + $0x38] sm:$0xf]
    %v38 = vld [vmem:[%s1 + $0x3c] sm:$0xf]
    %v39 = vld [vmem:[%s1 + $0x40] sm:$0xf]
    %v40 = vld [vmem:[%s1 + $0x44] sm:$0xf]
    %v41 = vld [vmem:[%s1 + $0x48] sm:$0xf]
    %v42 = vld [vmem:[%s1 + $0x4c] sm:$0xf]
    %v43 = vld [vmem:[%s1 + $0x50] sm:$0xf]
    %v44 = vld [vmem:[%s1 + $0x54] sm:$0xf]
    %v45 = vld [vmem:[%s1 + $0x58] sm:$0xf]
    %v46 = vld [vmem:[%s1 + $0x5c] sm:$0xf]
    %v47 = vld [vmem:[%s1 + $0x60] sm:$0xf]
    %v48 = vld [vmem:[%s1 + $0x64] sm:$0xf]
    %v49 = vld [vmem:[%s1 + $0x68] sm:$0xf]
    %v50 = vld [vmem:[%s1 + $0x6c] sm:$0xf]
    %v51 = vld [vmem:[%s1 + $0x70] sm:$0xf]
    %v52 = vld [vmem:[%s1 + $0x74] sm:$0xf]
    %v53 = vld [vmem:[%s1 + $0x78] sm:$0xf]
    %v54 = vld [vmem:[%s1 + $0x7c] sm:$0xf]
    %v55 = vld [vmem:[%s1 + $0x80] sm:$0xf]
    %v56 = vld [vmem:[%s1 + $0x84] sm:$0xf]
    %v57 = vld [vmem:[%s1 + $0x88] sm:$0xf]
    %v58 = vld [vmem:[%s1 + $0x8c] sm:$0xf]
    %v59 = vld [vmem:[%s1 + $0x90] sm:$0xf]
    %v60 = vld [vmem:[%s1 + $0x94] sm:$0xf]
    %v61 = vld [vmem:[%s1 + $0x98] sm:$0xf]
    %v62 = vld [vmem:[%s1 + $0x9c] sm:$0xf]
    %v63 = vld [vmem:[%s1 + $0xa0] sm:$0xf]
    %v64 = vld [vmem:[%s1 + $0xa4] sm:$0xf]
    %v65 = vld [vmem:[%s1 + $0xa8] sm:$0xf]
    %v66 = vld [vmem:[%s1 + $0xac] sm:$0xf]
    %v67 = vld [vmem:[%s1 + $0xb0] sm:$0xf]
    %v68 = vld [vmem:[%s1 + $0xb4] sm:$0xf]
    %v69 = vld [vmem:[%s1 + $0xb8] sm:$0xf]
    %v70 = vld [vmem:[%s1 + $0xbc] sm:$0xf]
    %v71 = vld [vmem:[%s1 + $0xc0] sm:$0xf]
    %v72 = vld [vmem:[%s1 + $0xc4] sm:$0xf]
    %v73 = vld [vmem:[%s1 + $0xc8] sm:$0xf]
    %v74 = vld [vmem:[%s1 + $0xcc] sm:$0xf]
    %v75 = vld [vmem:[%s1 + $0xd0] sm:$0xf]
    %v76 = vld [vmem:[%s1 + $0xd4] sm:$0xf]
    %v77 = vld [vmem:[%s1 + $0xd8] sm:$0xf]
    %v78 = vld [vmem:[%s1 + $0xdc] sm:$0xf]
    %v79 = vld [vmem:[%s1 + $0xe0] sm:$0xf]
    %v80 = vld [vmem:[%s1 + $0xe4] sm:$0xf]
    %v81 = vld [vmem:[%s1 + $0xe8] sm:$0xf]
    %v82 = vld [vmem:[%s1 + $0xec] sm:$0xf]
    %v83 = vld [vmem:[%s1 + $0xf0] sm:$0xf]
    %v84 = vld [vmem:[%s1 + $0xf4] sm:$0xf]
    %v85 = vld [vmem:[%s1 + $0xf8] sm:$0xf]
    %v86 = vld [vmem:[%s1 + $0xfc] sm:$0xf]
    %v87 = vld [vmem:[%s1 + $0x100] sm:$0xf]
    %v88 = vld [vmem:[%s1 + $0x104] sm:$0xf]
    %v89 = vld [vmem:[%s1 + $0x108] sm:$0xf]
    %v90 = vld [vmem:[%s1 + $0x10c] sm:$0xf]
    %v91 = vld [vmem:[%s1 + $0x110] sm:$0xf]
    %v92 = vld [vmem:[%s1 + $0x114] sm:$0xf]
    %v93 = vld [vmem:[%s1 + $0x118] sm:$0xf]
    %v94 = vld [vmem:[%s1 + $0x11c] sm:$0xf]
    %v95 = vld [vmem:[%s1 + $0x120] sm:$0xf]
    %v96 = vld [vmem:[%s1 + $0x124] sm:$0xf]
    %v97 = vld [vmem:[%s1 + $0x128] sm:$0xf]
    %v98 = vld [vmem:[%s1 + $0x12c] sm:$0xf]
    %v99 = vld [vmem:[%s1 + $0x130] sm:$0xf]
    %v100 = vld [vmem:[%s1 + $0x134] sm:$0xf]
    %v101 = vld [vmem:[%s1 + $0x138] sm:$0xf]
    %v102 = vld [vmem:[%s1 + $0x13c] sm:$0xf]
    %v103 = vld [vmem:[%s1 + $0x140] sm:$0xf]
    %v104 = vld [vmem:[%s1 + $0x144] sm:$0xf]
    %v105 = vld [vmem:[%s1 + $0x148] sm:$0xf]
    %v106 = vld [vmem:[%s1 + $0x14c] sm:$0xf]
    %v107 = vld [vmem:[%s1 + $0x150] sm:$0xf]
    %v108 = vld [vmem:[%s1 + $0x154] sm:$0xf]
    %v109 = vld [vmem:[%s1 + $0x158] sm:$0xf]
    %v110 = vld [vmem:[%s1 + $0x15c] sm:$0xf]
    %v111 = vld [vmem:[%s1 + $0x160] sm:$0xf]
    %v112 = vld [vmem:[%s1 + $0x164] sm:$0xf]
    %v113 = vld [vmem:[%s1 + $0x168] sm:$0xf]
    %v114 = vld [vmem:[%s1 + $0x16c] sm:$0xf]
    %v115 = vld [vmem:[%s1 + $0x170] sm:$0xf]
    %v116 = vld [vmem:[%s1 + $0x174] sm:$0xf]
    %v117 = vld [vmem:[%s1 + $0x178] sm:$0xf]
    %v118 = vld [vmem:[%s1 + $0x17c] sm:$0xf]
    %v119 = vld [vmem:[%s1 + $0x180] sm:$0xf]
    %v120 = vld [vmem:[%s1 + $0x184] sm:$0xf]
    %v121 = vld [vmem:[%s1 + $0x188] sm:$0xf]
    %v122 = vld [vmem:[%s1 + $0x18c] sm:$0xf]
    %v123 = vld [vmem:[%s1 + $0x190] sm:$0xf]
    %v124 = vld [vmem:[%s1 + $0x194] sm:$0xf]
    %v125 = vld [vmem:[%s1 + $0x198] sm:$0xf]
    %v126 = vld [vmem:[%s1 + $0x19c] sm:$0xf]
    %v127 = vld [vmem:[%s1 + $0x1a0] sm:$0xf]
    %v128 = vld [vmem:[%s1 + $0x1a4] sm:$0xf]
    %v129 = vld [vmem:[%s1 + $0x1a8] sm:$0xf]
    %v130 = vld [vmem:[%s1 + $0x1ac] sm:$0xf]
    %v131 = vld [vmem:[%s1 + $0x1b0] sm:$0xf]
    %v132 = vld [vmem:[%s1 + $0x1b4] sm:$0xf]
    %v133 = vld [vmem:[%s1 + $0x1b8] sm:$0xf]
    %v134 = vld [vmem:[%s1 + $0x1bc] sm:$0xf]
    %v135 = vld [vmem:[%s1 + $0x1c0] sm:$0xf]
    %v136 = vld [vmem:[%s1 + $0x1c4] sm:$0xf]
    %v137 = vld [vmem:[%s1 + $0x1c8] sm:$0xf]
    %v138 = vld [vmem:[%s1 + $0x1cc] sm:$0xf]
    %v139 = vld [vmem:[%s1 + $0x1d0] sm:$0xf]
    %v140 = vld [vmem:[%s1 + $0x1d4] sm:$0xf]
    %v141 = vld [vmem:[%s1 + $0x1d8] sm:$0xf]
    %v142 = vld [vmem:[%s1 + $0x1dc] sm:$0xf]
    %v143 = vld [vmem:[%s1 + $0x1e0] sm:$0xf]
    %v144 = vld [vmem:[%s1 + $0x1e4] sm:$0xf]
    %v145 = vld [vmem:[%s1 + $0x1e8] sm:$0xf]
    %v146 = vld [vmem:[%s1 + $0x1ec] sm:$0xf]
    %v147 = vld [vmem:[%s1 + $0x1f0] sm:$0xf]
    %v148 = vld [vmem:[%s1 + $0x1f4] sm:$0xf]
    %v149 = vld [vmem:[%s1 + $0x1f8] sm:$0xf]
    %v150 = vld [vmem:[%s1 + $0x1fc] sm:$0xf]
    %v151 = vld [vmem:[%s2] sm:$0x1]
    %v153 = vlaneseq
    %v154 = vshrl.u32 %v153, 7
    %v155 = vsub.s32 0, %v154
    %v156 = vrot.slane %v151, %v155
    %v159 = vcombine.high %v22, %v22
    %v161 = vunpack.c.l.s4 1966171168
    %v162 = vunpack.c.0.s8 %v161
    %v163 = vlaneseq
    %v164 = vshrl.u32 %v163, 7
    %v165 = vsub.s32 %v162, %v164
    %v166 = vrot.slane %v22, %v165
    %v168 = vunpack.c.l.s4 1966171168
    %v169 = vunpack.c.0.s8 %v168
    %v170 = vlaneseq
    %v171 = vshrl.u32 %v170, 7
    %v172 = vsub.s32 %v169, %v171
    %v173 = vrot.slane %v159, %v172
    %v174 = vcombine.high %v166, %v166
    %v175 = vcombine.high %v173, %v173
    %v177 = vunpack.c.l.s4 1966171168
    %v178 = vunpack.c.0.s8 %v177
    %v179 = vlaneseq
    %v180 = vshrl.u32 %v179, 7
    %v181 = vsub.s32 %v178, %v180
    %v182 = vrot.slane %v166, %v181
    %v184 = vunpack.c.l.s4 1966171168
    %v185 = vunpack.c.0.s8 %v184
    %v186 = vlaneseq
    %v187 = vshrl.u32 %v186, 7
    %v188 = vsub.s32 %v185, %v187
    %v189 = vrot.slane %v173, %v188
    %v191 = vunpack.c.l.s4 1966171168
    %v192 = vunpack.c.0.s8 %v191
    %v193 = vlaneseq
    %v194 = vshrl.u32 %v193, 7
    %v195 = vsub.s32 %v192, %v194
    %v196 = vrot.slane %v174, %v195
    %v198 = vunpack.c.l.s4 1966171168
    %v199 = vunpack.c.0.s8 %v198
    %v200 = vlaneseq
    %v201 = vshrl.u32 %v200, 7
    %v202 = vsub.s32 %v199, %v201
    %v203 = vrot.slane %v175, %v202
    %v204 = vcombine.high %v182, %v182
    %v205 = vcombine.high %v189, %v189
    %v206 = vcombine.high %v196, %v196
    %v207 = vcombine.high %v203, %v203
    %v344 = vunpack.c.l.b16 %v23
    %v345 = vunpack.c.l.b16 %v24
    %v346 = vunpack.c.l.b16 %v25
    %v347 = vunpack.c.l.b16 %v26
    %v348 = vunpack.c.l.b16 %v27
    %v349 = vunpack.c.l.b16 %v28
    %v350 = vunpack.c.l.b16 %v29
    %v351 = vunpack.c.l.b16 %v30
    %v352 = vunpack.c.l.b16 %v31
    %v353 = vunpack.c.l.b16 %v32
    %v354 = vunpack.c.l.b16 %v33
    %v355 = vunpack.c.l.b16 %v34
    %v356 = vunpack.c.l.b16 %v35
    %v357 = vunpack.c.l.b16 %v36
    %v358 = vunpack.c.l.b16 %v37
    %v359 = vunpack.c.l.b16 %v38
    %v360 = vunpack.c.l.b16 %v39
    %v361 = vunpack.c.l.b16 %v40
    %v362 = vunpack.c.l.b16 %v41
    %v363 = vunpack.c.l.b16 %v42
    %v364 = vunpack.c.l.b16 %v43
    %v365 = vunpack.c.l.b16 %v44
    %v366 = vunpack.c.l.b16 %v45
    %v367 = vunpack.c.l.b16 %v46
    %v368 = vunpack.c.l.b16 %v47
    %v369 = vunpack.c.l.b16 %v48
    %v370 = vunpack.c.l.b16 %v49
    %v371 = vunpack.c.l.b16 %v50
    %v372 = vunpack.c.l.b16 %v51
    %v373 = vunpack.c.l.b16 %v52
    %v374 = vunpack.c.l.b16 %v53
    %v375 = vunpack.c.l.b16 %v54
    %v376 = vunpack.c.l.b16 %v55
    %v377 = vunpack.c.l.b16 %v56
    %v378 = vunpack.c.l.b16 %v57
    %v379 = vunpack.c.l.b16 %v58
    %v380 = vunpack.c.l.b16 %v59
    %v381 = vunpack.c.l.b16 %v60
    %v382 = vunpack.c.l.b16 %v61
    %v383 = vunpack.c.l.b16 %v62
    %v384 = vunpack.c.l.b16 %v63
    %v385 = vunpack.c.l.b16 %v64
    %v386 = vunpack.c.l.b16 %v65
    %v387 = vunpack.c.l.b16 %v66
    %v388 = vunpack.c.l.b16 %v67
    %v389 = vunpack.c.l.b16 %v68
    %v390 = vunpack.c.l.b16 %v69
    %v391 = vunpack.c.l.b16 %v70
    %v392 = vunpack.c.l.b16 %v71
    %v393 = vunpack.c.l.b16 %v72
    %v394 = vunpack.c.l.b16 %v73
    %v395 = vunpack.c.l.b16 %v74
    %v396 = vunpack.c.l.b16 %v75
    %v397 = vunpack.c.l.b16 %v76
    %v398 = vunpack.c.l.b16 %v77
    %v399 = vunpack.c.l.b16 %v78
    %v400 = vunpack.c.l.b16 %v79
    %v401 = vunpack.c.l.b16 %v80
    %v402 = vunpack.c.l.b16 %v81
    %v403 = vunpack.c.l.b16 %v82
    %v404 = vunpack.c.l.b16 %v83
    %v405 = vunpack.c.l.b16 %v84
    %v406 = vunpack.c.l.b16 %v85
    %v407 = vunpack.c.l.b16 %v86
    %v408 = vunpack.c.l.b16 %v87
    %v409 = vunpack.c.l.b16 %v88
    %v410 = vunpack.c.l.b16 %v89
    %v411 = vunpack.c.l.b16 %v90
    %v412 = vunpack.c.l.b16 %v91
    %v413 = vunpack.c.l.b16 %v92
    %v414 = vunpack.c.l.b16 %v93
    %v415 = vunpack.c.l.b16 %v94
    %v416 = vunpack.c.l.b16 %v95
    %v417 = vunpack.c.l.b16 %v96
    %v418 = vunpack.c.l.b16 %v97
    %v419 = vunpack.c.l.b16 %v98
    %v420 = vunpack.c.l.b16 %v99
    %v421 = vunpack.c.l.b16 %v100
    %v422 = vunpack.c.l.b16 %v101
    %v423 = vunpack.c.l.b16 %v102
    %v424 = vunpack.c.l.b16 %v103
    %v425 = vunpack.c.l.b16 %v104
    %v426 = vunpack.c.l.b16 %v105
    %v427 = vunpack.c.l.b16 %v106
    %v428 = vunpack.c.l.b16 %v107
    %v429 = vunpack.c.l.b16 %v108
    %v430 = vunpack.c.l.b16 %v109
    %v431 = vunpack.c.l.b16 %v110
    %v432 = vunpack.c.l.b16 %v111
    %v433 = vunpack.c.l.b16 %v112
    %v434 = vunpack.c.l.b16 %v113
    %v435 = vunpack.c.l.b16 %v114
    %v436 = vunpack.c.l.b16 %v115
    %v437 = vunpack.c.l.b16 %v116
    %v438 = vunpack.c.l.b16 %v117
    %v439 = vunpack.c.l.b16 %v118
    %v440 = vunpack.c.l.b16 %v119
    %v441 = vunpack.c.l.b16 %v120
    %v442 = vunpack.c.l.b16 %v121
    %v443 = vunpack.c.l.b16 %v122
    %v444 = vunpack.c.l.b16 %v123
    %v445 = vunpack.c.l.b16 %v124
    %v446 = vunpack.c.l.b16 %v125
    %v447 = vunpack.c.l.b16 %v126
    %v448 = vunpack.c.l.b16 %v127
    %v449 = vunpack.c.l.b16 %v128
    %v450 = vunpack.c.l.b16 %v129
    %v451 = vunpack.c.l.b16 %v130
    %v452 = vunpack.c.l.b16 %v131
    %v453 = vunpack.c.l.b16 %v132
    %v454 = vunpack.c.l.b16 %v133
    %v455 = vunpack.c.l.b16 %v134
    %v456 = vunpack.c.l.b16 %v135
    %v457 = vunpack.c.l.b16 %v136
    %v458 = vunpack.c.l.b16 %v137
    %v459 = vunpack.c.l.b16 %v138
    %v460 = vunpack.c.l.b16 %v139
    %v461 = vunpack.c.l.b16 %v140
    %v462 = vunpack.c.l.b16 %v141
    %v463 = vunpack.c.l.b16 %v142
    %v464 = vunpack.c.l.b16 %v143
    %v465 = vunpack.c.l.b16 %v144
    %v466 = vunpack.c.l.b16 %v145
    %v467 = vunpack.c.l.b16 %v146
    %v468 = vunpack.c.l.b16 %v147
    %v469 = vunpack.c.l.b16 %v148
    %v470 = vunpack.c.l.b16 %v149
    %v471 = vunpack.c.l.b16 %v150
    %v472 = vpack.c.b16 %v345, %v344
    %v473 = vpack.c.b16 %v347, %v346
    %v474 = vpack.c.b16 %v349, %v348
    %v475 = vpack.c.b16 %v351, %v350
    %v476 = vpack.c.b16 %v353, %v352
    %v477 = vpack.c.b16 %v355, %v354
    %v478 = vpack.c.b16 %v357, %v356
    %v479 = vpack.c.b16 %v359, %v358
    %v480 = vpack.c.b16 %v361, %v360
    %v481 = vpack.c.b16 %v363, %v362
    %v482 = vpack.c.b16 %v365, %v364
    %v483 = vpack.c.b16 %v367, %v366
    %v484 = vpack.c.b16 %v369, %v368
    %v485 = vpack.c.b16 %v371, %v370
    %v486 = vpack.c.b16 %v373, %v372
    %v487 = vpack.c.b16 %v375, %v374
    %v488 = vpack.c.b16 %v377, %v376
    %v489 = vpack.c.b16 %v379, %v378
    %v490 = vpack.c.b16 %v381, %v380
    %v491 = vpack.c.b16 %v383, %v382
    %v492 = vpack.c.b16 %v385, %v384
    %v493 = vpack.c.b16 %v387, %v386
    %v494 = vpack.c.b16 %v389, %v388
    %v495 = vpack.c.b16 %v391, %v390
    %v496 = vpack.c.b16 %v393, %v392
    %v497 = vpack.c.b16 %v395, %v394
    %v498 = vpack.c.b16 %v397, %v396
    %v499 = vpack.c.b16 %v399, %v398
    %v500 = vpack.c.b16 %v401, %v400
    %v501 = vpack.c.b16 %v403, %v402
    %v502 = vpack.c.b16 %v405, %v404
    %v503 = vpack.c.b16 %v407, %v406
    %v504 = vpack.c.b16 %v409, %v408
    %v505 = vpack.c.b16 %v411, %v410
    %v506 = vpack.c.b16 %v413, %v412
    %v507 = vpack.c.b16 %v415, %v414
    %v508 = vpack.c.b16 %v417, %v416
    %v509 = vpack.c.b16 %v419, %v418
    %v510 = vpack.c.b16 %v421, %v420
    %v511 = vpack.c.b16 %v423, %v422
    %v512 = vpack.c.b16 %v425, %v424
    %v513 = vpack.c.b16 %v427, %v426
    %v514 = vpack.c.b16 %v429, %v428
    %v515 = vpack.c.b16 %v431, %v430
    %v516 = vpack.c.b16 %v433, %v432
    %v517 = vpack.c.b16 %v435, %v434
    %v518 = vpack.c.b16 %v437, %v436
    %v519 = vpack.c.b16 %v439, %v438
    %v520 = vpack.c.b16 %v441, %v440
    %v521 = vpack.c.b16 %v443, %v442
    %v522 = vpack.c.b16 %v445, %v444
    %v523 = vpack.c.b16 %v447, %v446
    %v524 = vpack.c.b16 %v449, %v448
    %v525 = vpack.c.b16 %v451, %v450
    %v526 = vpack.c.b16 %v453, %v452
    %v527 = vpack.c.b16 %v455, %v454
    %v528 = vpack.c.b16 %v457, %v456
    %v529 = vpack.c.b16 %v459, %v458
    %v530 = vpack.c.b16 %v461, %v460
    %v531 = vpack.c.b16 %v463, %v462
    %v532 = vpack.c.b16 %v465, %v464
    %v533 = vpack.c.b16 %v467, %v466
    %v534 = vpack.c.b16 %v469, %v468
    %v535 = vpack.c.b16 %v471, %v470
    %600 = vmatprep.subr.bf16.mxu0 0
    %601 = vmatpush1.bf16.msra.mxu0 %v472
    %602 = vmatprep.subr.bf16.mxu0 0
    %603 = vmatpush1.bf16.msra.mxu0 %v473
    %604 = vmatprep.subr.bf16.mxu0 0
    %605 = vmatpush1.bf16.msra.mxu0 %v474
    %606 = vmatprep.subr.bf16.mxu0 0
    %607 = vmatpush1.bf16.msra.mxu0 %v475
    %608 = vmatprep.subr.bf16.mxu0 0
    %609 = vmatpush1.bf16.msra.mxu0 %v476
    %610 = vmatprep.subr.bf16.mxu0 0
    %611 = vmatpush1.bf16.msra.mxu0 %v477
    %612 = vmatprep.subr.bf16.mxu0 0
    %613 = vmatpush1.bf16.msra.mxu0 %v478
    %614 = vmatprep.subr.bf16.mxu0 0
    %615 = vmatpush1.bf16.msra.mxu0 %v479
    %616 = vmatprep.subr.bf16.mxu0 0
    %617 = vmatpush1.bf16.msra.mxu0 %v480
    %618 = vmatprep.subr.bf16.mxu0 0
    %619 = vmatpush1.bf16.msra.mxu0 %v481
    %620 = vmatprep.subr.bf16.mxu0 0
    %621 = vmatpush1.bf16.msra.mxu0 %v482
    %622 = vmatprep.subr.bf16.mxu0 0
    %623 = vmatpush1.bf16.msra.mxu0 %v483
    %624 = vmatprep.subr.bf16.mxu0 0
    %625 = vmatpush1.bf16.msra.mxu0 %v484
    %626 = vmatprep.subr.bf16.mxu0 0
    %627 = vmatpush1.bf16.msra.mxu0 %v485
    %628 = vmatprep.subr.bf16.mxu0 0
    %629 = vmatpush1.bf16.msra.mxu0 %v486
    %630 = vmatprep.subr.bf16.mxu0 0
    %631 = vmatpush1.bf16.msra.mxu0 %v487
    %632 = vmatprep.mubr.bf16.mxu0 %v196
    %633 = vmatmul.mubr.bf16.gmra.mrb[0].mxu0 %v182
    %v634 = vpop.f32.mrb[0].mxu0
    %v635 = vadd.f32 %v156, %v634
    %v636 = vpop.f32.mrb[0].mxu0
    %v637 = vpop.f32.mrb[0].mxu0
    %v638 = vpop.f32.mrb[0].mxu0
    %639 = vdwg.mxu0
    %640 = vmatprep.subr.bf16.mxu0 0
    %641 = vmatpush1.bf16.msra.mxu0 %v488
    %642 = vmatprep.subr.bf16.mxu0 0
    %643 = vmatpush1.bf16.msra.mxu0 %v489
    %644 = vmatprep.subr.bf16.mxu0 0
    %645 = vmatpush1.bf16.msra.mxu0 %v490
    %646 = vmatprep.subr.bf16.mxu0 0
    %647 = vmatpush1.bf16.msra.mxu0 %v491
    %648 = vmatprep.subr.bf16.mxu0 0
    %649 = vmatpush1.bf16.msra.mxu0 %v492
    %650 = vmatprep.subr.bf16.mxu0 0
    %651 = vmatpush1.bf16.msra.mxu0 %v493
    %652 = vmatprep.subr.bf16.mxu0 0
    %653 = vmatpush1.bf16.msra.mxu0 %v494
    %654 = vmatprep.subr.bf16.mxu0 0
    %655 = vmatpush1.bf16.msra.mxu0 %v495
    %656 = vmatprep.subr.bf16.mxu0 0
    %657 = vmatpush1.bf16.msra.mxu0 %v496
    %658 = vmatprep.subr.bf16.mxu0 0
    %659 = vmatpush1.bf16.msra.mxu0 %v497
    %660 = vmatprep.subr.bf16.mxu0 0
    %661 = vmatpush1.bf16.msra.mxu0 %v498
    %662 = vmatprep.subr.bf16.mxu0 0
    %663 = vmatpush1.bf16.msra.mxu0 %v499
    %664 = vmatprep.subr.bf16.mxu0 0
    %665 = vmatpush1.bf16.msra.mxu0 %v500
    %666 = vmatprep.subr.bf16.mxu0 0
    %667 = vmatpush1.bf16.msra.mxu0 %v501
    %668 = vmatprep.subr.bf16.mxu0 0
    %669 = vmatpush1.bf16.msra.mxu0 %v502
    %670 = vmatprep.subr.bf16.mxu0 0
    %671 = vmatpush1.bf16.msra.mxu0 %v503
    %672 = vmatprep.mubr.bf16.mxu0 %v206
    %673 = vmatmul.mubr.bf16.gmra.mrb[0].mxu0 %v204
    %v674 = vpop.f32.mrb[0].mxu0
    %v675 = vadd.f32 %v635, %v674
    %v676 = vpop.f32.mrb[0].mxu0
    %v677 = vpop.f32.mrb[0].mxu0
    %v678 = vpop.f32.mrb[0].mxu0
    %679 = vdwg.mxu0
    %680 = vmatprep.subr.bf16.mxu0 0
    %681 = vmatpush1.bf16.msra.mxu0 %v504
    %682 = vmatprep.subr.bf16.mxu0 0
    %683 = vmatpush1.bf16.msra.mxu0 %v505
    %684 = vmatprep.subr.bf16.mxu0 0
    %685 = vmatpush1.bf16.msra.mxu0 %v506
    %686 = vmatprep.subr.bf16.mxu0 0
    %687 = vmatpush1.bf16.msra.mxu0 %v507
    %688 = vmatprep.subr.bf16.mxu0 0
    %689 = vmatpush1.bf16.msra.mxu0 %v508
    %690 = vmatprep.subr.bf16.mxu0 0
    %691 = vmatpush1.bf16.msra.mxu0 %v509
    %692 = vmatprep.subr.bf16.mxu0 0
    %693 = vmatpush1.bf16.msra.mxu0 %v510
    %694 = vmatprep.subr.bf16.mxu0 0
    %695 = vmatpush1.bf16.msra.mxu0 %v511
    %696 = vmatprep.subr.bf16.mxu0 0
    %697 = vmatpush1.bf16.msra.mxu0 %v512
    %698 = vmatprep.subr.bf16.mxu0 0
    %699 = vmatpush1.bf16.msra.mxu0 %v513
    %700 = vmatprep.subr.bf16.mxu0 0
    %701 = vmatpush1.bf16.msra.mxu0 %v514
    %702 = vmatprep.subr.bf16.mxu0 0
    %703 = vmatpush1.bf16.msra.mxu0 %v515
    %704 = vmatprep.subr.bf16.mxu0 0
    %705 = vmatpush1.bf16.msra.mxu0 %v516
    %706 = vmatprep.subr.bf16.mxu0 0
    %707 = vmatpush1.bf16.msra.mxu0 %v517
    %708 = vmatprep.subr.bf16.mxu0 0
    %709 = vmatpush1.bf16.msra.mxu0 %v518
    %710 = vmatprep.subr.bf16.mxu0 0
    %711 = vmatpush1.bf16.msra.mxu0 %v519
    %712 = vmatprep.mubr.bf16.mxu0 %v203
    %713 = vmatmul.mubr.bf16.gmra.mrb[0].mxu0 %v189
    %v714 = vpop.f32.mrb[0].mxu0
    %v715 = vadd.f32 %v675, %v714
    %v716 = vpop.f32.mrb[0].mxu0
    %v717 = vpop.f32.mrb[0].mxu0
    %v718 = vpop.f32.mrb[0].mxu0
    %719 = vdwg.mxu0
    %720 = vmatprep.subr.bf16.mxu0 0
    %721 = vmatpush1.bf16.msra.mxu0 %v520
    %722 = vmatprep.subr.bf16.mxu0 0
    %723 = vmatpush1.bf16.msra.mxu0 %v521
    %724 = vmatprep.subr.bf16.mxu0 0
    %725 = vmatpush1.bf16.msra.mxu0 %v522
    %726 = vmatprep.subr.bf16.mxu0 0
    %727 = vmatpush1.bf16.msra.mxu0 %v523
    %728 = vmatprep.subr.bf16.mxu0 0
    %729 = vmatpush1.bf16.msra.mxu0 %v524
    %730 = vmatprep.subr.bf16.mxu0 0
    %731 = vmatpush1.bf16.msra.mxu0 %v525
    %732 = vmatprep.subr.bf16.mxu0 0
    %733 = vmatpush1.bf16.msra.mxu0 %v526
    %734 = vmatprep.subr.bf16.mxu0 0
    %735 = vmatpush1.bf16.msra.mxu0 %v527
    %736 = vmatprep.subr.bf16.mxu0 0
    %737 = vmatpush1.bf16.msra.mxu0 %v528
    %738 = vmatprep.subr.bf16.mxu0 0
    %739 = vmatpush1.bf16.msra.mxu0 %v529
    %740 = vmatprep.subr.bf16.mxu0 0
    %741 = vmatpush1.bf16.msra.mxu0 %v530
    %742 = vmatprep.subr.bf16.mxu0 0
    %743 = vmatpush1.bf16.msra.mxu0 %v531
    %744 = vmatprep.subr.bf16.mxu0 0
    %745 = vmatpush1.bf16.msra.mxu0 %v532
    %746 = vmatprep.subr.bf16.mxu0 0
    %747 = vmatpush1.bf16.msra.mxu0 %v533
    %748 = vmatprep.subr.bf16.mxu0 0
    %749 = vmatpush1.bf16.msra.mxu0 %v534
    %750 = vmatprep.subr.bf16.mxu0 0
    %751 = vmatpush1.bf16.msra.mxu0 %v535
    %752 = vmatprep.mubr.bf16.mxu0 %v207
    %753 = vmatmul.mubr.bf16.gmra.mrb[0].mxu0 %v205
    %v754 = vpop.f32.mrb[0].mxu0
    %v755 = vadd.f32 %v715, %v754
    %v756 = vpop.f32.mrb[0].mxu0
    %v757 = vpop.f32.mrb[0].mxu0
    %v758 = vpop.f32.mrb[0].mxu0
    %759 = vdwg.mxu0
    %v760 = vmax.f32 %v755, 0.0
    %v761 = vpack.c.bf16 %v760, %v760
    %v762 = vld [vmem:[%s3] sm:$0xf]
    %v763 = vld [vmem:[%s3 + $0x4] sm:$0xf]
    %v764 = vld [vmem:[%s3 + $0x8] sm:$0xf]
    %v765 = vld [vmem:[%s3 + $0xc] sm:$0xf]
    %v766 = vld [vmem:[%s3 + $0x10] sm:$0xf]
    %v767 = vld [vmem:[%s3 + $0x14] sm:$0xf]
    %v768 = vld [vmem:[%s3 + $0x18] sm:$0xf]
    %v769 = vld [vmem:[%s3 + $0x1c] sm:$0xf]
    %v770 = vld [vmem:[%s3 + $0x20] sm:$0xf]
    %v771 = vld [vmem:[%s3 + $0x24] sm:$0xf]
    %v772 = vld [vmem:[%s3 + $0x28] sm:$0xf]
    %v773 = vld [vmem:[%s3 + $0x2c] sm:$0xf]
    %v774 = vld [vmem:[%s3 + $0x30] sm:$0xf]
    %v775 = vld [vmem:[%s3 + $0x34] sm:$0xf]
    %v776 = vld [vmem:[%s3 + $0x38] sm:$0xf]
    %v777 = vld [vmem:[%s3 + $0x3c] sm:$0xf]
    %v778 = vld [vmem:[%s4] sm:$0x1]
    %v780 = vlaneseq
    %v781 = vshrl.u32 %v780, 7
    %v782 = vsub.s32 0, %v781
    %v783 = vrot.slane %v778, %v782
    %v801 = vunpack.c.l.b16 %v762
    %v802 = vunpack.c.l.b16 %v763
    %v803 = vunpack.c.l.b16 %v764
    %v804 = vunpack.c.l.b16 %v765
    %v805 = vunpack.c.l.b16 %v766
    %v806 = vunpack.c.l.b16 %v767
    %v807 = vunpack.c.l.b16 %v768
    %v808 = vunpack.c.l.b16 %v769
    %v809 = vunpack.c.l.b16 %v770
    %v810 = vunpack.c.l.b16 %v771
    %v811 = vunpack.c.l.b16 %v772
    %v812 = vunpack.c.l.b16 %v773
    %v813 = vunpack.c.l.b16 %v774
    %v814 = vunpack.c.l.b16 %v775
    %v815 = vunpack.c.l.b16 %v776
    %v816 = vunpack.c.l.b16 %v777
    %v817 = vpack.c.b16 %v802, %v801
    %v818 = vpack.c.b16 %v804, %v803
    %v819 = vpack.c.b16 %v806, %v805
    %v820 = vpack.c.b16 %v808, %v807
    %v821 = vpack.c.b16 %v810, %v809
    %v822 = vpack.c.b16 %v812, %v811
    %v823 = vpack.c.b16 %v814, %v813
    %v824 = vpack.c.b16 %v816, %v815
    %833 = vmatprep.subr.bf16.mxu0 0
    %834 = vmatpush1.bf16.msra.mxu0 %v817
    %835 = vmatprep.subr.bf16.mxu0 0
    %836 = vmatpush1.bf16.msra.mxu0 %v818
    %837 = vmatprep.subr.bf16.mxu0 0
    %838 = vmatpush1.bf16.msra.mxu0 %v819
    %839 = vmatprep.subr.bf16.mxu0 0
    %840 = vmatpush1.bf16.msra.mxu0 %v820
    %841 = vmatprep.subr.bf16.mxu0 0
    %842 = vmatpush1.bf16.msra.mxu0 %v821
    %843 = vmatprep.subr.bf16.mxu0 0
    %844 = vmatpush1.bf16.msra.mxu0 %v822
    %845 = vmatprep.subr.bf16.mxu0 0
    %846 = vmatpush1.bf16.msra.mxu0 %v823
    %847 = vmatprep.subr.bf16.mxu0 0
    %848 = vmatpush1.bf16.msra.mxu0 %v824
    %849 = vmatprep.subr.bf16.mxu0 0
    %850 = vmatpush1.bf16.msra.mxu0 0
    %851 = vmatprep.subr.bf16.mxu0 0
    %852 = vmatpush1.bf16.msra.mxu0 0
    %853 = vmatprep.subr.bf16.mxu0 0
    %854 = vmatpush1.bf16.msra.mxu0 0
    %855 = vmatprep.subr.bf16.mxu0 0
    %856 = vmatpush1.bf16.msra.mxu0 0
    %857 = vmatprep.subr.bf16.mxu0 0
    %858 = vmatpush1.bf16.msra.mxu0 0
    %859 = vmatprep.subr.bf16.mxu0 0
    %860 = vmatpush1.bf16.msra.mxu0 0
    %861 = vmatprep.subr.bf16.mxu0 0
    %862 = vmatpush1.bf16.msra.mxu0 0
    %863 = vmatprep.subr.bf16.mxu0 0
    %864 = vmatpush1.bf16.msra.mxu0 0
    %865 = vmatprep.mubr.bf16.mxu0 0
    %866 = vmatmul.mubr.bf16.gmra.mrb[0].mxu0 %v761
    %v867 = vpop.f32.mrb[0].mxu0
    %v868 = vadd.f32 %v783, %v867
    %v869 = vpop.f32.mrb[0].mxu0
    %v870 = vpop.f32.mrb[0].mxu0
    %v871 = vpop.f32.mrb[0].mxu0
    %872 = vdwg.mxu0
    %v873 = vmul.f32 %v868, %v868
    %vm874 = vcmask 517120
    %v875 = vsel %vm874, %v873, 0.0
    %876 = vadd.xlane.f32.xlu0 %v875
    %v877 = vpop.xlane.xlu0 %876
    %v878 = vadd.f32 %v877, 1e-12
    %v879 = vrsqrt.pop %v878
    %v880 = vmul.f32 %v868, %v879
    %881 = vst.msk [vmem:[#allocation2] sm:$0x3] %vm874, %v880
    // Predicated region
    $region22: #{encoder_s_forward.11} parent=1 // pred_check
      _
    $region23: #{encoder_s_forward.11} parent=1 // pred_check_branch
      %883 = sbr.rel (0) target = $region25
    $region24: #{encoder_s_forward.11} parent=1 // pred_region
      %s885 = ssub.s32 32, 32
      %886 = vsyncadd [#allocation3], %s885
      %s888 = sshll.u32 [#allocation2], 4
      %s889 = int_to_ptr.vmem [resolvable:$true] %s888
      %891 = dma.vmem_to_hbm [thread:$0]  %s889, 32, %s5, [#allocation3]
    $region25: #{encoder_s_forward.11} parent=1 // pred_fallthru
      _
    // Predicated region
    $region26: #{encoder_s_forward.11} parent=1 // pred_check
      _
    $region27: #{encoder_s_forward.11} parent=1 // pred_check_branch
      %893 = sbr.rel (0) target = $region29
    $region28: #{encoder_s_forward.11} parent=1 // pred_region
      %894 = dma.done [#allocation3], 32
    $region29: #{encoder_s_forward.11} parent=1 // pred_fallthru
      _
    %895 = vsyncpa [#allocation3], 1

</llo_original>
